<compile_context>
chip_gen: v7x
topology: tpu7x:2x2x1
jax: 0.10.0
libtpu: 0.0.40
codegen_flags: <defaults>
</compile_context>

<pallas_src>
import functools

import jax
import jax.numpy as jnp
from jax import lax
from jax.experimental import pallas as pl
from jax.experimental.pallas import tpu as pltpu


def _erf_f32(x):
    # Eigen/XLA float32 rational approximation of erf (matches lax.erf to ~1 ulp).
    x = jnp.clip(x, -4.0, 4.0)
    x2 = x * x
    alpha = (-2.72614225801306e-10, 2.77068142495902e-08, -2.10102402082508e-06,
             -5.69250639462346e-05, -7.34990630326855e-04, -2.95459980854025e-03,
             -1.60960333262415e-02)
    beta = (-1.45660718464996e-05, -2.13374055278905e-04, -1.68282697438203e-03,
            -7.37332916720468e-03, -1.42647390514189e-02)
    p = jnp.full_like(x2, alpha[0])
    for a in alpha[1:]:
        p = p * x2 + a
    p = p * x
    q = jnp.full_like(x2, beta[0])
    for b in beta[1:]:
        q = q * x2 + b
    # p / q with the divide pushed to the EUP (approx reciprocal, ~1e-4 rel err).
    return p * pl.reciprocal(q, approx=True)


def _gelu_exact(x):
    # torch.nn.GELU() default: 0.5 * x * (1 + erf(x / sqrt(2)))
    return 0.5 * x * (1.0 + _erf_f32(x * 0.7071067811865476))


def _layernorm(x, gamma, beta, eps=1e-5):
    mu = jnp.mean(x, axis=-1, keepdims=True)
    var = jnp.mean((x - mu) ** 2, axis=-1, keepdims=True)
    return (x - mu) * lax.rsqrt(var + eps) * gamma + beta


def block_kernel(x_ref, g1_ref, b1_ref, wqkv_ref, wproj_ref, bproj_ref,
                 g2_ref, b2_ref, w1_ref, bb1_ref, w2_ref, bb2_ref, o_ref,
                 *, num_heads):
    f32, bf16 = jnp.float32, jnp.bfloat16
    Bt, N, C = x_ref.shape
    M = Bt * N
    hd = C // num_heads

    # Flatten the batch tile into one row slab so every matmul sees M = Bt*N rows.
    x = x_ref[...].astype(f32).reshape(M, C)

    # ---------------- attention branch ----------------
    xn = _layernorm(x, g1_ref[...], b1_ref[...])                          # (M, C) f32
    # Softmax scale is pre-folded into the q columns of wqkv (host side).
    # Cast to bf16 immediately: q/k/v are only ever consumed as bf16.
    qkv = jnp.dot(xn.astype(bf16), wqkv_ref[...],
                  preferred_element_type=f32).astype(bf16)                # (M, 3C) bf16

    head_outs = []
    for h in range(num_heads):              # static loop over heads (small)
        qh = qkv[:, h * hd:(h + 1) * hd].reshape(Bt, N, hd)               # bf16
        kh = qkv[:, C + h * hd:C + (h + 1) * hd].reshape(Bt, N, hd)
        vh = qkv[:, 2 * C + h * hd:2 * C + (h + 1) * hd].reshape(Bt, N, hd)
        # Batched (over Bt) q @ k^T — no transpose materialized.
        s = jnp.einsum('bqd,bkd->bqk', qh, kh,
                       preferred_element_type=f32)                        # (Bt, N, N) f32
        s = s - jnp.max(s, axis=-1, keepdims=True)
        e = jnp.exp(s)
        p = e * pl.reciprocal(jnp.sum(e, axis=-1, keepdims=True), approx=True)
        oh = jnp.einsum('bqk,bkd->bqd', p.astype(bf16), vh,
                        preferred_element_type=f32)                       # (Bt, N, hd) f32
        head_outs.append(oh.astype(bf16).reshape(M, hd))

    # Lane-concatenate head outputs, then ONE K=C output-projection matmul.
    attn = jnp.concatenate(head_outs, axis=-1)                            # (M, C) bf16
    proj = jnp.dot(attn, wproj_ref[...], preferred_element_type=f32) + bproj_ref[...]
    x1 = x + proj                            # residual 1 (drop_path is identity)

    # ---------------- MLP branch ----------------
    xn2 = _layernorm(x1, g2_ref[...], b2_ref[...])
    hid = jnp.dot(xn2.astype(bf16), w1_ref[...],
                  preferred_element_type=f32) + bb1_ref[...]
    hid = _gelu_exact(hid)
    mlp = jnp.dot(hid.astype(bf16), w2_ref[...],
                  preferred_element_type=f32) + bb2_ref[...]

    o_ref[...] = (x1 + mlp).reshape(Bt, N, C).astype(o_ref.dtype)         # residual 2


def _pick_bt(B, N, C):
    """Largest batch tile that (a) keeps >= 2 grid steps when B >= 2 (megacore),
    (b) keeps double-buffered f32 x/out blocks under ~8 MiB; prefer the smallest
    tile already presenting >= 256 matmul rows."""
    budget = 8 << 20
    best = 1
    for d in range(1, B + 1):
        if B % d:
            continue
        if 4 * (2 * 2 * d * N * C) > budget:      # f32 x + out, double buffered
            break
        if B >= 2 and (B // d) < 2:               # keep >= 2 steps for 2 TCs
            break
        best = d
        if d * N >= 256:
            break
    return best


def _vmem_limit_bytes(Bt, N, C, H):
    M = Bt * N
    w = 2 * 2 * (C * 3 * C + C * C + C * H + H * C)   # bf16 weights, double-buffered
    vec = 2 * 4 * (6 * C + H)                         # f32 LN/bias vectors
    io = 2 * 4 * (2 * M * C)                          # f32 x + out blocks, double-buffered
    inter = (4 + 2) * (3 * M * C) \
        + 2 * 4 * (Bt * N * N) \
        + 2 * 4 * (M * H) \
        + 4 * 4 * (M * C)                             # qkv, scores, hidden, misc f32
    est = w + vec + io + inter
    # 2x headroom; 8 MiB floor for safety, 48 MiB cap so v7x (64 MiB VMEM) is never pinned.
    return int(min(max(2 * est, 8 << 20), 48 << 20))


@functools.lru_cache(maxsize=None)
def _build_call(B, N, C, H, num_heads, out_dtype_name):
    Bt = _pick_bt(B, N, C)
    kernel = functools.partial(block_kernel, num_heads=num_heads)

    def rep(shape):
        nd = len(shape)
        return pl.BlockSpec(shape, lambda b, _nd=nd: (0,) * _nd)

    in_specs = [
        pl.BlockSpec((Bt, N, C), lambda b: (b, 0, 0)),     # x batch tile
        rep((1, C)), rep((1, C)),                          # ln1 gamma/beta (f32)
        rep((C, 3 * C)),                                   # qkv weight (bf16, scale folded into q cols)
        rep((C, C)), rep((1, C)),                          # proj weight (bf16) / bias (f32)
        rep((1, C)), rep((1, C)),                          # ln2 gamma/beta (f32)
        rep((C, H)), rep((1, H)),                          # fc1 weight (bf16) / bias (f32)
        rep((H, C)), rep((1, C)),                          # fc2 weight (bf16) / bias (f32)
    ]
    call = pl.pallas_call(
        kernel,
        out_shape=jax.ShapeDtypeStruct((B, N, C), jnp.dtype(out_dtype_name)),
        grid=(B // Bt,),
        in_specs=in_specs,
        out_specs=pl.BlockSpec((Bt, N, C), lambda b: (b, 0, 0)),
        compiler_params=pltpu.CompilerParams(
            dimension_semantics=("parallel",),
            vmem_limit_bytes=_vmem_limit_bytes(Bt, N, C, H)),
    )
    return jax.jit(call)


def block_forward(x, params, num_heads):
    B, N, C = x.shape
    H = params["w1"].shape[1]
    scale = (C // num_heads) ** -0.5
    f32, bf16 = jnp.float32, jnp.bfloat16
    # Fold the softmax scale into the q columns of the QKV weight (zero in-kernel cost).
    wqkv = params["wqkv"].astype(f32).at[:, :C].multiply(scale).astype(bf16)
    args = (
        x,
        params["g1"].astype(f32), params["b1"].astype(f32),
        wqkv,
        params["wproj"].astype(bf16), params["bproj"].astype(f32),
        params["g2"].astype(f32), params["b2"].astype(f32),
        params["w1"].astype(bf16), params["bb1"].astype(f32),
        params["w2"].astype(bf16), params["bb2"].astype(f32),
    )
    return _build_call(B, N, C, H, num_heads, str(x.dtype))(*args)


def block_ref(x, p, num_heads, matmul_dtype=jnp.float32):
    """Pure-JAX reference matching the PyTorch Block forward (eval mode, drop=0).

    matmul_dtype=bfloat16 mirrors the kernel's mixed precision (bf16 matmul
    inputs, f32 accumulation) for a tight numerical comparison.
    """
    B, N, C = x.shape
    hd = C // num_heads
    scale = hd ** -0.5
    f32 = jnp.float32
    c = lambda t: t.astype(matmul_dtype)

    def ln(t, g, b):
        mu = t.mean(-1, keepdims=True)
        var = ((t - mu) ** 2).mean(-1, keepdims=True)
        return (t - mu) / jnp.sqrt(var + 1e-5) * g + b

    xn = ln(x, p["g1"], p["b1"])
    qkv = jnp.dot(c(xn), c(p["wqkv"]), preferred_element_type=f32)
    qkv = qkv.reshape(B, N, 3, num_heads, hd).transpose(2, 0, 3, 1, 4)
    q, k, v = qkv[0], qkv[1], qkv[2]
    attn = jnp.einsum("bhnd,bhmd->bhnm", c(q), c(k),
                      preferred_element_type=f32) * scale
    attn = jax.nn.softmax(attn, axis=-1)
    o = jnp.einsum("bhnm,bhmd->bhnd", c(attn), c(v), preferred_element_type=f32)
    o = o.transpose(0, 2, 1, 3).reshape(B, N, C)
    o = jnp.dot(c(o), c(p["wproj"]), preferred_element_type=f32) + p["bproj"]
    x = x + o
    xn2 = ln(x, p["g2"], p["b2"])
    h = jax.nn.gelu(jnp.dot(c(xn2), c(p["w1"]), preferred_element_type=f32) + p["bb1"],
                    approximate=False)
    return x + jnp.dot(c(h), c(p["w2"]), preferred_element_type=f32) + p["bb2"]


if __name__ == "__main__":
    # Lane-dense small demo: C % 128 == 0, N % 8 == 0.  Bt is auto-picked so the
    # grid keeps 2 parallel steps (both v7x TCs) with Bt*N rows per matmul.
    B, N, C = 8, 32, 128
    num_heads = 4
    mlp_ratio = 4.0
    H = int(C * mlp_ratio)

    key = jax.random.PRNGKey(0)
    ks = jax.random.split(key, 12)
    params = {
        "g1": 1.0 + 0.1 * jax.random.normal(ks[0], (1, C), jnp.float32),
        "b1": 0.1 * jax.random.normal(ks[1], (1, C), jnp.float32),
        "wqkv": 0.05 * jax.random.normal(ks[2], (C, 3 * C), jnp.float32),
        "wproj": 0.05 * jax.random.normal(ks[3], (C, C), jnp.float32),
        "bproj": 0.05 * jax.random.normal(ks[4], (1, C), jnp.float32),
        "g2": 1.0 + 0.1 * jax.random.normal(ks[5], (1, C), jnp.float32),
        "b2": 0.1 * jax.random.normal(ks[6], (1, C), jnp.float32),
        "w1": 0.05 * jax.random.normal(ks[7], (C, H), jnp.float32),
        "bb1": 0.05 * jax.random.normal(ks[8], (1, H), jnp.float32),
        "w2": 0.05 * jax.random.normal(ks[9], (H, C), jnp.float32),
        "bb2": 0.05 * jax.random.normal(ks[10], (1, C), jnp.float32),
    }
    x = jax.random.normal(ks[11], (B, N, C), jnp.float32)

    out = jax.block_until_ready(block_forward(x, params, num_heads))

    # Tight check vs a reference mirroring the kernel's bf16-input / f32-acc matmuls.
    ref_bf16 = block_ref(x, params, num_heads, matmul_dtype=jnp.bfloat16)
    err_b = float(jnp.max(jnp.abs(out - ref_bf16)))
    assert jnp.allclose(out, ref_bf16, rtol=1e-2, atol=1e-2), f"bf16-ref max abs err = {err_b}"

    # Looser check vs the exact-f32 PyTorch-semantics reference.
    ref_f32 = block_ref(x, params, num_heads, matmul_dtype=jnp.float32)
    err_f = float(jnp.max(jnp.abs(out - ref_f32)))
    assert jnp.allclose(out, ref_f32, rtol=5e-2, atol=5e-2), f"f32-ref max abs err = {err_f}"

    print("KERNEL_OK")
</pallas_src>

<mosaic_0001>
module attributes {stable_mosaic.version = 11 : i64} {
  func.func @block_kernel(%arg0: i32, %arg1: memref<4x32x128xf32, #tpu.memory_space<vmem>>, %arg2: memref<1x128xf32, #tpu.memory_space<vmem>>, %arg3: memref<1x128xf32, #tpu.memory_space<vmem>>, %arg4: memref<128x384xbf16, #tpu.memory_space<vmem>>, %arg5: memref<128x128xbf16, #tpu.memory_space<vmem>>, %arg6: memref<1x128xf32, #tpu.memory_space<vmem>>, %arg7: memref<1x128xf32, #tpu.memory_space<vmem>>, %arg8: memref<1x128xf32, #tpu.memory_space<vmem>>, %arg9: memref<128x512xbf16, #tpu.memory_space<vmem>>, %arg10: memref<1x512xf32, #tpu.memory_space<vmem>>, %arg11: memref<512x128xbf16, #tpu.memory_space<vmem>>, %arg12: memref<1x128xf32, #tpu.memory_space<vmem>>, %arg13: memref<4x32x128xf32, #tpu.memory_space<vmem>>) attributes {dimension_semantics = [#tpu.dimension_semantics<parallel>], iteration_bounds = array<i64: 2>, scalar_prefetch = 0 : i64, scratch_operands = 0 : i64, tpu.core_type = #tpu.core_type<tc>, window_params = [{transform_indices = @transform_0, window_bounds = array<i64: 4, 32, 128>}, {pipeline_mode = #tpu.pipeline_mode<synchronous>, transform_indices = @transform_1, window_bounds = array<i64: 1, 128>}, {pipeline_mode = #tpu.pipeline_mode<synchronous>, transform_indices = @transform_2, window_bounds = array<i64: 1, 128>}, {pipeline_mode = #tpu.pipeline_mode<synchronous>, transform_indices = @transform_3, window_bounds = array<i64: 128, 384>}, {pipeline_mode = #tpu.pipeline_mode<synchronous>, transform_indices = @transform_4, window_bounds = array<i64: 128, 128>}, {pipeline_mode = #tpu.pipeline_mode<synchronous>, transform_indices = @transform_5, window_bounds = array<i64: 1, 128>}, {pipeline_mode = #tpu.pipeline_mode<synchronous>, transform_indices = @transform_6, window_bounds = array<i64: 1, 128>}, {pipeline_mode = #tpu.pipeline_mode<synchronous>, transform_indices = @transform_7, window_bounds = array<i64: 1, 128>}, {pipeline_mode = #tpu.pipeline_mode<synchronous>, transform_indices = @transform_8, window_bounds = array<i64: 128, 512>}, {pipeline_mode = #tpu.pipeline_mode<synchronous>, transform_indices = @transform_9, window_bounds = array<i64: 1, 512>}, {pipeline_mode = #tpu.pipeline_mode<synchronous>, transform_indices = @transform_10, window_bounds = array<i64: 512, 128>}, {pipeline_mode = #tpu.pipeline_mode<synchronous>, transform_indices = @transform_11, window_bounds = array<i64: 1, 128>}, {transform_indices = @transform_12, window_bounds = array<i64: 4, 32, 128>}]} {
    %c0 = arith.constant 0 : index
    %c0_0 = arith.constant 0 : index
    %c0_1 = arith.constant 0 : index
    %0 = vector.load %arg1[%c0, %c0_0, %c0_1] : memref<4x32x128xf32, #tpu.memory_space<vmem>>, vector<4x32x128xf32>
    %1 = vector.shape_cast %0 : vector<4x32x128xf32> to vector<128x128xf32>
    %c0_2 = arith.constant 0 : index
    %c0_3 = arith.constant 0 : index
    %2 = vector.load %arg2[%c0_2, %c0_3] : memref<1x128xf32, #tpu.memory_space<vmem>>, vector<1x128xf32>
    %c0_4 = arith.constant 0 : index
    %c0_5 = arith.constant 0 : index
    %3 = vector.load %arg3[%c0_4, %c0_5] : memref<1x128xf32, #tpu.memory_space<vmem>>, vector<1x128xf32>
    %cst = arith.constant dense<0.000000e+00> : vector<128xf32>
    %4 = vector.multi_reduction <add>, %1, %cst [1] : vector<128x128xf32> to vector<128xf32>
    %5 = vector.shape_cast %4 : vector<128xf32> to vector<128x1xf32>
    %cst_6 = arith.constant 1.280000e+02 : f32
    %6 = vector.broadcast %cst_6 : f32 to vector<128x1xf32>
    %7 = arith.divf %5, %6 : vector<128x1xf32>
    %8 = vector.broadcast %7 : vector<128x1xf32> to vector<128x128xf32>
    %9 = arith.subf %1, %8 : vector<128x128xf32>
    %10 = arith.mulf %9, %9 : vector<128x128xf32>
    %cst_7 = arith.constant dense<0.000000e+00> : vector<128xf32>
    %11 = vector.multi_reduction <add>, %10, %cst_7 [1] : vector<128x128xf32> to vector<128xf32>
    %12 = vector.shape_cast %11 : vector<128xf32> to vector<128x1xf32>
    %cst_8 = arith.constant 1.280000e+02 : f32
    %13 = vector.broadcast %cst_8 : f32 to vector<128x1xf32>
    %14 = arith.divf %12, %13 : vector<128x1xf32>
    %15 = vector.broadcast %7 : vector<128x1xf32> to vector<128x128xf32>
    %16 = arith.subf %1, %15 : vector<128x128xf32>
    %cst_9 = arith.constant 9.99999974E-6 : f32
    %17 = vector.broadcast %cst_9 : f32 to vector<128x1xf32>
    %18 = arith.addf %14, %17 : vector<128x1xf32>
    %19 = math.rsqrt %18 : vector<128x1xf32>
    %20 = vector.broadcast %19 : vector<128x1xf32> to vector<128x128xf32>
    %21 = arith.mulf %16, %20 : vector<128x128xf32>
    %22 = vector.broadcast %2 : vector<1x128xf32> to vector<128x128xf32>
    %23 = arith.mulf %21, %22 : vector<128x128xf32>
    %24 = vector.broadcast %3 : vector<1x128xf32> to vector<128x128xf32>
    %25 = arith.addf %23, %24 : vector<128x128xf32>
    %26 = arith.truncf %25 : vector<128x128xf32> to vector<128x128xbf16>
    %c0_10 = arith.constant 0 : index
    %c0_11 = arith.constant 0 : index
    %27 = vector.load %arg4[%c0_10, %c0_11] : memref<128x384xbf16, #tpu.memory_space<vmem>>, vector<128x384xbf16>
    %cst_12 = arith.constant dense<0.000000e+00> : vector<128x384xf32>
    %28 = tpu.matmul %26, %27, %cst_12 {dimension_numbers = #tpu.dot_dimension_numbers<[1], [0], [0], [1], [0, 0, 1, 1], [], []>} : vector<128x128xbf16>, vector<128x384xbf16>, vector<128x384xf32> -> vector<128x384xf32>
    %29 = arith.truncf %28 : vector<128x384xf32> to vector<128x384xbf16>
    %30 = vector.extract_strided_slice %29 {offsets = [0, 0], sizes = [128, 32], strides = [1, 1]} : vector<128x384xbf16> to vector<128x32xbf16>
    %31 = vector.shape_cast %30 : vector<128x32xbf16> to vector<4x32x32xbf16>
    %32 = vector.extract_strided_slice %29 {offsets = [0, 128], sizes = [128, 32], strides = [1, 1]} : vector<128x384xbf16> to vector<128x32xbf16>
    %33 = vector.shape_cast %32 : vector<128x32xbf16> to vector<4x32x32xbf16>
    %34 = vector.extract_strided_slice %29 {offsets = [0, 256], sizes = [128, 32], strides = [1, 1]} : vector<128x384xbf16> to vector<128x32xbf16>
    %35 = vector.shape_cast %34 : vector<128x32xbf16> to vector<4x32x32xbf16>
    "tpu.trace_start"() <{level = 10 : i32, message = "bqd,bkd->bqk"}> : () -> ()
    %cst_13 = arith.constant dense<0.000000e+00> : vector<4x32x32xf32>
    %36 = tpu.matmul %31, %33, %cst_13 {dimension_numbers = #tpu.dot_dimension_numbers<[2], [2], [1], [1], [0, 0, 0, 1, 1, 1], [0], [0]>} : vector<4x32x32xbf16>, vector<4x32x32xbf16>, vector<4x32x32xf32> -> vector<4x32x32xf32>
    "tpu.trace_stop"() : () -> ()
    %cst_14 = arith.constant dense<0xFF800000> : vector<4x32xf32>
    %37 = vector.multi_reduction <maximumf>, %36, %cst_14 [2] : vector<4x32x32xf32> to vector<4x32xf32>
    %38 = vector.shape_cast %37 : vector<4x32xf32> to vector<4x32x1xf32>
    %39 = vector.broadcast %38 : vector<4x32x1xf32> to vector<4x32x32xf32>
    %40 = arith.subf %36, %39 : vector<4x32x32xf32>
    %41 = math.exp %40 : vector<4x32x32xf32>
    %cst_15 = arith.constant dense<0.000000e+00> : vector<4x32xf32>
    %42 = vector.multi_reduction <add>, %41, %cst_15 [2] : vector<4x32x32xf32> to vector<4x32xf32>
    %43 = vector.shape_cast %42 : vector<4x32xf32> to vector<4x32x1xf32>
    %44 = tpu.reciprocal %43 {approx = true} : vector<4x32x1xf32> -> vector<4x32x1xf32>
    %45 = vector.broadcast %44 : vector<4x32x1xf32> to vector<4x32x32xf32>
    %46 = arith.mulf %41, %45 : vector<4x32x32xf32>
    %47 = arith.truncf %46 : vector<4x32x32xf32> to vector<4x32x32xbf16>
    "tpu.trace_start"() <{level = 10 : i32, message = "bqk,bkd->bqd"}> : () -> ()
    %cst_16 = arith.constant dense<0.000000e+00> : vector<4x32x32xf32>
    %48 = tpu.matmul %47, %35, %cst_16 {dimension_numbers = #tpu.dot_dimension_numbers<[2], [1], [1], [2], [0, 0, 0, 1, 1, 2], [0], [0]>} : vector<4x32x32xbf16>, vector<4x32x32xbf16>, vector<4x32x32xf32> -> vector<4x32x32xf32>
    "tpu.trace_stop"() : () -> ()
    %49 = arith.truncf %48 : vector<4x32x32xf32> to vector<4x32x32xbf16>
    %50 = vector.shape_cast %49 : vector<4x32x32xbf16> to vector<128x32xbf16>
    %51 = vector.extract_strided_slice %29 {offsets = [0, 32], sizes = [128, 32], strides = [1, 1]} : vector<128x384xbf16> to vector<128x32xbf16>
    %52 = vector.shape_cast %51 : vector<128x32xbf16> to vector<4x32x32xbf16>
    %53 = vector.extract_strided_slice %29 {offsets = [0, 160], sizes = [128, 32], strides = [1, 1]} : vector<128x384xbf16> to vector<128x32xbf16>
    %54 = vector.shape_cast %53 : vector<128x32xbf16> to vector<4x32x32xbf16>
    %55 = vector.extract_strided_slice %29 {offsets = [0, 288], sizes = [128, 32], strides = [1, 1]} : vector<128x384xbf16> to vector<128x32xbf16>
    %56 = vector.shape_cast %55 : vector<128x32xbf16> to vector<4x32x32xbf16>
    "tpu.trace_start"() <{level = 10 : i32, message = "bqd,bkd->bqk"}> : () -> ()
    %cst_17 = arith.constant dense<0.000000e+00> : vector<4x32x32xf32>
    %57 = tpu.matmul %52, %54, %cst_17 {dimension_numbers = #tpu.dot_dimension_numbers<[2], [2], [1], [1], [0, 0, 0, 1, 1, 1], [0], [0]>} : vector<4x32x32xbf16>, vector<4x32x32xbf16>, vector<4x32x32xf32> -> vector<4x32x32xf32>
    "tpu.trace_stop"() : () -> ()
    %cst_18 = arith.constant dense<0xFF800000> : vector<4x32xf32>
    %58 = vector.multi_reduction <maximumf>, %57, %cst_18 [2] : vector<4x32x32xf32> to vector<4x32xf32>
    %59 = vector.shape_cast %58 : vector<4x32xf32> to vector<4x32x1xf32>
    %60 = vector.broadcast %59 : vector<4x32x1xf32> to vector<4x32x32xf32>
    %61 = arith.subf %57, %60 : vector<4x32x32xf32>
    %62 = math.exp %61 : vector<4x32x32xf32>
    %cst_19 = arith.constant dense<0.000000e+00> : vector<4x32xf32>
    %63 = vector.multi_reduction <add>, %62, %cst_19 [2] : vector<4x32x32xf32> to vector<4x32xf32>
    %64 = vector.shape_cast %63 : vector<4x32xf32> to vector<4x32x1xf32>
    %65 = tpu.reciprocal %64 {approx = true} : vector<4x32x1xf32> -> vector<4x32x1xf32>
    %66 = vector.broadcast %65 : vector<4x32x1xf32> to vector<4x32x32xf32>
    %67 = arith.mulf %62, %66 : vector<4x32x32xf32>
    %68 = arith.truncf %67 : vector<4x32x32xf32> to vector<4x32x32xbf16>
    "tpu.trace_start"() <{level = 10 : i32, message = "bqk,bkd->bqd"}> : () -> ()
    %cst_20 = arith.constant dense<0.000000e+00> : vector<4x32x32xf32>
    %69 = tpu.matmul %68, %56, %cst_20 {dimension_numbers = #tpu.dot_dimension_numbers<[2], [1], [1], [2], [0, 0, 0, 1, 1, 2], [0], [0]>} : vector<4x32x32xbf16>, vector<4x32x32xbf16>, vector<4x32x32xf32> -> vector<4x32x32xf32>
    "tpu.trace_stop"() : () -> ()
    %70 = arith.truncf %69 : vector<4x32x32xf32> to vector<4x32x32xbf16>
    %71 = vector.shape_cast %70 : vector<4x32x32xbf16> to vector<128x32xbf16>
    %72 = vector.extract_strided_slice %29 {offsets = [0, 64], sizes = [128, 32], strides = [1, 1]} : vector<128x384xbf16> to vector<128x32xbf16>
    %73 = vector.shape_cast %72 : vector<128x32xbf16> to vector<4x32x32xbf16>
    %74 = vector.extract_strided_slice %29 {offsets = [0, 192], sizes = [128, 32], strides = [1, 1]} : vector<128x384xbf16> to vector<128x32xbf16>
    %75 = vector.shape_cast %74 : vector<128x32xbf16> to vector<4x32x32xbf16>
    %76 = vector.extract_strided_slice %29 {offsets = [0, 320], sizes = [128, 32], strides = [1, 1]} : vector<128x384xbf16> to vector<128x32xbf16>
    %77 = vector.shape_cast %76 : vector<128x32xbf16> to vector<4x32x32xbf16>
    "tpu.trace_start"() <{level = 10 : i32, message = "bqd,bkd->bqk"}> : () -> ()
    %cst_21 = arith.constant dense<0.000000e+00> : vector<4x32x32xf32>
    %78 = tpu.matmul %73, %75, %cst_21 {dimension_numbers = #tpu.dot_dimension_numbers<[2], [2], [1], [1], [0, 0, 0, 1, 1, 1], [0], [0]>} : vector<4x32x32xbf16>, vector<4x32x32xbf16>, vector<4x32x32xf32> -> vector<4x32x32xf32>
    "tpu.trace_stop"() : () -> ()
    %cst_22 = arith.constant dense<0xFF800000> : vector<4x32xf32>
    %79 = vector.multi_reduction <maximumf>, %78, %cst_22 [2] : vector<4x32x32xf32> to vector<4x32xf32>
    %80 = vector.shape_cast %79 : vector<4x32xf32> to vector<4x32x1xf32>
    %81 = vector.broadcast %80 : vector<4x32x1xf32> to vector<4x32x32xf32>
    %82 = arith.subf %78, %81 : vector<4x32x32xf32>
    %83 = math.exp %82 : vector<4x32x32xf32>
    %cst_23 = arith.constant dense<0.000000e+00> : vector<4x32xf32>
    %84 = vector.multi_reduction <add>, %83, %cst_23 [2] : vector<4x32x32xf32> to vector<4x32xf32>
    %85 = vector.shape_cast %84 : vector<4x32xf32> to vector<4x32x1xf32>
    %86 = tpu.reciprocal %85 {approx = true} : vector<4x32x1xf32> -> vector<4x32x1xf32>
    %87 = vector.broadcast %86 : vector<4x32x1xf32> to vector<4x32x32xf32>
    %88 = arith.mulf %83, %87 : vector<4x32x32xf32>
    %89 = arith.truncf %88 : vector<4x32x32xf32> to vector<4x32x32xbf16>
    "tpu.trace_start"() <{level = 10 : i32, message = "bqk,bkd->bqd"}> : () -> ()
    %cst_24 = arith.constant dense<0.000000e+00> : vector<4x32x32xf32>
    %90 = tpu.matmul %89, %77, %cst_24 {dimension_numbers = #tpu.dot_dimension_numbers<[2], [1], [1], [2], [0, 0, 0, 1, 1, 2], [0], [0]>} : vector<4x32x32xbf16>, vector<4x32x32xbf16>, vector<4x32x32xf32> -> vector<4x32x32xf32>
    "tpu.trace_stop"() : () -> ()
    %91 = arith.truncf %90 : vector<4x32x32xf32> to vector<4x32x32xbf16>
    %92 = vector.shape_cast %91 : vector<4x32x32xbf16> to vector<128x32xbf16>
    %93 = vector.extract_strided_slice %29 {offsets = [0, 96], sizes = [128, 32], strides = [1, 1]} : vector<128x384xbf16> to vector<128x32xbf16>
    %94 = vector.shape_cast %93 : vector<128x32xbf16> to vector<4x32x32xbf16>
    %95 = vector.extract_strided_slice %29 {offsets = [0, 224], sizes = [128, 32], strides = [1, 1]} : vector<128x384xbf16> to vector<128x32xbf16>
    %96 = vector.shape_cast %95 : vector<128x32xbf16> to vector<4x32x32xbf16>
    %97 = vector.extract_strided_slice %29 {offsets = [0, 352], sizes = [128, 32], strides = [1, 1]} : vector<128x384xbf16> to vector<128x32xbf16>
    %98 = vector.shape_cast %97 : vector<128x32xbf16> to vector<4x32x32xbf16>
    "tpu.trace_start"() <{level = 10 : i32, message = "bqd,bkd->bqk"}> : () -> ()
    %cst_25 = arith.constant dense<0.000000e+00> : vector<4x32x32xf32>
    %99 = tpu.matmul %94, %96, %cst_25 {dimension_numbers = #tpu.dot_dimension_numbers<[2], [2], [1], [1], [0, 0, 0, 1, 1, 1], [0], [0]>} : vector<4x32x32xbf16>, vector<4x32x32xbf16>, vector<4x32x32xf32> -> vector<4x32x32xf32>
    "tpu.trace_stop"() : () -> ()
    %cst_26 = arith.constant dense<0xFF800000> : vector<4x32xf32>
    %100 = vector.multi_reduction <maximumf>, %99, %cst_26 [2] : vector<4x32x32xf32> to vector<4x32xf32>
    %101 = vector.shape_cast %100 : vector<4x32xf32> to vector<4x32x1xf32>
    %102 = vector.broadcast %101 : vector<4x32x1xf32> to vector<4x32x32xf32>
    %103 = arith.subf %99, %102 : vector<4x32x32xf32>
    %104 = math.exp %103 : vector<4x32x32xf32>
    %cst_27 = arith.constant dense<0.000000e+00> : vector<4x32xf32>
    %105 = vector.multi_reduction <add>, %104, %cst_27 [2] : vector<4x32x32xf32> to vector<4x32xf32>
    %106 = vector.shape_cast %105 : vector<4x32xf32> to vector<4x32x1xf32>
    %107 = tpu.reciprocal %106 {approx = true} : vector<4x32x1xf32> -> vector<4x32x1xf32>
    %108 = vector.broadcast %107 : vector<4x32x1xf32> to vector<4x32x32xf32>
    %109 = arith.mulf %104, %108 : vector<4x32x32xf32>
    %110 = arith.truncf %109 : vector<4x32x32xf32> to vector<4x32x32xbf16>
    "tpu.trace_start"() <{level = 10 : i32, message = "bqk,bkd->bqd"}> : () -> ()
    %cst_28 = arith.constant dense<0.000000e+00> : vector<4x32x32xf32>
    %111 = tpu.matmul %110, %98, %cst_28 {dimension_numbers = #tpu.dot_dimension_numbers<[2], [1], [1], [2], [0, 0, 0, 1, 1, 2], [0], [0]>} : vector<4x32x32xbf16>, vector<4x32x32xbf16>, vector<4x32x32xf32> -> vector<4x32x32xf32>
    "tpu.trace_stop"() : () -> ()
    %112 = arith.truncf %111 : vector<4x32x32xf32> to vector<4x32x32xbf16>
    %113 = vector.shape_cast %112 : vector<4x32x32xbf16> to vector<128x32xbf16>
    %114 = tpu.concatenate %50, %71, %92, %113 in 1 : vector<128x32xbf16>, vector<128x32xbf16>, vector<128x32xbf16>, vector<128x32xbf16> -> vector<128x128xbf16>
    %c0_29 = arith.constant 0 : index
    %c0_30 = arith.constant 0 : index
    %115 = vector.load %arg5[%c0_29, %c0_30] : memref<128x128xbf16, #tpu.memory_space<vmem>>, vector<128x128xbf16>
    %cst_31 = arith.constant dense<0.000000e+00> : vector<128x128xf32>
    %116 = tpu.matmul %114, %115, %cst_31 {dimension_numbers = #tpu.dot_dimension_numbers<[1], [0], [0], [1], [0, 0, 1, 1], [], []>} : vector<128x128xbf16>, vector<128x128xbf16>, vector<128x128xf32> -> vector<128x128xf32>
    %c0_32 = arith.constant 0 : index
    %c0_33 = arith.constant 0 : index
    %117 = vector.load %arg6[%c0_32, %c0_33] : memref<1x128xf32, #tpu.memory_space<vmem>>, vector<1x128xf32>
    %118 = vector.broadcast %117 : vector<1x128xf32> to vector<128x128xf32>
    %119 = arith.addf %116, %118 : vector<128x128xf32>
    %120 = arith.addf %1, %119 : vector<128x128xf32>
    %c0_34 = arith.constant 0 : index
    %c0_35 = arith.constant 0 : index
    %121 = vector.load %arg7[%c0_34, %c0_35] : memref<1x128xf32, #tpu.memory_space<vmem>>, vector<1x128xf32>
    %c0_36 = arith.constant 0 : index
    %c0_37 = arith.constant 0 : index
    %122 = vector.load %arg8[%c0_36, %c0_37] : memref<1x128xf32, #tpu.memory_space<vmem>>, vector<1x128xf32>
    %cst_38 = arith.constant dense<0.000000e+00> : vector<128xf32>
    %123 = vector.multi_reduction <add>, %120, %cst_38 [1] : vector<128x128xf32> to vector<128xf32>
    %124 = vector.shape_cast %123 : vector<128xf32> to vector<128x1xf32>
    %cst_39 = arith.constant 1.280000e+02 : f32
    %125 = vector.broadcast %cst_39 : f32 to vector<128x1xf32>
    %126 = arith.divf %124, %125 : vector<128x1xf32>
    %127 = vector.broadcast %126 : vector<128x1xf32> to vector<128x128xf32>
    %128 = arith.subf %120, %127 : vector<128x128xf32>
    %129 = arith.mulf %128, %128 : vector<128x128xf32>
    %cst_40 = arith.constant dense<0.000000e+00> : vector<128xf32>
    %130 = vector.multi_reduction <add>, %129, %cst_40 [1] : vector<128x128xf32> to vector<128xf32>
    %131 = vector.shape_cast %130 : vector<128xf32> to vector<128x1xf32>
    %cst_41 = arith.constant 1.280000e+02 : f32
    %132 = vector.broadcast %cst_41 : f32 to vector<128x1xf32>
    %133 = arith.divf %131, %132 : vector<128x1xf32>
    %134 = vector.broadcast %126 : vector<128x1xf32> to vector<128x128xf32>
    %135 = arith.subf %120, %134 : vector<128x128xf32>
    %cst_42 = arith.constant 9.99999974E-6 : f32
    %136 = vector.broadcast %cst_42 : f32 to vector<128x1xf32>
    %137 = arith.addf %133, %136 : vector<128x1xf32>
    %138 = math.rsqrt %137 : vector<128x1xf32>
    %139 = vector.broadcast %138 : vector<128x1xf32> to vector<128x128xf32>
    %140 = arith.mulf %135, %139 : vector<128x128xf32>
    %141 = vector.broadcast %121 : vector<1x128xf32> to vector<128x128xf32>
    %142 = arith.mulf %140, %141 : vector<128x128xf32>
    %143 = vector.broadcast %122 : vector<1x128xf32> to vector<128x128xf32>
    %144 = arith.addf %142, %143 : vector<128x128xf32>
    %145 = arith.truncf %144 : vector<128x128xf32> to vector<128x128xbf16>
    %c0_43 = arith.constant 0 : index
    %c0_44 = arith.constant 0 : index
    %146 = vector.load %arg9[%c0_43, %c0_44] : memref<128x512xbf16, #tpu.memory_space<vmem>>, vector<128x512xbf16>
    %cst_45 = arith.constant dense<0.000000e+00> : vector<128x512xf32>
    %147 = tpu.matmul %145, %146, %cst_45 {dimension_numbers = #tpu.dot_dimension_numbers<[1], [0], [0], [1], [0, 0, 1, 1], [], []>} : vector<128x128xbf16>, vector<128x512xbf16>, vector<128x512xf32> -> vector<128x512xf32>
    %c0_46 = arith.constant 0 : index
    %c0_47 = arith.constant 0 : index
    %148 = vector.load %arg10[%c0_46, %c0_47] : memref<1x512xf32, #tpu.memory_space<vmem>>, vector<1x512xf32>
    %149 = vector.broadcast %148 : vector<1x512xf32> to vector<128x512xf32>
    %150 = arith.addf %147, %149 : vector<128x512xf32>
    %cst_48 = arith.constant 5.000000e-01 : f32
    %151 = vector.broadcast %cst_48 : f32 to vector<128x512xf32>
    %152 = arith.mulf %151, %150 : vector<128x512xf32>
    %cst_49 = arith.constant 0.707106769 : f32
    %153 = vector.broadcast %cst_49 : f32 to vector<128x512xf32>
    %154 = arith.mulf %150, %153 : vector<128x512xf32>
    %cst_50 = arith.constant -4.000000e+00 : f32
    %cst_51 = arith.constant 4.000000e+00 : f32
    %155 = vector.broadcast %cst_50 : f32 to vector<128x512xf32>
    %156 = arith.maximumf %155, %154 : vector<128x512xf32>
    %157 = vector.broadcast %cst_51 : f32 to vector<128x512xf32>
    %158 = arith.minimumf %157, %156 : vector<128x512xf32>
    %159 = arith.mulf %158, %158 : vector<128x512xf32>
    %cst_52 = arith.constant -2.72614237E-10 : f32
    %160 = vector.broadcast %cst_52 : f32 to vector<128x512xf32>
    %161 = arith.mulf %160, %159 : vector<128x512xf32>
    %cst_53 = arith.constant 2.77068146E-8 : f32
    %162 = vector.broadcast %cst_53 : f32 to vector<128x512xf32>
    %163 = arith.addf %161, %162 : vector<128x512xf32>
    %164 = arith.mulf %163, %159 : vector<128x512xf32>
    %cst_54 = arith.constant -2.10102394E-6 : f32
    %165 = vector.broadcast %cst_54 : f32 to vector<128x512xf32>
    %166 = arith.addf %164, %165 : vector<128x512xf32>
    %167 = arith.mulf %166, %159 : vector<128x512xf32>
    %cst_55 = arith.constant -5.69250624E-5 : f32
    %168 = vector.broadcast %cst_55 : f32 to vector<128x512xf32>
    %169 = arith.addf %167, %168 : vector<128x512xf32>
    %170 = arith.mulf %169, %159 : vector<128x512xf32>
    %cst_56 = arith.constant -7.34990637E-4 : f32
    %171 = vector.broadcast %cst_56 : f32 to vector<128x512xf32>
    %172 = arith.addf %170, %171 : vector<128x512xf32>
    %173 = arith.mulf %172, %159 : vector<128x512xf32>
    %cst_57 = arith.constant -2.954600e-03 : f32
    %174 = vector.broadcast %cst_57 : f32 to vector<128x512xf32>
    %175 = arith.addf %173, %174 : vector<128x512xf32>
    %176 = arith.mulf %175, %159 : vector<128x512xf32>
    %cst_58 = arith.constant -0.0160960332 : f32
    %177 = vector.broadcast %cst_58 : f32 to vector<128x512xf32>
    %178 = arith.addf %176, %177 : vector<128x512xf32>
    %179 = arith.mulf %178, %158 : vector<128x512xf32>
    %cst_59 = arith.constant -1.45660715E-5 : f32
    %180 = vector.broadcast %cst_59 : f32 to vector<128x512xf32>
    %181 = arith.mulf %180, %159 : vector<128x512xf32>
    %cst_60 = arith.constant -2.13374049E-4 : f32
    %182 = vector.broadcast %cst_60 : f32 to vector<128x512xf32>
    %183 = arith.addf %181, %182 : vector<128x512xf32>
    %184 = arith.mulf %183, %159 : vector<128x512xf32>
    %cst_61 = arith.constant -0.00168282702 : f32
    %185 = vector.broadcast %cst_61 : f32 to vector<128x512xf32>
    %186 = arith.addf %184, %185 : vector<128x512xf32>
    %187 = arith.mulf %186, %159 : vector<128x512xf32>
    %cst_62 = arith.constant -0.00737332925 : f32
    %188 = vector.broadcast %cst_62 : f32 to vector<128x512xf32>
    %189 = arith.addf %187, %188 : vector<128x512xf32>
    %190 = arith.mulf %189, %159 : vector<128x512xf32>
    %cst_63 = arith.constant -0.0142647391 : f32
    %191 = vector.broadcast %cst_63 : f32 to vector<128x512xf32>
    %192 = arith.addf %190, %191 : vector<128x512xf32>
    %193 = tpu.reciprocal %192 {approx = true} : vector<128x512xf32> -> vector<128x512xf32>
    %194 = arith.mulf %179, %193 : vector<128x512xf32>
    %cst_64 = arith.constant 1.000000e+00 : f32
    %195 = vector.broadcast %cst_64 : f32 to vector<128x512xf32>
    %196 = arith.addf %195, %194 : vector<128x512xf32>
    %197 = arith.mulf %152, %196 : vector<128x512xf32>
    %198 = arith.truncf %197 : vector<128x512xf32> to vector<128x512xbf16>
    %c0_65 = arith.constant 0 : index
    %c0_66 = arith.constant 0 : index
    %199 = vector.load %arg11[%c0_65, %c0_66] : memref<512x128xbf16, #tpu.memory_space<vmem>>, vector<512x128xbf16>
    %cst_67 = arith.constant dense<0.000000e+00> : vector<128x128xf32>
    %200 = tpu.matmul %198, %199, %cst_67 {dimension_numbers = #tpu.dot_dimension_numbers<[1], [0], [0], [1], [0, 0, 1, 1], [], []>} : vector<128x512xbf16>, vector<512x128xbf16>, vector<128x128xf32> -> vector<128x128xf32>
    %c0_68 = arith.constant 0 : index
    %c0_69 = arith.constant 0 : index
    %201 = vector.load %arg12[%c0_68, %c0_69] : memref<1x128xf32, #tpu.memory_space<vmem>>, vector<1x128xf32>
    %202 = vector.broadcast %201 : vector<1x128xf32> to vector<128x128xf32>
    %203 = arith.addf %200, %202 : vector<128x128xf32>
    %204 = arith.addf %120, %203 : vector<128x128xf32>
    %205 = vector.shape_cast %204 : vector<128x128xf32> to vector<4x32x128xf32>
    %c0_70 = arith.constant 0 : index
    %c0_71 = arith.constant 0 : index
    %c0_72 = arith.constant 0 : index
    %206 = vector.load %arg13[%c0_70, %c0_71, %c0_72] : memref<4x32x128xf32, #tpu.memory_space<vmem>>, vector<4x32x128xf32>
    tpu.vector_store %arg13[%c0_70, %c0_71, %c0_72], %205 {strides = array<i32>} : memref<4x32x128xf32, #tpu.memory_space<vmem>>, vector<4x32x128xf32>,
    return
  }
  func.func @transform_0(%arg0: i32) -> (i32, i32, i32) {
    %c0_i32 = arith.constant 0 : i32
    %c0_i32_0 = arith.constant 0 : i32
    %c0_i32_1 = arith.constant 0 : i32
    return %arg0, %c0_i32, %c0_i32_0 : i32, i32, i32
  }
  func.func @transform_1(%arg0: i32) -> (i32, i32) {
    %c0_i32 = arith.constant 0 : i32
    %c0_i32_0 = arith.constant 0 : i32
    %c0_i32_1 = arith.constant 0 : i32
    return %c0_i32, %c0_i32_0 : i32, i32
  }
  func.func @transform_2(%arg0: i32) -> (i32, i32) {
    %c0_i32 = arith.constant 0 : i32
    %c0_i32_0 = arith.constant 0 : i32
    %c0_i32_1 = arith.constant 0 : i32
    return %c0_i32, %c0_i32_0 : i32, i32
  }
  func.func @transform_3(%arg0: i32) -> (i32, i32) {
    %c0_i32 = arith.constant 0 : i32
    %c0_i32_0 = arith.constant 0 : i32
    %c0_i32_1 = arith.constant 0 : i32
    return %c0_i32, %c0_i32_0 : i32, i32
  }
  func.func @transform_4(%arg0: i32) -> (i32, i32) {
    %c0_i32 = arith.constant 0 : i32
    %c0_i32_0 = arith.constant 0 : i32
    %c0_i32_1 = arith.constant 0 : i32
    return %c0_i32, %c0_i32_0 : i32, i32
  }
  func.func @transform_5(%arg0: i32) -> (i32, i32) {
    %c0_i32 = arith.constant 0 : i32
    %c0_i32_0 = arith.constant 0 : i32
    %c0_i32_1 = arith.constant 0 : i32
    return %c0_i32, %c0_i32_0 : i32, i32
  }
  func.func @transform_6(%arg0: i32) -> (i32, i32) {
    %c0_i32 = arith.constant 0 : i32
    %c0_i32_0 = arith.constant 0 : i32
    %c0_i32_1 = arith.constant 0 : i32
    return %c0_i32, %c0_i32_0 : i32, i32
  }
  func.func @transform_7(%arg0: i32) -> (i32, i32) {
    %c0_i32 = arith.constant 0 : i32
    %c0_i32_0 = arith.constant 0 : i32
    %c0_i32_1 = arith.constant 0 : i32
    return %c0_i32, %c0_i32_0 : i32, i32
  }
  func.func @transform_8(%arg0: i32) -> (i32, i32) {
    %c0_i32 = arith.constant 0 : i32
    %c0_i32_0 = arith.constant 0 : i32
    %c0_i32_1 = arith.constant 0 : i32
    return %c0_i32, %c0_i32_0 : i32, i32
  }
  func.func @transform_9(%arg0: i32) -> (i32, i32) {
    %c0_i32 = arith.constant 0 : i32
    %c0_i32_0 = arith.constant 0 : i32
    %c0_i32_1 = arith.constant 0 : i32
    return %c0_i32, %c0_i32_0 : i32, i32
  }
  func.func @transform_10(%arg0: i32) -> (i32, i32) {
    %c0_i32 = arith.constant 0 : i32
    %c0_i32_0 = arith.constant 0 : i32
    %c0_i32_1 = arith.constant 0 : i32
    return %c0_i32, %c0_i32_0 : i32, i32
  }
  func.func @transform_11(%arg0: i32) -> (i32, i32) {
    %c0_i32 = arith.constant 0 : i32
    %c0_i32_0 = arith.constant 0 : i32
    %c0_i32_1 = arith.constant 0 : i32
    return %c0_i32, %c0_i32_0 : i32, i32
  }
  func.func @transform_12(%arg0: i32) -> (i32, i32, i32) {
    %c0_i32 = arith.constant 0 : i32
    %c0_i32_0 = arith.constant 0 : i32
    %c0_i32_1 = arith.constant 0 : i32
    return %arg0, %c0_i32, %c0_i32_0 : i32, i32, i32
  }
}

</mosaic_0001>

<llo_original>
// kernel: tpu_custom_call.1
$region0: #{tpu_custom_call.1}
  #allocation0 [shape = 'u32[]', space=smem, size = 0x4, offset = 0x4, fixed_abs, tag = 'smem constant byte address 0x4 - core index']
  #allocation1 [shape = 'u32[144,128]{1,0:T(1,128)}', space=vmem, size = 0x12000, scoped, tag = 'internal scratch']
  %s0 = inlined_call_operand.hbm [shape: f32[8,32,128], index: 0, kind: input, shape index: {}]
  %s1 = inlined_call_operand.vmem [shape: f32[1,128], index: 1, kind: input, shape index: {}]
  %s2 = inlined_call_operand.vmem [shape: f32[1,128], index: 2, kind: input, shape index: {}]
  %s3 = inlined_call_operand.hbm [shape: bf16[128,384], index: 3, kind: input, shape index: {}]
  %s4 = inlined_call_operand.hbm [shape: bf16[128,128], index: 4, kind: input, shape index: {}]
  %s5 = inlined_call_operand.vmem [shape: f32[1,128], index: 5, kind: input, shape index: {}]
  %s6 = inlined_call_operand.vmem [shape: f32[1,128], index: 6, kind: input, shape index: {}]
  %s7 = inlined_call_operand.vmem [shape: f32[1,128], index: 7, kind: input, shape index: {}]
  %s8 = inlined_call_operand.hbm [shape: bf16[128,512], index: 8, kind: input, shape index: {}]
  %s9 = inlined_call_operand.vmem [shape: f32[1,512], index: 9, kind: input, shape index: {}]
  %s10 = inlined_call_operand.hbm [shape: bf16[512,128], index: 10, kind: input, shape index: {}]
  %s11 = inlined_call_operand.vmem [shape: f32[1,128], index: 11, kind: input, shape index: {}]
  %s12 = inlined_call_operand.hbm [shape: f32[8,32,128], index: 12, kind: output, shape index: {}]
  %s13 = sld [smem:[#allocation0]]
  $region101: #{tpu_custom_call.1} parent=0
    _
  %s15 = ssub.s32 1, %s13
  %s16 = scalar_select 0, %s15, %s13
  $region1: #{tpu_custom_call.1} parent=0
    #allocation2 [shape = 'u8[131072]{0}', space=vmem, size = 0x20000, scoped, tag = 'input window, operand 0']
    #allocation3 [shape = 's32[2]{0}', space=sflag, size = 0x8, scoped, tag = 'scoped memory for tpu_custom_call.1']
    #allocation4 [shape = 's32[2]{0}', space=sflag, size = 0x8, scoped, tag = 'scoped memory for tpu_custom_call.1']
    #allocation5 [shape = 'u8[98304]{0}', space=vmem, size = 0x18000, scoped, tag = 'input window, operand 3, single buffered']
    #allocation6 [shape = 's32[1]{0}', space=sflag, size = 0x4, scoped, tag = 'scoped memory for tpu_custom_call.1']
    #allocation7 [shape = 'u8[32768]{0}', space=vmem, size = 0x8000, scoped, tag = 'input window, operand 4, single buffered']
    #allocation8 [shape = 'u8[131072]{0}', space=vmem, size = 0x20000, scoped, tag = 'input window, operand 8, single buffered']
    #allocation9 [shape = 's32[1]{0}', space=sflag, size = 0x4, scoped, tag = 'scoped memory for tpu_custom_call.1']
    #allocation10 [shape = 'u8[131072]{0}', space=vmem, size = 0x20000, scoped, tag = 'input window, operand 10, single buffered']
    #allocation11 [shape = 'u8[131072]{0}', space=vmem, size = 0x20000, scoped, tag = 'output window, operand 0']
    %17 = vsyncpa [#allocation3], 0
    %s18 = scalar_lea.sflag [#allocation3], 1
    %19 = vsyncpa %s18, 0
    %20 = vsyncpa [#allocation6], 0
    %21 = vsyncpa [#allocation9], 0
    %22 = vsyncpa [#allocation4], 0
    %s23 = scalar_lea.sflag [#allocation4], 1
    %24 = vsyncpa %s23, 0
    loop: start=0, step=1, limit=4
    $region2: #{tpu_custom_call.1} parent=1 // loop_pre_header
      _
    $region3: #{tpu_custom_call.1} parent=1 // loop_header
      %s26 = sphi 0, %s30
      %p27 = scmp.ge.s32.totalorder %s26, 4
      %s36 = sphi 0, %s38
      %s39 = sphi 0, %s36
      %s40 = sphi 0, %s39
      %s56 = sphi 0, %s40
      %s60 = sphi 0, %s60
      %s62 = sphi 0, %s60
      %s63 = sphi 0, %s62
      %s77 = sphi 0, %s63
      %s81 = sphi 0, %s81
      %s83 = sphi 0, %s81
      %s84 = sphi 0, %s83
      %s98 = sphi 0, %s84
      %s102 = sphi 0, %s102
      %s104 = sphi 0, %s102
      %s105 = sphi 0, %s104
      %s119 = sphi 0, %s105
      %s123 = sphi 0, %s123
      %s125 = sphi 0, %s123
      %s126 = sphi 0, %s125
      %s140 = sphi 0, %s126
      %s144 = sphi 0, %s144
      %s146 = sphi 0, %s144
      %s147 = sphi 0, %s146
      %s161 = sphi 0, %s147
      %s165 = sphi 0, %s165
      %s167 = sphi 0, %s165
      %s168 = sphi 0, %s167
      %s182 = sphi 0, %s168
      %s186 = sphi 0, %s186
      %s188 = sphi 0, %s186
      %s189 = sphi 0, %s188
      %s203 = sphi 0, %s189
      %s207 = sphi 0, %s207
      %s209 = sphi 0, %s207
      %s210 = sphi 0, %s209
      %s224 = sphi 0, %s210
      %s228 = sphi 0, %s228
      %s230 = sphi 0, %s228
      %s231 = sphi 0, %s230
      %s245 = sphi 0, %s231
      %s249 = sphi 0, %s249
      %s251 = sphi 0, %s249
      %s252 = sphi 0, %s251
      %s266 = sphi 0, %s252
      %s270 = sphi 0, %s270
      %s272 = sphi 0, %s270
      %s273 = sphi 0, %s272
      %s287 = sphi 0, %s273
      %s293 = sphi 0, %s295
      %s296 = sphi 0, %s293
      %s297 = sphi 0, %s296
      %s313 = sphi 0, %s297
    $region4: #{tpu_custom_call.1} parent=1 // loop_header_branch
      %29 = sbr.rel (%p27) target = $region8
    $region5: #{tpu_custom_call.1} parent=1 // loop_body
      %s31 = ssub.s32 %s26, 1
      %s32 = ssub.s32 %s26, 2
      %s33 = sadd.s32 %s26, 1
      %s34 = ssub.s32 %s26, %s33
      %p35 = scmp.eq.s32.totalorder %s34, 0
      %s37 = sadd.s32 %s36, 1
      %s38 = scalar_select %p35, %s36, %s37
      %p41 = pneg %p35
      %p42 = scmp.eq.s32.totalorder %s26, 1
      %p43 = por %p41, %p42
      %p44 = scmp.ne.s32.totalorder %s36, %s39
      %p45 = scmp.eq.s32.totalorder %s26, 0
      %p46 = por %p44, %p45
      %p47 = scmp.ne.s32.totalorder %s36, %s39
      %p48 = scmp.eq.s32.totalorder %s31, 1
      %p49 = por %p47, %p48
      %p50 = scmp.ne.s32.totalorder %s39, %s40
      %p51 = scmp.eq.s32.totalorder %s31, 0
      %p52 = por %p50, %p51
      %p53 = scmp.ne.s32.totalorder %s39, %s40
      %p54 = scmp.eq.s32.totalorder %s32, 1
      %p55 = por %p53, %p54
      %p57 = scmp.ne.s32.totalorder %s40, %s56
      %p58 = scmp.eq.s32.totalorder %s32, 0
      %p59 = por %p57, %p58
      %s61 = sadd.s32 %s60, 1
      %p64 = scmp.eq.s32.totalorder %s26, 1
      %p65 = scmp.ne.s32.totalorder %s60, %s62
      %p66 = scmp.eq.s32.totalorder %s26, 0
      %p67 = por %p65, %p66
      %p68 = scmp.ne.s32.totalorder %s60, %s62
      %p69 = scmp.eq.s32.totalorder %s31, 1
      %p70 = por %p68, %p69
      %p71 = scmp.ne.s32.totalorder %s62, %s63
      %p72 = scmp.eq.s32.totalorder %s31, 0
      %p73 = por %p71, %p72
      %p74 = scmp.ne.s32.totalorder %s62, %s63
      %p75 = scmp.eq.s32.totalorder %s32, 1
      %p76 = por %p74, %p75
      %p78 = scmp.ne.s32.totalorder %s63, %s77
      %p79 = scmp.eq.s32.totalorder %s32, 0
      %p80 = por %p78, %p79
      %s82 = sadd.s32 %s81, 1
      %p85 = scmp.eq.s32.totalorder %s26, 1
      %p86 = scmp.ne.s32.totalorder %s81, %s83
      %p87 = scmp.eq.s32.totalorder %s26, 0
      %p88 = por %p86, %p87
      %p89 = scmp.ne.s32.totalorder %s81, %s83
      %p90 = scmp.eq.s32.totalorder %s31, 1
      %p91 = por %p89, %p90
      %p92 = scmp.ne.s32.totalorder %s83, %s84
      %p93 = scmp.eq.s32.totalorder %s31, 0
      %p94 = por %p92, %p93
      %p95 = scmp.ne.s32.totalorder %s83, %s84
      %p96 = scmp.eq.s32.totalorder %s32, 1
      %p97 = por %p95, %p96
      %p99 = scmp.ne.s32.totalorder %s84, %s98
      %p100 = scmp.eq.s32.totalorder %s32, 0
      %p101 = por %p99, %p100
      %s103 = sadd.s32 %s102, 1
      %p106 = scmp.eq.s32.totalorder %s26, 1
      %p107 = scmp.ne.s32.totalorder %s102, %s104
      %p108 = scmp.eq.s32.totalorder %s26, 0
      %p109 = por %p107, %p108
      %p110 = scmp.ne.s32.totalorder %s102, %s104
      %p111 = scmp.eq.s32.totalorder %s31, 1
      %p112 = por %p110, %p111
      %p113 = scmp.ne.s32.totalorder %s104, %s105
      %p114 = scmp.eq.s32.totalorder %s31, 0
      %p115 = por %p113, %p114
      %p116 = scmp.ne.s32.totalorder %s104, %s105
      %p117 = scmp.eq.s32.totalorder %s32, 1
      %p118 = por %p116, %p117
      %p120 = scmp.ne.s32.totalorder %s105, %s119
      %p121 = scmp.eq.s32.totalorder %s32, 0
      %p122 = por %p120, %p121
      %s124 = sadd.s32 %s123, 1
      %p127 = scmp.eq.s32.totalorder %s26, 1
      %p128 = scmp.ne.s32.totalorder %s123, %s125
      %p129 = scmp.eq.s32.totalorder %s26, 0
      %p130 = por %p128, %p129
      %p131 = scmp.ne.s32.totalorder %s123, %s125
      %p132 = scmp.eq.s32.totalorder %s31, 1
      %p133 = por %p131, %p132
      %p134 = scmp.ne.s32.totalorder %s125, %s126
      %p135 = scmp.eq.s32.totalorder %s31, 0
      %p136 = por %p134, %p135
      %p137 = scmp.ne.s32.totalorder %s125, %s126
      %p138 = scmp.eq.s32.totalorder %s32, 1
      %p139 = por %p137, %p138
      %p141 = scmp.ne.s32.totalorder %s126, %s140
      %p142 = scmp.eq.s32.totalorder %s32, 0
      %p143 = por %p141, %p142
      %s145 = sadd.s32 %s144, 1
      %p148 = scmp.eq.s32.totalorder %s26, 1
      %p149 = scmp.ne.s32.totalorder %s144, %s146
      %p150 = scmp.eq.s32.totalorder %s26, 0
      %p151 = por %p149, %p150
      %p152 = scmp.ne.s32.totalorder %s144, %s146
      %p153 = scmp.eq.s32.totalorder %s31, 1
      %p154 = por %p152, %p153
      %p155 = scmp.ne.s32.totalorder %s146, %s147
      %p156 = scmp.eq.s32.totalorder %s31, 0
      %p157 = por %p155, %p156
      %p158 = scmp.ne.s32.totalorder %s146, %s147
      %p159 = scmp.eq.s32.totalorder %s32, 1
      %p160 = por %p158, %p159
      %p162 = scmp.ne.s32.totalorder %s147, %s161
      %p163 = scmp.eq.s32.totalorder %s32, 0
      %p164 = por %p162, %p163
      %s166 = sadd.s32 %s165, 1
      %p169 = scmp.eq.s32.totalorder %s26, 1
      %p170 = scmp.ne.s32.totalorder %s165, %s167
      %p171 = scmp.eq.s32.totalorder %s26, 0
      %p172 = por %p170, %p171
      %p173 = scmp.ne.s32.totalorder %s165, %s167
      %p174 = scmp.eq.s32.totalorder %s31, 1
      %p175 = por %p173, %p174
      %p176 = scmp.ne.s32.totalorder %s167, %s168
      %p177 = scmp.eq.s32.totalorder %s31, 0
      %p178 = por %p176, %p177
      %p179 = scmp.ne.s32.totalorder %s167, %s168
      %p180 = scmp.eq.s32.totalorder %s32, 1
      %p181 = por %p179, %p180
      %p183 = scmp.ne.s32.totalorder %s168, %s182
      %p184 = scmp.eq.s32.totalorder %s32, 0
      %p185 = por %p183, %p184
      %s187 = sadd.s32 %s186, 1
      %p190 = scmp.eq.s32.totalorder %s26, 1
      %p191 = scmp.ne.s32.totalorder %s186, %s188
      %p192 = scmp.eq.s32.totalorder %s26, 0
      %p193 = por %p191, %p192
      %p194 = scmp.ne.s32.totalorder %s186, %s188
      %p195 = scmp.eq.s32.totalorder %s31, 1
      %p196 = por %p194, %p195
      %p197 = scmp.ne.s32.totalorder %s188, %s189
      %p198 = scmp.eq.s32.totalorder %s31, 0
      %p199 = por %p197, %p198
      %p200 = scmp.ne.s32.totalorder %s188, %s189
      %p201 = scmp.eq.s32.totalorder %s32, 1
      %p202 = por %p200, %p201
      %p204 = scmp.ne.s32.totalorder %s189, %s203
      %p205 = scmp.eq.s32.totalorder %s32, 0
      %p206 = por %p204, %p205
      %s208 = sadd.s32 %s207, 1
      %p211 = scmp.eq.s32.totalorder %s26, 1
      %p212 = scmp.ne.s32.totalorder %s207, %s209
      %p213 = scmp.eq.s32.totalorder %s26, 0
      %p214 = por %p212, %p213
      %p215 = scmp.ne.s32.totalorder %s207, %s209
      %p216 = scmp.eq.s32.totalorder %s31, 1
      %p217 = por %p215, %p216
      %p218 = scmp.ne.s32.totalorder %s209, %s210
      %p219 = scmp.eq.s32.totalorder %s31, 0
      %p220 = por %p218, %p219
      %p221 = scmp.ne.s32.totalorder %s209, %s210
      %p222 = scmp.eq.s32.totalorder %s32, 1
      %p223 = por %p221, %p222
      %p225 = scmp.ne.s32.totalorder %s210, %s224
      %p226 = scmp.eq.s32.totalorder %s32, 0
      %p227 = por %p225, %p226
      %s229 = sadd.s32 %s228, 1
      %p232 = scmp.eq.s32.totalorder %s26, 1
      %p233 = scmp.ne.s32.totalorder %s228, %s230
      %p234 = scmp.eq.s32.totalorder %s26, 0
      %p235 = por %p233, %p234
      %p236 = scmp.ne.s32.totalorder %s228, %s230
      %p237 = scmp.eq.s32.totalorder %s31, 1
      %p238 = por %p236, %p237
      %p239 = scmp.ne.s32.totalorder %s230, %s231
      %p240 = scmp.eq.s32.totalorder %s31, 0
      %p241 = por %p239, %p240
      %p242 = scmp.ne.s32.totalorder %s230, %s231
      %p243 = scmp.eq.s32.totalorder %s32, 1
      %p244 = por %p242, %p243
      %p246 = scmp.ne.s32.totalorder %s231, %s245
      %p247 = scmp.eq.s32.totalorder %s32, 0
      %p248 = por %p246, %p247
      %s250 = sadd.s32 %s249, 1
      %p253 = scmp.eq.s32.totalorder %s26, 1
      %p254 = scmp.ne.s32.totalorder %s249, %s251
      %p255 = scmp.eq.s32.totalorder %s26, 0
      %p256 = por %p254, %p255
      %p257 = scmp.ne.s32.totalorder %s249, %s251
      %p258 = scmp.eq.s32.totalorder %s31, 1
      %p259 = por %p257, %p258
      %p260 = scmp.ne.s32.totalorder %s251, %s252
      %p261 = scmp.eq.s32.totalorder %s31, 0
      %p262 = por %p260, %p261
      %p263 = scmp.ne.s32.totalorder %s251, %s252
      %p264 = scmp.eq.s32.totalorder %s32, 1
      %p265 = por %p263, %p264
      %p267 = scmp.ne.s32.totalorder %s252, %s266
      %p268 = scmp.eq.s32.totalorder %s32, 0
      %p269 = por %p267, %p268
      %s271 = sadd.s32 %s270, 1
      %p274 = scmp.eq.s32.totalorder %s26, 1
      %p275 = scmp.ne.s32.totalorder %s270, %s272
      %p276 = scmp.eq.s32.totalorder %s26, 0
      %p277 = por %p275, %p276
      %p278 = scmp.ne.s32.totalorder %s270, %s272
      %p279 = scmp.eq.s32.totalorder %s31, 1
      %p280 = por %p278, %p279
      %p281 = scmp.ne.s32.totalorder %s272, %s273
      %p282 = scmp.eq.s32.totalorder %s31, 0
      %p283 = por %p281, %p282
      %p284 = scmp.ne.s32.totalorder %s272, %s273
      %p285 = scmp.eq.s32.totalorder %s32, 1
      %p286 = por %p284, %p285
      %p288 = scmp.ne.s32.totalorder %s273, %s287
      %p289 = scmp.eq.s32.totalorder %s32, 0
      %p290 = por %p288, %p289
      %s291 = ssub.s32 %s26, %s33
      %p292 = scmp.eq.s32.totalorder %s291, 0
      %s294 = sadd.s32 %s293, 1
      %s295 = scalar_select %p292, %s293, %s294
      %p298 = pneg %p292
      %p299 = scmp.eq.s32.totalorder %s26, 1
      %p300 = por %p298, %p299
      %p301 = scmp.ne.s32.totalorder %s293, %s296
      %p302 = scmp.eq.s32.totalorder %s26, 0
      %p303 = por %p301, %p302
      %p304 = scmp.ne.s32.totalorder %s293, %s296
      %p305 = scmp.eq.s32.totalorder %s31, 1
      %p306 = por %p304, %p305
      %p307 = scmp.ne.s32.totalorder %s296, %s297
      %p308 = scmp.eq.s32.totalorder %s31, 0
      %p309 = por %p307, %p308
      %p310 = scmp.ne.s32.totalorder %s296, %s297
      %p311 = scmp.eq.s32.totalorder %s32, 1
      %p312 = por %p310, %p311
      %p314 = scmp.ne.s32.totalorder %s297, %s313
      %p315 = scmp.eq.s32.totalorder %s32, 0
      %p316 = por %p314, %p315
      %p317 = scmp.le.s32.totalorder 1, %s26
      %p318 = scmp.lt.s32.totalorder %s26, 3
      %p319 = pnand %p317, %p318
      %p320 = pneg %p319
      // Predicated region
      $region9: #{tpu_custom_call.1} parent=5 // pred_check
        _
      $region10: #{tpu_custom_call.1} parent=5 // pred_check_branch
        %322 = sbr.rel (%p319) target = $region12
      $region11: #{tpu_custom_call.1} parent=5 // pred_region
        %s323 = ssub.s32 %s26, 1
        // Predicated region
        $region13: #{tpu_custom_call.1} parent=11 // pred_check
          %p324 = pneg %p73
        $region14: #{tpu_custom_call.1} parent=11 // pred_check_branch
          %326 = sbr.rel (%p324) target = $region16
        $region15: #{tpu_custom_call.1} parent=11 // pred_region
          _
        $region16: #{tpu_custom_call.1} parent=11 // pred_fallthru
          _
        // Predicated region
        $region17: #{tpu_custom_call.1} parent=11 // pred_check
          %p327 = pneg %p94
        $region18: #{tpu_custom_call.1} parent=11 // pred_check_branch
          %329 = sbr.rel (%p327) target = $region20
        $region19: #{tpu_custom_call.1} parent=11 // pred_region
          _
        $region20: #{tpu_custom_call.1} parent=11 // pred_fallthru
          _
        // Predicated region
        $region21: #{tpu_custom_call.1} parent=11 // pred_check
          %p330 = pneg %p115
        $region22: #{tpu_custom_call.1} parent=11 // pred_check_branch
          %332 = sbr.rel (%p330) target = $region24
        $region23: #{tpu_custom_call.1} parent=11 // pred_region
          %s334 = ssub.s32 3072, 3072
          %335 = vsyncadd [#allocation6], %s334
          %s336 = sshll.u32 [#allocation5], 4
          %s337 = int_to_ptr.vmem [resolvable:$true] %s336
          %342 = dma.hbm_to_vmem [thread:$0]  %s3, 3072, %s337, [#allocation6], 192, 192, 12
        $region24: #{tpu_custom_call.1} parent=11 // pred_fallthru
          _
        // Predicated region
        $region25: #{tpu_custom_call.1} parent=11 // pred_check
          %p343 = pneg %p136
        $region26: #{tpu_custom_call.1} parent=11 // pred_check_branch
          %345 = sbr.rel (%p343) target = $region28
        $region27: #{tpu_custom_call.1} parent=11 // pred_region
          %s347 = ssub.s32 1024, 1024
          %348 = vsyncadd [#allocation6], %s347
          %s349 = sshll.u32 [#allocation7], 4
          %s350 = int_to_ptr.vmem [resolvable:$true] %s349
          %355 = dma.hbm_to_vmem [thread:$0]  %s4, 1024, %s350, [#allocation6], 64, 64, 4
        $region28: #{tpu_custom_call.1} parent=11 // pred_fallthru
          _
        // Predicated region
        $region29: #{tpu_custom_call.1} parent=11 // pred_check
          %p356 = pneg %p157
        $region30: #{tpu_custom_call.1} parent=11 // pred_check_branch
          %358 = sbr.rel (%p356) target = $region32
        $region31: #{tpu_custom_call.1} parent=11 // pred_region
          _
        $region32: #{tpu_custom_call.1} parent=11 // pred_fallthru
          _
        // Predicated region
        $region33: #{tpu_custom_call.1} parent=11 // pred_check
          %p359 = pneg %p178
        $region34: #{tpu_custom_call.1} parent=11 // pred_check_branch
          %361 = sbr.rel (%p359) target = $region36
        $region35: #{tpu_custom_call.1} parent=11 // pred_region
          _
        $region36: #{tpu_custom_call.1} parent=11 // pred_fallthru
          _
        // Predicated region
        $region37: #{tpu_custom_call.1} parent=11 // pred_check
          %p362 = pneg %p199
        $region38: #{tpu_custom_call.1} parent=11 // pred_check_branch
          %364 = sbr.rel (%p362) target = $region40
        $region39: #{tpu_custom_call.1} parent=11 // pred_region
          _
        $region40: #{tpu_custom_call.1} parent=11 // pred_fallthru
          _
        // Predicated region
        $region41: #{tpu_custom_call.1} parent=11 // pred_check
          %p365 = pneg %p220
        $region42: #{tpu_custom_call.1} parent=11 // pred_check_branch
          %367 = sbr.rel (%p365) target = $region44
        $region43: #{tpu_custom_call.1} parent=11 // pred_region
          %s369 = ssub.s32 4096, 4096
          %370 = vsyncadd [#allocation9], %s369
          %s371 = sshll.u32 [#allocation8], 4
          %s372 = int_to_ptr.vmem [resolvable:$true] %s371
          %377 = dma.hbm_to_vmem [thread:$0]  %s8, 4096, %s372, [#allocation9], 256, 256, 16
        $region44: #{tpu_custom_call.1} parent=11 // pred_fallthru
          _
        // Predicated region
        $region45: #{tpu_custom_call.1} parent=11 // pred_check
          %p378 = pneg %p241
        $region46: #{tpu_custom_call.1} parent=11 // pred_check_branch
          %380 = sbr.rel (%p378) target = $region48
        $region47: #{tpu_custom_call.1} parent=11 // pred_region
          _
        $region48: #{tpu_custom_call.1} parent=11 // pred_fallthru
          _
        // Predicated region
        $region49: #{tpu_custom_call.1} parent=11 // pred_check
          %p381 = pneg %p262
        $region50: #{tpu_custom_call.1} parent=11 // pred_check_branch
          %383 = sbr.rel (%p381) target = $region52
        $region51: #{tpu_custom_call.1} parent=11 // pred_region
          %s385 = ssub.s32 4096, 4096
          %386 = vsyncadd [#allocation9], %s385
          %s387 = sshll.u32 [#allocation10], 4
          %s388 = int_to_ptr.vmem [resolvable:$true] %s387
          %393 = dma.hbm_to_vmem [thread:$0]  %s10, 4096, %s388, [#allocation9], 64, 64, 4
        $region52: #{tpu_custom_call.1} parent=11 // pred_fallthru
          _
        // Predicated region
        $region53: #{tpu_custom_call.1} parent=11 // pred_check
          %p394 = pneg %p283
        $region54: #{tpu_custom_call.1} parent=11 // pred_check_branch
          %396 = sbr.rel (%p394) target = $region56
        $region55: #{tpu_custom_call.1} parent=11 // pred_region
          _
        $region56: #{tpu_custom_call.1} parent=11 // pred_fallthru
          _
      $region12: #{tpu_custom_call.1} parent=5 // pred_fallthru
        _
      %p397 = scmp.lt.s32.totalorder %s26, 2
      // Predicated region
      $region57: #{tpu_custom_call.1} parent=5 // pred_check
        %p398 = pneg %p397
      $region58: #{tpu_custom_call.1} parent=5 // pred_check_branch
        %400 = sbr.rel (%p398) target = $region60
      $region59: #{tpu_custom_call.1} parent=5 // pred_region
        // Predicated region
        $region61: #{tpu_custom_call.1} parent=59 // pred_check
          %p401 = pneg %p46
        $region62: #{tpu_custom_call.1} parent=59 // pred_check_branch
          %403 = sbr.rel (%p401) target = $region64
        $region63: #{tpu_custom_call.1} parent=59 // pred_region
          %s404 = sand.u32 %s36, 1
          %s405 = scalar_lea.sflag [#allocation3], %s404
          %s406 = sand.u32 %s36, 1
          %s407 = smul.addr %s406, 128
          %s408 = scalar_lea.vmem [#allocation2], %s407
          %s409 = smul.u32 4, %s26
          %s411 = ssub.s32 2048, 2048
          %412 = vsyncadd %s405, %s411
          %s413 = smul.addr %s409, 4
          %s414 = smul.addr %s413, 128
          %s415 = scalar_lea.hbm %s0, %s414
          %s416 = sshll.u32 %s408, 4
          %s417 = int_to_ptr.vmem [resolvable:$true] %s416
          %422 = dma.hbm_to_vmem [thread:$0]  %s415, 2048, %s417, %s405, 128, 128, 8
        $region64: #{tpu_custom_call.1} parent=59 // pred_fallthru
          _
      $region60: #{tpu_custom_call.1} parent=5 // pred_fallthru
        _
      %p423 = scmp.le.s32.totalorder 1, %s26
      %p424 = scmp.lt.s32.totalorder %s26, 3
      %p425 = pnand %p423, %p424
      %p426 = pneg %p425
      // Predicated region
      $region65: #{tpu_custom_call.1} parent=5 // pred_check
        _
      $region66: #{tpu_custom_call.1} parent=5 // pred_check_branch
        %428 = sbr.rel (%p425) target = $region68
      $region67: #{tpu_custom_call.1} parent=5 // pred_region
        %s429 = ssub.s32 %s26, 1
        %s430 = sand.u32 %s39, 1
        %s431 = scalar_lea.sflag [#allocation3], %s430
        %s432 = sand.u32 %s39, 1
        %s433 = smul.addr %s432, 128
        %s434 = scalar_lea.vmem [#allocation2], %s433
        // Predicated region
        $region69: #{tpu_custom_call.1} parent=67 // pred_check
          %p435 = pneg %p52
        $region70: #{tpu_custom_call.1} parent=67 // pred_check_branch
          %437 = sbr.rel (%p435) target = $region72
        $region71: #{tpu_custom_call.1} parent=67 // pred_region
          %438 = dma.done %s431, 2048
        $region72: #{tpu_custom_call.1} parent=67 // pred_fallthru
          _
        // Predicated region
        $region73: #{tpu_custom_call.1} parent=67 // pred_check
          %p439 = pneg %p115
        $region74: #{tpu_custom_call.1} parent=67 // pred_check_branch
          %441 = sbr.rel (%p439) target = $region76
        $region75: #{tpu_custom_call.1} parent=67 // pred_region
          %442 = dma.done [#allocation6], 3072
        $region76: #{tpu_custom_call.1} parent=67 // pred_fallthru
          _
        // Predicated region
        $region77: #{tpu_custom_call.1} parent=67 // pred_check
          %p443 = pneg %p136
        $region78: #{tpu_custom_call.1} parent=67 // pred_check_branch
          %445 = sbr.rel (%p443) target = $region80
        $region79: #{tpu_custom_call.1} parent=67 // pred_region
          %446 = dma.done [#allocation6], 1024
        $region80: #{tpu_custom_call.1} parent=67 // pred_fallthru
          _
        // Predicated region
        $region81: #{tpu_custom_call.1} parent=67 // pred_check
          %p447 = pneg %p220
        $region82: #{tpu_custom_call.1} parent=67 // pred_check_branch
          %449 = sbr.rel (%p447) target = $region84
        $region83: #{tpu_custom_call.1} parent=67 // pred_region
          %450 = dma.done [#allocation9], 4096
        $region84: #{tpu_custom_call.1} parent=67 // pred_fallthru
          _
        // Predicated region
        $region85: #{tpu_custom_call.1} parent=67 // pred_check
          %p451 = pneg %p262
        $region86: #{tpu_custom_call.1} parent=67 // pred_check_branch
          %453 = sbr.rel (%p451) target = $region88
        $region87: #{tpu_custom_call.1} parent=67 // pred_region
          %454 = dma.done [#allocation9], 4096
        $region88: #{tpu_custom_call.1} parent=67 // pred_fallthru
          _
        %s455 = sand.u32 %s39, 1
        %s456 = scalar_lea.sflag [#allocation3], %s455
        %s457 = sand.u32 %s39, 1
        %s458 = smul.addr %s457, 128
        %s459 = scalar_lea.vmem [#allocation2], %s458
        %p460 = pneg %p52
        %p461 = pneg %p49
        %p462 = pneg %p73
        %p463 = pneg %p70
        %p464 = pneg %p94
        %p465 = pneg %p91
        %p466 = pneg %p115
        %p467 = pneg %p112
        %p468 = pneg %p136
        %p469 = pneg %p133
        %p470 = pneg %p157
        %p471 = pneg %p154
        %p472 = pneg %p178
        %p473 = pneg %p175
        %p474 = pneg %p199
        %p475 = pneg %p196
        %p476 = pneg %p220
        %p477 = pneg %p217
        %p478 = pneg %p241
        %p479 = pneg %p238
        %p480 = pneg %p262
        %p481 = pneg %p259
        %p482 = pneg %p283
        %p483 = pneg %p280
        %p484 = pneg %p309
        %p485 = pneg %p306
        %s486 = sand.u32 %s296, 1
        %s487 = scalar_lea.sflag [#allocation4], %s486
        %s488 = sand.u32 %s296, 1
        %s489 = smul.addr %s488, 128
        %s490 = scalar_lea.vmem [#allocation11], %s489
        %s491 = smul.u32 4, %s31
        %s492 = smul.u32 4, %s31
        %v494 = vld [vmem:[%s434] sm:$0xff]
        %v495 = vld [vmem:[%s434 + $0x8] sm:$0xff]
        %v496 = vld [vmem:[%s434 + $0x10] sm:$0xff]
        %v497 = vld [vmem:[%s434 + $0x18] sm:$0xff]
        %v498 = vld [vmem:[%s434 + $0x20] sm:$0xff]
        %v499 = vld [vmem:[%s434 + $0x28] sm:$0xff]
        %v500 = vld [vmem:[%s434 + $0x30] sm:$0xff]
        %v501 = vld [vmem:[%s434 + $0x38] sm:$0xff]
        %v502 = vld [vmem:[%s434 + $0x40] sm:$0xff]
        %v503 = vld [vmem:[%s434 + $0x48] sm:$0xff]
        %v504 = vld [vmem:[%s434 + $0x50] sm:$0xff]
        %v505 = vld [vmem:[%s434 + $0x58] sm:$0xff]
        %v506 = vld [vmem:[%s434 + $0x60] sm:$0xff]
        %v507 = vld [vmem:[%s434 + $0x68] sm:$0xff]
        %v508 = vld [vmem:[%s434 + $0x70] sm:$0xff]
        %v509 = vld [vmem:[%s434 + $0x78] sm:$0xff]
        %v510 = vld [vmem:[%s1] sm:$0x1]
        %v511 = vld [vmem:[%s2] sm:$0x1]
        %512 = vadd.xlane.f32.xlu0 %v494
        %v513 = vpop.xlane.xlu0 %512
        %514 = vadd.xlane.f32.xlu0 %v495
        %v515 = vpop.xlane.xlu0 %514
        %516 = vadd.xlane.f32.xlu0 %v496
        %v517 = vpop.xlane.xlu0 %516
        %518 = vadd.xlane.f32.xlu0 %v497
        %v519 = vpop.xlane.xlu0 %518
        %520 = vadd.xlane.f32.xlu0 %v498
        %v521 = vpop.xlane.xlu0 %520
        %522 = vadd.xlane.f32.xlu0 %v499
        %v523 = vpop.xlane.xlu0 %522
        %524 = vadd.xlane.f32.xlu0 %v500
        %v525 = vpop.xlane.xlu0 %524
        %526 = vadd.xlane.f32.xlu0 %v501
        %v527 = vpop.xlane.xlu0 %526
        %528 = vadd.xlane.f32.xlu0 %v502
        %v529 = vpop.xlane.xlu0 %528
        %530 = vadd.xlane.f32.xlu0 %v503
        %v531 = vpop.xlane.xlu0 %530
        %532 = vadd.xlane.f32.xlu0 %v504
        %v533 = vpop.xlane.xlu0 %532
        %534 = vadd.xlane.f32.xlu0 %v505
        %v535 = vpop.xlane.xlu0 %534
        %536 = vadd.xlane.f32.xlu0 %v506
        %v537 = vpop.xlane.xlu0 %536
        %538 = vadd.xlane.f32.xlu0 %v507
        %v539 = vpop.xlane.xlu0 %538
        %540 = vadd.xlane.f32.xlu0 %v508
        %v541 = vpop.xlane.xlu0 %540
        %542 = vadd.xlane.f32.xlu0 %v509
        %v543 = vpop.xlane.xlu0 %542
        %v544 = vrcp.pop 128.0
        %v545 = vmul.f32 %v513, %v544
        %v546 = vmul.f32 %v515, %v544
        %v547 = vmul.f32 %v517, %v544
        %v548 = vmul.f32 %v519, %v544
        %v549 = vmul.f32 %v521, %v544
        %v550 = vmul.f32 %v523, %v544
        %v551 = vmul.f32 %v525, %v544
        %v552 = vmul.f32 %v527, %v544
        %v553 = vmul.f32 %v529, %v544
        %v554 = vmul.f32 %v531, %v544
        %v555 = vmul.f32 %v533, %v544
        %v556 = vmul.f32 %v535, %v544
        %v557 = vmul.f32 %v537, %v544
        %v558 = vmul.f32 %v539, %v544
        %v559 = vmul.f32 %v541, %v544
        %v560 = vmul.f32 %v543, %v544
        %v561 = vsub.f32 %v494, %v545
        %v562 = vsub.f32 %v495, %v546
        %v563 = vsub.f32 %v496, %v547
        %v564 = vsub.f32 %v497, %v548
        %v565 = vsub.f32 %v498, %v549
        %v566 = vsub.f32 %v499, %v550
        %v567 = vsub.f32 %v500, %v551
        %v568 = vsub.f32 %v501, %v552
        %v569 = vsub.f32 %v502, %v553
        %v570 = vsub.f32 %v503, %v554
        %v571 = vsub.f32 %v504, %v555
        %v572 = vsub.f32 %v505, %v556
        %v573 = vsub.f32 %v506, %v557
        %v574 = vsub.f32 %v507, %v558
        %v575 = vsub.f32 %v508, %v559
        %v576 = vsub.f32 %v509, %v560
        %v577 = vmul.f32 %v561, %v561
        %v578 = vmul.f32 %v562, %v562
        %v579 = vmul.f32 %v563, %v563
        %v580 = vmul.f32 %v564, %v564
        %v581 = vmul.f32 %v565, %v565
        %v582 = vmul.f32 %v566, %v566
        %v583 = vmul.f32 %v567, %v567
        %v584 = vmul.f32 %v568, %v568
        %v585 = vmul.f32 %v569, %v569
        %v586 = vmul.f32 %v570, %v570
        %v587 = vmul.f32 %v571, %v571
        %v588 = vmul.f32 %v572, %v572
        %v589 = vmul.f32 %v573, %v573
        %v590 = vmul.f32 %v574, %v574
        %v591 = vmul.f32 %v575, %v575
        %v592 = vmul.f32 %v576, %v576
        %593 = vadd.xlane.f32.xlu0 %v577
        %v594 = vpop.xlane.xlu0 %593
        %595 = vadd.xlane.f32.xlu0 %v578
        %v596 = vpop.xlane.xlu0 %595
        %597 = vadd.xlane.f32.xlu0 %v579
        %v598 = vpop.xlane.xlu0 %597
        %599 = vadd.xlane.f32.xlu0 %v580
        %v600 = vpop.xlane.xlu0 %599
        %601 = vadd.xlane.f32.xlu0 %v581
        %v602 = vpop.xlane.xlu0 %601
        %603 = vadd.xlane.f32.xlu0 %v582
        %v604 = vpop.xlane.xlu0 %603
        %605 = vadd.xlane.f32.xlu0 %v583
        %v606 = vpop.xlane.xlu0 %605
        %607 = vadd.xlane.f32.xlu0 %v584
        %v608 = vpop.xlane.xlu0 %607
        %609 = vadd.xlane.f32.xlu0 %v585
        %v610 = vpop.xlane.xlu0 %609
        %611 = vadd.xlane.f32.xlu0 %v586
        %v612 = vpop.xlane.xlu0 %611
        %613 = vadd.xlane.f32.xlu0 %v587
        %v614 = vpop.xlane.xlu0 %613
        %615 = vadd.xlane.f32.xlu0 %v588
        %v616 = vpop.xlane.xlu0 %615
        %617 = vadd.xlane.f32.xlu0 %v589
        %v618 = vpop.xlane.xlu0 %617
        %619 = vadd.xlane.f32.xlu0 %v590
        %v620 = vpop.xlane.xlu0 %619
        %621 = vadd.xlane.f32.xlu0 %v591
        %v622 = vpop.xlane.xlu0 %621
        %623 = vadd.xlane.f32.xlu0 %v592
        %v624 = vpop.xlane.xlu0 %623
        %v625 = vmul.f32 %v594, %v544
        %v626 = vmul.f32 %v596, %v544
        %v627 = vmul.f32 %v598, %v544
        %v628 = vmul.f32 %v600, %v544
        %v629 = vmul.f32 %v602, %v544
        %v630 = vmul.f32 %v604, %v544
        %v631 = vmul.f32 %v606, %v544
        %v632 = vmul.f32 %v608, %v544
        %v633 = vmul.f32 %v610, %v544
        %v634 = vmul.f32 %v612, %v544
        %v635 = vmul.f32 %v614, %v544
        %v636 = vmul.f32 %v616, %v544
        %v637 = vmul.f32 %v618, %v544
        %v638 = vmul.f32 %v620, %v544
        %v639 = vmul.f32 %v622, %v544
        %v640 = vmul.f32 %v624, %v544
        %v641 = vadd.f32 %v625, 1e-05
        %v642 = vadd.f32 %v626, 1e-05
        %v643 = vadd.f32 %v627, 1e-05
        %v644 = vadd.f32 %v628, 1e-05
        %v645 = vadd.f32 %v629, 1e-05
        %v646 = vadd.f32 %v630, 1e-05
        %v647 = vadd.f32 %v631, 1e-05
        %v648 = vadd.f32 %v632, 1e-05
        %v649 = vadd.f32 %v633, 1e-05
        %v650 = vadd.f32 %v634, 1e-05
        %v651 = vadd.f32 %v635, 1e-05
        %v652 = vadd.f32 %v636, 1e-05
        %v653 = vadd.f32 %v637, 1e-05
        %v654 = vadd.f32 %v638, 1e-05
        %v655 = vadd.f32 %v639, 1e-05
        %v656 = vadd.f32 %v640, 1e-05
        %v657 = vrsqrt.pop %v641
        %v658 = vrsqrt.pop %v642
        %v659 = vrsqrt.pop %v643
        %v660 = vrsqrt.pop %v644
        %v661 = vrsqrt.pop %v645
        %v662 = vrsqrt.pop %v646
        %v663 = vrsqrt.pop %v647
        %v664 = vrsqrt.pop %v648
        %v665 = vrsqrt.pop %v649
        %v666 = vrsqrt.pop %v650
        %v667 = vrsqrt.pop %v651
        %v668 = vrsqrt.pop %v652
        %v669 = vrsqrt.pop %v653
        %v670 = vrsqrt.pop %v654
        %v671 = vrsqrt.pop %v655
        %v672 = vrsqrt.pop %v656
        %v673 = vmul.f32 %v561, %v657
        %v674 = vmul.f32 %v562, %v658
        %v675 = vmul.f32 %v563, %v659
        %v676 = vmul.f32 %v564, %v660
        %v677 = vmul.f32 %v565, %v661
        %v678 = vmul.f32 %v566, %v662
        %v679 = vmul.f32 %v567, %v663
        %v680 = vmul.f32 %v568, %v664
        %v681 = vmul.f32 %v569, %v665
        %v682 = vmul.f32 %v570, %v666
        %v683 = vmul.f32 %v571, %v667
        %v684 = vmul.f32 %v572, %v668
        %v685 = vmul.f32 %v573, %v669
        %v686 = vmul.f32 %v574, %v670
        %v687 = vmul.f32 %v575, %v671
        %v688 = vmul.f32 %v576, %v672
        %v690 = vlaneseq
        %v691 = vshrl.u32 %v690, 7
        %v692 = vsub.s32 0, %v691
        %v693 = vrot.slane %v510, %v692
        %v695 = vmul.f32 %v673, %v693
        %v696 = vmul.f32 %v674, %v693
        %v697 = vmul.f32 %v675, %v693
        %v698 = vmul.f32 %v676, %v693
        %v699 = vmul.f32 %v677, %v693
        %v700 = vmul.f32 %v678, %v693
        %v701 = vmul.f32 %v679, %v693
        %v702 = vmul.f32 %v680, %v693
        %v703 = vmul.f32 %v681, %v693
        %v704 = vmul.f32 %v682, %v693
        %v705 = vmul.f32 %v683, %v693
        %v706 = vmul.f32 %v684, %v693
        %v707 = vmul.f32 %v685, %v693
        %v708 = vmul.f32 %v686, %v693
        %v709 = vmul.f32 %v687, %v693
        %v710 = vmul.f32 %v688, %v693
        %v712 = vlaneseq
        %v713 = vshrl.u32 %v712, 7
        %v714 = vsub.s32 0, %v713
        %v715 = vrot.slane %v511, %v714
        %v717 = vadd.f32 %v695, %v715
        %v718 = vadd.f32 %v696, %v715
        %v719 = vadd.f32 %v697, %v715
        %v720 = vadd.f32 %v698, %v715
        %v721 = vadd.f32 %v699, %v715
        %v722 = vadd.f32 %v700, %v715
        %v723 = vadd.f32 %v701, %v715
        %v724 = vadd.f32 %v702, %v715
        %v725 = vadd.f32 %v703, %v715
        %v726 = vadd.f32 %v704, %v715
        %v727 = vadd.f32 %v705, %v715
        %v728 = vadd.f32 %v706, %v715
        %v729 = vadd.f32 %v707, %v715
        %v730 = vadd.f32 %v708, %v715
        %v731 = vadd.f32 %v709, %v715
        %v732 = vadd.f32 %v710, %v715
        %v733 = vpack.c.bf16 %v718, %v717
        %v734 = vpack.c.bf16 %v720, %v719
        %v735 = vpack.c.bf16 %v722, %v721
        %v736 = vpack.c.bf16 %v724, %v723
        %v737 = vpack.c.bf16 %v726, %v725
        %v738 = vpack.c.bf16 %v728, %v727
        %v739 = vpack.c.bf16 %v730, %v729
        %v740 = vpack.c.bf16 %v732, %v731
        %v741 = vld [vmem:[#allocation5] sm:$0xff]
        %v742 = vld [vmem:[#allocation5 + $0x8] sm:$0xf]
        %v743 = vld [vmem:[#allocation5 + $0xc] sm:$0xff]
        %v744 = vld [vmem:[#allocation5 + $0x14] sm:$0xf]
        %v745 = vld [vmem:[#allocation5 + $0x18] sm:$0xff]
        %v746 = vld [vmem:[#allocation5 + $0x20] sm:$0xf]
        %v747 = vld [vmem:[#allocation5 + $0x24] sm:$0xff]
        %v748 = vld [vmem:[#allocation5 + $0x2c] sm:$0xf]
        %v749 = vld [vmem:[#allocation5 + $0x30] sm:$0xff]
        %v750 = vld [vmem:[#allocation5 + $0x38] sm:$0xf]
        %v751 = vld [vmem:[#allocation5 + $0x3c] sm:$0xff]
        %v752 = vld [vmem:[#allocation5 + $0x44] sm:$0xf]
        %v753 = vld [vmem:[#allocation5 + $0x48] sm:$0xff]
        %v754 = vld [vmem:[#allocation5 + $0x50] sm:$0xf]
        %v755 = vld [vmem:[#allocation5 + $0x54] sm:$0xff]
        %v756 = vld [vmem:[#allocation5 + $0x5c] sm:$0xf]
        %v757 = vld [vmem:[#allocation5 + $0x60] sm:$0xff]
        %v758 = vld [vmem:[#allocation5 + $0x68] sm:$0xf]
        %v759 = vld [vmem:[#allocation5 + $0x6c] sm:$0xff]
        %v760 = vld [vmem:[#allocation5 + $0x74] sm:$0xf]
        %v761 = vld [vmem:[#allocation5 + $0x78] sm:$0xff]
        %v762 = vld [vmem:[#allocation5 + $0x80] sm:$0xf]
        %v763 = vld [vmem:[#allocation5 + $0x84] sm:$0xff]
        %v764 = vld [vmem:[#allocation5 + $0x8c] sm:$0xf]
        %v765 = vld [vmem:[#allocation5 + $0x90] sm:$0xff]
        %v766 = vld [vmem:[#allocation5 + $0x98] sm:$0xf]
        %v767 = vld [vmem:[#allocation5 + $0x9c] sm:$0xff]
        %v768 = vld [vmem:[#allocation5 + $0xa4] sm:$0xf]
        %v769 = vld [vmem:[#allocation5 + $0xa8] sm:$0xff]
        %v770 = vld [vmem:[#allocation5 + $0xb0] sm:$0xf]
        %v771 = vld [vmem:[#allocation5 + $0xb4] sm:$0xff]
        %v772 = vld [vmem:[#allocation5 + $0xbc] sm:$0xf]
        %v805 = vunpack.c.l.b16 %v741
        %v806 = vunpack.c.h.b16 %v741
        %v807 = vunpack.c.l.b16 %v742
        %v808 = vunpack.c.l.b16 %v743
        %v809 = vunpack.c.h.b16 %v743
        %v810 = vunpack.c.l.b16 %v744
        %v811 = vunpack.c.l.b16 %v745
        %v812 = vunpack.c.h.b16 %v745
        %v813 = vunpack.c.l.b16 %v746
        %v814 = vunpack.c.l.b16 %v747
        %v815 = vunpack.c.h.b16 %v747
        %v816 = vunpack.c.l.b16 %v748
        %v817 = vunpack.c.l.b16 %v749
        %v818 = vunpack.c.h.b16 %v749
        %v819 = vunpack.c.l.b16 %v750
        %v820 = vunpack.c.l.b16 %v751
        %v821 = vunpack.c.h.b16 %v751
        %v822 = vunpack.c.l.b16 %v752
        %v823 = vunpack.c.l.b16 %v753
        %v824 = vunpack.c.h.b16 %v753
        %v825 = vunpack.c.l.b16 %v754
        %v826 = vunpack.c.l.b16 %v755
        %v827 = vunpack.c.h.b16 %v755
        %v828 = vunpack.c.l.b16 %v756
        %v829 = vunpack.c.l.b16 %v757
        %v830 = vunpack.c.h.b16 %v757
        %v831 = vunpack.c.l.b16 %v758
        %v832 = vunpack.c.l.b16 %v759
        %v833 = vunpack.c.h.b16 %v759
        %v834 = vunpack.c.l.b16 %v760
        %v835 = vunpack.c.l.b16 %v761
        %v836 = vunpack.c.h.b16 %v761
        %v837 = vunpack.c.l.b16 %v762
        %v838 = vunpack.c.l.b16 %v763
        %v839 = vunpack.c.h.b16 %v763
        %v840 = vunpack.c.l.b16 %v764
        %v841 = vunpack.c.l.b16 %v765
        %v842 = vunpack.c.h.b16 %v765
        %v843 = vunpack.c.l.b16 %v766
        %v844 = vunpack.c.l.b16 %v767
        %v845 = vunpack.c.h.b16 %v767
        %v846 = vunpack.c.l.b16 %v768
        %v847 = vunpack.c.l.b16 %v769
        %v848 = vunpack.c.h.b16 %v769
        %v849 = vunpack.c.l.b16 %v770
        %v850 = vunpack.c.l.b16 %v771
        %v851 = vunpack.c.h.b16 %v771
        %v852 = vunpack.c.l.b16 %v772
        %v853 = vpack.c.b16 %v808, %v805
        %v854 = vpack.c.b16 %v809, %v806
        %v855 = vpack.c.b16 %v810, %v807
        %v856 = vpack.c.b16 %v814, %v811
        %v857 = vpack.c.b16 %v815, %v812
        %v858 = vpack.c.b16 %v816, %v813
        %v859 = vpack.c.b16 %v820, %v817
        %v860 = vpack.c.b16 %v821, %v818
        %v861 = vpack.c.b16 %v822, %v819
        %v862 = vpack.c.b16 %v826, %v823
        %v863 = vpack.c.b16 %v827, %v824
        %v864 = vpack.c.b16 %v828, %v825
        %v865 = vpack.c.b16 %v832, %v829
        %v866 = vpack.c.b16 %v833, %v830
        %v867 = vpack.c.b16 %v834, %v831
        %v868 = vpack.c.b16 %v838, %v835
        %v869 = vpack.c.b16 %v839, %v836
        %v870 = vpack.c.b16 %v840, %v837
        %v871 = vpack.c.b16 %v844, %v841
        %v872 = vpack.c.b16 %v845, %v842
        %v873 = vpack.c.b16 %v846, %v843
        %v874 = vpack.c.b16 %v850, %v847
        %v875 = vpack.c.b16 %v851, %v848
        %v876 = vpack.c.b16 %v852, %v849
        %901 = vmatprep.subr.bf16.mxu0 %v854
        %902 = vmatpush1.bf16.msra.mxu0 %v853
        %903 = vmatprep.subr.bf16.mxu0 %v857
        %904 = vmatpush1.bf16.msra.mxu0 %v856
        %905 = vmatprep.subr.bf16.mxu0 %v860
        %906 = vmatpush1.bf16.msra.mxu0 %v859
        %907 = vmatprep.subr.bf16.mxu0 %v863
        %908 = vmatpush1.bf16.msra.mxu0 %v862
        %909 = vmatprep.subr.bf16.mxu0 %v866
        %910 = vmatpush1.bf16.msra.mxu0 %v865
        %911 = vmatprep.subr.bf16.mxu0 %v869
        %912 = vmatpush1.bf16.msra.mxu0 %v868
        %913 = vmatprep.subr.bf16.mxu0 %v872
        %914 = vmatpush1.bf16.msra.mxu0 %v871
        %915 = vmatprep.subr.bf16.mxu0 %v875
        %916 = vmatpush1.bf16.msra.mxu0 %v874
        %917 = vmatprep.subr.bf16.mxu0 0
        %918 = vmatpush1.bf16.msra.mxu0 0
        %919 = vmatprep.subr.bf16.mxu0 0
        %920 = vmatpush1.bf16.msra.mxu0 0
        %921 = vmatprep.subr.bf16.mxu0 0
        %922 = vmatpush1.bf16.msra.mxu0 0
        %923 = vmatprep.subr.bf16.mxu0 0
        %924 = vmatpush1.bf16.msra.mxu0 0
        %925 = vmatprep.subr.bf16.mxu0 0
        %926 = vmatpush1.bf16.msra.mxu0 0
        %927 = vmatprep.subr.bf16.mxu0 0
        %928 = vmatpush1.bf16.msra.mxu0 0
        %929 = vmatprep.subr.bf16.mxu0 0
        %930 = vmatpush1.bf16.msra.mxu0 0
        %931 = vmatprep.subr.bf16.mxu0 0
        %932 = vmatpush1.bf16.msra.mxu0 0
        %933 = vmatprep.mubr.bf16.mxu0 0
        %934 = vmatmul.mubr.bf16.gmra.mrb[0].mxu0 %v733
        %v935 = vpop.f32.mrb[0].mxu0
        %v936 = vadd.f32 0.0, %v935
        %v937 = vpop.f32.mrb[0].mxu0
        %v938 = vadd.f32 0.0, %v937
        %v939 = vpop.f32.mrb[0].mxu0
        %v940 = vadd.f32 0.0, %v939
        %v941 = vpop.f32.mrb[0].mxu0
        %v942 = vadd.f32 0.0, %v941
        %943 = vmatprep.mubr.bf16.mxu0 0
        %944 = vmatmul.mubr.bf16.gmra.mrb[0].mxu0 %v734
        %v945 = vpop.f32.mrb[0].mxu0
        %v946 = vadd.f32 0.0, %v945
        %v947 = vpop.f32.mrb[0].mxu0
        %v948 = vadd.f32 0.0, %v947
        %v949 = vpop.f32.mrb[0].mxu0
        %v950 = vadd.f32 0.0, %v949
        %v951 = vpop.f32.mrb[0].mxu0
        %v952 = vadd.f32 0.0, %v951
        %953 = vmatprep.mubr.bf16.mxu0 0
        %954 = vmatmul.mubr.bf16.gmra.mrb[0].mxu0 %v735
        %v955 = vpop.f32.mrb[0].mxu0
        %v956 = vadd.f32 0.0, %v955
        %v957 = vpop.f32.mrb[0].mxu0
        %v958 = vadd.f32 0.0, %v957
        %v959 = vpop.f32.mrb[0].mxu0
        %v960 = vadd.f32 0.0, %v959
        %v961 = vpop.f32.mrb[0].mxu0
        %v962 = vadd.f32 0.0, %v961
        %963 = vmatprep.mubr.bf16.mxu0 0
        %964 = vmatmul.mubr.bf16.gmra.mrb[0].mxu0 %v736
        %v965 = vpop.f32.mrb[0].mxu0
        %v966 = vadd.f32 0.0, %v965
        %v967 = vpop.f32.mrb[0].mxu0
        %v968 = vadd.f32 0.0, %v967
        %v969 = vpop.f32.mrb[0].mxu0
        %v970 = vadd.f32 0.0, %v969
        %v971 = vpop.f32.mrb[0].mxu0
        %v972 = vadd.f32 0.0, %v971
        %973 = vmatprep.mubr.bf16.mxu0 0
        %974 = vmatmul.mubr.bf16.gmra.mrb[0].mxu0 %v737
        %v975 = vpop.f32.mrb[0].mxu0
        %v976 = vadd.f32 0.0, %v975
        %v977 = vpop.f32.mrb[0].mxu0
        %v978 = vadd.f32 0.0, %v977
        %v979 = vpop.f32.mrb[0].mxu0
        %v980 = vadd.f32 0.0, %v979
        %v981 = vpop.f32.mrb[0].mxu0
        %v982 = vadd.f32 0.0, %v981
        %983 = vmatprep.mubr.bf16.mxu0 0
        %984 = vmatmul.mubr.bf16.gmra.mrb[0].mxu0 %v738
        %v985 = vpop.f32.mrb[0].mxu0
        %v986 = vadd.f32 0.0, %v985
        %v987 = vpop.f32.mrb[0].mxu0
        %v988 = vadd.f32 0.0, %v987
        %v989 = vpop.f32.mrb[0].mxu0
        %v990 = vadd.f32 0.0, %v989
        %v991 = vpop.f32.mrb[0].mxu0
        %v992 = vadd.f32 0.0, %v991
        %993 = vmatprep.mubr.bf16.mxu0 0
        %994 = vmatmul.mubr.bf16.gmra.mrb[0].mxu0 %v739
        %v995 = vpop.f32.mrb[0].mxu0
        %v996 = vadd.f32 0.0, %v995
        %v997 = vpop.f32.mrb[0].mxu0
        %v998 = vadd.f32 0.0, %v997
        %v999 = vpop.f32.mrb[0].mxu0
        %v1000 = vadd.f32 0.0, %v999
        %v1001 = vpop.f32.mrb[0].mxu0
        %v1002 = vadd.f32 0.0, %v1001
        %1003 = vmatprep.mubr.bf16.mxu0 0
        %1004 = vmatmul.mubr.bf16.gmra.mrb[0].mxu0 %v740
        %v1005 = vpop.f32.mrb[0].mxu0
        %v1006 = vadd.f32 0.0, %v1005
        %v1007 = vpop.f32.mrb[0].mxu0
        %v1008 = vadd.f32 0.0, %v1007
        %v1009 = vpop.f32.mrb[0].mxu0
        %v1010 = vadd.f32 0.0, %v1009
        %v1011 = vpop.f32.mrb[0].mxu0
        %v1012 = vadd.f32 0.0, %v1011
        %1013 = vdwg.mxu0
        %1014 = vmatprep.subr.bf16.mxu0 0
        %1015 = vmatpush1.bf16.msra.mxu0 %v855
        %1016 = vmatprep.subr.bf16.mxu0 0
        %1017 = vmatpush1.bf16.msra.mxu0 %v858
        %1018 = vmatprep.subr.bf16.mxu0 0
        %1019 = vmatpush1.bf16.msra.mxu0 %v861
        %1020 = vmatprep.subr.bf16.mxu0 0
        %1021 = vmatpush1.bf16.msra.mxu0 %v864
        %1022 = vmatprep.subr.bf16.mxu0 0
        %1023 = vmatpush1.bf16.msra.mxu0 %v867
        %1024 = vmatprep.subr.bf16.mxu0 0
        %1025 = vmatpush1.bf16.msra.mxu0 %v870
        %1026 = vmatprep.subr.bf16.mxu0 0
        %1027 = vmatpush1.bf16.msra.mxu0 %v873
        %1028 = vmatprep.subr.bf16.mxu0 0
        %1029 = vmatpush1.bf16.msra.mxu0 %v876
        %1030 = vmatprep.subr.bf16.mxu0 0
        %1031 = vmatpush1.bf16.msra.mxu0 0
        %1032 = vmatprep.subr.bf16.mxu0 0
        %1033 = vmatpush1.bf16.msra.mxu0 0
        %1034 = vmatprep.subr.bf16.mxu0 0
        %1035 = vmatpush1.bf16.msra.mxu0 0
        %1036 = vmatprep.subr.bf16.mxu0 0
        %1037 = vmatpush1.bf16.msra.mxu0 0
        %1038 = vmatprep.subr.bf16.mxu0 0
        %1039 = vmatpush1.bf16.msra.mxu0 0
        %1040 = vmatprep.subr.bf16.mxu0 0
        %1041 = vmatpush1.bf16.msra.mxu0 0
        %1042 = vmatprep.subr.bf16.mxu0 0
        %1043 = vmatpush1.bf16.msra.mxu0 0
        %1044 = vmatprep.subr.bf16.mxu0 0
        %1045 = vmatpush1.bf16.msra.mxu0 0
        %1046 = vmatprep.mubr.bf16.mxu0 0
        %1047 = vmatmul.mubr.bf16.gmra.mrb[0].mxu0 %v733
        %v1048 = vpop.f32.mrb[0].mxu0
        %v1049 = vadd.f32 0.0, %v1048
        %v1050 = vpop.f32.mrb[0].mxu0
        %v1051 = vpop.f32.mrb[0].mxu0
        %v1052 = vadd.f32 0.0, %v1051
        %v1053 = vpop.f32.mrb[0].mxu0
        %1054 = vmatprep.mubr.bf16.mxu0 0
        %1055 = vmatmul.mubr.bf16.gmra.mrb[0].mxu0 %v734
        %v1056 = vpop.f32.mrb[0].mxu0
        %v1057 = vadd.f32 0.0, %v1056
        %v1058 = vpop.f32.mrb[0].mxu0
        %v1059 = vpop.f32.mrb[0].mxu0
        %v1060 = vadd.f32 0.0, %v1059
        %v1061 = vpop.f32.mrb[0].mxu0
        %1062 = vmatprep.mubr.bf16.mxu0 0
        %1063 = vmatmul.mubr.bf16.gmra.mrb[0].mxu0 %v735
        %v1064 = vpop.f32.mrb[0].mxu0
        %v1065 = vadd.f32 0.0, %v1064
        %v1066 = vpop.f32.mrb[0].mxu0
        %v1067 = vpop.f32.mrb[0].mxu0
        %v1068 = vadd.f32 0.0, %v1067
        %v1069 = vpop.f32.mrb[0].mxu0
        %1070 = vmatprep.mubr.bf16.mxu0 0
        %1071 = vmatmul.mubr.bf16.gmra.mrb[0].mxu0 %v736
        %v1072 = vpop.f32.mrb[0].mxu0
        %v1073 = vadd.f32 0.0, %v1072
        %v1074 = vpop.f32.mrb[0].mxu0
        %v1075 = vpop.f32.mrb[0].mxu0
        %v1076 = vadd.f32 0.0, %v1075
        %v1077 = vpop.f32.mrb[0].mxu0
        %1078 = vmatprep.mubr.bf16.mxu0 0
        %1079 = vmatmul.mubr.bf16.gmra.mrb[0].mxu0 %v737
        %v1080 = vpop.f32.mrb[0].mxu0
        %v1081 = vadd.f32 0.0, %v1080
        %v1082 = vpop.f32.mrb[0].mxu0
        %v1083 = vpop.f32.mrb[0].mxu0
        %v1084 = vadd.f32 0.0, %v1083
        %v1085 = vpop.f32.mrb[0].mxu0
        %1086 = vmatprep.mubr.bf16.mxu0 0
        %1087 = vmatmul.mubr.bf16.gmra.mrb[0].mxu0 %v738
        %v1088 = vpop.f32.mrb[0].mxu0
        %v1089 = vadd.f32 0.0, %v1088
        %v1090 = vpop.f32.mrb[0].mxu0
        %v1091 = vpop.f32.mrb[0].mxu0
        %v1092 = vadd.f32 0.0, %v1091
        %v1093 = vpop.f32.mrb[0].mxu0
        %1094 = vmatprep.mubr.bf16.mxu0 0
        %1095 = vmatmul.mubr.bf16.gmra.mrb[0].mxu0 %v739
        %v1096 = vpop.f32.mrb[0].mxu0
        %v1097 = vadd.f32 0.0, %v1096
        %v1098 = vpop.f32.mrb[0].mxu0
        %v1099 = vpop.f32.mrb[0].mxu0
        %v1100 = vadd.f32 0.0, %v1099
        %v1101 = vpop.f32.mrb[0].mxu0
        %1102 = vmatprep.mubr.bf16.mxu0 0
        %1103 = vmatmul.mubr.bf16.gmra.mrb[0].mxu0 %v740
        %v1104 = vpop.f32.mrb[0].mxu0
        %v1105 = vadd.f32 0.0, %v1104
        %v1106 = vpop.f32.mrb[0].mxu0
        %v1107 = vpop.f32.mrb[0].mxu0
        %v1108 = vadd.f32 0.0, %v1107
        %v1109 = vpop.f32.mrb[0].mxu0
        %1110 = vdwg.mxu0
        %v1111 = vpack.c.bf16 %v940, %v936
        %v1112 = vpack.c.bf16 %v942, %v938
        %v1113 = vpack.c.bf16 %v1052, %v1049
        %v1114 = vpack.c.bf16 %v950, %v946
        %v1115 = vpack.c.bf16 %v952, %v948
        %v1116 = vpack.c.bf16 %v1060, %v1057
        %v1117 = vpack.c.bf16 %v960, %v956
        %v1118 = vpack.c.bf16 %v962, %v958
        %v1119 = vpack.c.bf16 %v1068, %v1065
        %v1120 = vpack.c.bf16 %v970, %v966
        %v1121 = vpack.c.bf16 %v972, %v968
        %v1122 = vpack.c.bf16 %v1076, %v1073
        %v1123 = vpack.c.bf16 %v980, %v976
        %v1124 = vpack.c.bf16 %v982, %v978
        %v1125 = vpack.c.bf16 %v1084, %v1081
        %v1126 = vpack.c.bf16 %v990, %v986
        %v1127 = vpack.c.bf16 %v992, %v988
        %v1128 = vpack.c.bf16 %v1092, %v1089
        %v1129 = vpack.c.bf16 %v1000, %v996
        %v1130 = vpack.c.bf16 %v1002, %v998
        %v1131 = vpack.c.bf16 %v1100, %v1097
        %v1132 = vpack.c.bf16 %v1010, %v1006
        %v1133 = vpack.c.bf16 %v1012, %v1008
        %v1134 = vpack.c.bf16 %v1108, %v1105
        %vm1135 = vcmask 261120
        %v1137 = vsel %vm1135, %v1111, 0
        %v1140 = vsel %vm1135, %v1114, 0
        %v1143 = vsel %vm1135, %v1112, 0
        %v1146 = vsel %vm1135, %v1115, 0
        %1148 = vmatprep.subr.bf16.mxu0 0
        %1149 = vmatpush1.bf16.xpose.msra.mxu0 %v1143
        %1150 = vmatprep.subr.bf16.mxu0 0
        %1151 = vmatpush1.bf16.xpose.msra.mxu0 %v1146
        %1152 = vmatprep.subr.bf16.mxu0 0
        %1153 = vmatpush1.bf16.xpose.msra.mxu0 0
        %1154 = vmatprep.subr.bf16.mxu0 0
        %1155 = vmatpush1.bf16.xpose.msra.mxu0 0
        %1156 = vmatprep.subr.bf16.mxu0 0
        %1157 = vmatpush1.bf16.xpose.msra.mxu0 0
        %1158 = vmatprep.subr.bf16.mxu0 0
        %1159 = vmatpush1.bf16.xpose.msra.mxu0 0
        %1160 = vmatprep.subr.bf16.mxu0 0
        %1161 = vmatpush1.bf16.xpose.msra.mxu0 0
        %1162 = vmatprep.subr.bf16.mxu0 0
        %1163 = vmatpush1.bf16.xpose.msra.mxu0 0
        %1164 = vmatprep.subr.bf16.mxu0 0
        %1165 = vmatpush1.bf16.xpose.msra.mxu0 0
        %1166 = vmatprep.subr.bf16.mxu0 0
        %1167 = vmatpush1.bf16.xpose.msra.mxu0 0
        %1168 = vmatprep.subr.bf16.mxu0 0
        %1169 = vmatpush1.bf16.xpose.msra.mxu0 0
        %1170 = vmatprep.subr.bf16.mxu0 0
        %1171 = vmatpush1.bf16.xpose.msra.mxu0 0
        %1172 = vmatprep.subr.bf16.mxu0 0
        %1173 = vmatpush1.bf16.xpose.msra.mxu0 0
        %1174 = vmatprep.subr.bf16.mxu0 0
        %1175 = vmatpush1.bf16.xpose.msra.mxu0 0
        %1176 = vmatprep.subr.bf16.mxu0 0
        %1177 = vmatpush1.bf16.xpose.msra.mxu0 0
        %1178 = vmatprep.subr.bf16.mxu0 0
        %1179 = vmatpush1.bf16.xpose.msra.mxu0 0
        %1180 = vmatprep.mubr.bf16.mxu0 0
        %1181 = vmatmul.mubr.bf16.gmra.mrb[0].mxu0 %v1137
        %v1182 = vpop.f32.mrb[0].mxu0
        %v1183 = vadd.f32 0.0, %v1182
        %v1184 = vpop.f32.mrb[0].mxu0
        %v1185 = vpop.f32.mrb[0].mxu0
        %v1186 = vadd.f32 0.0, %v1185
        %v1187 = vpop.f32.mrb[0].mxu0
        %1188 = vmatprep.mubr.bf16.mxu0 0
        %1189 = vmatmul.mubr.bf16.gmra.mrb[0].mxu0 %v1140
        %v1190 = vpop.f32.mrb[0].mxu0
        %v1191 = vadd.f32 0.0, %v1190
        %v1192 = vpop.f32.mrb[0].mxu0
        %v1193 = vpop.f32.mrb[0].mxu0
        %v1194 = vadd.f32 0.0, %v1193
        %v1195 = vpop.f32.mrb[0].mxu0
        %1196 = vdwg.mxu0
        %v1198 = vsel %vm1135, %v1117, 0
        %v1201 = vsel %vm1135, %v1120, 0
        %v1204 = vsel %vm1135, %v1118, 0
        %v1207 = vsel %vm1135, %v1121, 0
        %1209 = vmatprep.subr.bf16.mxu0 0
        %1210 = vmatpush1.bf16.xpose.msra.mxu0 %v1204
        %1211 = vmatprep.subr.bf16.mxu0 0
        %1212 = vmatpush1.bf16.xpose.msra.mxu0 %v1207
        %1213 = vmatprep.subr.bf16.mxu0 0
        %1214 = vmatpush1.bf16.xpose.msra.mxu0 0
        %1215 = vmatprep.subr.bf16.mxu0 0
        %1216 = vmatpush1.bf16.xpose.msra.mxu0 0
        %1217 = vmatprep.subr.bf16.mxu0 0
        %1218 = vmatpush1.bf16.xpose.msra.mxu0 0
        %1219 = vmatprep.subr.bf16.mxu0 0
        %1220 = vmatpush1.bf16.xpose.msra.mxu0 0
        %1221 = vmatprep.subr.bf16.mxu0 0
        %1222 = vmatpush1.bf16.xpose.msra.mxu0 0
        %1223 = vmatprep.subr.bf16.mxu0 0
        %1224 = vmatpush1.bf16.xpose.msra.mxu0 0
        %1225 = vmatprep.subr.bf16.mxu0 0
        %1226 = vmatpush1.bf16.xpose.msra.mxu0 0
        %1227 = vmatprep.subr.bf16.mxu0 0
        %1228 = vmatpush1.bf16.xpose.msra.mxu0 0
        %1229 = vmatprep.subr.bf16.mxu0 0
        %1230 = vmatpush1.bf16.xpose.msra.mxu0 0
        %1231 = vmatprep.subr.bf16.mxu0 0
        %1232 = vmatpush1.bf16.xpose.msra.mxu0 0
        %1233 = vmatprep.subr.bf16.mxu0 0
        %1234 = vmatpush1.bf16.xpose.msra.mxu0 0
        %1235 = vmatprep.subr.bf16.mxu0 0
        %1236 = vmatpush1.bf16.xpose.msra.mxu0 0
        %1237 = vmatprep.subr.bf16.mxu0 0
        %1238 = vmatpush1.bf16.xpose.msra.mxu0 0
        %1239 = vmatprep.subr.bf16.mxu0 0
        %1240 = vmatpush1.bf16.xpose.msra.mxu0 0
        %1241 = vmatprep.mubr.bf16.mxu0 0
        %1242 = vmatmul.mubr.bf16.gmra.mrb[0].mxu0 %v1198
        %v1243 = vpop.f32.mrb[0].mxu0
        %v1244 = vadd.f32 0.0, %v1243
        %v1245 = vpop.f32.mrb[0].mxu0
        %v1246 = vpop.f32.mrb[0].mxu0
        %v1247 = vadd.f32 0.0, %v1246
        %v1248 = vpop.f32.mrb[0].mxu0
        %1249 = vmatprep.mubr.bf16.mxu0 0
        %1250 = vmatmul.mubr.bf16.gmra.mrb[0].mxu0 %v1201
        %v1251 = vpop.f32.mrb[0].mxu0
        %v1252 = vadd.f32 0.0, %v1251
        %v1253 = vpop.f32.mrb[0].mxu0
        %v1254 = vpop.f32.mrb[0].mxu0
        %v1255 = vadd.f32 0.0, %v1254
        %v1256 = vpop.f32.mrb[0].mxu0
        %1257 = vdwg.mxu0
        %v1259 = vsel %vm1135, %v1123, 0
        %v1262 = vsel %vm1135, %v1126, 0
        %v1265 = vsel %vm1135, %v1124, 0
        %v1268 = vsel %vm1135, %v1127, 0
        %1270 = vmatprep.subr.bf16.mxu0 0
        %1271 = vmatpush1.bf16.xpose.msra.mxu0 %v1265
        %1272 = vmatprep.subr.bf16.mxu0 0
        %1273 = vmatpush1.bf16.xpose.msra.mxu0 %v1268
        %1274 = vmatprep.subr.bf16.mxu0 0
        %1275 = vmatpush1.bf16.xpose.msra.mxu0 0
        %1276 = vmatprep.subr.bf16.mxu0 0
        %1277 = vmatpush1.bf16.xpose.msra.mxu0 0
        %1278 = vmatprep.subr.bf16.mxu0 0
        %1279 = vmatpush1.bf16.xpose.msra.mxu0 0
        %1280 = vmatprep.subr.bf16.mxu0 0
        %1281 = vmatpush1.bf16.xpose.msra.mxu0 0
        %1282 = vmatprep.subr.bf16.mxu0 0
        %1283 = vmatpush1.bf16.xpose.msra.mxu0 0
        %1284 = vmatprep.subr.bf16.mxu0 0
        %1285 = vmatpush1.bf16.xpose.msra.mxu0 0
        %1286 = vmatprep.subr.bf16.mxu0 0
        %1287 = vmatpush1.bf16.xpose.msra.mxu0 0
        %1288 = vmatprep.subr.bf16.mxu0 0
        %1289 = vmatpush1.bf16.xpose.msra.mxu0 0
        %1290 = vmatprep.subr.bf16.mxu0 0
        %1291 = vmatpush1.bf16.xpose.msra.mxu0 0
        %1292 = vmatprep.subr.bf16.mxu0 0
        %1293 = vmatpush1.bf16.xpose.msra.mxu0 0
        %1294 = vmatprep.subr.bf16.mxu0 0
        %1295 = vmatpush1.bf16.xpose.msra.mxu0 0
        %1296 = vmatprep.subr.bf16.mxu0 0
        %1297 = vmatpush1.bf16.xpose.msra.mxu0 0
        %1298 = vmatprep.subr.bf16.mxu0 0
        %1299 = vmatpush1.bf16.xpose.msra.mxu0 0
        %1300 = vmatprep.subr.bf16.mxu0 0
        %1301 = vmatpush1.bf16.xpose.msra.mxu0 0
        %1302 = vmatprep.mubr.bf16.mxu0 0
        %1303 = vmatmul.mubr.bf16.gmra.mrb[0].mxu0 %v1259
        %v1304 = vpop.f32.mrb[0].mxu0
        %v1305 = vadd.f32 0.0, %v1304
        %v1306 = vpop.f32.mrb[0].mxu0
        %v1307 = vpop.f32.mrb[0].mxu0
        %v1308 = vadd.f32 0.0, %v1307
        %v1309 = vpop.f32.mrb[0].mxu0
        %1310 = vmatprep.mubr.bf16.mxu0 0
        %1311 = vmatmul.mubr.bf16.gmra.mrb[0].mxu0 %v1262
        %v1312 = vpop.f32.mrb[0].mxu0
        %v1313 = vadd.f32 0.0, %v1312
        %v1314 = vpop.f32.mrb[0].mxu0
        %v1315 = vpop.f32.mrb[0].mxu0
        %v1316 = vadd.f32 0.0, %v1315
        %v1317 = vpop.f32.mrb[0].mxu0
        %1318 = vdwg.mxu0
        %v1320 = vsel %vm1135, %v1129, 0
        %v1323 = vsel %vm1135, %v1132, 0
        %v1326 = vsel %vm1135, %v1130, 0
        %v1329 = vsel %vm1135, %v1133, 0
        %1331 = vmatprep.subr.bf16.mxu0 0
        %1332 = vmatpush1.bf16.xpose.msra.mxu0 %v1326
        %1333 = vmatprep.subr.bf16.mxu0 0
        %1334 = vmatpush1.bf16.xpose.msra.mxu0 %v1329
        %1335 = vmatprep.subr.bf16.mxu0 0
        %1336 = vmatpush1.bf16.xpose.msra.mxu0 0
        %1337 = vmatprep.subr.bf16.mxu0 0
        %1338 = vmatpush1.bf16.xpose.msra.mxu0 0
        %1339 = vmatprep.subr.bf16.mxu0 0
        %1340 = vmatpush1.bf16.xpose.msra.mxu0 0
        %1341 = vmatprep.subr.bf16.mxu0 0
        %1342 = vmatpush1.bf16.xpose.msra.mxu0 0
        %1343 = vmatprep.subr.bf16.mxu0 0
        %1344 = vmatpush1.bf16.xpose.msra.mxu0 0
        %1345 = vmatprep.subr.bf16.mxu0 0
        %1346 = vmatpush1.bf16.xpose.msra.mxu0 0
        %1347 = vmatprep.subr.bf16.mxu0 0
        %1348 = vmatpush1.bf16.xpose.msra.mxu0 0
        %1349 = vmatprep.subr.bf16.mxu0 0
        %1350 = vmatpush1.bf16.xpose.msra.mxu0 0
        %1351 = vmatprep.subr.bf16.mxu0 0
        %1352 = vmatpush1.bf16.xpose.msra.mxu0 0
        %1353 = vmatprep.subr.bf16.mxu0 0
        %1354 = vmatpush1.bf16.xpose.msra.mxu0 0
        %1355 = vmatprep.subr.bf16.mxu0 0
        %1356 = vmatpush1.bf16.xpose.msra.mxu0 0
        %1357 = vmatprep.subr.bf16.mxu0 0
        %1358 = vmatpush1.bf16.xpose.msra.mxu0 0
        %1359 = vmatprep.subr.bf16.mxu0 0
        %1360 = vmatpush1.bf16.xpose.msra.mxu0 0
        %1361 = vmatprep.subr.bf16.mxu0 0
        %1362 = vmatpush1.bf16.xpose.msra.mxu0 0
        %1363 = vmatprep.mubr.bf16.mxu0 0
        %1364 = vmatmul.mubr.bf16.gmra.mrb[0].mxu0 %v1320
        %v1365 = vpop.f32.mrb[0].mxu0
        %v1366 = vadd.f32 0.0, %v1365
        %v1367 = vpop.f32.mrb[0].mxu0
        %v1368 = vpop.f32.mrb[0].mxu0
        %v1369 = vadd.f32 0.0, %v1368
        %v1370 = vpop.f32.mrb[0].mxu0
        %1371 = vmatprep.mubr.bf16.mxu0 0
        %1372 = vmatmul.mubr.bf16.gmra.mrb[0].mxu0 %v1323
        %v1373 = vpop.f32.mrb[0].mxu0
        %v1374 = vadd.f32 0.0, %v1373
        %v1375 = vpop.f32.mrb[0].mxu0
        %v1376 = vpop.f32.mrb[0].mxu0
        %v1377 = vadd.f32 0.0, %v1376
        %v1378 = vpop.f32.mrb[0].mxu0
        %1379 = vdwg.mxu0
        %v1380 = vsel %vm1135, %v1183, -inf
        %1381 = vmax.xlane.f32.xlu0 %v1380
        %v1382 = vpop.xlane.xlu0 %1381
        %v1383 = vsel %vm1135, %v1186, -inf
        %1384 = vmax.xlane.f32.xlu0 %v1383
        %v1385 = vpop.xlane.xlu0 %1384
        %v1386 = vsel %vm1135, %v1191, -inf
        %1387 = vmax.xlane.f32.xlu0 %v1386
        %v1388 = vpop.xlane.xlu0 %1387
        %v1389 = vsel %vm1135, %v1194, -inf
        %1390 = vmax.xlane.f32.xlu0 %v1389
        %v1391 = vpop.xlane.xlu0 %1390
        %v1392 = vsel %vm1135, %v1244, -inf
        %1393 = vmax.xlane.f32.xlu0 %v1392
        %v1394 = vpop.xlane.xlu0 %1393
        %v1395 = vsel %vm1135, %v1247, -inf
        %1396 = vmax.xlane.f32.xlu0 %v1395
        %v1397 = vpop.xlane.xlu0 %1396
        %v1398 = vsel %vm1135, %v1252, -inf
        %1399 = vmax.xlane.f32.xlu0 %v1398
        %v1400 = vpop.xlane.xlu0 %1399
        %v1401 = vsel %vm1135, %v1255, -inf
        %1402 = vmax.xlane.f32.xlu0 %v1401
        %v1403 = vpop.xlane.xlu0 %1402
        %v1404 = vsel %vm1135, %v1305, -inf
        %1405 = vmax.xlane.f32.xlu0 %v1404
        %v1406 = vpop.xlane.xlu0 %1405
        %v1407 = vsel %vm1135, %v1308, -inf
        %1408 = vmax.xlane.f32.xlu0 %v1407
        %v1409 = vpop.xlane.xlu0 %1408
        %v1410 = vsel %vm1135, %v1313, -inf
        %1411 = vmax.xlane.f32.xlu0 %v1410
        %v1412 = vpop.xlane.xlu0 %1411
        %v1413 = vsel %vm1135, %v1316, -inf
        %1414 = vmax.xlane.f32.xlu0 %v1413
        %v1415 = vpop.xlane.xlu0 %1414
        %v1416 = vsel %vm1135, %v1366, -inf
        %1417 = vmax.xlane.f32.xlu0 %v1416
        %v1418 = vpop.xlane.xlu0 %1417
        %v1419 = vsel %vm1135, %v1369, -inf
        %1420 = vmax.xlane.f32.xlu0 %v1419
        %v1421 = vpop.xlane.xlu0 %1420
        %v1422 = vsel %vm1135, %v1374, -inf
        %1423 = vmax.xlane.f32.xlu0 %v1422
        %v1424 = vpop.xlane.xlu0 %1423
        %v1425 = vsel %vm1135, %v1377, -inf
        %1426 = vmax.xlane.f32.xlu0 %v1425
        %v1427 = vpop.xlane.xlu0 %1426
        %v1428 = vsub.f32 %v1183, %v1382
        %v1429 = vsub.f32 %v1186, %v1385
        %v1430 = vsub.f32 %v1191, %v1388
        %v1431 = vsub.f32 %v1194, %v1391
        %v1432 = vsub.f32 %v1244, %v1394
        %v1433 = vsub.f32 %v1247, %v1397
        %v1434 = vsub.f32 %v1252, %v1400
        %v1435 = vsub.f32 %v1255, %v1403
        %v1436 = vsub.f32 %v1305, %v1406
        %v1437 = vsub.f32 %v1308, %v1409
        %v1438 = vsub.f32 %v1313, %v1412
        %v1439 = vsub.f32 %v1316, %v1415
        %v1440 = vsub.f32 %v1366, %v1418
        %v1441 = vsub.f32 %v1369, %v1421
        %v1442 = vsub.f32 %v1374, %v1424
        %v1443 = vsub.f32 %v1377, %v1427
        %v1444 = vmul.f32 %v1428, 1.442695
        %v1445 = vpow.pop %v1444
        %v1446 = vmul.f32 %v1429, 1.442695
        %v1447 = vpow.pop %v1446
        %v1448 = vmul.f32 %v1430, 1.442695
        %v1449 = vpow.pop %v1448
        %v1450 = vmul.f32 %v1431, 1.442695
        %v1451 = vpow.pop %v1450
        %v1452 = vmul.f32 %v1432, 1.442695
        %v1453 = vpow.pop %v1452
        %v1454 = vmul.f32 %v1433, 1.442695
        %v1455 = vpow.pop %v1454
        %v1456 = vmul.f32 %v1434, 1.442695
        %v1457 = vpow.pop %v1456
        %v1458 = vmul.f32 %v1435, 1.442695
        %v1459 = vpow.pop %v1458
        %v1460 = vmul.f32 %v1436, 1.442695
        %v1461 = vpow.pop %v1460
        %v1462 = vmul.f32 %v1437, 1.442695
        %v1463 = vpow.pop %v1462
        %v1464 = vmul.f32 %v1438, 1.442695
        %v1465 = vpow.pop %v1464
        %v1466 = vmul.f32 %v1439, 1.442695
        %v1467 = vpow.pop %v1466
        %v1468 = vmul.f32 %v1440, 1.442695
        %v1469 = vpow.pop %v1468
        %v1470 = vmul.f32 %v1441, 1.442695
        %v1471 = vpow.pop %v1470
        %v1472 = vmul.f32 %v1442, 1.442695
        %v1473 = vpow.pop %v1472
        %v1474 = vmul.f32 %v1443, 1.442695
        %v1475 = vpow.pop %v1474
        %v1476 = vsel %vm1135, %v1445, 0.0
        %1477 = vadd.xlane.f32.xlu0 %v1476
        %v1478 = vpop.xlane.xlu0 %1477
        %v1479 = vsel %vm1135, %v1447, 0.0
        %1480 = vadd.xlane.f32.xlu0 %v1479
        %v1481 = vpop.xlane.xlu0 %1480
        %v1482 = vsel %vm1135, %v1449, 0.0
        %1483 = vadd.xlane.f32.xlu0 %v1482
        %v1484 = vpop.xlane.xlu0 %1483
        %v1485 = vsel %vm1135, %v1451, 0.0
        %1486 = vadd.xlane.f32.xlu0 %v1485
        %v1487 = vpop.xlane.xlu0 %1486
        %v1488 = vsel %vm1135, %v1453, 0.0
        %1489 = vadd.xlane.f32.xlu0 %v1488
        %v1490 = vpop.xlane.xlu0 %1489
        %v1491 = vsel %vm1135, %v1455, 0.0
        %1492 = vadd.xlane.f32.xlu0 %v1491
        %v1493 = vpop.xlane.xlu0 %1492
        %v1494 = vsel %vm1135, %v1457, 0.0
        %1495 = vadd.xlane.f32.xlu0 %v1494
        %v1496 = vpop.xlane.xlu0 %1495
        %v1497 = vsel %vm1135, %v1459, 0.0
        %1498 = vadd.xlane.f32.xlu0 %v1497
        %v1499 = vpop.xlane.xlu0 %1498
        %v1500 = vsel %vm1135, %v1461, 0.0
        %1501 = vadd.xlane.f32.xlu0 %v1500
        %v1502 = vpop.xlane.xlu0 %1501
        %v1503 = vsel %vm1135, %v1463, 0.0
        %1504 = vadd.xlane.f32.xlu0 %v1503
        %v1505 = vpop.xlane.xlu0 %1504
        %v1506 = vsel %vm1135, %v1465, 0.0
        %1507 = vadd.xlane.f32.xlu0 %v1506
        %v1508 = vpop.xlane.xlu0 %1507
        %v1509 = vsel %vm1135, %v1467, 0.0
        %1510 = vadd.xlane.f32.xlu0 %v1509
        %v1511 = vpop.xlane.xlu0 %1510
        %v1512 = vsel %vm1135, %v1469, 0.0
        %1513 = vadd.xlane.f32.xlu0 %v1512
        %v1514 = vpop.xlane.xlu0 %1513
        %v1515 = vsel %vm1135, %v1471, 0.0
        %1516 = vadd.xlane.f32.xlu0 %v1515
        %v1517 = vpop.xlane.xlu0 %1516
        %v1518 = vsel %vm1135, %v1473, 0.0
        %1519 = vadd.xlane.f32.xlu0 %v1518
        %v1520 = vpop.xlane.xlu0 %1519
        %v1521 = vsel %vm1135, %v1475, 0.0
        %1522 = vadd.xlane.f32.xlu0 %v1521
        %v1523 = vpop.xlane.xlu0 %1522
        %v1524 = vrcp.pop %v1478
        %v1525 = vrcp.pop %v1481
        %v1526 = vrcp.pop %v1484
        %v1527 = vrcp.pop %v1487
        %v1528 = vrcp.pop %v1490
        %v1529 = vrcp.pop %v1493
        %v1530 = vrcp.pop %v1496
        %v1531 = vrcp.pop %v1499
        %v1532 = vrcp.pop %v1502
        %v1533 = vrcp.pop %v1505
        %v1534 = vrcp.pop %v1508
        %v1535 = vrcp.pop %v1511
        %v1536 = vrcp.pop %v1514
        %v1537 = vrcp.pop %v1517
        %v1538 = vrcp.pop %v1520
        %v1539 = vrcp.pop %v1523
        %v1540 = vmul.f32 %v1445, %v1524
        %v1541 = vmul.f32 %v1447, %v1525
        %v1542 = vmul.f32 %v1449, %v1526
        %v1543 = vmul.f32 %v1451, %v1527
        %v1544 = vmul.f32 %v1453, %v1528
        %v1545 = vmul.f32 %v1455, %v1529
        %v1546 = vmul.f32 %v1457, %v1530
        %v1547 = vmul.f32 %v1459, %v1531
        %v1548 = vmul.f32 %v1461, %v1532
        %v1549 = vmul.f32 %v1463, %v1533
        %v1550 = vmul.f32 %v1465, %v1534
        %v1551 = vmul.f32 %v1467, %v1535
        %v1552 = vmul.f32 %v1469, %v1536
        %v1553 = vmul.f32 %v1471, %v1537
        %v1554 = vmul.f32 %v1473, %v1538
        %v1555 = vmul.f32 %v1475, %v1539
        %v1556 = vpack.c.bf16 %v1541, %v1540
        %v1557 = vpack.c.bf16 %v1543, %v1542
        %v1558 = vpack.c.bf16 %v1545, %v1544
        %v1559 = vpack.c.bf16 %v1547, %v1546
        %v1560 = vpack.c.bf16 %v1549, %v1548
        %v1561 = vpack.c.bf16 %v1551, %v1550
        %v1562 = vpack.c.bf16 %v1553, %v1552
        %v1563 = vpack.c.bf16 %v1555, %v1554
        %v1565 = vsel %vm1135, %v1556, 0
        %v1568 = vsel %vm1135, %v1557, 0
        %1570 = vmatprep.subr.bf16.mxu0 0
        %1571 = vmatpush1.bf16.msra.mxu0 %v1113
        %1572 = vmatprep.subr.bf16.mxu0 0
        %1573 = vmatpush1.bf16.msra.mxu0 %v1116
        %1574 = vmatprep.subr.bf16.mxu0 0
        %1575 = vmatpush1.bf16.msra.mxu0 0
        %1576 = vmatprep.subr.bf16.mxu0 0
        %1577 = vmatpush1.bf16.msra.mxu0 0
        %1578 = vmatprep.subr.bf16.mxu0 0
        %1579 = vmatpush1.bf16.msra.mxu0 0
        %1580 = vmatprep.subr.bf16.mxu0 0
        %1581 = vmatpush1.bf16.msra.mxu0 0
        %1582 = vmatprep.subr.bf16.mxu0 0
        %1583 = vmatpush1.bf16.msra.mxu0 0
        %1584 = vmatprep.subr.bf16.mxu0 0
        %1585 = vmatpush1.bf16.msra.mxu0 0
        %1586 = vmatprep.subr.bf16.mxu0 0
        %1587 = vmatpush1.bf16.msra.mxu0 0
        %1588 = vmatprep.subr.bf16.mxu0 0
        %1589 = vmatpush1.bf16.msra.mxu0 0
        %1590 = vmatprep.subr.bf16.mxu0 0
        %1591 = vmatpush1.bf16.msra.mxu0 0
        %1592 = vmatprep.subr.bf16.mxu0 0
        %1593 = vmatpush1.bf16.msra.mxu0 0
        %1594 = vmatprep.subr.bf16.mxu0 0
        %1595 = vmatpush1.bf16.msra.mxu0 0
        %1596 = vmatprep.subr.bf16.mxu0 0
        %1597 = vmatpush1.bf16.msra.mxu0 0
        %1598 = vmatprep.subr.bf16.mxu0 0
        %1599 = vmatpush1.bf16.msra.mxu0 0
        %1600 = vmatprep.subr.bf16.mxu0 0
        %1601 = vmatpush1.bf16.msra.mxu0 0
        %1602 = vmatprep.mubr.bf16.mxu0 0
        %1603 = vmatmul.mubr.bf16.gmra.mrb[0].mxu0 %v1565
        %v1604 = vpop.f32.mrb[0].mxu0
        %v1605 = vadd.f32 0.0, %v1604
        %v1606 = vpop.f32.mrb[0].mxu0
        %v1607 = vpop.f32.mrb[0].mxu0
        %v1608 = vadd.f32 0.0, %v1607
        %v1609 = vpop.f32.mrb[0].mxu0
        %1610 = vmatprep.mubr.bf16.mxu0 0
        %1611 = vmatmul.mubr.bf16.gmra.mrb[0].mxu0 %v1568
        %v1612 = vpop.f32.mrb[0].mxu0
        %v1613 = vadd.f32 0.0, %v1612
        %v1614 = vpop.f32.mrb[0].mxu0
        %v1615 = vpop.f32.mrb[0].mxu0
        %v1616 = vadd.f32 0.0, %v1615
        %v1617 = vpop.f32.mrb[0].mxu0
        %1618 = vdwg.mxu0
        %v1620 = vsel %vm1135, %v1558, 0
        %v1623 = vsel %vm1135, %v1559, 0
        %1625 = vmatprep.subr.bf16.mxu0 0
        %1626 = vmatpush1.bf16.msra.mxu0 %v1119
        %1627 = vmatprep.subr.bf16.mxu0 0
        %1628 = vmatpush1.bf16.msra.mxu0 %v1122
        %1629 = vmatprep.subr.bf16.mxu0 0
        %1630 = vmatpush1.bf16.msra.mxu0 0
        %1631 = vmatprep.subr.bf16.mxu0 0
        %1632 = vmatpush1.bf16.msra.mxu0 0
        %1633 = vmatprep.subr.bf16.mxu0 0
        %1634 = vmatpush1.bf16.msra.mxu0 0
        %1635 = vmatprep.subr.bf16.mxu0 0
        %1636 = vmatpush1.bf16.msra.mxu0 0
        %1637 = vmatprep.subr.bf16.mxu0 0
        %1638 = vmatpush1.bf16.msra.mxu0 0
        %1639 = vmatprep.subr.bf16.mxu0 0
        %1640 = vmatpush1.bf16.msra.mxu0 0
        %1641 = vmatprep.subr.bf16.mxu0 0
        %1642 = vmatpush1.bf16.msra.mxu0 0
        %1643 = vmatprep.subr.bf16.mxu0 0
        %1644 = vmatpush1.bf16.msra.mxu0 0
        %1645 = vmatprep.subr.bf16.mxu0 0
        %1646 = vmatpush1.bf16.msra.mxu0 0
        %1647 = vmatprep.subr.bf16.mxu0 0
        %1648 = vmatpush1.bf16.msra.mxu0 0
        %1649 = vmatprep.subr.bf16.mxu0 0
        %1650 = vmatpush1.bf16.msra.mxu0 0
        %1651 = vmatprep.subr.bf16.mxu0 0
        %1652 = vmatpush1.bf16.msra.mxu0 0
        %1653 = vmatprep.subr.bf16.mxu0 0
        %1654 = vmatpush1.bf16.msra.mxu0 0
        %1655 = vmatprep.subr.bf16.mxu0 0
        %1656 = vmatpush1.bf16.msra.mxu0 0
        %1657 = vmatprep.mubr.bf16.mxu0 0
        %1658 = vmatmul.mubr.bf16.gmra.mrb[0].mxu0 %v1620
        %v1659 = vpop.f32.mrb[0].mxu0
        %v1660 = vadd.f32 0.0, %v1659
        %v1661 = vpop.f32.mrb[0].mxu0
        %v1662 = vpop.f32.mrb[0].mxu0
        %v1663 = vadd.f32 0.0, %v1662
        %v1664 = vpop.f32.mrb[0].mxu0
        %1665 = vmatprep.mubr.bf16.mxu0 0
        %1666 = vmatmul.mubr.bf16.gmra.mrb[0].mxu0 %v1623
        %v1667 = vpop.f32.mrb[0].mxu0
        %v1668 = vadd.f32 0.0, %v1667
        %v1669 = vpop.f32.mrb[0].mxu0
        %v1670 = vpop.f32.mrb[0].mxu0
        %v1671 = vadd.f32 0.0, %v1670
        %v1672 = vpop.f32.mrb[0].mxu0
        %1673 = vdwg.mxu0
        %v1675 = vsel %vm1135, %v1560, 0
        %v1678 = vsel %vm1135, %v1561, 0
        %1680 = vmatprep.subr.bf16.mxu0 0
        %1681 = vmatpush1.bf16.msra.mxu0 %v1125
        %1682 = vmatprep.subr.bf16.mxu0 0
        %1683 = vmatpush1.bf16.msra.mxu0 %v1128
        %1684 = vmatprep.subr.bf16.mxu0 0
        %1685 = vmatpush1.bf16.msra.mxu0 0
        %1686 = vmatprep.subr.bf16.mxu0 0
        %1687 = vmatpush1.bf16.msra.mxu0 0
        %1688 = vmatprep.subr.bf16.mxu0 0
        %1689 = vmatpush1.bf16.msra.mxu0 0
        %1690 = vmatprep.subr.bf16.mxu0 0
        %1691 = vmatpush1.bf16.msra.mxu0 0
        %1692 = vmatprep.subr.bf16.mxu0 0
        %1693 = vmatpush1.bf16.msra.mxu0 0
        %1694 = vmatprep.subr.bf16.mxu0 0
        %1695 = vmatpush1.bf16.msra.mxu0 0
        %1696 = vmatprep.subr.bf16.mxu0 0
        %1697 = vmatpush1.bf16.msra.mxu0 0
        %1698 = vmatprep.subr.bf16.mxu0 0
        %1699 = vmatpush1.bf16.msra.mxu0 0
        %1700 = vmatprep.subr.bf16.mxu0 0
        %1701 = vmatpush1.bf16.msra.mxu0 0
        %1702 = vmatprep.subr.bf16.mxu0 0
        %1703 = vmatpush1.bf16.msra.mxu0 0
        %1704 = vmatprep.subr.bf16.mxu0 0
        %1705 = vmatpush1.bf16.msra.mxu0 0
        %1706 = vmatprep.subr.bf16.mxu0 0
        %1707 = vmatpush1.bf16.msra.mxu0 0
        %1708 = vmatprep.subr.bf16.mxu0 0
        %1709 = vmatpush1.bf16.msra.mxu0 0
        %1710 = vmatprep.subr.bf16.mxu0 0
        %1711 = vmatpush1.bf16.msra.mxu0 0
        %1712 = vmatprep.mubr.bf16.mxu0 0
        %1713 = vmatmul.mubr.bf16.gmra.mrb[0].mxu0 %v1675
        %v1714 = vpop.f32.mrb[0].mxu0
        %v1715 = vadd.f32 0.0, %v1714
        %v1716 = vpop.f32.mrb[0].mxu0
        %v1717 = vpop.f32.mrb[0].mxu0
        %v1718 = vadd.f32 0.0, %v1717
        %v1719 = vpop.f32.mrb[0].mxu0
        %1720 = vmatprep.mubr.bf16.mxu0 0
        %1721 = vmatmul.mubr.bf16.gmra.mrb[0].mxu0 %v1678
        %v1722 = vpop.f32.mrb[0].mxu0
        %v1723 = vadd.f32 0.0, %v1722
        %v1724 = vpop.f32.mrb[0].mxu0
        %v1725 = vpop.f32.mrb[0].mxu0
        %v1726 = vadd.f32 0.0, %v1725
        %v1727 = vpop.f32.mrb[0].mxu0
        %1728 = vdwg.mxu0
        %v1730 = vsel %vm1135, %v1562, 0
        %v1733 = vsel %vm1135, %v1563, 0
        %1735 = vmatprep.subr.bf16.mxu0 0
        %1736 = vmatpush1.bf16.msra.mxu0 %v1131
        %1737 = vmatprep.subr.bf16.mxu0 0
        %1738 = vmatpush1.bf16.msra.mxu0 %v1134
        %1739 = vmatprep.subr.bf16.mxu0 0
        %1740 = vmatpush1.bf16.msra.mxu0 0
        %1741 = vmatprep.subr.bf16.mxu0 0
        %1742 = vmatpush1.bf16.msra.mxu0 0
        %1743 = vmatprep.subr.bf16.mxu0 0
        %1744 = vmatpush1.bf16.msra.mxu0 0
        %1745 = vmatprep.subr.bf16.mxu0 0
        %1746 = vmatpush1.bf16.msra.mxu0 0
        %1747 = vmatprep.subr.bf16.mxu0 0
        %1748 = vmatpush1.bf16.msra.mxu0 0
        %1749 = vmatprep.subr.bf16.mxu0 0
        %1750 = vmatpush1.bf16.msra.mxu0 0
        %1751 = vmatprep.subr.bf16.mxu0 0
        %1752 = vmatpush1.bf16.msra.mxu0 0
        %1753 = vmatprep.subr.bf16.mxu0 0
        %1754 = vmatpush1.bf16.msra.mxu0 0
        %1755 = vmatprep.subr.bf16.mxu0 0
        %1756 = vmatpush1.bf16.msra.mxu0 0
        %1757 = vmatprep.subr.bf16.mxu0 0
        %1758 = vmatpush1.bf16.msra.mxu0 0
        %1759 = vmatprep.subr.bf16.mxu0 0
        %1760 = vmatpush1.bf16.msra.mxu0 0
        %1761 = vmatprep.subr.bf16.mxu0 0
        %1762 = vmatpush1.bf16.msra.mxu0 0
        %1763 = vmatprep.subr.bf16.mxu0 0
        %1764 = vmatpush1.bf16.msra.mxu0 0
        %1765 = vmatprep.subr.bf16.mxu0 0
        %1766 = vmatpush1.bf16.msra.mxu0 0
        %1767 = vmatprep.mubr.bf16.mxu0 0
        %1768 = vmatmul.mubr.bf16.gmra.mrb[0].mxu0 %v1730
        %v1769 = vpop.f32.mrb[0].mxu0
        %v1770 = vadd.f32 0.0, %v1769
        %v1771 = vpop.f32.mrb[0].mxu0
        %v1772 = vpop.f32.mrb[0].mxu0
        %v1773 = vadd.f32 0.0, %v1772
        %v1774 = vpop.f32.mrb[0].mxu0
        %1775 = vmatprep.mubr.bf16.mxu0 0
        %1776 = vmatmul.mubr.bf16.gmra.mrb[0].mxu0 %v1733
        %v1777 = vpop.f32.mrb[0].mxu0
        %v1778 = vadd.f32 0.0, %v1777
        %v1779 = vpop.f32.mrb[0].mxu0
        %v1780 = vpop.f32.mrb[0].mxu0
        %v1781 = vadd.f32 0.0, %v1780
        %v1782 = vpop.f32.mrb[0].mxu0
        %1783 = vdwg.mxu0
        %v1784 = vpack.c.bf16 %v1608, %v1605
        %v1785 = vpack.c.bf16 %v1616, %v1613
        %v1786 = vpack.c.bf16 %v1663, %v1660
        %v1787 = vpack.c.bf16 %v1671, %v1668
        %v1788 = vpack.c.bf16 %v1718, %v1715
        %v1789 = vpack.c.bf16 %v1726, %v1723
        %v1790 = vpack.c.bf16 %v1773, %v1770
        %v1791 = vpack.c.bf16 %v1781, %v1778
        %1794 = vrot.lane.b32.xlu0 %v1111, 96
        %v1795 = vpop.permute.xlu0 %1794
        %1796 = vrot.lane.b32.xlu0 %v1114, 96
        %v1797 = vpop.permute.xlu0 %1796
        %1800 = vrot.lane.b32.xlu0 %v1112, 96
        %v1801 = vpop.permute.xlu0 %1800
        %1802 = vrot.lane.b32.xlu0 %v1115, 96
        %v1803 = vpop.permute.xlu0 %1802
        %v1805 = vsel %vm1135, %v1795, 0
        %v1808 = vsel %vm1135, %v1797, 0
        %v1811 = vsel %vm1135, %v1801, 0
        %v1814 = vsel %vm1135, %v1803, 0
        %1816 = vmatprep.subr.bf16.mxu0 0
        %1817 = vmatpush1.bf16.xpose.msra.mxu0 %v1811
        %1818 = vmatprep.subr.bf16.mxu0 0
        %1819 = vmatpush1.bf16.xpose.msra.mxu0 %v1814
        %1820 = vmatprep.subr.bf16.mxu0 0
        %1821 = vmatpush1.bf16.xpose.msra.mxu0 0
        %1822 = vmatprep.subr.bf16.mxu0 0
        %1823 = vmatpush1.bf16.xpose.msra.mxu0 0
        %1824 = vmatprep.subr.bf16.mxu0 0
        %1825 = vmatpush1.bf16.xpose.msra.mxu0 0
        %1826 = vmatprep.subr.bf16.mxu0 0
        %1827 = vmatpush1.bf16.xpose.msra.mxu0 0
        %1828 = vmatprep.subr.bf16.mxu0 0
        %1829 = vmatpush1.bf16.xpose.msra.mxu0 0
        %1830 = vmatprep.subr.bf16.mxu0 0
        %1831 = vmatpush1.bf16.xpose.msra.mxu0 0
        %1832 = vmatprep.subr.bf16.mxu0 0
        %1833 = vmatpush1.bf16.xpose.msra.mxu0 0
        %1834 = vmatprep.subr.bf16.mxu0 0
        %1835 = vmatpush1.bf16.xpose.msra.mxu0 0
        %1836 = vmatprep.subr.bf16.mxu0 0
        %1837 = vmatpush1.bf16.xpose.msra.mxu0 0
        %1838 = vmatprep.subr.bf16.mxu0 0
        %1839 = vmatpush1.bf16.xpose.msra.mxu0 0
        %1840 = vmatprep.subr.bf16.mxu0 0
        %1841 = vmatpush1.bf16.xpose.msra.mxu0 0
        %1842 = vmatprep.subr.bf16.mxu0 0
        %1843 = vmatpush1.bf16.xpose.msra.mxu0 0
        %1844 = vmatprep.subr.bf16.mxu0 0
        %1845 = vmatpush1.bf16.xpose.msra.mxu0 0
        %1846 = vmatprep.subr.bf16.mxu0 0
        %1847 = vmatpush1.bf16.xpose.msra.mxu0 0
        %1848 = vmatprep.mubr.bf16.mxu0 0
        %1849 = vmatmul.mubr.bf16.gmra.mrb[0].mxu0 %v1805
        %v1850 = vpop.f32.mrb[0].mxu0
        %v1851 = vadd.f32 0.0, %v1850
        %v1852 = vpop.f32.mrb[0].mxu0
        %v1853 = vpop.f32.mrb[0].mxu0
        %v1854 = vadd.f32 0.0, %v1853
        %v1855 = vpop.f32.mrb[0].mxu0
        %1856 = vmatprep.mubr.bf16.mxu0 0
        %1857 = vmatmul.mubr.bf16.gmra.mrb[0].mxu0 %v1808
        %v1858 = vpop.f32.mrb[0].mxu0
        %v1859 = vadd.f32 0.0, %v1858
        %v1860 = vpop.f32.mrb[0].mxu0
        %v1861 = vpop.f32.mrb[0].mxu0
        %v1862 = vadd.f32 0.0, %v1861
        %v1863 = vpop.f32.mrb[0].mxu0
        %1864 = vdwg.mxu0
        %1867 = vrot.lane.b32.xlu0 %v1117, 96
        %v1868 = vpop.permute.xlu0 %1867
        %1869 = vrot.lane.b32.xlu0 %v1120, 96
        %v1870 = vpop.permute.xlu0 %1869
        %1873 = vrot.lane.b32.xlu0 %v1118, 96
        %v1874 = vpop.permute.xlu0 %1873
        %1875 = vrot.lane.b32.xlu0 %v1121, 96
        %v1876 = vpop.permute.xlu0 %1875
        %v1878 = vsel %vm1135, %v1868, 0
        %v1881 = vsel %vm1135, %v1870, 0
        %v1884 = vsel %vm1135, %v1874, 0
        %v1887 = vsel %vm1135, %v1876, 0
        %1889 = vmatprep.subr.bf16.mxu0 0
        %1890 = vmatpush1.bf16.xpose.msra.mxu0 %v1884
        %1891 = vmatprep.subr.bf16.mxu0 0
        %1892 = vmatpush1.bf16.xpose.msra.mxu0 %v1887
        %1893 = vmatprep.subr.bf16.mxu0 0
        %1894 = vmatpush1.bf16.xpose.msra.mxu0 0
        %1895 = vmatprep.subr.bf16.mxu0 0
        %1896 = vmatpush1.bf16.xpose.msra.mxu0 0
        %1897 = vmatprep.subr.bf16.mxu0 0
        %1898 = vmatpush1.bf16.xpose.msra.mxu0 0
        %1899 = vmatprep.subr.bf16.mxu0 0
        %1900 = vmatpush1.bf16.xpose.msra.mxu0 0
        %1901 = vmatprep.subr.bf16.mxu0 0
        %1902 = vmatpush1.bf16.xpose.msra.mxu0 0
        %1903 = vmatprep.subr.bf16.mxu0 0
        %1904 = vmatpush1.bf16.xpose.msra.mxu0 0
        %1905 = vmatprep.subr.bf16.mxu0 0
        %1906 = vmatpush1.bf16.xpose.msra.mxu0 0
        %1907 = vmatprep.subr.bf16.mxu0 0
        %1908 = vmatpush1.bf16.xpose.msra.mxu0 0
        %1909 = vmatprep.subr.bf16.mxu0 0
        %1910 = vmatpush1.bf16.xpose.msra.mxu0 0
        %1911 = vmatprep.subr.bf16.mxu0 0
        %1912 = vmatpush1.bf16.xpose.msra.mxu0 0
        %1913 = vmatprep.subr.bf16.mxu0 0
        %1914 = vmatpush1.bf16.xpose.msra.mxu0 0
        %1915 = vmatprep.subr.bf16.mxu0 0
        %1916 = vmatpush1.bf16.xpose.msra.mxu0 0
        %1917 = vmatprep.subr.bf16.mxu0 0
        %1918 = vmatpush1.bf16.xpose.msra.mxu0 0
        %1919 = vmatprep.subr.bf16.mxu0 0
        %1920 = vmatpush1.bf16.xpose.msra.mxu0 0
        %1921 = vmatprep.mubr.bf16.mxu0 0
        %1922 = vmatmul.mubr.bf16.gmra.mrb[0].mxu0 %v1878
        %v1923 = vpop.f32.mrb[0].mxu0
        %v1924 = vadd.f32 0.0, %v1923
        %v1925 = vpop.f32.mrb[0].mxu0
        %v1926 = vpop.f32.mrb[0].mxu0
        %v1927 = vadd.f32 0.0, %v1926
        %v1928 = vpop.f32.mrb[0].mxu0
        %1929 = vmatprep.mubr.bf16.mxu0 0
        %1930 = vmatmul.mubr.bf16.gmra.mrb[0].mxu0 %v1881
        %v1931 = vpop.f32.mrb[0].mxu0
        %v1932 = vadd.f32 0.0, %v1931
        %v1933 = vpop.f32.mrb[0].mxu0
        %v1934 = vpop.f32.mrb[0].mxu0
        %v1935 = vadd.f32 0.0, %v1934
        %v1936 = vpop.f32.mrb[0].mxu0
        %1937 = vdwg.mxu0
        %1940 = vrot.lane.b32.xlu0 %v1123, 96
        %v1941 = vpop.permute.xlu0 %1940
        %1942 = vrot.lane.b32.xlu0 %v1126, 96
        %v1943 = vpop.permute.xlu0 %1942
        %1946 = vrot.lane.b32.xlu0 %v1124, 96
        %v1947 = vpop.permute.xlu0 %1946
        %1948 = vrot.lane.b32.xlu0 %v1127, 96
        %v1949 = vpop.permute.xlu0 %1948
        %v1951 = vsel %vm1135, %v1941, 0
        %v1954 = vsel %vm1135, %v1943, 0
        %v1957 = vsel %vm1135, %v1947, 0
        %v1960 = vsel %vm1135, %v1949, 0
        %1962 = vmatprep.subr.bf16.mxu0 0
        %1963 = vmatpush1.bf16.xpose.msra.mxu0 %v1957
        %1964 = vmatprep.subr.bf16.mxu0 0
        %1965 = vmatpush1.bf16.xpose.msra.mxu0 %v1960
        %1966 = vmatprep.subr.bf16.mxu0 0
        %1967 = vmatpush1.bf16.xpose.msra.mxu0 0
        %1968 = vmatprep.subr.bf16.mxu0 0
        %1969 = vmatpush1.bf16.xpose.msra.mxu0 0
        %1970 = vmatprep.subr.bf16.mxu0 0
        %1971 = vmatpush1.bf16.xpose.msra.mxu0 0
        %1972 = vmatprep.subr.bf16.mxu0 0
        %1973 = vmatpush1.bf16.xpose.msra.mxu0 0
        %1974 = vmatprep.subr.bf16.mxu0 0
        %1975 = vmatpush1.bf16.xpose.msra.mxu0 0
        %1976 = vmatprep.subr.bf16.mxu0 0
        %1977 = vmatpush1.bf16.xpose.msra.mxu0 0
        %1978 = vmatprep.subr.bf16.mxu0 0
        %1979 = vmatpush1.bf16.xpose.msra.mxu0 0
        %1980 = vmatprep.subr.bf16.mxu0 0
        %1981 = vmatpush1.bf16.xpose.msra.mxu0 0
        %1982 = vmatprep.subr.bf16.mxu0 0
        %1983 = vmatpush1.bf16.xpose.msra.mxu0 0
        %1984 = vmatprep.subr.bf16.mxu0 0
        %1985 = vmatpush1.bf16.xpose.msra.mxu0 0
        %1986 = vmatprep.subr.bf16.mxu0 0
        %1987 = vmatpush1.bf16.xpose.msra.mxu0 0
        %1988 = vmatprep.subr.bf16.mxu0 0
        %1989 = vmatpush1.bf16.xpose.msra.mxu0 0
        %1990 = vmatprep.subr.bf16.mxu0 0
        %1991 = vmatpush1.bf16.xpose.msra.mxu0 0
        %1992 = vmatprep.subr.bf16.mxu0 0
        %1993 = vmatpush1.bf16.xpose.msra.mxu0 0
        %1994 = vmatprep.mubr.bf16.mxu0 0
        %1995 = vmatmul.mubr.bf16.gmra.mrb[0].mxu0 %v1951
        %v1996 = vpop.f32.mrb[0].mxu0
        %v1997 = vadd.f32 0.0, %v1996
        %v1998 = vpop.f32.mrb[0].mxu0
        %v1999 = vpop.f32.mrb[0].mxu0
        %v2000 = vadd.f32 0.0, %v1999
        %v2001 = vpop.f32.mrb[0].mxu0
        %2002 = vmatprep.mubr.bf16.mxu0 0
        %2003 = vmatmul.mubr.bf16.gmra.mrb[0].mxu0 %v1954
        %v2004 = vpop.f32.mrb[0].mxu0
        %v2005 = vadd.f32 0.0, %v2004
        %v2006 = vpop.f32.mrb[0].mxu0
        %v2007 = vpop.f32.mrb[0].mxu0
        %v2008 = vadd.f32 0.0, %v2007
        %v2009 = vpop.f32.mrb[0].mxu0
        %2010 = vdwg.mxu0
        %2013 = vrot.lane.b32.xlu0 %v1129, 96
        %v2014 = vpop.permute.xlu0 %2013
        %2015 = vrot.lane.b32.xlu0 %v1132, 96
        %v2016 = vpop.permute.xlu0 %2015
        %2019 = vrot.lane.b32.xlu0 %v1130, 96
        %v2020 = vpop.permute.xlu0 %2019
        %2021 = vrot.lane.b32.xlu0 %v1133, 96
        %v2022 = vpop.permute.xlu0 %2021
        %v2024 = vsel %vm1135, %v2014, 0
        %v2027 = vsel %vm1135, %v2016, 0
        %v2030 = vsel %vm1135, %v2020, 0
        %v2033 = vsel %vm1135, %v2022, 0
        %2035 = vmatprep.subr.bf16.mxu0 0
        %2036 = vmatpush1.bf16.xpose.msra.mxu0 %v2030
        %2037 = vmatprep.subr.bf16.mxu0 0
        %2038 = vmatpush1.bf16.xpose.msra.mxu0 %v2033
        %2039 = vmatprep.subr.bf16.mxu0 0
        %2040 = vmatpush1.bf16.xpose.msra.mxu0 0
        %2041 = vmatprep.subr.bf16.mxu0 0
        %2042 = vmatpush1.bf16.xpose.msra.mxu0 0
        %2043 = vmatprep.subr.bf16.mxu0 0
        %2044 = vmatpush1.bf16.xpose.msra.mxu0 0
        %2045 = vmatprep.subr.bf16.mxu0 0
        %2046 = vmatpush1.bf16.xpose.msra.mxu0 0
        %2047 = vmatprep.subr.bf16.mxu0 0
        %2048 = vmatpush1.bf16.xpose.msra.mxu0 0
        %2049 = vmatprep.subr.bf16.mxu0 0
        %2050 = vmatpush1.bf16.xpose.msra.mxu0 0
        %2051 = vmatprep.subr.bf16.mxu0 0
        %2052 = vmatpush1.bf16.xpose.msra.mxu0 0
        %2053 = vmatprep.subr.bf16.mxu0 0
        %2054 = vmatpush1.bf16.xpose.msra.mxu0 0
        %2055 = vmatprep.subr.bf16.mxu0 0
        %2056 = vmatpush1.bf16.xpose.msra.mxu0 0
        %2057 = vmatprep.subr.bf16.mxu0 0
        %2058 = vmatpush1.bf16.xpose.msra.mxu0 0
        %2059 = vmatprep.subr.bf16.mxu0 0
        %2060 = vmatpush1.bf16.xpose.msra.mxu0 0
        %2061 = vmatprep.subr.bf16.mxu0 0
        %2062 = vmatpush1.bf16.xpose.msra.mxu0 0
        %2063 = vmatprep.subr.bf16.mxu0 0
        %2064 = vmatpush1.bf16.xpose.msra.mxu0 0
        %2065 = vmatprep.subr.bf16.mxu0 0
        %2066 = vmatpush1.bf16.xpose.msra.mxu0 0
        %2067 = vmatprep.mubr.bf16.mxu0 0
        %2068 = vmatmul.mubr.bf16.gmra.mrb[0].mxu0 %v2024
        %v2069 = vpop.f32.mrb[0].mxu0
        %v2070 = vadd.f32 0.0, %v2069
        %v2071 = vpop.f32.mrb[0].mxu0
        %v2072 = vpop.f32.mrb[0].mxu0
        %v2073 = vadd.f32 0.0, %v2072
        %v2074 = vpop.f32.mrb[0].mxu0
        %2075 = vmatprep.mubr.bf16.mxu0 0
        %2076 = vmatmul.mubr.bf16.gmra.mrb[0].mxu0 %v2027
        %v2077 = vpop.f32.mrb[0].mxu0
        %v2078 = vadd.f32 0.0, %v2077
        %v2079 = vpop.f32.mrb[0].mxu0
        %v2080 = vpop.f32.mrb[0].mxu0
        %v2081 = vadd.f32 0.0, %v2080
        %v2082 = vpop.f32.mrb[0].mxu0
        %2083 = vdwg.mxu0
        %v2084 = vsel %vm1135, %v1851, -inf
        %2085 = vmax.xlane.f32.xlu0 %v2084
        %v2086 = vpop.xlane.xlu0 %2085
        %v2087 = vsel %vm1135, %v1854, -inf
        %2088 = vmax.xlane.f32.xlu0 %v2087
        %v2089 = vpop.xlane.xlu0 %2088
        %v2090 = vsel %vm1135, %v1859, -inf
        %2091 = vmax.xlane.f32.xlu0 %v2090
        %v2092 = vpop.xlane.xlu0 %2091
        %v2093 = vsel %vm1135, %v1862, -inf
        %2094 = vmax.xlane.f32.xlu0 %v2093
        %v2095 = vpop.xlane.xlu0 %2094
        %v2096 = vsel %vm1135, %v1924, -inf
        %2097 = vmax.xlane.f32.xlu0 %v2096
        %v2098 = vpop.xlane.xlu0 %2097
        %v2099 = vsel %vm1135, %v1927, -inf
        %2100 = vmax.xlane.f32.xlu0 %v2099
        %v2101 = vpop.xlane.xlu0 %2100
        %v2102 = vsel %vm1135, %v1932, -inf
        %2103 = vmax.xlane.f32.xlu0 %v2102
        %v2104 = vpop.xlane.xlu0 %2103
        %v2105 = vsel %vm1135, %v1935, -inf
        %2106 = vmax.xlane.f32.xlu0 %v2105
        %v2107 = vpop.xlane.xlu0 %2106
        %v2108 = vsel %vm1135, %v1997, -inf
        %2109 = vmax.xlane.f32.xlu0 %v2108
        %v2110 = vpop.xlane.xlu0 %2109
        %v2111 = vsel %vm1135, %v2000, -inf
        %2112 = vmax.xlane.f32.xlu0 %v2111
        %v2113 = vpop.xlane.xlu0 %2112
        %v2114 = vsel %vm1135, %v2005, -inf
        %2115 = vmax.xlane.f32.xlu0 %v2114
        %v2116 = vpop.xlane.xlu0 %2115
        %v2117 = vsel %vm1135, %v2008, -inf
        %2118 = vmax.xlane.f32.xlu0 %v2117
        %v2119 = vpop.xlane.xlu0 %2118
        %v2120 = vsel %vm1135, %v2070, -inf
        %2121 = vmax.xlane.f32.xlu0 %v2120
        %v2122 = vpop.xlane.xlu0 %2121
        %v2123 = vsel %vm1135, %v2073, -inf
        %2124 = vmax.xlane.f32.xlu0 %v2123
        %v2125 = vpop.xlane.xlu0 %2124
        %v2126 = vsel %vm1135, %v2078, -inf
        %2127 = vmax.xlane.f32.xlu0 %v2126
        %v2128 = vpop.xlane.xlu0 %2127
        %v2129 = vsel %vm1135, %v2081, -inf
        %2130 = vmax.xlane.f32.xlu0 %v2129
        %v2131 = vpop.xlane.xlu0 %2130
        %v2132 = vsub.f32 %v1851, %v2086
        %v2133 = vsub.f32 %v1854, %v2089
        %v2134 = vsub.f32 %v1859, %v2092
        %v2135 = vsub.f32 %v1862, %v2095
        %v2136 = vsub.f32 %v1924, %v2098
        %v2137 = vsub.f32 %v1927, %v2101
        %v2138 = vsub.f32 %v1932, %v2104
        %v2139 = vsub.f32 %v1935, %v2107
        %v2140 = vsub.f32 %v1997, %v2110
        %v2141 = vsub.f32 %v2000, %v2113
        %v2142 = vsub.f32 %v2005, %v2116
        %v2143 = vsub.f32 %v2008, %v2119
        %v2144 = vsub.f32 %v2070, %v2122
        %v2145 = vsub.f32 %v2073, %v2125
        %v2146 = vsub.f32 %v2078, %v2128
        %v2147 = vsub.f32 %v2081, %v2131
        %v2148 = vmul.f32 %v2132, 1.442695
        %v2149 = vpow.pop %v2148
        %v2150 = vmul.f32 %v2133, 1.442695
        %v2151 = vpow.pop %v2150
        %v2152 = vmul.f32 %v2134, 1.442695
        %v2153 = vpow.pop %v2152
        %v2154 = vmul.f32 %v2135, 1.442695
        %v2155 = vpow.pop %v2154
        %v2156 = vmul.f32 %v2136, 1.442695
        %v2157 = vpow.pop %v2156
        %v2158 = vmul.f32 %v2137, 1.442695
        %v2159 = vpow.pop %v2158
        %v2160 = vmul.f32 %v2138, 1.442695
        %v2161 = vpow.pop %v2160
        %v2162 = vmul.f32 %v2139, 1.442695
        %v2163 = vpow.pop %v2162
        %v2164 = vmul.f32 %v2140, 1.442695
        %v2165 = vpow.pop %v2164
        %v2166 = vmul.f32 %v2141, 1.442695
        %v2167 = vpow.pop %v2166
        %v2168 = vmul.f32 %v2142, 1.442695
        %v2169 = vpow.pop %v2168
        %v2170 = vmul.f32 %v2143, 1.442695
        %v2171 = vpow.pop %v2170
        %v2172 = vmul.f32 %v2144, 1.442695
        %v2173 = vpow.pop %v2172
        %v2174 = vmul.f32 %v2145, 1.442695
        %v2175 = vpow.pop %v2174
        %v2176 = vmul.f32 %v2146, 1.442695
        %v2177 = vpow.pop %v2176
        %v2178 = vmul.f32 %v2147, 1.442695
        %v2179 = vpow.pop %v2178
        %v2180 = vsel %vm1135, %v2149, 0.0
        %2181 = vadd.xlane.f32.xlu0 %v2180
        %v2182 = vpop.xlane.xlu0 %2181
        %v2183 = vsel %vm1135, %v2151, 0.0
        %2184 = vadd.xlane.f32.xlu0 %v2183
        %v2185 = vpop.xlane.xlu0 %2184
        %v2186 = vsel %vm1135, %v2153, 0.0
        %2187 = vadd.xlane.f32.xlu0 %v2186
        %v2188 = vpop.xlane.xlu0 %2187
        %v2189 = vsel %vm1135, %v2155, 0.0
        %2190 = vadd.xlane.f32.xlu0 %v2189
        %v2191 = vpop.xlane.xlu0 %2190
        %v2192 = vsel %vm1135, %v2157, 0.0
        %2193 = vadd.xlane.f32.xlu0 %v2192
        %v2194 = vpop.xlane.xlu0 %2193
        %v2195 = vsel %vm1135, %v2159, 0.0
        %2196 = vadd.xlane.f32.xlu0 %v2195
        %v2197 = vpop.xlane.xlu0 %2196
        %v2198 = vsel %vm1135, %v2161, 0.0
        %2199 = vadd.xlane.f32.xlu0 %v2198
        %v2200 = vpop.xlane.xlu0 %2199
        %v2201 = vsel %vm1135, %v2163, 0.0
        %2202 = vadd.xlane.f32.xlu0 %v2201
        %v2203 = vpop.xlane.xlu0 %2202
        %v2204 = vsel %vm1135, %v2165, 0.0
        %2205 = vadd.xlane.f32.xlu0 %v2204
        %v2206 = vpop.xlane.xlu0 %2205
        %v2207 = vsel %vm1135, %v2167, 0.0
        %2208 = vadd.xlane.f32.xlu0 %v2207
        %v2209 = vpop.xlane.xlu0 %2208
        %v2210 = vsel %vm1135, %v2169, 0.0
        %2211 = vadd.xlane.f32.xlu0 %v2210
        %v2212 = vpop.xlane.xlu0 %2211
        %v2213 = vsel %vm1135, %v2171, 0.0
        %2214 = vadd.xlane.f32.xlu0 %v2213
        %v2215 = vpop.xlane.xlu0 %2214
        %v2216 = vsel %vm1135, %v2173, 0.0
        %2217 = vadd.xlane.f32.xlu0 %v2216
        %v2218 = vpop.xlane.xlu0 %2217
        %v2219 = vsel %vm1135, %v2175, 0.0
        %2220 = vadd.xlane.f32.xlu0 %v2219
        %v2221 = vpop.xlane.xlu0 %2220
        %v2222 = vsel %vm1135, %v2177, 0.0
        %2223 = vadd.xlane.f32.xlu0 %v2222
        %v2224 = vpop.xlane.xlu0 %2223
        %v2225 = vsel %vm1135, %v2179, 0.0
        %2226 = vadd.xlane.f32.xlu0 %v2225
        %v2227 = vpop.xlane.xlu0 %2226
        %v2228 = vrcp.pop %v2182
        %v2229 = vrcp.pop %v2185
        %v2230 = vrcp.pop %v2188
        %v2231 = vrcp.pop %v2191
        %v2232 = vrcp.pop %v2194
        %v2233 = vrcp.pop %v2197
        %v2234 = vrcp.pop %v2200
        %v2235 = vrcp.pop %v2203
        %v2236 = vrcp.pop %v2206
        %v2237 = vrcp.pop %v2209
        %v2238 = vrcp.pop %v2212
        %v2239 = vrcp.pop %v2215
        %v2240 = vrcp.pop %v2218
        %v2241 = vrcp.pop %v2221
        %v2242 = vrcp.pop %v2224
        %v2243 = vrcp.pop %v2227
        %v2244 = vmul.f32 %v2149, %v2228
        %v2245 = vmul.f32 %v2151, %v2229
        %v2246 = vmul.f32 %v2153, %v2230
        %v2247 = vmul.f32 %v2155, %v2231
        %v2248 = vmul.f32 %v2157, %v2232
        %v2249 = vmul.f32 %v2159, %v2233
        %v2250 = vmul.f32 %v2161, %v2234
        %v2251 = vmul.f32 %v2163, %v2235
        %v2252 = vmul.f32 %v2165, %v2236
        %v2253 = vmul.f32 %v2167, %v2237
        %v2254 = vmul.f32 %v2169, %v2238
        %v2255 = vmul.f32 %v2171, %v2239
        %v2256 = vmul.f32 %v2173, %v2240
        %v2257 = vmul.f32 %v2175, %v2241
        %v2258 = vmul.f32 %v2177, %v2242
        %v2259 = vmul.f32 %v2179, %v2243
        %v2260 = vpack.c.bf16 %v2245, %v2244
        %v2261 = vpack.c.bf16 %v2247, %v2246
        %v2262 = vpack.c.bf16 %v2249, %v2248
        %v2263 = vpack.c.bf16 %v2251, %v2250
        %v2264 = vpack.c.bf16 %v2253, %v2252
        %v2265 = vpack.c.bf16 %v2255, %v2254
        %v2266 = vpack.c.bf16 %v2257, %v2256
        %v2267 = vpack.c.bf16 %v2259, %v2258
        %2270 = vrot.lane.b32.xlu0 %v1113, 96
        %v2271 = vpop.permute.xlu0 %2270
        %2272 = vrot.lane.b32.xlu0 %v1116, 96
        %v2273 = vpop.permute.xlu0 %2272
        %v2277 = vsel %vm1135, %v2260, 0
        %v2280 = vsel %vm1135, %v2261, 0
        %2282 = vmatprep.subr.bf16.mxu0 0
        %2283 = vmatpush1.bf16.msra.mxu0 %v2271
        %2284 = vmatprep.subr.bf16.mxu0 0
        %2285 = vmatpush1.bf16.msra.mxu0 %v2273
        %2286 = vmatprep.subr.bf16.mxu0 0
        %2287 = vmatpush1.bf16.msra.mxu0 0
        %2288 = vmatprep.subr.bf16.mxu0 0
        %2289 = vmatpush1.bf16.msra.mxu0 0
        %2290 = vmatprep.subr.bf16.mxu0 0
        %2291 = vmatpush1.bf16.msra.mxu0 0
        %2292 = vmatprep.subr.bf16.mxu0 0
        %2293 = vmatpush1.bf16.msra.mxu0 0
        %2294 = vmatprep.subr.bf16.mxu0 0
        %2295 = vmatpush1.bf16.msra.mxu0 0
        %2296 = vmatprep.subr.bf16.mxu0 0
        %2297 = vmatpush1.bf16.msra.mxu0 0
        %2298 = vmatprep.subr.bf16.mxu0 0
        %2299 = vmatpush1.bf16.msra.mxu0 0
        %2300 = vmatprep.subr.bf16.mxu0 0
        %2301 = vmatpush1.bf16.msra.mxu0 0
        %2302 = vmatprep.subr.bf16.mxu0 0
        %2303 = vmatpush1.bf16.msra.mxu0 0
        %2304 = vmatprep.subr.bf16.mxu0 0
        %2305 = vmatpush1.bf16.msra.mxu0 0
        %2306 = vmatprep.subr.bf16.mxu0 0
        %2307 = vmatpush1.bf16.msra.mxu0 0
        %2308 = vmatprep.subr.bf16.mxu0 0
        %2309 = vmatpush1.bf16.msra.mxu0 0
        %2310 = vmatprep.subr.bf16.mxu0 0
        %2311 = vmatpush1.bf16.msra.mxu0 0
        %2312 = vmatprep.subr.bf16.mxu0 0
        %2313 = vmatpush1.bf16.msra.mxu0 0
        %2314 = vmatprep.mubr.bf16.mxu0 0
        %2315 = vmatmul.mubr.bf16.gmra.mrb[0].mxu0 %v2277
        %v2316 = vpop.f32.mrb[0].mxu0
        %v2317 = vadd.f32 0.0, %v2316
        %v2318 = vpop.f32.mrb[0].mxu0
        %v2319 = vpop.f32.mrb[0].mxu0
        %v2320 = vadd.f32 0.0, %v2319
        %v2321 = vpop.f32.mrb[0].mxu0
        %2322 = vmatprep.mubr.bf16.mxu0 0
        %2323 = vmatmul.mubr.bf16.gmra.mrb[0].mxu0 %v2280
        %v2324 = vpop.f32.mrb[0].mxu0
        %v2325 = vadd.f32 0.0, %v2324
        %v2326 = vpop.f32.mrb[0].mxu0
        %v2327 = vpop.f32.mrb[0].mxu0
        %v2328 = vadd.f32 0.0, %v2327
        %v2329 = vpop.f32.mrb[0].mxu0
        %2330 = vdwg.mxu0
        %2333 = vrot.lane.b32.xlu0 %v1119, 96
        %v2334 = vpop.permute.xlu0 %2333
        %2335 = vrot.lane.b32.xlu0 %v1122, 96
        %v2336 = vpop.permute.xlu0 %2335
        %v2340 = vsel %vm1135, %v2262, 0
        %v2343 = vsel %vm1135, %v2263, 0
        %2345 = vmatprep.subr.bf16.mxu0 0
        %2346 = vmatpush1.bf16.msra.mxu0 %v2334
        %2347 = vmatprep.subr.bf16.mxu0 0
        %2348 = vmatpush1.bf16.msra.mxu0 %v2336
        %2349 = vmatprep.subr.bf16.mxu0 0
        %2350 = vmatpush1.bf16.msra.mxu0 0
        %2351 = vmatprep.subr.bf16.mxu0 0
        %2352 = vmatpush1.bf16.msra.mxu0 0
        %2353 = vmatprep.subr.bf16.mxu0 0
        %2354 = vmatpush1.bf16.msra.mxu0 0
        %2355 = vmatprep.subr.bf16.mxu0 0
        %2356 = vmatpush1.bf16.msra.mxu0 0
        %2357 = vmatprep.subr.bf16.mxu0 0
        %2358 = vmatpush1.bf16.msra.mxu0 0
        %2359 = vmatprep.subr.bf16.mxu0 0
        %2360 = vmatpush1.bf16.msra.mxu0 0
        %2361 = vmatprep.subr.bf16.mxu0 0
        %2362 = vmatpush1.bf16.msra.mxu0 0
        %2363 = vmatprep.subr.bf16.mxu0 0
        %2364 = vmatpush1.bf16.msra.mxu0 0
        %2365 = vmatprep.subr.bf16.mxu0 0
        %2366 = vmatpush1.bf16.msra.mxu0 0
        %2367 = vmatprep.subr.bf16.mxu0 0
        %2368 = vmatpush1.bf16.msra.mxu0 0
        %2369 = vmatprep.subr.bf16.mxu0 0
        %2370 = vmatpush1.bf16.msra.mxu0 0
        %2371 = vmatprep.subr.bf16.mxu0 0
        %2372 = vmatpush1.bf16.msra.mxu0 0
        %2373 = vmatprep.subr.bf16.mxu0 0
        %2374 = vmatpush1.bf16.msra.mxu0 0
        %2375 = vmatprep.subr.bf16.mxu0 0
        %2376 = vmatpush1.bf16.msra.mxu0 0
        %2377 = vmatprep.mubr.bf16.mxu0 0
        %2378 = vmatmul.mubr.bf16.gmra.mrb[0].mxu0 %v2340
        %v2379 = vpop.f32.mrb[0].mxu0
        %v2380 = vadd.f32 0.0, %v2379
        %v2381 = vpop.f32.mrb[0].mxu0
        %v2382 = vpop.f32.mrb[0].mxu0
        %v2383 = vadd.f32 0.0, %v2382
        %v2384 = vpop.f32.mrb[0].mxu0
        %2385 = vmatprep.mubr.bf16.mxu0 0
        %2386 = vmatmul.mubr.bf16.gmra.mrb[0].mxu0 %v2343
        %v2387 = vpop.f32.mrb[0].mxu0
        %v2388 = vadd.f32 0.0, %v2387
        %v2389 = vpop.f32.mrb[0].mxu0
        %v2390 = vpop.f32.mrb[0].mxu0
        %v2391 = vadd.f32 0.0, %v2390
        %v2392 = vpop.f32.mrb[0].mxu0
        %2393 = vdwg.mxu0
        %2396 = vrot.lane.b32.xlu0 %v1125, 96
        %v2397 = vpop.permute.xlu0 %2396
        %2398 = vrot.lane.b32.xlu0 %v1128, 96
        %v2399 = vpop.permute.xlu0 %2398
        %v2403 = vsel %vm1135, %v2264, 0
        %v2406 = vsel %vm1135, %v2265, 0
        %2408 = vmatprep.subr.bf16.mxu0 0
        %2409 = vmatpush1.bf16.msra.mxu0 %v2397
        %2410 = vmatprep.subr.bf16.mxu0 0
        %2411 = vmatpush1.bf16.msra.mxu0 %v2399
        %2412 = vmatprep.subr.bf16.mxu0 0
        %2413 = vmatpush1.bf16.msra.mxu0 0
        %2414 = vmatprep.subr.bf16.mxu0 0
        %2415 = vmatpush1.bf16.msra.mxu0 0
        %2416 = vmatprep.subr.bf16.mxu0 0
        %2417 = vmatpush1.bf16.msra.mxu0 0
        %2418 = vmatprep.subr.bf16.mxu0 0
        %2419 = vmatpush1.bf16.msra.mxu0 0
        %2420 = vmatprep.subr.bf16.mxu0 0
        %2421 = vmatpush1.bf16.msra.mxu0 0
        %2422 = vmatprep.subr.bf16.mxu0 0
        %2423 = vmatpush1.bf16.msra.mxu0 0
        %2424 = vmatprep.subr.bf16.mxu0 0
        %2425 = vmatpush1.bf16.msra.mxu0 0
        %2426 = vmatprep.subr.bf16.mxu0 0
        %2427 = vmatpush1.bf16.msra.mxu0 0
        %2428 = vmatprep.subr.bf16.mxu0 0
        %2429 = vmatpush1.bf16.msra.mxu0 0
        %2430 = vmatprep.subr.bf16.mxu0 0
        %2431 = vmatpush1.bf16.msra.mxu0 0
        %2432 = vmatprep.subr.bf16.mxu0 0
        %2433 = vmatpush1.bf16.msra.mxu0 0
        %2434 = vmatprep.subr.bf16.mxu0 0
        %2435 = vmatpush1.bf16.msra.mxu0 0
        %2436 = vmatprep.subr.bf16.mxu0 0
        %2437 = vmatpush1.bf16.msra.mxu0 0
        %2438 = vmatprep.subr.bf16.mxu0 0
        %2439 = vmatpush1.bf16.msra.mxu0 0
        %2440 = vmatprep.mubr.bf16.mxu0 0
        %2441 = vmatmul.mubr.bf16.gmra.mrb[0].mxu0 %v2403
        %v2442 = vpop.f32.mrb[0].mxu0
        %v2443 = vadd.f32 0.0, %v2442
        %v2444 = vpop.f32.mrb[0].mxu0
        %v2445 = vpop.f32.mrb[0].mxu0
        %v2446 = vadd.f32 0.0, %v2445
        %v2447 = vpop.f32.mrb[0].mxu0
        %2448 = vmatprep.mubr.bf16.mxu0 0
        %2449 = vmatmul.mubr.bf16.gmra.mrb[0].mxu0 %v2406
        %v2450 = vpop.f32.mrb[0].mxu0
        %v2451 = vadd.f32 0.0, %v2450
        %v2452 = vpop.f32.mrb[0].mxu0
        %v2453 = vpop.f32.mrb[0].mxu0
        %v2454 = vadd.f32 0.0, %v2453
        %v2455 = vpop.f32.mrb[0].mxu0
        %2456 = vdwg.mxu0
        %2459 = vrot.lane.b32.xlu0 %v1131, 96
        %v2460 = vpop.permute.xlu0 %2459
        %2461 = vrot.lane.b32.xlu0 %v1134, 96
        %v2462 = vpop.permute.xlu0 %2461
        %v2466 = vsel %vm1135, %v2266, 0
        %v2469 = vsel %vm1135, %v2267, 0
        %2471 = vmatprep.subr.bf16.mxu0 0
        %2472 = vmatpush1.bf16.msra.mxu0 %v2460
        %2473 = vmatprep.subr.bf16.mxu0 0
        %2474 = vmatpush1.bf16.msra.mxu0 %v2462
        %2475 = vmatprep.subr.bf16.mxu0 0
        %2476 = vmatpush1.bf16.msra.mxu0 0
        %2477 = vmatprep.subr.bf16.mxu0 0
        %2478 = vmatpush1.bf16.msra.mxu0 0
        %2479 = vmatprep.subr.bf16.mxu0 0
        %2480 = vmatpush1.bf16.msra.mxu0 0
        %2481 = vmatprep.subr.bf16.mxu0 0
        %2482 = vmatpush1.bf16.msra.mxu0 0
        %2483 = vmatprep.subr.bf16.mxu0 0
        %2484 = vmatpush1.bf16.msra.mxu0 0
        %2485 = vmatprep.subr.bf16.mxu0 0
        %2486 = vmatpush1.bf16.msra.mxu0 0
        %2487 = vmatprep.subr.bf16.mxu0 0
        %2488 = vmatpush1.bf16.msra.mxu0 0
        %2489 = vmatprep.subr.bf16.mxu0 0
        %2490 = vmatpush1.bf16.msra.mxu0 0
        %2491 = vmatprep.subr.bf16.mxu0 0
        %2492 = vmatpush1.bf16.msra.mxu0 0
        %2493 = vmatprep.subr.bf16.mxu0 0
        %2494 = vmatpush1.bf16.msra.mxu0 0
        %2495 = vmatprep.subr.bf16.mxu0 0
        %2496 = vmatpush1.bf16.msra.mxu0 0
        %2497 = vmatprep.subr.bf16.mxu0 0
        %2498 = vmatpush1.bf16.msra.mxu0 0
        %2499 = vmatprep.subr.bf16.mxu0 0
        %2500 = vmatpush1.bf16.msra.mxu0 0
        %2501 = vmatprep.subr.bf16.mxu0 0
        %2502 = vmatpush1.bf16.msra.mxu0 0
        %2503 = vmatprep.mubr.bf16.mxu0 0
        %2504 = vmatmul.mubr.bf16.gmra.mrb[0].mxu0 %v2466
        %v2505 = vpop.f32.mrb[0].mxu0
        %v2506 = vadd.f32 0.0, %v2505
        %v2507 = vpop.f32.mrb[0].mxu0
        %v2508 = vpop.f32.mrb[0].mxu0
        %v2509 = vadd.f32 0.0, %v2508
        %v2510 = vpop.f32.mrb[0].mxu0
        %2511 = vmatprep.mubr.bf16.mxu0 0
        %2512 = vmatmul.mubr.bf16.gmra.mrb[0].mxu0 %v2469
        %v2513 = vpop.f32.mrb[0].mxu0
        %v2514 = vadd.f32 0.0, %v2513
        %v2515 = vpop.f32.mrb[0].mxu0
        %v2516 = vpop.f32.mrb[0].mxu0
        %v2517 = vadd.f32 0.0, %v2516
        %v2518 = vpop.f32.mrb[0].mxu0
        %2519 = vdwg.mxu0
        %v2520 = vpack.c.bf16 %v2320, %v2317
        %v2521 = vpack.c.bf16 %v2328, %v2325
        %v2522 = vpack.c.bf16 %v2383, %v2380
        %v2523 = vpack.c.bf16 %v2391, %v2388
        %v2524 = vpack.c.bf16 %v2446, %v2443
        %v2525 = vpack.c.bf16 %v2454, %v2451
        %v2526 = vpack.c.bf16 %v2509, %v2506
        %v2527 = vpack.c.bf16 %v2517, %v2514
        %2528 = vrot.lane.b32.xlu0 %v1111, 64
        %v2529 = vpop.permute.xlu0 %2528
        %2530 = vrot.lane.b32.xlu0 %v1114, 64
        %v2531 = vpop.permute.xlu0 %2530
        %2532 = vrot.lane.b32.xlu0 %v1112, 64
        %v2533 = vpop.permute.xlu0 %2532
        %2534 = vrot.lane.b32.xlu0 %v1115, 64
        %v2535 = vpop.permute.xlu0 %2534
        %v2537 = vsel %vm1135, %v2529, 0
        %v2540 = vsel %vm1135, %v2531, 0
        %v2543 = vsel %vm1135, %v2533, 0
        %v2546 = vsel %vm1135, %v2535, 0
        %2548 = vmatprep.subr.bf16.mxu0 0
        %2549 = vmatpush1.bf16.xpose.msra.mxu0 %v2543
        %2550 = vmatprep.subr.bf16.mxu0 0
        %2551 = vmatpush1.bf16.xpose.msra.mxu0 %v2546
        %2552 = vmatprep.subr.bf16.mxu0 0
        %2553 = vmatpush1.bf16.xpose.msra.mxu0 0
        %2554 = vmatprep.subr.bf16.mxu0 0
        %2555 = vmatpush1.bf16.xpose.msra.mxu0 0
        %2556 = vmatprep.subr.bf16.mxu0 0
        %2557 = vmatpush1.bf16.xpose.msra.mxu0 0
        %2558 = vmatprep.subr.bf16.mxu0 0
        %2559 = vmatpush1.bf16.xpose.msra.mxu0 0
        %2560 = vmatprep.subr.bf16.mxu0 0
        %2561 = vmatpush1.bf16.xpose.msra.mxu0 0
        %2562 = vmatprep.subr.bf16.mxu0 0
        %2563 = vmatpush1.bf16.xpose.msra.mxu0 0
        %2564 = vmatprep.subr.bf16.mxu0 0
        %2565 = vmatpush1.bf16.xpose.msra.mxu0 0
        %2566 = vmatprep.subr.bf16.mxu0 0
        %2567 = vmatpush1.bf16.xpose.msra.mxu0 0
        %2568 = vmatprep.subr.bf16.mxu0 0
        %2569 = vmatpush1.bf16.xpose.msra.mxu0 0
        %2570 = vmatprep.subr.bf16.mxu0 0
        %2571 = vmatpush1.bf16.xpose.msra.mxu0 0
        %2572 = vmatprep.subr.bf16.mxu0 0
        %2573 = vmatpush1.bf16.xpose.msra.mxu0 0
        %2574 = vmatprep.subr.bf16.mxu0 0
        %2575 = vmatpush1.bf16.xpose.msra.mxu0 0
        %2576 = vmatprep.subr.bf16.mxu0 0
        %2577 = vmatpush1.bf16.xpose.msra.mxu0 0
        %2578 = vmatprep.subr.bf16.mxu0 0
        %2579 = vmatpush1.bf16.xpose.msra.mxu0 0
        %2580 = vmatprep.mubr.bf16.mxu0 0
        %2581 = vmatmul.mubr.bf16.gmra.mrb[0].mxu0 %v2537
        %v2582 = vpop.f32.mrb[0].mxu0
        %v2583 = vadd.f32 0.0, %v2582
        %v2584 = vpop.f32.mrb[0].mxu0
        %v2585 = vpop.f32.mrb[0].mxu0
        %v2586 = vadd.f32 0.0, %v2585
        %v2587 = vpop.f32.mrb[0].mxu0
        %2588 = vmatprep.mubr.bf16.mxu0 0
        %2589 = vmatmul.mubr.bf16.gmra.mrb[0].mxu0 %v2540
        %v2590 = vpop.f32.mrb[0].mxu0
        %v2591 = vadd.f32 0.0, %v2590
        %v2592 = vpop.f32.mrb[0].mxu0
        %v2593 = vpop.f32.mrb[0].mxu0
        %v2594 = vadd.f32 0.0, %v2593
        %v2595 = vpop.f32.mrb[0].mxu0
        %2596 = vdwg.mxu0
        %2597 = vrot.lane.b32.xlu0 %v1117, 64
        %v2598 = vpop.permute.xlu0 %2597
        %2599 = vrot.lane.b32.xlu0 %v1120, 64
        %v2600 = vpop.permute.xlu0 %2599
        %2601 = vrot.lane.b32.xlu0 %v1118, 64
        %v2602 = vpop.permute.xlu0 %2601
        %2603 = vrot.lane.b32.xlu0 %v1121, 64
        %v2604 = vpop.permute.xlu0 %2603
        %v2606 = vsel %vm1135, %v2598, 0
        %v2609 = vsel %vm1135, %v2600, 0
        %v2612 = vsel %vm1135, %v2602, 0
        %v2615 = vsel %vm1135, %v2604, 0
        %2617 = vmatprep.subr.bf16.mxu0 0
        %2618 = vmatpush1.bf16.xpose.msra.mxu0 %v2612
        %2619 = vmatprep.subr.bf16.mxu0 0
        %2620 = vmatpush1.bf16.xpose.msra.mxu0 %v2615
        %2621 = vmatprep.subr.bf16.mxu0 0
        %2622 = vmatpush1.bf16.xpose.msra.mxu0 0
        %2623 = vmatprep.subr.bf16.mxu0 0
        %2624 = vmatpush1.bf16.xpose.msra.mxu0 0
        %2625 = vmatprep.subr.bf16.mxu0 0
        %2626 = vmatpush1.bf16.xpose.msra.mxu0 0
        %2627 = vmatprep.subr.bf16.mxu0 0
        %2628 = vmatpush1.bf16.xpose.msra.mxu0 0
        %2629 = vmatprep.subr.bf16.mxu0 0
        %2630 = vmatpush1.bf16.xpose.msra.mxu0 0
        %2631 = vmatprep.subr.bf16.mxu0 0
        %2632 = vmatpush1.bf16.xpose.msra.mxu0 0
        %2633 = vmatprep.subr.bf16.mxu0 0
        %2634 = vmatpush1.bf16.xpose.msra.mxu0 0
        %2635 = vmatprep.subr.bf16.mxu0 0
        %2636 = vmatpush1.bf16.xpose.msra.mxu0 0
        %2637 = vmatprep.subr.bf16.mxu0 0
        %2638 = vmatpush1.bf16.xpose.msra.mxu0 0
        %2639 = vmatprep.subr.bf16.mxu0 0
        %2640 = vmatpush1.bf16.xpose.msra.mxu0 0
        %2641 = vmatprep.subr.bf16.mxu0 0
        %2642 = vmatpush1.bf16.xpose.msra.mxu0 0
        %2643 = vmatprep.subr.bf16.mxu0 0
        %2644 = vmatpush1.bf16.xpose.msra.mxu0 0
        %2645 = vmatprep.subr.bf16.mxu0 0
        %2646 = vmatpush1.bf16.xpose.msra.mxu0 0
        %2647 = vmatprep.subr.bf16.mxu0 0
        %2648 = vmatpush1.bf16.xpose.msra.mxu0 0
        %2649 = vmatprep.mubr.bf16.mxu0 0
        %2650 = vmatmul.mubr.bf16.gmra.mrb[0].mxu0 %v2606
        %v2651 = vpop.f32.mrb[0].mxu0
        %v2652 = vadd.f32 0.0, %v2651
        %v2653 = vpop.f32.mrb[0].mxu0
        %v2654 = vpop.f32.mrb[0].mxu0
        %v2655 = vadd.f32 0.0, %v2654
        %v2656 = vpop.f32.mrb[0].mxu0
        %2657 = vmatprep.mubr.bf16.mxu0 0
        %2658 = vmatmul.mubr.bf16.gmra.mrb[0].mxu0 %v2609
        %v2659 = vpop.f32.mrb[0].mxu0
        %v2660 = vadd.f32 0.0, %v2659
        %v2661 = vpop.f32.mrb[0].mxu0
        %v2662 = vpop.f32.mrb[0].mxu0
        %v2663 = vadd.f32 0.0, %v2662
        %v2664 = vpop.f32.mrb[0].mxu0
        %2665 = vdwg.mxu0
        %2666 = vrot.lane.b32.xlu0 %v1123, 64
        %v2667 = vpop.permute.xlu0 %2666
        %2668 = vrot.lane.b32.xlu0 %v1126, 64
        %v2669 = vpop.permute.xlu0 %2668
        %2670 = vrot.lane.b32.xlu0 %v1124, 64
        %v2671 = vpop.permute.xlu0 %2670
        %2672 = vrot.lane.b32.xlu0 %v1127, 64
        %v2673 = vpop.permute.xlu0 %2672
        %v2675 = vsel %vm1135, %v2667, 0
        %v2678 = vsel %vm1135, %v2669, 0
        %v2681 = vsel %vm1135, %v2671, 0
        %v2684 = vsel %vm1135, %v2673, 0
        %2686 = vmatprep.subr.bf16.mxu0 0
        %2687 = vmatpush1.bf16.xpose.msra.mxu0 %v2681
        %2688 = vmatprep.subr.bf16.mxu0 0
        %2689 = vmatpush1.bf16.xpose.msra.mxu0 %v2684
        %2690 = vmatprep.subr.bf16.mxu0 0
        %2691 = vmatpush1.bf16.xpose.msra.mxu0 0
        %2692 = vmatprep.subr.bf16.mxu0 0
        %2693 = vmatpush1.bf16.xpose.msra.mxu0 0
        %2694 = vmatprep.subr.bf16.mxu0 0
        %2695 = vmatpush1.bf16.xpose.msra.mxu0 0
        %2696 = vmatprep.subr.bf16.mxu0 0
        %2697 = vmatpush1.bf16.xpose.msra.mxu0 0
        %2698 = vmatprep.subr.bf16.mxu0 0
        %2699 = vmatpush1.bf16.xpose.msra.mxu0 0
        %2700 = vmatprep.subr.bf16.mxu0 0
        %2701 = vmatpush1.bf16.xpose.msra.mxu0 0
        %2702 = vmatprep.subr.bf16.mxu0 0
        %2703 = vmatpush1.bf16.xpose.msra.mxu0 0
        %2704 = vmatprep.subr.bf16.mxu0 0
        %2705 = vmatpush1.bf16.xpose.msra.mxu0 0
        %2706 = vmatprep.subr.bf16.mxu0 0
        %2707 = vmatpush1.bf16.xpose.msra.mxu0 0
        %2708 = vmatprep.subr.bf16.mxu0 0
        %2709 = vmatpush1.bf16.xpose.msra.mxu0 0
        %2710 = vmatprep.subr.bf16.mxu0 0
        %2711 = vmatpush1.bf16.xpose.msra.mxu0 0
        %2712 = vmatprep.subr.bf16.mxu0 0
        %2713 = vmatpush1.bf16.xpose.msra.mxu0 0
        %2714 = vmatprep.subr.bf16.mxu0 0
        %2715 = vmatpush1.bf16.xpose.msra.mxu0 0
        %2716 = vmatprep.subr.bf16.mxu0 0
        %2717 = vmatpush1.bf16.xpose.msra.mxu0 0
        %2718 = vmatprep.mubr.bf16.mxu0 0
        %2719 = vmatmul.mubr.bf16.gmra.mrb[0].mxu0 %v2675
        %v2720 = vpop.f32.mrb[0].mxu0
        %v2721 = vadd.f32 0.0, %v2720
        %v2722 = vpop.f32.mrb[0].mxu0
        %v2723 = vpop.f32.mrb[0].mxu0
        %v2724 = vadd.f32 0.0, %v2723
        %v2725 = vpop.f32.mrb[0].mxu0
        %2726 = vmatprep.mubr.bf16.mxu0 0
        %2727 = vmatmul.mubr.bf16.gmra.mrb[0].mxu0 %v2678
        %v2728 = vpop.f32.mrb[0].mxu0
        %v2729 = vadd.f32 0.0, %v2728
        %v2730 = vpop.f32.mrb[0].mxu0
        %v2731 = vpop.f32.mrb[0].mxu0
        %v2732 = vadd.f32 0.0, %v2731
        %v2733 = vpop.f32.mrb[0].mxu0
        %2734 = vdwg.mxu0
        %2735 = vrot.lane.b32.xlu0 %v1129, 64
        %v2736 = vpop.permute.xlu0 %2735
        %2737 = vrot.lane.b32.xlu0 %v1132, 64
        %v2738 = vpop.permute.xlu0 %2737
        %2739 = vrot.lane.b32.xlu0 %v1130, 64
        %v2740 = vpop.permute.xlu0 %2739
        %2741 = vrot.lane.b32.xlu0 %v1133, 64
        %v2742 = vpop.permute.xlu0 %2741
        %v2744 = vsel %vm1135, %v2736, 0
        %v2747 = vsel %vm1135, %v2738, 0
        %v2750 = vsel %vm1135, %v2740, 0
        %v2753 = vsel %vm1135, %v2742, 0
        %2755 = vmatprep.subr.bf16.mxu0 0
        %2756 = vmatpush1.bf16.xpose.msra.mxu0 %v2750
        %2757 = vmatprep.subr.bf16.mxu0 0
        %2758 = vmatpush1.bf16.xpose.msra.mxu0 %v2753
        %2759 = vmatprep.subr.bf16.mxu0 0
        %2760 = vmatpush1.bf16.xpose.msra.mxu0 0
        %2761 = vmatprep.subr.bf16.mxu0 0
        %2762 = vmatpush1.bf16.xpose.msra.mxu0 0
        %2763 = vmatprep.subr.bf16.mxu0 0
        %2764 = vmatpush1.bf16.xpose.msra.mxu0 0
        %2765 = vmatprep.subr.bf16.mxu0 0
        %2766 = vmatpush1.bf16.xpose.msra.mxu0 0
        %2767 = vmatprep.subr.bf16.mxu0 0
        %2768 = vmatpush1.bf16.xpose.msra.mxu0 0
        %2769 = vmatprep.subr.bf16.mxu0 0
        %2770 = vmatpush1.bf16.xpose.msra.mxu0 0
        %2771 = vmatprep.subr.bf16.mxu0 0
        %2772 = vmatpush1.bf16.xpose.msra.mxu0 0
        %2773 = vmatprep.subr.bf16.mxu0 0
        %2774 = vmatpush1.bf16.xpose.msra.mxu0 0
        %2775 = vmatprep.subr.bf16.mxu0 0
        %2776 = vmatpush1.bf16.xpose.msra.mxu0 0
        %2777 = vmatprep.subr.bf16.mxu0 0
        %2778 = vmatpush1.bf16.xpose.msra.mxu0 0
        %2779 = vmatprep.subr.bf16.mxu0 0
        %2780 = vmatpush1.bf16.xpose.msra.mxu0 0
        %2781 = vmatprep.subr.bf16.mxu0 0
        %2782 = vmatpush1.bf16.xpose.msra.mxu0 0
        %2783 = vmatprep.subr.bf16.mxu0 0
        %2784 = vmatpush1.bf16.xpose.msra.mxu0 0
        %2785 = vmatprep.subr.bf16.mxu0 0
        %2786 = vmatpush1.bf16.xpose.msra.mxu0 0
        %2787 = vmatprep.mubr.bf16.mxu0 0
        %2788 = vmatmul.mubr.bf16.gmra.mrb[0].mxu0 %v2744
        %v2789 = vpop.f32.mrb[0].mxu0
        %v2790 = vadd.f32 0.0, %v2789
        %v2791 = vpop.f32.mrb[0].mxu0
        %v2792 = vpop.f32.mrb[0].mxu0
        %v2793 = vadd.f32 0.0, %v2792
        %v2794 = vpop.f32.mrb[0].mxu0
        %2795 = vmatprep.mubr.bf16.mxu0 0
        %2796 = vmatmul.mubr.bf16.gmra.mrb[0].mxu0 %v2747
        %v2797 = vpop.f32.mrb[0].mxu0
        %v2798 = vadd.f32 0.0, %v2797
        %v2799 = vpop.f32.mrb[0].mxu0
        %v2800 = vpop.f32.mrb[0].mxu0
        %v2801 = vadd.f32 0.0, %v2800
        %v2802 = vpop.f32.mrb[0].mxu0
        %2803 = vdwg.mxu0
        %v2804 = vsel %vm1135, %v2583, -inf
        %2805 = vmax.xlane.f32.xlu0 %v2804
        %v2806 = vpop.xlane.xlu0 %2805
        %v2807 = vsel %vm1135, %v2586, -inf
        %2808 = vmax.xlane.f32.xlu0 %v2807
        %v2809 = vpop.xlane.xlu0 %2808
        %v2810 = vsel %vm1135, %v2591, -inf
        %2811 = vmax.xlane.f32.xlu0 %v2810
        %v2812 = vpop.xlane.xlu0 %2811
        %v2813 = vsel %vm1135, %v2594, -inf
        %2814 = vmax.xlane.f32.xlu0 %v2813
        %v2815 = vpop.xlane.xlu0 %2814
        %v2816 = vsel %vm1135, %v2652, -inf
        %2817 = vmax.xlane.f32.xlu0 %v2816
        %v2818 = vpop.xlane.xlu0 %2817
        %v2819 = vsel %vm1135, %v2655, -inf
        %2820 = vmax.xlane.f32.xlu0 %v2819
        %v2821 = vpop.xlane.xlu0 %2820
        %v2822 = vsel %vm1135, %v2660, -inf
        %2823 = vmax.xlane.f32.xlu0 %v2822
        %v2824 = vpop.xlane.xlu0 %2823
        %v2825 = vsel %vm1135, %v2663, -inf
        %2826 = vmax.xlane.f32.xlu0 %v2825
        %v2827 = vpop.xlane.xlu0 %2826
        %v2828 = vsel %vm1135, %v2721, -inf
        %2829 = vmax.xlane.f32.xlu0 %v2828
        %v2830 = vpop.xlane.xlu0 %2829
        %v2831 = vsel %vm1135, %v2724, -inf
        %2832 = vmax.xlane.f32.xlu0 %v2831
        %v2833 = vpop.xlane.xlu0 %2832
        %v2834 = vsel %vm1135, %v2729, -inf
        %2835 = vmax.xlane.f32.xlu0 %v2834
        %v2836 = vpop.xlane.xlu0 %2835
        %v2837 = vsel %vm1135, %v2732, -inf
        %2838 = vmax.xlane.f32.xlu0 %v2837
        %v2839 = vpop.xlane.xlu0 %2838
        %v2840 = vsel %vm1135, %v2790, -inf
        %2841 = vmax.xlane.f32.xlu0 %v2840
        %v2842 = vpop.xlane.xlu0 %2841
        %v2843 = vsel %vm1135, %v2793, -inf
        %2844 = vmax.xlane.f32.xlu0 %v2843
        %v2845 = vpop.xlane.xlu0 %2844
        %v2846 = vsel %vm1135, %v2798, -inf
        %2847 = vmax.xlane.f32.xlu0 %v2846
        %v2848 = vpop.xlane.xlu0 %2847
        %v2849 = vsel %vm1135, %v2801, -inf
        %2850 = vmax.xlane.f32.xlu0 %v2849
        %v2851 = vpop.xlane.xlu0 %2850
        %v2852 = vsub.f32 %v2583, %v2806
        %v2853 = vsub.f32 %v2586, %v2809
        %v2854 = vsub.f32 %v2591, %v2812
        %v2855 = vsub.f32 %v2594, %v2815
        %v2856 = vsub.f32 %v2652, %v2818
        %v2857 = vsub.f32 %v2655, %v2821
        %v2858 = vsub.f32 %v2660, %v2824
        %v2859 = vsub.f32 %v2663, %v2827
        %v2860 = vsub.f32 %v2721, %v2830
        %v2861 = vsub.f32 %v2724, %v2833
        %v2862 = vsub.f32 %v2729, %v2836
        %v2863 = vsub.f32 %v2732, %v2839
        %v2864 = vsub.f32 %v2790, %v2842
        %v2865 = vsub.f32 %v2793, %v2845
        %v2866 = vsub.f32 %v2798, %v2848
        %v2867 = vsub.f32 %v2801, %v2851
        %v2868 = vmul.f32 %v2852, 1.442695
        %v2869 = vpow.pop %v2868
        %v2870 = vmul.f32 %v2853, 1.442695
        %v2871 = vpow.pop %v2870
        %v2872 = vmul.f32 %v2854, 1.442695
        %v2873 = vpow.pop %v2872
        %v2874 = vmul.f32 %v2855, 1.442695
        %v2875 = vpow.pop %v2874
        %v2876 = vmul.f32 %v2856, 1.442695
        %v2877 = vpow.pop %v2876
        %v2878 = vmul.f32 %v2857, 1.442695
        %v2879 = vpow.pop %v2878
        %v2880 = vmul.f32 %v2858, 1.442695
        %v2881 = vpow.pop %v2880
        %v2882 = vmul.f32 %v2859, 1.442695
        %v2883 = vpow.pop %v2882
        %v2884 = vmul.f32 %v2860, 1.442695
        %v2885 = vpow.pop %v2884
        %v2886 = vmul.f32 %v2861, 1.442695
        %v2887 = vpow.pop %v2886
        %v2888 = vmul.f32 %v2862, 1.442695
        %v2889 = vpow.pop %v2888
        %v2890 = vmul.f32 %v2863, 1.442695
        %v2891 = vpow.pop %v2890
        %v2892 = vmul.f32 %v2864, 1.442695
        %v2893 = vpow.pop %v2892
        %v2894 = vmul.f32 %v2865, 1.442695
        %v2895 = vpow.pop %v2894
        %v2896 = vmul.f32 %v2866, 1.442695
        %v2897 = vpow.pop %v2896
        %v2898 = vmul.f32 %v2867, 1.442695
        %v2899 = vpow.pop %v2898
        %v2900 = vsel %vm1135, %v2869, 0.0
        %2901 = vadd.xlane.f32.xlu0 %v2900
        %v2902 = vpop.xlane.xlu0 %2901
        %v2903 = vsel %vm1135, %v2871, 0.0
        %2904 = vadd.xlane.f32.xlu0 %v2903
        %v2905 = vpop.xlane.xlu0 %2904
        %v2906 = vsel %vm1135, %v2873, 0.0
        %2907 = vadd.xlane.f32.xlu0 %v2906
        %v2908 = vpop.xlane.xlu0 %2907
        %v2909 = vsel %vm1135, %v2875, 0.0
        %2910 = vadd.xlane.f32.xlu0 %v2909
        %v2911 = vpop.xlane.xlu0 %2910
        %v2912 = vsel %vm1135, %v2877, 0.0
        %2913 = vadd.xlane.f32.xlu0 %v2912
        %v2914 = vpop.xlane.xlu0 %2913
        %v2915 = vsel %vm1135, %v2879, 0.0
        %2916 = vadd.xlane.f32.xlu0 %v2915
        %v2917 = vpop.xlane.xlu0 %2916
        %v2918 = vsel %vm1135, %v2881, 0.0
        %2919 = vadd.xlane.f32.xlu0 %v2918
        %v2920 = vpop.xlane.xlu0 %2919
        %v2921 = vsel %vm1135, %v2883, 0.0
        %2922 = vadd.xlane.f32.xlu0 %v2921
        %v2923 = vpop.xlane.xlu0 %2922
        %v2924 = vsel %vm1135, %v2885, 0.0
        %2925 = vadd.xlane.f32.xlu0 %v2924
        %v2926 = vpop.xlane.xlu0 %2925
        %v2927 = vsel %vm1135, %v2887, 0.0
        %2928 = vadd.xlane.f32.xlu0 %v2927
        %v2929 = vpop.xlane.xlu0 %2928
        %v2930 = vsel %vm1135, %v2889, 0.0
        %2931 = vadd.xlane.f32.xlu0 %v2930
        %v2932 = vpop.xlane.xlu0 %2931
        %v2933 = vsel %vm1135, %v2891, 0.0
        %2934 = vadd.xlane.f32.xlu0 %v2933
        %v2935 = vpop.xlane.xlu0 %2934
        %v2936 = vsel %vm1135, %v2893, 0.0
        %2937 = vadd.xlane.f32.xlu0 %v2936
        %v2938 = vpop.xlane.xlu0 %2937
        %v2939 = vsel %vm1135, %v2895, 0.0
        %2940 = vadd.xlane.f32.xlu0 %v2939
        %v2941 = vpop.xlane.xlu0 %2940
        %v2942 = vsel %vm1135, %v2897, 0.0
        %2943 = vadd.xlane.f32.xlu0 %v2942
        %v2944 = vpop.xlane.xlu0 %2943
        %v2945 = vsel %vm1135, %v2899, 0.0
        %2946 = vadd.xlane.f32.xlu0 %v2945
        %v2947 = vpop.xlane.xlu0 %2946
        %v2948 = vrcp.pop %v2902
        %v2949 = vrcp.pop %v2905
        %v2950 = vrcp.pop %v2908
        %v2951 = vrcp.pop %v2911
        %v2952 = vrcp.pop %v2914
        %v2953 = vrcp.pop %v2917
        %v2954 = vrcp.pop %v2920
        %v2955 = vrcp.pop %v2923
        %v2956 = vrcp.pop %v2926
        %v2957 = vrcp.pop %v2929
        %v2958 = vrcp.pop %v2932
        %v2959 = vrcp.pop %v2935
        %v2960 = vrcp.pop %v2938
        %v2961 = vrcp.pop %v2941
        %v2962 = vrcp.pop %v2944
        %v2963 = vrcp.pop %v2947
        %v2964 = vmul.f32 %v2869, %v2948
        %v2965 = vmul.f32 %v2871, %v2949
        %v2966 = vmul.f32 %v2873, %v2950
        %v2967 = vmul.f32 %v2875, %v2951
        %v2968 = vmul.f32 %v2877, %v2952
        %v2969 = vmul.f32 %v2879, %v2953
        %v2970 = vmul.f32 %v2881, %v2954
        %v2971 = vmul.f32 %v2883, %v2955
        %v2972 = vmul.f32 %v2885, %v2956
        %v2973 = vmul.f32 %v2887, %v2957
        %v2974 = vmul.f32 %v2889, %v2958
        %v2975 = vmul.f32 %v2891, %v2959
        %v2976 = vmul.f32 %v2893, %v2960
        %v2977 = vmul.f32 %v2895, %v2961
        %v2978 = vmul.f32 %v2897, %v2962
        %v2979 = vmul.f32 %v2899, %v2963
        %v2980 = vpack.c.bf16 %v2965, %v2964
        %v2981 = vpack.c.bf16 %v2967, %v2966
        %v2982 = vpack.c.bf16 %v2969, %v2968
        %v2983 = vpack.c.bf16 %v2971, %v2970
        %v2984 = vpack.c.bf16 %v2973, %v2972
        %v2985 = vpack.c.bf16 %v2975, %v2974
        %v2986 = vpack.c.bf16 %v2977, %v2976
        %v2987 = vpack.c.bf16 %v2979, %v2978
        %2988 = vrot.lane.b32.xlu0 %v1113, 64
        %v2989 = vpop.permute.xlu0 %2988
        %2990 = vrot.lane.b32.xlu0 %v1116, 64
        %v2991 = vpop.permute.xlu0 %2990
        %v2995 = vsel %vm1135, %v2980, 0
        %v2998 = vsel %vm1135, %v2981, 0
        %3000 = vmatprep.subr.bf16.mxu0 0
        %3001 = vmatpush1.bf16.msra.mxu0 %v2989
        %3002 = vmatprep.subr.bf16.mxu0 0
        %3003 = vmatpush1.bf16.msra.mxu0 %v2991
        %3004 = vmatprep.subr.bf16.mxu0 0
        %3005 = vmatpush1.bf16.msra.mxu0 0
        %3006 = vmatprep.subr.bf16.mxu0 0
        %3007 = vmatpush1.bf16.msra.mxu0 0
        %3008 = vmatprep.subr.bf16.mxu0 0
        %3009 = vmatpush1.bf16.msra.mxu0 0
        %3010 = vmatprep.subr.bf16.mxu0 0
        %3011 = vmatpush1.bf16.msra.mxu0 0
        %3012 = vmatprep.subr.bf16.mxu0 0
        %3013 = vmatpush1.bf16.msra.mxu0 0
        %3014 = vmatprep.subr.bf16.mxu0 0
        %3015 = vmatpush1.bf16.msra.mxu0 0
        %3016 = vmatprep.subr.bf16.mxu0 0
        %3017 = vmatpush1.bf16.msra.mxu0 0
        %3018 = vmatprep.subr.bf16.mxu0 0
        %3019 = vmatpush1.bf16.msra.mxu0 0
        %3020 = vmatprep.subr.bf16.mxu0 0
        %3021 = vmatpush1.bf16.msra.mxu0 0
        %3022 = vmatprep.subr.bf16.mxu0 0
        %3023 = vmatpush1.bf16.msra.mxu0 0
        %3024 = vmatprep.subr.bf16.mxu0 0
        %3025 = vmatpush1.bf16.msra.mxu0 0
        %3026 = vmatprep.subr.bf16.mxu0 0
        %3027 = vmatpush1.bf16.msra.mxu0 0
        %3028 = vmatprep.subr.bf16.mxu0 0
        %3029 = vmatpush1.bf16.msra.mxu0 0
        %3030 = vmatprep.subr.bf16.mxu0 0
        %3031 = vmatpush1.bf16.msra.mxu0 0
        %3032 = vmatprep.mubr.bf16.mxu0 0
        %3033 = vmatmul.mubr.bf16.gmra.mrb[0].mxu0 %v2995
        %v3034 = vpop.f32.mrb[0].mxu0
        %v3035 = vadd.f32 0.0, %v3034
        %v3036 = vpop.f32.mrb[0].mxu0
        %v3037 = vpop.f32.mrb[0].mxu0
        %v3038 = vadd.f32 0.0, %v3037
        %v3039 = vpop.f32.mrb[0].mxu0
        %3040 = vmatprep.mubr.bf16.mxu0 0
        %3041 = vmatmul.mubr.bf16.gmra.mrb[0].mxu0 %v2998
        %v3042 = vpop.f32.mrb[0].mxu0
        %v3043 = vadd.f32 0.0, %v3042
        %v3044 = vpop.f32.mrb[0].mxu0
        %v3045 = vpop.f32.mrb[0].mxu0
        %v3046 = vadd.f32 0.0, %v3045
        %v3047 = vpop.f32.mrb[0].mxu0
        %3048 = vdwg.mxu0
        %3049 = vrot.lane.b32.xlu0 %v1119, 64
        %v3050 = vpop.permute.xlu0 %3049
        %3051 = vrot.lane.b32.xlu0 %v1122, 64
        %v3052 = vpop.permute.xlu0 %3051
        %v3056 = vsel %vm1135, %v2982, 0
        %v3059 = vsel %vm1135, %v2983, 0
        %3061 = vmatprep.subr.bf16.mxu0 0
        %3062 = vmatpush1.bf16.msra.mxu0 %v3050
        %3063 = vmatprep.subr.bf16.mxu0 0
        %3064 = vmatpush1.bf16.msra.mxu0 %v3052
        %3065 = vmatprep.subr.bf16.mxu0 0
        %3066 = vmatpush1.bf16.msra.mxu0 0
        %3067 = vmatprep.subr.bf16.mxu0 0
        %3068 = vmatpush1.bf16.msra.mxu0 0
        %3069 = vmatprep.subr.bf16.mxu0 0
        %3070 = vmatpush1.bf16.msra.mxu0 0
        %3071 = vmatprep.subr.bf16.mxu0 0
        %3072 = vmatpush1.bf16.msra.mxu0 0
        %3073 = vmatprep.subr.bf16.mxu0 0
        %3074 = vmatpush1.bf16.msra.mxu0 0
        %3075 = vmatprep.subr.bf16.mxu0 0
        %3076 = vmatpush1.bf16.msra.mxu0 0
        %3077 = vmatprep.subr.bf16.mxu0 0
        %3078 = vmatpush1.bf16.msra.mxu0 0
        %3079 = vmatprep.subr.bf16.mxu0 0
        %3080 = vmatpush1.bf16.msra.mxu0 0
        %3081 = vmatprep.subr.bf16.mxu0 0
        %3082 = vmatpush1.bf16.msra.mxu0 0
        %3083 = vmatprep.subr.bf16.mxu0 0
        %3084 = vmatpush1.bf16.msra.mxu0 0
        %3085 = vmatprep.subr.bf16.mxu0 0
        %3086 = vmatpush1.bf16.msra.mxu0 0
        %3087 = vmatprep.subr.bf16.mxu0 0
        %3088 = vmatpush1.bf16.msra.mxu0 0
        %3089 = vmatprep.subr.bf16.mxu0 0
        %3090 = vmatpush1.bf16.msra.mxu0 0
        %3091 = vmatprep.subr.bf16.mxu0 0
        %3092 = vmatpush1.bf16.msra.mxu0 0
        %3093 = vmatprep.mubr.bf16.mxu0 0
        %3094 = vmatmul.mubr.bf16.gmra.mrb[0].mxu0 %v3056
        %v3095 = vpop.f32.mrb[0].mxu0
        %v3096 = vadd.f32 0.0, %v3095
        %v3097 = vpop.f32.mrb[0].mxu0
        %v3098 = vpop.f32.mrb[0].mxu0
        %v3099 = vadd.f32 0.0, %v3098
        %v3100 = vpop.f32.mrb[0].mxu0
        %3101 = vmatprep.mubr.bf16.mxu0 0
        %3102 = vmatmul.mubr.bf16.gmra.mrb[0].mxu0 %v3059
        %v3103 = vpop.f32.mrb[0].mxu0
        %v3104 = vadd.f32 0.0, %v3103
        %v3105 = vpop.f32.mrb[0].mxu0
        %v3106 = vpop.f32.mrb[0].mxu0
        %v3107 = vadd.f32 0.0, %v3106
        %v3108 = vpop.f32.mrb[0].mxu0
        %3109 = vdwg.mxu0
        %3110 = vrot.lane.b32.xlu0 %v1125, 64
        %v3111 = vpop.permute.xlu0 %3110
        %3112 = vrot.lane.b32.xlu0 %v1128, 64
        %v3113 = vpop.permute.xlu0 %3112
        %v3117 = vsel %vm1135, %v2984, 0
        %v3120 = vsel %vm1135, %v2985, 0
        %3122 = vmatprep.subr.bf16.mxu0 0
        %3123 = vmatpush1.bf16.msra.mxu0 %v3111
        %3124 = vmatprep.subr.bf16.mxu0 0
        %3125 = vmatpush1.bf16.msra.mxu0 %v3113
        %3126 = vmatprep.subr.bf16.mxu0 0
        %3127 = vmatpush1.bf16.msra.mxu0 0
        %3128 = vmatprep.subr.bf16.mxu0 0
        %3129 = vmatpush1.bf16.msra.mxu0 0
        %3130 = vmatprep.subr.bf16.mxu0 0
        %3131 = vmatpush1.bf16.msra.mxu0 0
        %3132 = vmatprep.subr.bf16.mxu0 0
        %3133 = vmatpush1.bf16.msra.mxu0 0
        %3134 = vmatprep.subr.bf16.mxu0 0
        %3135 = vmatpush1.bf16.msra.mxu0 0
        %3136 = vmatprep.subr.bf16.mxu0 0
        %3137 = vmatpush1.bf16.msra.mxu0 0
        %3138 = vmatprep.subr.bf16.mxu0 0
        %3139 = vmatpush1.bf16.msra.mxu0 0
        %3140 = vmatprep.subr.bf16.mxu0 0
        %3141 = vmatpush1.bf16.msra.mxu0 0
        %3142 = vmatprep.subr.bf16.mxu0 0
        %3143 = vmatpush1.bf16.msra.mxu0 0
        %3144 = vmatprep.subr.bf16.mxu0 0
        %3145 = vmatpush1.bf16.msra.mxu0 0
        %3146 = vmatprep.subr.bf16.mxu0 0
        %3147 = vmatpush1.bf16.msra.mxu0 0
        %3148 = vmatprep.subr.bf16.mxu0 0
        %3149 = vmatpush1.bf16.msra.mxu0 0
        %3150 = vmatprep.subr.bf16.mxu0 0
        %3151 = vmatpush1.bf16.msra.mxu0 0
        %3152 = vmatprep.subr.bf16.mxu0 0
        %3153 = vmatpush1.bf16.msra.mxu0 0
        %3154 = vmatprep.mubr.bf16.mxu0 0
        %3155 = vmatmul.mubr.bf16.gmra.mrb[0].mxu0 %v3117
        %v3156 = vpop.f32.mrb[0].mxu0
        %v3157 = vadd.f32 0.0, %v3156
        %v3158 = vpop.f32.mrb[0].mxu0
        %v3159 = vpop.f32.mrb[0].mxu0
        %v3160 = vadd.f32 0.0, %v3159
        %v3161 = vpop.f32.mrb[0].mxu0
        %3162 = vmatprep.mubr.bf16.mxu0 0
        %3163 = vmatmul.mubr.bf16.gmra.mrb[0].mxu0 %v3120
        %v3164 = vpop.f32.mrb[0].mxu0
        %v3165 = vadd.f32 0.0, %v3164
        %v3166 = vpop.f32.mrb[0].mxu0
        %v3167 = vpop.f32.mrb[0].mxu0
        %v3168 = vadd.f32 0.0, %v3167
        %v3169 = vpop.f32.mrb[0].mxu0
        %3170 = vdwg.mxu0
        %3171 = vrot.lane.b32.xlu0 %v1131, 64
        %v3172 = vpop.permute.xlu0 %3171
        %3173 = vrot.lane.b32.xlu0 %v1134, 64
        %v3174 = vpop.permute.xlu0 %3173
        %v3178 = vsel %vm1135, %v2986, 0
        %v3181 = vsel %vm1135, %v2987, 0
        %3183 = vmatprep.subr.bf16.mxu0 0
        %3184 = vmatpush1.bf16.msra.mxu0 %v3172
        %3185 = vmatprep.subr.bf16.mxu0 0
        %3186 = vmatpush1.bf16.msra.mxu0 %v3174
        %3187 = vmatprep.subr.bf16.mxu0 0
        %3188 = vmatpush1.bf16.msra.mxu0 0
        %3189 = vmatprep.subr.bf16.mxu0 0
        %3190 = vmatpush1.bf16.msra.mxu0 0
        %3191 = vmatprep.subr.bf16.mxu0 0
        %3192 = vmatpush1.bf16.msra.mxu0 0
        %3193 = vmatprep.subr.bf16.mxu0 0
        %3194 = vmatpush1.bf16.msra.mxu0 0
        %3195 = vmatprep.subr.bf16.mxu0 0
        %3196 = vmatpush1.bf16.msra.mxu0 0
        %3197 = vmatprep.subr.bf16.mxu0 0
        %3198 = vmatpush1.bf16.msra.mxu0 0
        %3199 = vmatprep.subr.bf16.mxu0 0
        %3200 = vmatpush1.bf16.msra.mxu0 0
        %3201 = vmatprep.subr.bf16.mxu0 0
        %3202 = vmatpush1.bf16.msra.mxu0 0
        %3203 = vmatprep.subr.bf16.mxu0 0
        %3204 = vmatpush1.bf16.msra.mxu0 0
        %3205 = vmatprep.subr.bf16.mxu0 0
        %3206 = vmatpush1.bf16.msra.mxu0 0
        %3207 = vmatprep.subr.bf16.mxu0 0
        %3208 = vmatpush1.bf16.msra.mxu0 0
        %3209 = vmatprep.subr.bf16.mxu0 0
        %3210 = vmatpush1.bf16.msra.mxu0 0
        %3211 = vmatprep.subr.bf16.mxu0 0
        %3212 = vmatpush1.bf16.msra.mxu0 0
        %3213 = vmatprep.subr.bf16.mxu0 0
        %3214 = vmatpush1.bf16.msra.mxu0 0
        %3215 = vmatprep.mubr.bf16.mxu0 0
        %3216 = vmatmul.mubr.bf16.gmra.mrb[0].mxu0 %v3178
        %v3217 = vpop.f32.mrb[0].mxu0
        %v3218 = vadd.f32 0.0, %v3217
        %v3219 = vpop.f32.mrb[0].mxu0
        %v3220 = vpop.f32.mrb[0].mxu0
        %v3221 = vadd.f32 0.0, %v3220
        %v3222 = vpop.f32.mrb[0].mxu0
        %3223 = vmatprep.mubr.bf16.mxu0 0
        %3224 = vmatmul.mubr.bf16.gmra.mrb[0].mxu0 %v3181
        %v3225 = vpop.f32.mrb[0].mxu0
        %v3226 = vadd.f32 0.0, %v3225
        %v3227 = vpop.f32.mrb[0].mxu0
        %v3228 = vpop.f32.mrb[0].mxu0
        %v3229 = vadd.f32 0.0, %v3228
        %v3230 = vpop.f32.mrb[0].mxu0
        %3231 = vdwg.mxu0
        %v3232 = vpack.c.bf16 %v3038, %v3035
        %v3233 = vpack.c.bf16 %v3046, %v3043
        %v3234 = vpack.c.bf16 %v3099, %v3096
        %v3235 = vpack.c.bf16 %v3107, %v3104
        %v3236 = vpack.c.bf16 %v3160, %v3157
        %v3237 = vpack.c.bf16 %v3168, %v3165
        %v3238 = vpack.c.bf16 %v3221, %v3218
        %v3239 = vpack.c.bf16 %v3229, %v3226
        %3240 = vrot.lane.b32.xlu0 %v1111, 32
        %v3241 = vpop.permute.xlu0 %3240
        %3242 = vrot.lane.b32.xlu0 %v1114, 32
        %v3243 = vpop.permute.xlu0 %3242
        %3244 = vrot.lane.b32.xlu0 %v1112, 32
        %v3245 = vpop.permute.xlu0 %3244
        %3246 = vrot.lane.b32.xlu0 %v1115, 32
        %v3247 = vpop.permute.xlu0 %3246
        %v3249 = vsel %vm1135, %v3241, 0
        %v3252 = vsel %vm1135, %v3243, 0
        %v3255 = vsel %vm1135, %v3245, 0
        %v3258 = vsel %vm1135, %v3247, 0
        %3260 = vmatprep.subr.bf16.mxu0 0
        %3261 = vmatpush1.bf16.xpose.msra.mxu0 %v3255
        %3262 = vmatprep.subr.bf16.mxu0 0
        %3263 = vmatpush1.bf16.xpose.msra.mxu0 %v3258
        %3264 = vmatprep.subr.bf16.mxu0 0
        %3265 = vmatpush1.bf16.xpose.msra.mxu0 0
        %3266 = vmatprep.subr.bf16.mxu0 0
        %3267 = vmatpush1.bf16.xpose.msra.mxu0 0
        %3268 = vmatprep.subr.bf16.mxu0 0
        %3269 = vmatpush1.bf16.xpose.msra.mxu0 0
        %3270 = vmatprep.subr.bf16.mxu0 0
        %3271 = vmatpush1.bf16.xpose.msra.mxu0 0
        %3272 = vmatprep.subr.bf16.mxu0 0
        %3273 = vmatpush1.bf16.xpose.msra.mxu0 0
        %3274 = vmatprep.subr.bf16.mxu0 0
        %3275 = vmatpush1.bf16.xpose.msra.mxu0 0
        %3276 = vmatprep.subr.bf16.mxu0 0
        %3277 = vmatpush1.bf16.xpose.msra.mxu0 0
        %3278 = vmatprep.subr.bf16.mxu0 0
        %3279 = vmatpush1.bf16.xpose.msra.mxu0 0
        %3280 = vmatprep.subr.bf16.mxu0 0
        %3281 = vmatpush1.bf16.xpose.msra.mxu0 0
        %3282 = vmatprep.subr.bf16.mxu0 0
        %3283 = vmatpush1.bf16.xpose.msra.mxu0 0
        %3284 = vmatprep.subr.bf16.mxu0 0
        %3285 = vmatpush1.bf16.xpose.msra.mxu0 0
        %3286 = vmatprep.subr.bf16.mxu0 0
        %3287 = vmatpush1.bf16.xpose.msra.mxu0 0
        %3288 = vmatprep.subr.bf16.mxu0 0
        %3289 = vmatpush1.bf16.xpose.msra.mxu0 0
        %3290 = vmatprep.subr.bf16.mxu0 0
        %3291 = vmatpush1.bf16.xpose.msra.mxu0 0
        %3292 = vmatprep.mubr.bf16.mxu0 0
        %3293 = vmatmul.mubr.bf16.gmra.mrb[0].mxu0 %v3249
        %v3294 = vpop.f32.mrb[0].mxu0
        %v3295 = vadd.f32 0.0, %v3294
        %v3296 = vpop.f32.mrb[0].mxu0
        %v3297 = vpop.f32.mrb[0].mxu0
        %v3298 = vadd.f32 0.0, %v3297
        %v3299 = vpop.f32.mrb[0].mxu0
        %3300 = vmatprep.mubr.bf16.mxu0 0
        %3301 = vmatmul.mubr.bf16.gmra.mrb[0].mxu0 %v3252
        %v3302 = vpop.f32.mrb[0].mxu0
        %v3303 = vadd.f32 0.0, %v3302
        %v3304 = vpop.f32.mrb[0].mxu0
        %v3305 = vpop.f32.mrb[0].mxu0
        %v3306 = vadd.f32 0.0, %v3305
        %v3307 = vpop.f32.mrb[0].mxu0
        %3308 = vdwg.mxu0
        %3309 = vrot.lane.b32.xlu0 %v1117, 32
        %v3310 = vpop.permute.xlu0 %3309
        %3311 = vrot.lane.b32.xlu0 %v1120, 32
        %v3312 = vpop.permute.xlu0 %3311
        %3313 = vrot.lane.b32.xlu0 %v1118, 32
        %v3314 = vpop.permute.xlu0 %3313
        %3315 = vrot.lane.b32.xlu0 %v1121, 32
        %v3316 = vpop.permute.xlu0 %3315
        %v3318 = vsel %vm1135, %v3310, 0
        %v3321 = vsel %vm1135, %v3312, 0
        %v3324 = vsel %vm1135, %v3314, 0
        %v3327 = vsel %vm1135, %v3316, 0
        %3329 = vmatprep.subr.bf16.mxu0 0
        %3330 = vmatpush1.bf16.xpose.msra.mxu0 %v3324
        %3331 = vmatprep.subr.bf16.mxu0 0
        %3332 = vmatpush1.bf16.xpose.msra.mxu0 %v3327
        %3333 = vmatprep.subr.bf16.mxu0 0
        %3334 = vmatpush1.bf16.xpose.msra.mxu0 0
        %3335 = vmatprep.subr.bf16.mxu0 0
        %3336 = vmatpush1.bf16.xpose.msra.mxu0 0
        %3337 = vmatprep.subr.bf16.mxu0 0
        %3338 = vmatpush1.bf16.xpose.msra.mxu0 0
        %3339 = vmatprep.subr.bf16.mxu0 0
        %3340 = vmatpush1.bf16.xpose.msra.mxu0 0
        %3341 = vmatprep.subr.bf16.mxu0 0
        %3342 = vmatpush1.bf16.xpose.msra.mxu0 0
        %3343 = vmatprep.subr.bf16.mxu0 0
        %3344 = vmatpush1.bf16.xpose.msra.mxu0 0
        %3345 = vmatprep.subr.bf16.mxu0 0
        %3346 = vmatpush1.bf16.xpose.msra.mxu0 0
        %3347 = vmatprep.subr.bf16.mxu0 0
        %3348 = vmatpush1.bf16.xpose.msra.mxu0 0
        %3349 = vmatprep.subr.bf16.mxu0 0
        %3350 = vmatpush1.bf16.xpose.msra.mxu0 0
        %3351 = vmatprep.subr.bf16.mxu0 0
        %3352 = vmatpush1.bf16.xpose.msra.mxu0 0
        %3353 = vmatprep.subr.bf16.mxu0 0
        %3354 = vmatpush1.bf16.xpose.msra.mxu0 0
        %3355 = vmatprep.subr.bf16.mxu0 0
        %3356 = vmatpush1.bf16.xpose.msra.mxu0 0
        %3357 = vmatprep.subr.bf16.mxu0 0
        %3358 = vmatpush1.bf16.xpose.msra.mxu0 0
        %3359 = vmatprep.subr.bf16.mxu0 0
        %3360 = vmatpush1.bf16.xpose.msra.mxu0 0
        %3361 = vmatprep.mubr.bf16.mxu0 0
        %3362 = vmatmul.mubr.bf16.gmra.mrb[0].mxu0 %v3318
        %v3363 = vpop.f32.mrb[0].mxu0
        %v3364 = vadd.f32 0.0, %v3363
        %v3365 = vpop.f32.mrb[0].mxu0
        %v3366 = vpop.f32.mrb[0].mxu0
        %v3367 = vadd.f32 0.0, %v3366
        %v3368 = vpop.f32.mrb[0].mxu0
        %3369 = vmatprep.mubr.bf16.mxu0 0
        %3370 = vmatmul.mubr.bf16.gmra.mrb[0].mxu0 %v3321
        %v3371 = vpop.f32.mrb[0].mxu0
        %v3372 = vadd.f32 0.0, %v3371
        %v3373 = vpop.f32.mrb[0].mxu0
        %v3374 = vpop.f32.mrb[0].mxu0
        %v3375 = vadd.f32 0.0, %v3374
        %v3376 = vpop.f32.mrb[0].mxu0
        %3377 = vdwg.mxu0
        %3378 = vrot.lane.b32.xlu0 %v1123, 32
        %v3379 = vpop.permute.xlu0 %3378
        %3380 = vrot.lane.b32.xlu0 %v1126, 32
        %v3381 = vpop.permute.xlu0 %3380
        %3382 = vrot.lane.b32.xlu0 %v1124, 32
        %v3383 = vpop.permute.xlu0 %3382
        %3384 = vrot.lane.b32.xlu0 %v1127, 32
        %v3385 = vpop.permute.xlu0 %3384
        %v3387 = vsel %vm1135, %v3379, 0
        %v3390 = vsel %vm1135, %v3381, 0
        %v3393 = vsel %vm1135, %v3383, 0
        %v3396 = vsel %vm1135, %v3385, 0
        %3398 = vmatprep.subr.bf16.mxu0 0
        %3399 = vmatpush1.bf16.xpose.msra.mxu0 %v3393
        %3400 = vmatprep.subr.bf16.mxu0 0
        %3401 = vmatpush1.bf16.xpose.msra.mxu0 %v3396
        %3402 = vmatprep.subr.bf16.mxu0 0
        %3403 = vmatpush1.bf16.xpose.msra.mxu0 0
        %3404 = vmatprep.subr.bf16.mxu0 0
        %3405 = vmatpush1.bf16.xpose.msra.mxu0 0
        %3406 = vmatprep.subr.bf16.mxu0 0
        %3407 = vmatpush1.bf16.xpose.msra.mxu0 0
        %3408 = vmatprep.subr.bf16.mxu0 0
        %3409 = vmatpush1.bf16.xpose.msra.mxu0 0
        %3410 = vmatprep.subr.bf16.mxu0 0
        %3411 = vmatpush1.bf16.xpose.msra.mxu0 0
        %3412 = vmatprep.subr.bf16.mxu0 0
        %3413 = vmatpush1.bf16.xpose.msra.mxu0 0
        %3414 = vmatprep.subr.bf16.mxu0 0
        %3415 = vmatpush1.bf16.xpose.msra.mxu0 0
        %3416 = vmatprep.subr.bf16.mxu0 0
        %3417 = vmatpush1.bf16.xpose.msra.mxu0 0
        %3418 = vmatprep.subr.bf16.mxu0 0
        %3419 = vmatpush1.bf16.xpose.msra.mxu0 0
        %3420 = vmatprep.subr.bf16.mxu0 0
        %3421 = vmatpush1.bf16.xpose.msra.mxu0 0
        %3422 = vmatprep.subr.bf16.mxu0 0
        %3423 = vmatpush1.bf16.xpose.msra.mxu0 0
        %3424 = vmatprep.subr.bf16.mxu0 0
        %3425 = vmatpush1.bf16.xpose.msra.mxu0 0
        %3426 = vmatprep.subr.bf16.mxu0 0
        %3427 = vmatpush1.bf16.xpose.msra.mxu0 0
        %3428 = vmatprep.subr.bf16.mxu0 0
        %3429 = vmatpush1.bf16.xpose.msra.mxu0 0
        %3430 = vmatprep.mubr.bf16.mxu0 0
        %3431 = vmatmul.mubr.bf16.gmra.mrb[0].mxu0 %v3387
        %v3432 = vpop.f32.mrb[0].mxu0
        %v3433 = vadd.f32 0.0, %v3432
        %v3434 = vpop.f32.mrb[0].mxu0
        %v3435 = vpop.f32.mrb[0].mxu0
        %v3436 = vadd.f32 0.0, %v3435
        %v3437 = vpop.f32.mrb[0].mxu0
        %3438 = vmatprep.mubr.bf16.mxu0 0
        %3439 = vmatmul.mubr.bf16.gmra.mrb[0].mxu0 %v3390
        %v3440 = vpop.f32.mrb[0].mxu0
        %v3441 = vadd.f32 0.0, %v3440
        %v3442 = vpop.f32.mrb[0].mxu0
        %v3443 = vpop.f32.mrb[0].mxu0
        %v3444 = vadd.f32 0.0, %v3443
        %v3445 = vpop.f32.mrb[0].mxu0
        %3446 = vdwg.mxu0
        %3447 = vrot.lane.b32.xlu0 %v1129, 32
        %v3448 = vpop.permute.xlu0 %3447
        %3449 = vrot.lane.b32.xlu0 %v1132, 32
        %v3450 = vpop.permute.xlu0 %3449
        %3451 = vrot.lane.b32.xlu0 %v1130, 32
        %v3452 = vpop.permute.xlu0 %3451
        %3453 = vrot.lane.b32.xlu0 %v1133, 32
        %v3454 = vpop.permute.xlu0 %3453
        %v3456 = vsel %vm1135, %v3448, 0
        %v3459 = vsel %vm1135, %v3450, 0
        %v3462 = vsel %vm1135, %v3452, 0
        %v3465 = vsel %vm1135, %v3454, 0
        %3467 = vmatprep.subr.bf16.mxu0 0
        %3468 = vmatpush1.bf16.xpose.msra.mxu0 %v3462
        %3469 = vmatprep.subr.bf16.mxu0 0
        %3470 = vmatpush1.bf16.xpose.msra.mxu0 %v3465
        %3471 = vmatprep.subr.bf16.mxu0 0
        %3472 = vmatpush1.bf16.xpose.msra.mxu0 0
        %3473 = vmatprep.subr.bf16.mxu0 0
        %3474 = vmatpush1.bf16.xpose.msra.mxu0 0
        %3475 = vmatprep.subr.bf16.mxu0 0
        %3476 = vmatpush1.bf16.xpose.msra.mxu0 0
        %3477 = vmatprep.subr.bf16.mxu0 0
        %3478 = vmatpush1.bf16.xpose.msra.mxu0 0
        %3479 = vmatprep.subr.bf16.mxu0 0
        %3480 = vmatpush1.bf16.xpose.msra.mxu0 0
        %3481 = vmatprep.subr.bf16.mxu0 0
        %3482 = vmatpush1.bf16.xpose.msra.mxu0 0
        %3483 = vmatprep.subr.bf16.mxu0 0
        %3484 = vmatpush1.bf16.xpose.msra.mxu0 0
        %3485 = vmatprep.subr.bf16.mxu0 0
        %3486 = vmatpush1.bf16.xpose.msra.mxu0 0
        %3487 = vmatprep.subr.bf16.mxu0 0
        %3488 = vmatpush1.bf16.xpose.msra.mxu0 0
        %3489 = vmatprep.subr.bf16.mxu0 0
        %3490 = vmatpush1.bf16.xpose.msra.mxu0 0
        %3491 = vmatprep.subr.bf16.mxu0 0
        %3492 = vmatpush1.bf16.xpose.msra.mxu0 0
        %3493 = vmatprep.subr.bf16.mxu0 0
        %3494 = vmatpush1.bf16.xpose.msra.mxu0 0
        %3495 = vmatprep.subr.bf16.mxu0 0
        %3496 = vmatpush1.bf16.xpose.msra.mxu0 0
        %3497 = vmatprep.subr.bf16.mxu0 0
        %3498 = vmatpush1.bf16.xpose.msra.mxu0 0
        %3499 = vmatprep.mubr.bf16.mxu0 0
        %3500 = vmatmul.mubr.bf16.gmra.mrb[0].mxu0 %v3456
        %v3501 = vpop.f32.mrb[0].mxu0
        %v3502 = vadd.f32 0.0, %v3501
        %v3503 = vpop.f32.mrb[0].mxu0
        %v3504 = vpop.f32.mrb[0].mxu0
        %v3505 = vadd.f32 0.0, %v3504
        %v3506 = vpop.f32.mrb[0].mxu0
        %3507 = vmatprep.mubr.bf16.mxu0 0
        %3508 = vmatmul.mubr.bf16.gmra.mrb[0].mxu0 %v3459
        %v3509 = vpop.f32.mrb[0].mxu0
        %v3510 = vadd.f32 0.0, %v3509
        %v3511 = vpop.f32.mrb[0].mxu0
        %v3512 = vpop.f32.mrb[0].mxu0
        %v3513 = vadd.f32 0.0, %v3512
        %v3514 = vpop.f32.mrb[0].mxu0
        %3515 = vdwg.mxu0
        %v3516 = vsel %vm1135, %v3295, -inf
        %3517 = vmax.xlane.f32.xlu0 %v3516
        %v3518 = vpop.xlane.xlu0 %3517
        %v3519 = vsel %vm1135, %v3298, -inf
        %3520 = vmax.xlane.f32.xlu0 %v3519
        %v3521 = vpop.xlane.xlu0 %3520
        %v3522 = vsel %vm1135, %v3303, -inf
        %3523 = vmax.xlane.f32.xlu0 %v3522
        %v3524 = vpop.xlane.xlu0 %3523
        %v3525 = vsel %vm1135, %v3306, -inf
        %3526 = vmax.xlane.f32.xlu0 %v3525
        %v3527 = vpop.xlane.xlu0 %3526
        %v3528 = vsel %vm1135, %v3364, -inf
        %3529 = vmax.xlane.f32.xlu0 %v3528
        %v3530 = vpop.xlane.xlu0 %3529
        %v3531 = vsel %vm1135, %v3367, -inf
        %3532 = vmax.xlane.f32.xlu0 %v3531
        %v3533 = vpop.xlane.xlu0 %3532
        %v3534 = vsel %vm1135, %v3372, -inf
        %3535 = vmax.xlane.f32.xlu0 %v3534
        %v3536 = vpop.xlane.xlu0 %3535
        %v3537 = vsel %vm1135, %v3375, -inf
        %3538 = vmax.xlane.f32.xlu0 %v3537
        %v3539 = vpop.xlane.xlu0 %3538
        %v3540 = vsel %vm1135, %v3433, -inf
        %3541 = vmax.xlane.f32.xlu0 %v3540
        %v3542 = vpop.xlane.xlu0 %3541
        %v3543 = vsel %vm1135, %v3436, -inf
        %3544 = vmax.xlane.f32.xlu0 %v3543
        %v3545 = vpop.xlane.xlu0 %3544
        %v3546 = vsel %vm1135, %v3441, -inf
        %3547 = vmax.xlane.f32.xlu0 %v3546
        %v3548 = vpop.xlane.xlu0 %3547
        %v3549 = vsel %vm1135, %v3444, -inf
        %3550 = vmax.xlane.f32.xlu0 %v3549
        %v3551 = vpop.xlane.xlu0 %3550
        %v3552 = vsel %vm1135, %v3502, -inf
        %3553 = vmax.xlane.f32.xlu0 %v3552
        %v3554 = vpop.xlane.xlu0 %3553
        %v3555 = vsel %vm1135, %v3505, -inf
        %3556 = vmax.xlane.f32.xlu0 %v3555
        %v3557 = vpop.xlane.xlu0 %3556
        %v3558 = vsel %vm1135, %v3510, -inf
        %3559 = vmax.xlane.f32.xlu0 %v3558
        %v3560 = vpop.xlane.xlu0 %3559
        %v3561 = vsel %vm1135, %v3513, -inf
        %3562 = vmax.xlane.f32.xlu0 %v3561
        %v3563 = vpop.xlane.xlu0 %3562
        %v3564 = vsub.f32 %v3295, %v3518
        %v3565 = vsub.f32 %v3298, %v3521
        %v3566 = vsub.f32 %v3303, %v3524
        %v3567 = vsub.f32 %v3306, %v3527
        %v3568 = vsub.f32 %v3364, %v3530
        %v3569 = vsub.f32 %v3367, %v3533
        %v3570 = vsub.f32 %v3372, %v3536
        %v3571 = vsub.f32 %v3375, %v3539
        %v3572 = vsub.f32 %v3433, %v3542
        %v3573 = vsub.f32 %v3436, %v3545
        %v3574 = vsub.f32 %v3441, %v3548
        %v3575 = vsub.f32 %v3444, %v3551
        %v3576 = vsub.f32 %v3502, %v3554
        %v3577 = vsub.f32 %v3505, %v3557
        %v3578 = vsub.f32 %v3510, %v3560
        %v3579 = vsub.f32 %v3513, %v3563
        %v3580 = vmul.f32 %v3564, 1.442695
        %v3581 = vpow.pop %v3580
        %v3582 = vmul.f32 %v3565, 1.442695
        %v3583 = vpow.pop %v3582
        %v3584 = vmul.f32 %v3566, 1.442695
        %v3585 = vpow.pop %v3584
        %v3586 = vmul.f32 %v3567, 1.442695
        %v3587 = vpow.pop %v3586
        %v3588 = vmul.f32 %v3568, 1.442695
        %v3589 = vpow.pop %v3588
        %v3590 = vmul.f32 %v3569, 1.442695
        %v3591 = vpow.pop %v3590
        %v3592 = vmul.f32 %v3570, 1.442695
        %v3593 = vpow.pop %v3592
        %v3594 = vmul.f32 %v3571, 1.442695
        %v3595 = vpow.pop %v3594
        %v3596 = vmul.f32 %v3572, 1.442695
        %v3597 = vpow.pop %v3596
        %v3598 = vmul.f32 %v3573, 1.442695
        %v3599 = vpow.pop %v3598
        %v3600 = vmul.f32 %v3574, 1.442695
        %v3601 = vpow.pop %v3600
        %v3602 = vmul.f32 %v3575, 1.442695
        %v3603 = vpow.pop %v3602
        %v3604 = vmul.f32 %v3576, 1.442695
        %v3605 = vpow.pop %v3604
        %v3606 = vmul.f32 %v3577, 1.442695
        %v3607 = vpow.pop %v3606
        %v3608 = vmul.f32 %v3578, 1.442695
        %v3609 = vpow.pop %v3608
        %v3610 = vmul.f32 %v3579, 1.442695
        %v3611 = vpow.pop %v3610
        %v3612 = vsel %vm1135, %v3581, 0.0
        %3613 = vadd.xlane.f32.xlu0 %v3612
        %v3614 = vpop.xlane.xlu0 %3613
        %v3615 = vsel %vm1135, %v3583, 0.0
        %3616 = vadd.xlane.f32.xlu0 %v3615
        %v3617 = vpop.xlane.xlu0 %3616
        %v3618 = vsel %vm1135, %v3585, 0.0
        %3619 = vadd.xlane.f32.xlu0 %v3618
        %v3620 = vpop.xlane.xlu0 %3619
        %v3621 = vsel %vm1135, %v3587, 0.0
        %3622 = vadd.xlane.f32.xlu0 %v3621
        %v3623 = vpop.xlane.xlu0 %3622
        %v3624 = vsel %vm1135, %v3589, 0.0
        %3625 = vadd.xlane.f32.xlu0 %v3624
        %v3626 = vpop.xlane.xlu0 %3625
        %v3627 = vsel %vm1135, %v3591, 0.0
        %3628 = vadd.xlane.f32.xlu0 %v3627
        %v3629 = vpop.xlane.xlu0 %3628
        %v3630 = vsel %vm1135, %v3593, 0.0
        %3631 = vadd.xlane.f32.xlu0 %v3630
        %v3632 = vpop.xlane.xlu0 %3631
        %v3633 = vsel %vm1135, %v3595, 0.0
        %3634 = vadd.xlane.f32.xlu0 %v3633
        %v3635 = vpop.xlane.xlu0 %3634
        %v3636 = vsel %vm1135, %v3597, 0.0
        %3637 = vadd.xlane.f32.xlu0 %v3636
        %v3638 = vpop.xlane.xlu0 %3637
        %v3639 = vsel %vm1135, %v3599, 0.0
        %3640 = vadd.xlane.f32.xlu0 %v3639
        %v3641 = vpop.xlane.xlu0 %3640
        %v3642 = vsel %vm1135, %v3601, 0.0
        %3643 = vadd.xlane.f32.xlu0 %v3642
        %v3644 = vpop.xlane.xlu0 %3643
        %v3645 = vsel %vm1135, %v3603, 0.0
        %3646 = vadd.xlane.f32.xlu0 %v3645
        %v3647 = vpop.xlane.xlu0 %3646
        %v3648 = vsel %vm1135, %v3605, 0.0
        %3649 = vadd.xlane.f32.xlu0 %v3648
        %v3650 = vpop.xlane.xlu0 %3649
        %v3651 = vsel %vm1135, %v3607, 0.0
        %3652 = vadd.xlane.f32.xlu0 %v3651
        %v3653 = vpop.xlane.xlu0 %3652
        %v3654 = vsel %vm1135, %v3609, 0.0
        %3655 = vadd.xlane.f32.xlu0 %v3654
        %v3656 = vpop.xlane.xlu0 %3655
        %v3657 = vsel %vm1135, %v3611, 0.0
        %3658 = vadd.xlane.f32.xlu0 %v3657
        %v3659 = vpop.xlane.xlu0 %3658
        %v3660 = vrcp.pop %v3614
        %v3661 = vrcp.pop %v3617
        %v3662 = vrcp.pop %v3620
        %v3663 = vrcp.pop %v3623
        %v3664 = vrcp.pop %v3626
        %v3665 = vrcp.pop %v3629
        %v3666 = vrcp.pop %v3632
        %v3667 = vrcp.pop %v3635
        %v3668 = vrcp.pop %v3638
        %v3669 = vrcp.pop %v3641
        %v3670 = vrcp.pop %v3644
        %v3671 = vrcp.pop %v3647
        %v3672 = vrcp.pop %v3650
        %v3673 = vrcp.pop %v3653
        %v3674 = vrcp.pop %v3656
        %v3675 = vrcp.pop %v3659
        %v3676 = vmul.f32 %v3581, %v3660
        %v3677 = vmul.f32 %v3583, %v3661
        %v3678 = vmul.f32 %v3585, %v3662
        %v3679 = vmul.f32 %v3587, %v3663
        %v3680 = vmul.f32 %v3589, %v3664
        %v3681 = vmul.f32 %v3591, %v3665
        %v3682 = vmul.f32 %v3593, %v3666
        %v3683 = vmul.f32 %v3595, %v3667
        %v3684 = vmul.f32 %v3597, %v3668
        %v3685 = vmul.f32 %v3599, %v3669
        %v3686 = vmul.f32 %v3601, %v3670
        %v3687 = vmul.f32 %v3603, %v3671
        %v3688 = vmul.f32 %v3605, %v3672
        %v3689 = vmul.f32 %v3607, %v3673
        %v3690 = vmul.f32 %v3609, %v3674
        %v3691 = vmul.f32 %v3611, %v3675
        %v3692 = vpack.c.bf16 %v3677, %v3676
        %v3693 = vpack.c.bf16 %v3679, %v3678
        %v3694 = vpack.c.bf16 %v3681, %v3680
        %v3695 = vpack.c.bf16 %v3683, %v3682
        %v3696 = vpack.c.bf16 %v3685, %v3684
        %v3697 = vpack.c.bf16 %v3687, %v3686
        %v3698 = vpack.c.bf16 %v3689, %v3688
        %v3699 = vpack.c.bf16 %v3691, %v3690
        %3700 = vrot.lane.b32.xlu0 %v1113, 32
        %v3701 = vpop.permute.xlu0 %3700
        %3702 = vrot.lane.b32.xlu0 %v1116, 32
        %v3703 = vpop.permute.xlu0 %3702
        %v3707 = vsel %vm1135, %v3692, 0
        %v3710 = vsel %vm1135, %v3693, 0
        %3712 = vmatprep.subr.bf16.mxu0 0
        %3713 = vmatpush1.bf16.msra.mxu0 %v3701
        %3714 = vmatprep.subr.bf16.mxu0 0
        %3715 = vmatpush1.bf16.msra.mxu0 %v3703
        %3716 = vmatprep.subr.bf16.mxu0 0
        %3717 = vmatpush1.bf16.msra.mxu0 0
        %3718 = vmatprep.subr.bf16.mxu0 0
        %3719 = vmatpush1.bf16.msra.mxu0 0
        %3720 = vmatprep.subr.bf16.mxu0 0
        %3721 = vmatpush1.bf16.msra.mxu0 0
        %3722 = vmatprep.subr.bf16.mxu0 0
        %3723 = vmatpush1.bf16.msra.mxu0 0
        %3724 = vmatprep.subr.bf16.mxu0 0
        %3725 = vmatpush1.bf16.msra.mxu0 0
        %3726 = vmatprep.subr.bf16.mxu0 0
        %3727 = vmatpush1.bf16.msra.mxu0 0
        %3728 = vmatprep.subr.bf16.mxu0 0
        %3729 = vmatpush1.bf16.msra.mxu0 0
        %3730 = vmatprep.subr.bf16.mxu0 0
        %3731 = vmatpush1.bf16.msra.mxu0 0
        %3732 = vmatprep.subr.bf16.mxu0 0
        %3733 = vmatpush1.bf16.msra.mxu0 0
        %3734 = vmatprep.subr.bf16.mxu0 0
        %3735 = vmatpush1.bf16.msra.mxu0 0
        %3736 = vmatprep.subr.bf16.mxu0 0
        %3737 = vmatpush1.bf16.msra.mxu0 0
        %3738 = vmatprep.subr.bf16.mxu0 0
        %3739 = vmatpush1.bf16.msra.mxu0 0
        %3740 = vmatprep.subr.bf16.mxu0 0
        %3741 = vmatpush1.bf16.msra.mxu0 0
        %3742 = vmatprep.subr.bf16.mxu0 0
        %3743 = vmatpush1.bf16.msra.mxu0 0
        %3744 = vmatprep.mubr.bf16.mxu0 0
        %3745 = vmatmul.mubr.bf16.gmra.mrb[0].mxu0 %v3707
        %v3746 = vpop.f32.mrb[0].mxu0
        %v3747 = vadd.f32 0.0, %v3746
        %v3748 = vpop.f32.mrb[0].mxu0
        %v3749 = vpop.f32.mrb[0].mxu0
        %v3750 = vadd.f32 0.0, %v3749
        %v3751 = vpop.f32.mrb[0].mxu0
        %3752 = vmatprep.mubr.bf16.mxu0 0
        %3753 = vmatmul.mubr.bf16.gmra.mrb[0].mxu0 %v3710
        %v3754 = vpop.f32.mrb[0].mxu0
        %v3755 = vadd.f32 0.0, %v3754
        %v3756 = vpop.f32.mrb[0].mxu0
        %v3757 = vpop.f32.mrb[0].mxu0
        %v3758 = vadd.f32 0.0, %v3757
        %v3759 = vpop.f32.mrb[0].mxu0
        %3760 = vdwg.mxu0
        %3761 = vrot.lane.b32.xlu0 %v1119, 32
        %v3762 = vpop.permute.xlu0 %3761
        %3763 = vrot.lane.b32.xlu0 %v1122, 32
        %v3764 = vpop.permute.xlu0 %3763
        %v3768 = vsel %vm1135, %v3694, 0
        %v3771 = vsel %vm1135, %v3695, 0
        %3773 = vmatprep.subr.bf16.mxu0 0
        %3774 = vmatpush1.bf16.msra.mxu0 %v3762
        %3775 = vmatprep.subr.bf16.mxu0 0
        %3776 = vmatpush1.bf16.msra.mxu0 %v3764
        %3777 = vmatprep.subr.bf16.mxu0 0
        %3778 = vmatpush1.bf16.msra.mxu0 0
        %3779 = vmatprep.subr.bf16.mxu0 0
        %3780 = vmatpush1.bf16.msra.mxu0 0
        %3781 = vmatprep.subr.bf16.mxu0 0
        %3782 = vmatpush1.bf16.msra.mxu0 0
        %3783 = vmatprep.subr.bf16.mxu0 0
        %3784 = vmatpush1.bf16.msra.mxu0 0
        %3785 = vmatprep.subr.bf16.mxu0 0
        %3786 = vmatpush1.bf16.msra.mxu0 0
        %3787 = vmatprep.subr.bf16.mxu0 0
        %3788 = vmatpush1.bf16.msra.mxu0 0
        %3789 = vmatprep.subr.bf16.mxu0 0
        %3790 = vmatpush1.bf16.msra.mxu0 0
        %3791 = vmatprep.subr.bf16.mxu0 0
        %3792 = vmatpush1.bf16.msra.mxu0 0
        %3793 = vmatprep.subr.bf16.mxu0 0
        %3794 = vmatpush1.bf16.msra.mxu0 0
        %3795 = vmatprep.subr.bf16.mxu0 0
        %3796 = vmatpush1.bf16.msra.mxu0 0
        %3797 = vmatprep.subr.bf16.mxu0 0
        %3798 = vmatpush1.bf16.msra.mxu0 0
        %3799 = vmatprep.subr.bf16.mxu0 0
        %3800 = vmatpush1.bf16.msra.mxu0 0
        %3801 = vmatprep.subr.bf16.mxu0 0
        %3802 = vmatpush1.bf16.msra.mxu0 0
        %3803 = vmatprep.subr.bf16.mxu0 0
        %3804 = vmatpush1.bf16.msra.mxu0 0
        %3805 = vmatprep.mubr.bf16.mxu0 0
        %3806 = vmatmul.mubr.bf16.gmra.mrb[0].mxu0 %v3768
        %v3807 = vpop.f32.mrb[0].mxu0
        %v3808 = vadd.f32 0.0, %v3807
        %v3809 = vpop.f32.mrb[0].mxu0
        %v3810 = vpop.f32.mrb[0].mxu0
        %v3811 = vadd.f32 0.0, %v3810
        %v3812 = vpop.f32.mrb[0].mxu0
        %3813 = vmatprep.mubr.bf16.mxu0 0
        %3814 = vmatmul.mubr.bf16.gmra.mrb[0].mxu0 %v3771
        %v3815 = vpop.f32.mrb[0].mxu0
        %v3816 = vadd.f32 0.0, %v3815
        %v3817 = vpop.f32.mrb[0].mxu0
        %v3818 = vpop.f32.mrb[0].mxu0
        %v3819 = vadd.f32 0.0, %v3818
        %v3820 = vpop.f32.mrb[0].mxu0
        %3821 = vdwg.mxu0
        %3822 = vrot.lane.b32.xlu0 %v1125, 32
        %v3823 = vpop.permute.xlu0 %3822
        %3824 = vrot.lane.b32.xlu0 %v1128, 32
        %v3825 = vpop.permute.xlu0 %3824
        %v3829 = vsel %vm1135, %v3696, 0
        %v3832 = vsel %vm1135, %v3697, 0
        %3834 = vmatprep.subr.bf16.mxu0 0
        %3835 = vmatpush1.bf16.msra.mxu0 %v3823
        %3836 = vmatprep.subr.bf16.mxu0 0
        %3837 = vmatpush1.bf16.msra.mxu0 %v3825
        %3838 = vmatprep.subr.bf16.mxu0 0
        %3839 = vmatpush1.bf16.msra.mxu0 0
        %3840 = vmatprep.subr.bf16.mxu0 0
        %3841 = vmatpush1.bf16.msra.mxu0 0
        %3842 = vmatprep.subr.bf16.mxu0 0
        %3843 = vmatpush1.bf16.msra.mxu0 0
        %3844 = vmatprep.subr.bf16.mxu0 0
        %3845 = vmatpush1.bf16.msra.mxu0 0
        %3846 = vmatprep.subr.bf16.mxu0 0
        %3847 = vmatpush1.bf16.msra.mxu0 0
        %3848 = vmatprep.subr.bf16.mxu0 0
        %3849 = vmatpush1.bf16.msra.mxu0 0
        %3850 = vmatprep.subr.bf16.mxu0 0
        %3851 = vmatpush1.bf16.msra.mxu0 0
        %3852 = vmatprep.subr.bf16.mxu0 0
        %3853 = vmatpush1.bf16.msra.mxu0 0
        %3854 = vmatprep.subr.bf16.mxu0 0
        %3855 = vmatpush1.bf16.msra.mxu0 0
        %3856 = vmatprep.subr.bf16.mxu0 0
        %3857 = vmatpush1.bf16.msra.mxu0 0
        %3858 = vmatprep.subr.bf16.mxu0 0
        %3859 = vmatpush1.bf16.msra.mxu0 0
        %3860 = vmatprep.subr.bf16.mxu0 0
        %3861 = vmatpush1.bf16.msra.mxu0 0
        %3862 = vmatprep.subr.bf16.mxu0 0
        %3863 = vmatpush1.bf16.msra.mxu0 0
        %3864 = vmatprep.subr.bf16.mxu0 0
        %3865 = vmatpush1.bf16.msra.mxu0 0
        %3866 = vmatprep.mubr.bf16.mxu0 0
        %3867 = vmatmul.mubr.bf16.gmra.mrb[0].mxu0 %v3829
        %v3868 = vpop.f32.mrb[0].mxu0
        %v3869 = vadd.f32 0.0, %v3868
        %v3870 = vpop.f32.mrb[0].mxu0
        %v3871 = vpop.f32.mrb[0].mxu0
        %v3872 = vadd.f32 0.0, %v3871
        %v3873 = vpop.f32.mrb[0].mxu0
        %3874 = vmatprep.mubr.bf16.mxu0 0
        %3875 = vmatmul.mubr.bf16.gmra.mrb[0].mxu0 %v3832
        %v3876 = vpop.f32.mrb[0].mxu0
        %v3877 = vadd.f32 0.0, %v3876
        %v3878 = vpop.f32.mrb[0].mxu0
        %v3879 = vpop.f32.mrb[0].mxu0
        %v3880 = vadd.f32 0.0, %v3879
        %v3881 = vpop.f32.mrb[0].mxu0
        %3882 = vdwg.mxu0
        %3883 = vrot.lane.b32.xlu0 %v1131, 32
        %v3884 = vpop.permute.xlu0 %3883
        %3885 = vrot.lane.b32.xlu0 %v1134, 32
        %v3886 = vpop.permute.xlu0 %3885
        %v3890 = vsel %vm1135, %v3698, 0
        %v3893 = vsel %vm1135, %v3699, 0
        %3895 = vmatprep.subr.bf16.mxu0 0
        %3896 = vmatpush1.bf16.msra.mxu0 %v3884
        %3897 = vmatprep.subr.bf16.mxu0 0
        %3898 = vmatpush1.bf16.msra.mxu0 %v3886
        %3899 = vmatprep.subr.bf16.mxu0 0
        %3900 = vmatpush1.bf16.msra.mxu0 0
        %3901 = vmatprep.subr.bf16.mxu0 0
        %3902 = vmatpush1.bf16.msra.mxu0 0
        %3903 = vmatprep.subr.bf16.mxu0 0
        %3904 = vmatpush1.bf16.msra.mxu0 0
        %3905 = vmatprep.subr.bf16.mxu0 0
        %3906 = vmatpush1.bf16.msra.mxu0 0
        %3907 = vmatprep.subr.bf16.mxu0 0
        %3908 = vmatpush1.bf16.msra.mxu0 0
        %3909 = vmatprep.subr.bf16.mxu0 0
        %3910 = vmatpush1.bf16.msra.mxu0 0
        %3911 = vmatprep.subr.bf16.mxu0 0
        %3912 = vmatpush1.bf16.msra.mxu0 0
        %3913 = vmatprep.subr.bf16.mxu0 0
        %3914 = vmatpush1.bf16.msra.mxu0 0
        %3915 = vmatprep.subr.bf16.mxu0 0
        %3916 = vmatpush1.bf16.msra.mxu0 0
        %3917 = vmatprep.subr.bf16.mxu0 0
        %3918 = vmatpush1.bf16.msra.mxu0 0
        %3919 = vmatprep.subr.bf16.mxu0 0
        %3920 = vmatpush1.bf16.msra.mxu0 0
        %3921 = vmatprep.subr.bf16.mxu0 0
        %3922 = vmatpush1.bf16.msra.mxu0 0
        %3923 = vmatprep.subr.bf16.mxu0 0
        %3924 = vmatpush1.bf16.msra.mxu0 0
        %3925 = vmatprep.subr.bf16.mxu0 0
        %3926 = vmatpush1.bf16.msra.mxu0 0
        %3927 = vmatprep.mubr.bf16.mxu0 0
        %3928 = vmatmul.mubr.bf16.gmra.mrb[0].mxu0 %v3890
        %v3929 = vpop.f32.mrb[0].mxu0
        %v3930 = vadd.f32 0.0, %v3929
        %v3931 = vpop.f32.mrb[0].mxu0
        %v3932 = vpop.f32.mrb[0].mxu0
        %v3933 = vadd.f32 0.0, %v3932
        %v3934 = vpop.f32.mrb[0].mxu0
        %3935 = vmatprep.mubr.bf16.mxu0 0
        %3936 = vmatmul.mubr.bf16.gmra.mrb[0].mxu0 %v3893
        %v3937 = vpop.f32.mrb[0].mxu0
        %v3938 = vadd.f32 0.0, %v3937
        %v3939 = vpop.f32.mrb[0].mxu0
        %v3940 = vpop.f32.mrb[0].mxu0
        %v3941 = vadd.f32 0.0, %v3940
        %v3942 = vpop.f32.mrb[0].mxu0
        %3943 = vdwg.mxu0
        %v3944 = vpack.c.bf16 %v3750, %v3747
        %v3945 = vpack.c.bf16 %v3758, %v3755
        %v3946 = vpack.c.bf16 %v3811, %v3808
        %v3947 = vpack.c.bf16 %v3819, %v3816
        %v3948 = vpack.c.bf16 %v3872, %v3869
        %v3949 = vpack.c.bf16 %v3880, %v3877
        %v3950 = vpack.c.bf16 %v3933, %v3930
        %v3951 = vpack.c.bf16 %v3941, %v3938
        %3960 = vrot.lane.b32.xlu0 %v2520, 32
        %v3961 = vpop.permute.xlu0 %3960
        %3962 = vrot.lane.b32.xlu0 %v2521, 32
        %v3963 = vpop.permute.xlu0 %3962
        %3964 = vrot.lane.b32.xlu0 %v2522, 32
        %v3965 = vpop.permute.xlu0 %3964
        %3966 = vrot.lane.b32.xlu0 %v2523, 32
        %v3967 = vpop.permute.xlu0 %3966
        %3968 = vrot.lane.b32.xlu0 %v2524, 32
        %v3969 = vpop.permute.xlu0 %3968
        %3970 = vrot.lane.b32.xlu0 %v2525, 32
        %v3971 = vpop.permute.xlu0 %3970
        %3972 = vrot.lane.b32.xlu0 %v2526, 32
        %v3973 = vpop.permute.xlu0 %3972
        %3974 = vrot.lane.b32.xlu0 %v2527, 32
        %v3975 = vpop.permute.xlu0 %3974
        %3984 = vrot.lane.b32.xlu0 %v3232, 64
        %v3985 = vpop.permute.xlu0 %3984
        %3986 = vrot.lane.b32.xlu0 %v3233, 64
        %v3987 = vpop.permute.xlu0 %3986
        %3988 = vrot.lane.b32.xlu0 %v3234, 64
        %v3989 = vpop.permute.xlu0 %3988
        %3990 = vrot.lane.b32.xlu0 %v3235, 64
        %v3991 = vpop.permute.xlu0 %3990
        %3992 = vrot.lane.b32.xlu0 %v3236, 64
        %v3993 = vpop.permute.xlu0 %3992
        %3994 = vrot.lane.b32.xlu0 %v3237, 64
        %v3995 = vpop.permute.xlu0 %3994
        %3996 = vrot.lane.b32.xlu0 %v3238, 64
        %v3997 = vpop.permute.xlu0 %3996
        %3998 = vrot.lane.b32.xlu0 %v3239, 64
        %v3999 = vpop.permute.xlu0 %3998
        %4008 = vrot.lane.b32.xlu0 %v3944, 96
        %v4009 = vpop.permute.xlu0 %4008
        %4010 = vrot.lane.b32.xlu0 %v3945, 96
        %v4011 = vpop.permute.xlu0 %4010
        %4012 = vrot.lane.b32.xlu0 %v3946, 96
        %v4013 = vpop.permute.xlu0 %4012
        %4014 = vrot.lane.b32.xlu0 %v3947, 96
        %v4015 = vpop.permute.xlu0 %4014
        %4016 = vrot.lane.b32.xlu0 %v3948, 96
        %v4017 = vpop.permute.xlu0 %4016
        %4018 = vrot.lane.b32.xlu0 %v3949, 96
        %v4019 = vpop.permute.xlu0 %4018
        %4020 = vrot.lane.b32.xlu0 %v3950, 96
        %v4021 = vpop.permute.xlu0 %4020
        %4022 = vrot.lane.b32.xlu0 %v3951, 96
        %v4023 = vpop.permute.xlu0 %4022
        %v4026 = vsel %vm1135, %v1784, %v3961
        %v4029 = vsel %vm1135, %v1785, %v3963
        %v4032 = vsel %vm1135, %v1786, %v3965
        %v4035 = vsel %vm1135, %v1787, %v3967
        %v4038 = vsel %vm1135, %v1788, %v3969
        %v4041 = vsel %vm1135, %v1789, %v3971
        %v4044 = vsel %vm1135, %v1790, %v3973
        %v4047 = vsel %vm1135, %v1791, %v3975
        %vm4048 = vcmask 523264
        %v4050 = vsel %vm4048, %v4026, %v3985
        %v4052 = vsel %vm4048, %v4029, %v3987
        %v4054 = vsel %vm4048, %v4032, %v3989
        %v4056 = vsel %vm4048, %v4035, %v3991
        %v4058 = vsel %vm4048, %v4038, %v3993
        %v4060 = vsel %vm4048, %v4041, %v3995
        %v4062 = vsel %vm4048, %v4044, %v3997
        %v4064 = vsel %vm4048, %v4047, %v3999
        %vm4065 = vcmask 785408
        %v4067 = vsel %vm4065, %v4050, %v4009
        %v4070 = vsel %vm4065, %v4052, %v4011
        %v4073 = vsel %vm4065, %v4054, %v4013
        %v4076 = vsel %vm4065, %v4056, %v4015
        %v4079 = vsel %vm4065, %v4058, %v4017
        %v4082 = vsel %vm4065, %v4060, %v4019
        %v4085 = vsel %vm4065, %v4062, %v4021
        %v4088 = vsel %vm4065, %v4064, %v4023
        %v4090 = vld [vmem:[#allocation7] sm:$0xf]
        %v4091 = vld [vmem:[#allocation7 + $0x4] sm:$0xf]
        %v4092 = vld [vmem:[#allocation7 + $0x8] sm:$0xf]
        %v4093 = vld [vmem:[#allocation7 + $0xc] sm:$0xf]
        %v4094 = vld [vmem:[#allocation7 + $0x10] sm:$0xf]
        %v4095 = vld [vmem:[#allocation7 + $0x14] sm:$0xf]
        %v4096 = vld [vmem:[#allocation7 + $0x18] sm:$0xf]
        %v4097 = vld [vmem:[#allocation7 + $0x1c] sm:$0xf]
        %v4098 = vld [vmem:[#allocation7 + $0x20] sm:$0xf]
        %v4099 = vld [vmem:[#allocation7 + $0x24] sm:$0xf]
        %v4100 = vld [vmem:[#allocation7 + $0x28] sm:$0xf]
        %v4101 = vld [vmem:[#allocation7 + $0x2c] sm:$0xf]
        %v4102 = vld [vmem:[#allocation7 + $0x30] sm:$0xf]
        %v4103 = vld [vmem:[#allocation7 + $0x34] sm:$0xf]
        %v4104 = vld [vmem:[#allocation7 + $0x38] sm:$0xf]
        %v4105 = vld [vmem:[#allocation7 + $0x3c] sm:$0xf]
        %v4106 = vld [vmem:[%s5] sm:$0x1]
        %v4108 = vlaneseq
        %v4109 = vshrl.u32 %v4108, 7
        %v4110 = vsub.s32 0, %v4109
        %v4111 = vrot.slane %v4106, %v4110
        %v4129 = vunpack.c.l.b16 %v4090
        %v4130 = vunpack.c.l.b16 %v4091
        %v4131 = vunpack.c.l.b16 %v4092
        %v4132 = vunpack.c.l.b16 %v4093
        %v4133 = vunpack.c.l.b16 %v4094
        %v4134 = vunpack.c.l.b16 %v4095
        %v4135 = vunpack.c.l.b16 %v4096
        %v4136 = vunpack.c.l.b16 %v4097
        %v4137 = vunpack.c.l.b16 %v4098
        %v4138 = vunpack.c.l.b16 %v4099
        %v4139 = vunpack.c.l.b16 %v4100
        %v4140 = vunpack.c.l.b16 %v4101
        %v4141 = vunpack.c.l.b16 %v4102
        %v4142 = vunpack.c.l.b16 %v4103
        %v4143 = vunpack.c.l.b16 %v4104
        %v4144 = vunpack.c.l.b16 %v4105
        %v4145 = vpack.c.b16 %v4130, %v4129
        %v4146 = vpack.c.b16 %v4132, %v4131
        %v4147 = vpack.c.b16 %v4134, %v4133
        %v4148 = vpack.c.b16 %v4136, %v4135
        %v4149 = vpack.c.b16 %v4138, %v4137
        %v4150 = vpack.c.b16 %v4140, %v4139
        %v4151 = vpack.c.b16 %v4142, %v4141
        %v4152 = vpack.c.b16 %v4144, %v4143
        %4161 = vmatprep.subr.bf16.mxu0 0
        %4162 = vmatpush1.bf16.msra.mxu0 %v4145
        %4163 = vmatprep.subr.bf16.mxu0 0
        %4164 = vmatpush1.bf16.msra.mxu0 %v4146
        %4165 = vmatprep.subr.bf16.mxu0 0
        %4166 = vmatpush1.bf16.msra.mxu0 %v4147
        %4167 = vmatprep.subr.bf16.mxu0 0
        %4168 = vmatpush1.bf16.msra.mxu0 %v4148
        %4169 = vmatprep.subr.bf16.mxu0 0
        %4170 = vmatpush1.bf16.msra.mxu0 %v4149
        %4171 = vmatprep.subr.bf16.mxu0 0
        %4172 = vmatpush1.bf16.msra.mxu0 %v4150
        %4173 = vmatprep.subr.bf16.mxu0 0
        %4174 = vmatpush1.bf16.msra.mxu0 %v4151
        %4175 = vmatprep.subr.bf16.mxu0 0
        %4176 = vmatpush1.bf16.msra.mxu0 %v4152
        %4177 = vmatprep.subr.bf16.mxu0 0
        %4178 = vmatpush1.bf16.msra.mxu0 0
        %4179 = vmatprep.subr.bf16.mxu0 0
        %4180 = vmatpush1.bf16.msra.mxu0 0
        %4181 = vmatprep.subr.bf16.mxu0 0
        %4182 = vmatpush1.bf16.msra.mxu0 0
        %4183 = vmatprep.subr.bf16.mxu0 0
        %4184 = vmatpush1.bf16.msra.mxu0 0
        %4185 = vmatprep.subr.bf16.mxu0 0
        %4186 = vmatpush1.bf16.msra.mxu0 0
        %4187 = vmatprep.subr.bf16.mxu0 0
        %4188 = vmatpush1.bf16.msra.mxu0 0
        %4189 = vmatprep.subr.bf16.mxu0 0
        %4190 = vmatpush1.bf16.msra.mxu0 0
        %4191 = vmatprep.subr.bf16.mxu0 0
        %4192 = vmatpush1.bf16.msra.mxu0 0
        %4193 = vmatprep.mubr.bf16.mxu0 0
        %4194 = vmatmul.mubr.bf16.gmra.mrb[0].mxu0 %v4067
        %v4195 = vpop.f32.mrb[0].mxu0
        %v4196 = vadd.f32 %v4111, %v4195
        %v4197 = vpop.f32.mrb[0].mxu0
        %v4198 = vpop.f32.mrb[0].mxu0
        %v4199 = vadd.f32 %v4111, %v4198
        %v4200 = vpop.f32.mrb[0].mxu0
        %4201 = vmatprep.mubr.bf16.mxu0 0
        %4202 = vmatmul.mubr.bf16.gmra.mrb[0].mxu0 %v4070
        %v4203 = vpop.f32.mrb[0].mxu0
        %v4204 = vadd.f32 %v4111, %v4203
        %v4205 = vpop.f32.mrb[0].mxu0
        %v4206 = vpop.f32.mrb[0].mxu0
        %v4207 = vadd.f32 %v4111, %v4206
        %v4208 = vpop.f32.mrb[0].mxu0
        %4209 = vmatprep.mubr.bf16.mxu0 0
        %4210 = vmatmul.mubr.bf16.gmra.mrb[0].mxu0 %v4073
        %v4211 = vpop.f32.mrb[0].mxu0
        %v4212 = vadd.f32 %v4111, %v4211
        %v4213 = vpop.f32.mrb[0].mxu0
        %v4214 = vpop.f32.mrb[0].mxu0
        %v4215 = vadd.f32 %v4111, %v4214
        %v4216 = vpop.f32.mrb[0].mxu0
        %4217 = vmatprep.mubr.bf16.mxu0 0
        %4218 = vmatmul.mubr.bf16.gmra.mrb[0].mxu0 %v4076
        %v4219 = vpop.f32.mrb[0].mxu0
        %v4220 = vadd.f32 %v4111, %v4219
        %v4221 = vpop.f32.mrb[0].mxu0
        %v4222 = vpop.f32.mrb[0].mxu0
        %v4223 = vadd.f32 %v4111, %v4222
        %v4224 = vpop.f32.mrb[0].mxu0
        %4225 = vmatprep.mubr.bf16.mxu0 0
        %4226 = vmatmul.mubr.bf16.gmra.mrb[0].mxu0 %v4079
        %v4227 = vpop.f32.mrb[0].mxu0
        %v4228 = vadd.f32 %v4111, %v4227
        %v4229 = vpop.f32.mrb[0].mxu0
        %v4230 = vpop.f32.mrb[0].mxu0
        %v4231 = vadd.f32 %v4111, %v4230
        %v4232 = vpop.f32.mrb[0].mxu0
        %4233 = vmatprep.mubr.bf16.mxu0 0
        %4234 = vmatmul.mubr.bf16.gmra.mrb[0].mxu0 %v4082
        %v4235 = vpop.f32.mrb[0].mxu0
        %v4236 = vadd.f32 %v4111, %v4235
        %v4237 = vpop.f32.mrb[0].mxu0
        %v4238 = vpop.f32.mrb[0].mxu0
        %v4239 = vadd.f32 %v4111, %v4238
        %v4240 = vpop.f32.mrb[0].mxu0
        %4241 = vmatprep.mubr.bf16.mxu0 0
        %4242 = vmatmul.mubr.bf16.gmra.mrb[0].mxu0 %v4085
        %v4243 = vpop.f32.mrb[0].mxu0
        %v4244 = vadd.f32 %v4111, %v4243
        %v4245 = vpop.f32.mrb[0].mxu0
        %v4246 = vpop.f32.mrb[0].mxu0
        %v4247 = vadd.f32 %v4111, %v4246
        %v4248 = vpop.f32.mrb[0].mxu0
        %4249 = vmatprep.mubr.bf16.mxu0 0
        %4250 = vmatmul.mubr.bf16.gmra.mrb[0].mxu0 %v4088
        %v4251 = vpop.f32.mrb[0].mxu0
        %v4252 = vadd.f32 %v4111, %v4251
        %v4253 = vpop.f32.mrb[0].mxu0
        %v4254 = vpop.f32.mrb[0].mxu0
        %v4255 = vadd.f32 %v4111, %v4254
        %v4256 = vpop.f32.mrb[0].mxu0
        %4257 = vdwg.mxu0
        %v4258 = vadd.f32 %v494, %v4196
        %v4259 = vadd.f32 %v495, %v4199
        %v4260 = vadd.f32 %v496, %v4204
        %v4261 = vadd.f32 %v497, %v4207
        %v4262 = vadd.f32 %v498, %v4212
        %v4263 = vadd.f32 %v499, %v4215
        %v4264 = vadd.f32 %v500, %v4220
        %v4265 = vadd.f32 %v501, %v4223
        %v4266 = vadd.f32 %v502, %v4228
        %v4267 = vadd.f32 %v503, %v4231
        %v4268 = vadd.f32 %v504, %v4236
        %v4269 = vadd.f32 %v505, %v4239
        %v4270 = vadd.f32 %v506, %v4244
        %v4271 = vadd.f32 %v507, %v4247
        %v4272 = vadd.f32 %v508, %v4252
        %v4273 = vadd.f32 %v509, %v4255
        %v4274 = vld [vmem:[%s6] sm:$0x1]
        %v4275 = vld [vmem:[%s7] sm:$0x1]
        %4276 = vadd.xlane.f32.xlu0 %v4258
        %v4277 = vpop.xlane.xlu0 %4276
        %4278 = vadd.xlane.f32.xlu0 %v4259
        %v4279 = vpop.xlane.xlu0 %4278
        %4280 = vadd.xlane.f32.xlu0 %v4260
        %v4281 = vpop.xlane.xlu0 %4280
        %4282 = vadd.xlane.f32.xlu0 %v4261
        %v4283 = vpop.xlane.xlu0 %4282
        %4284 = vadd.xlane.f32.xlu0 %v4262
        %v4285 = vpop.xlane.xlu0 %4284
        %4286 = vadd.xlane.f32.xlu0 %v4263
        %v4287 = vpop.xlane.xlu0 %4286
        %4288 = vadd.xlane.f32.xlu0 %v4264
        %v4289 = vpop.xlane.xlu0 %4288
        %4290 = vadd.xlane.f32.xlu0 %v4265
        %v4291 = vpop.xlane.xlu0 %4290
        %4292 = vadd.xlane.f32.xlu0 %v4266
        %v4293 = vpop.xlane.xlu0 %4292
        %4294 = vadd.xlane.f32.xlu0 %v4267
        %v4295 = vpop.xlane.xlu0 %4294
        %4296 = vadd.xlane.f32.xlu0 %v4268
        %v4297 = vpop.xlane.xlu0 %4296
        %4298 = vadd.xlane.f32.xlu0 %v4269
        %v4299 = vpop.xlane.xlu0 %4298
        %4300 = vadd.xlane.f32.xlu0 %v4270
        %v4301 = vpop.xlane.xlu0 %4300
        %4302 = vadd.xlane.f32.xlu0 %v4271
        %v4303 = vpop.xlane.xlu0 %4302
        %4304 = vadd.xlane.f32.xlu0 %v4272
        %v4305 = vpop.xlane.xlu0 %4304
        %4306 = vadd.xlane.f32.xlu0 %v4273
        %v4307 = vpop.xlane.xlu0 %4306
        %v4308 = vmul.f32 %v4277, %v544
        %v4309 = vmul.f32 %v4279, %v544
        %v4310 = vmul.f32 %v4281, %v544
        %v4311 = vmul.f32 %v4283, %v544
        %v4312 = vmul.f32 %v4285, %v544
        %v4313 = vmul.f32 %v4287, %v544
        %v4314 = vmul.f32 %v4289, %v544
        %v4315 = vmul.f32 %v4291, %v544
        %v4316 = vmul.f32 %v4293, %v544
        %v4317 = vmul.f32 %v4295, %v544
        %v4318 = vmul.f32 %v4297, %v544
        %v4319 = vmul.f32 %v4299, %v544
        %v4320 = vmul.f32 %v4301, %v544
        %v4321 = vmul.f32 %v4303, %v544
        %v4322 = vmul.f32 %v4305, %v544
        %v4323 = vmul.f32 %v4307, %v544
        %v4324 = vsub.f32 %v4258, %v4308
        %v4325 = vsub.f32 %v4259, %v4309
        %v4326 = vsub.f32 %v4260, %v4310
        %v4327 = vsub.f32 %v4261, %v4311
        %v4328 = vsub.f32 %v4262, %v4312
        %v4329 = vsub.f32 %v4263, %v4313
        %v4330 = vsub.f32 %v4264, %v4314
        %v4331 = vsub.f32 %v4265, %v4315
        %v4332 = vsub.f32 %v4266, %v4316
        %v4333 = vsub.f32 %v4267, %v4317
        %v4334 = vsub.f32 %v4268, %v4318
        %v4335 = vsub.f32 %v4269, %v4319
        %v4336 = vsub.f32 %v4270, %v4320
        %v4337 = vsub.f32 %v4271, %v4321
        %v4338 = vsub.f32 %v4272, %v4322
        %v4339 = vsub.f32 %v4273, %v4323
        %v4340 = vmul.f32 %v4324, %v4324
        %v4341 = vmul.f32 %v4325, %v4325
        %v4342 = vmul.f32 %v4326, %v4326
        %v4343 = vmul.f32 %v4327, %v4327
        %v4344 = vmul.f32 %v4328, %v4328
        %v4345 = vmul.f32 %v4329, %v4329
        %v4346 = vmul.f32 %v4330, %v4330
        %v4347 = vmul.f32 %v4331, %v4331
        %v4348 = vmul.f32 %v4332, %v4332
        %v4349 = vmul.f32 %v4333, %v4333
        %v4350 = vmul.f32 %v4334, %v4334
        %v4351 = vmul.f32 %v4335, %v4335
        %v4352 = vmul.f32 %v4336, %v4336
        %v4353 = vmul.f32 %v4337, %v4337
        %v4354 = vmul.f32 %v4338, %v4338
        %v4355 = vmul.f32 %v4339, %v4339
        %4356 = vadd.xlane.f32.xlu0 %v4340
        %v4357 = vpop.xlane.xlu0 %4356
        %4358 = vadd.xlane.f32.xlu0 %v4341
        %v4359 = vpop.xlane.xlu0 %4358
        %4360 = vadd.xlane.f32.xlu0 %v4342
        %v4361 = vpop.xlane.xlu0 %4360
        %4362 = vadd.xlane.f32.xlu0 %v4343
        %v4363 = vpop.xlane.xlu0 %4362
        %4364 = vadd.xlane.f32.xlu0 %v4344
        %v4365 = vpop.xlane.xlu0 %4364
        %4366 = vadd.xlane.f32.xlu0 %v4345
        %v4367 = vpop.xlane.xlu0 %4366
        %4368 = vadd.xlane.f32.xlu0 %v4346
        %v4369 = vpop.xlane.xlu0 %4368
        %4370 = vadd.xlane.f32.xlu0 %v4347
        %v4371 = vpop.xlane.xlu0 %4370
        %4372 = vadd.xlane.f32.xlu0 %v4348
        %v4373 = vpop.xlane.xlu0 %4372
        %4374 = vadd.xlane.f32.xlu0 %v4349
        %v4375 = vpop.xlane.xlu0 %4374
        %4376 = vadd.xlane.f32.xlu0 %v4350
        %v4377 = vpop.xlane.xlu0 %4376
        %4378 = vadd.xlane.f32.xlu0 %v4351
        %v4379 = vpop.xlane.xlu0 %4378
        %4380 = vadd.xlane.f32.xlu0 %v4352
        %v4381 = vpop.xlane.xlu0 %4380
        %4382 = vadd.xlane.f32.xlu0 %v4353
        %v4383 = vpop.xlane.xlu0 %4382
        %4384 = vadd.xlane.f32.xlu0 %v4354
        %v4385 = vpop.xlane.xlu0 %4384
        %4386 = vadd.xlane.f32.xlu0 %v4355
        %v4387 = vpop.xlane.xlu0 %4386
        %v4388 = vmul.f32 %v4357, %v544
        %v4389 = vmul.f32 %v4359, %v544
        %v4390 = vmul.f32 %v4361, %v544
        %v4391 = vmul.f32 %v4363, %v544
        %v4392 = vmul.f32 %v4365, %v544
        %v4393 = vmul.f32 %v4367, %v544
        %v4394 = vmul.f32 %v4369, %v544
        %v4395 = vmul.f32 %v4371, %v544
        %v4396 = vmul.f32 %v4373, %v544
        %v4397 = vmul.f32 %v4375, %v544
        %v4398 = vmul.f32 %v4377, %v544
        %v4399 = vmul.f32 %v4379, %v544
        %v4400 = vmul.f32 %v4381, %v544
        %v4401 = vmul.f32 %v4383, %v544
        %v4402 = vmul.f32 %v4385, %v544
        %v4403 = vmul.f32 %v4387, %v544
        %v4404 = vadd.f32 %v4388, 1e-05
        %v4405 = vadd.f32 %v4389, 1e-05
        %v4406 = vadd.f32 %v4390, 1e-05
        %v4407 = vadd.f32 %v4391, 1e-05
        %v4408 = vadd.f32 %v4392, 1e-05
        %v4409 = vadd.f32 %v4393, 1e-05
        %v4410 = vadd.f32 %v4394, 1e-05
        %v4411 = vadd.f32 %v4395, 1e-05
        %v4412 = vadd.f32 %v4396, 1e-05
        %v4413 = vadd.f32 %v4397, 1e-05
        %v4414 = vadd.f32 %v4398, 1e-05
        %v4415 = vadd.f32 %v4399, 1e-05
        %v4416 = vadd.f32 %v4400, 1e-05
        %v4417 = vadd.f32 %v4401, 1e-05
        %v4418 = vadd.f32 %v4402, 1e-05
        %v4419 = vadd.f32 %v4403, 1e-05
        %v4420 = vrsqrt.pop %v4404
        %v4421 = vrsqrt.pop %v4405
        %v4422 = vrsqrt.pop %v4406
        %v4423 = vrsqrt.pop %v4407
        %v4424 = vrsqrt.pop %v4408
        %v4425 = vrsqrt.pop %v4409
        %v4426 = vrsqrt.pop %v4410
        %v4427 = vrsqrt.pop %v4411
        %v4428 = vrsqrt.pop %v4412
        %v4429 = vrsqrt.pop %v4413
        %v4430 = vrsqrt.pop %v4414
        %v4431 = vrsqrt.pop %v4415
        %v4432 = vrsqrt.pop %v4416
        %v4433 = vrsqrt.pop %v4417
        %v4434 = vrsqrt.pop %v4418
        %v4435 = vrsqrt.pop %v4419
        %v4436 = vmul.f32 %v4324, %v4420
        %v4437 = vmul.f32 %v4325, %v4421
        %v4438 = vmul.f32 %v4326, %v4422
        %v4439 = vmul.f32 %v4327, %v4423
        %v4440 = vmul.f32 %v4328, %v4424
        %v4441 = vmul.f32 %v4329, %v4425
        %v4442 = vmul.f32 %v4330, %v4426
        %v4443 = vmul.f32 %v4331, %v4427
        %v4444 = vmul.f32 %v4332, %v4428
        %v4445 = vmul.f32 %v4333, %v4429
        %v4446 = vmul.f32 %v4334, %v4430
        %v4447 = vmul.f32 %v4335, %v4431
        %v4448 = vmul.f32 %v4336, %v4432
        %v4449 = vmul.f32 %v4337, %v4433
        %v4450 = vmul.f32 %v4338, %v4434
        %v4451 = vmul.f32 %v4339, %v4435
        %v4453 = vlaneseq
        %v4454 = vshrl.u32 %v4453, 7
        %v4455 = vsub.s32 0, %v4454
        %v4456 = vrot.slane %v4274, %v4455
        %v4458 = vmul.f32 %v4436, %v4456
        %v4459 = vmul.f32 %v4437, %v4456
        %v4460 = vmul.f32 %v4438, %v4456
        %v4461 = vmul.f32 %v4439, %v4456
        %v4462 = vmul.f32 %v4440, %v4456
        %v4463 = vmul.f32 %v4441, %v4456
        %v4464 = vmul.f32 %v4442, %v4456
        %v4465 = vmul.f32 %v4443, %v4456
        %v4466 = vmul.f32 %v4444, %v4456
        %v4467 = vmul.f32 %v4445, %v4456
        %v4468 = vmul.f32 %v4446, %v4456
        %v4469 = vmul.f32 %v4447, %v4456
        %v4470 = vmul.f32 %v4448, %v4456
        %v4471 = vmul.f32 %v4449, %v4456
        %v4472 = vmul.f32 %v4450, %v4456
        %v4473 = vmul.f32 %v4451, %v4456
        %v4475 = vlaneseq
        %v4476 = vshrl.u32 %v4475, 7
        %v4477 = vsub.s32 0, %v4476
        %v4478 = vrot.slane %v4275, %v4477
        %v4480 = vadd.f32 %v4458, %v4478
        %v4481 = vadd.f32 %v4459, %v4478
        %v4482 = vadd.f32 %v4460, %v4478
        %v4483 = vadd.f32 %v4461, %v4478
        %v4484 = vadd.f32 %v4462, %v4478
        %v4485 = vadd.f32 %v4463, %v4478
        %v4486 = vadd.f32 %v4464, %v4478
        %v4487 = vadd.f32 %v4465, %v4478
        %v4488 = vadd.f32 %v4466, %v4478
        %v4489 = vadd.f32 %v4467, %v4478
        %v4490 = vadd.f32 %v4468, %v4478
        %v4491 = vadd.f32 %v4469, %v4478
        %v4492 = vadd.f32 %v4470, %v4478
        %v4493 = vadd.f32 %v4471, %v4478
        %v4494 = vadd.f32 %v4472, %v4478
        %v4495 = vadd.f32 %v4473, %v4478
        %v4496 = vpack.c.bf16 %v4481, %v4480
        %v4497 = vpack.c.bf16 %v4483, %v4482
        %v4498 = vpack.c.bf16 %v4485, %v4484
        %v4499 = vpack.c.bf16 %v4487, %v4486
        %v4500 = vpack.c.bf16 %v4489, %v4488
        %v4501 = vpack.c.bf16 %v4491, %v4490
        %v4502 = vpack.c.bf16 %v4493, %v4492
        %v4503 = vpack.c.bf16 %v4495, %v4494
        %v4504 = vld [vmem:[#allocation8] sm:$0xff]
        %v4505 = vld [vmem:[#allocation8 + $0x8] sm:$0xff]
        %v4506 = vld [vmem:[#allocation8 + $0x10] sm:$0xff]
        %v4507 = vld [vmem:[#allocation8 + $0x18] sm:$0xff]
        %v4508 = vld [vmem:[#allocation8 + $0x20] sm:$0xff]
        %v4509 = vld [vmem:[#allocation8 + $0x28] sm:$0xff]
        %v4510 = vld [vmem:[#allocation8 + $0x30] sm:$0xff]
        %v4511 = vld [vmem:[#allocation8 + $0x38] sm:$0xff]
        %v4512 = vld [vmem:[#allocation8 + $0x40] sm:$0xff]
        %v4513 = vld [vmem:[#allocation8 + $0x48] sm:$0xff]
        %v4514 = vld [vmem:[#allocation8 + $0x50] sm:$0xff]
        %v4515 = vld [vmem:[#allocation8 + $0x58] sm:$0xff]
        %v4516 = vld [vmem:[#allocation8 + $0x60] sm:$0xff]
        %v4517 = vld [vmem:[#allocation8 + $0x68] sm:$0xff]
        %v4518 = vld [vmem:[#allocation8 + $0x70] sm:$0xff]
        %v4519 = vld [vmem:[#allocation8 + $0x78] sm:$0xff]
        %v4520 = vld [vmem:[#allocation8 + $0x80] sm:$0xff]
        %v4521 = vld [vmem:[#allocation8 + $0x88] sm:$0xff]
        %v4522 = vld [vmem:[#allocation8 + $0x90] sm:$0xff]
        %v4523 = vld [vmem:[#allocation8 + $0x98] sm:$0xff]
        %v4524 = vld [vmem:[#allocation8 + $0xa0] sm:$0xff]
        %v4525 = vld [vmem:[#allocation8 + $0xa8] sm:$0xff]
        %v4526 = vld [vmem:[#allocation8 + $0xb0] sm:$0xff]
        %v4527 = vld [vmem:[#allocation8 + $0xb8] sm:$0xff]
        %v4528 = vld [vmem:[#allocation8 + $0xc0] sm:$0xff]
        %v4529 = vld [vmem:[#allocation8 + $0xc8] sm:$0xff]
        %v4530 = vld [vmem:[#allocation8 + $0xd0] sm:$0xff]
        %v4531 = vld [vmem:[#allocation8 + $0xd8] sm:$0xff]
        %v4532 = vld [vmem:[#allocation8 + $0xe0] sm:$0xff]
        %v4533 = vld [vmem:[#allocation8 + $0xe8] sm:$0xff]
        %v4534 = vld [vmem:[#allocation8 + $0xf0] sm:$0xff]
        %v4535 = vld [vmem:[#allocation8 + $0xf8] sm:$0xff]
        %v4536 = vld [vmem:[%s9] sm:$0xf]
        %v4538 = vlaneseq
        %v4539 = vshrl.u32 %v4538, 7
        %v4540 = vsub.s32 0, %v4539
        %v4541 = vrot.slane %v4536, %v4540
        %v4542 = vlaneseq
        %v4543 = vshrl.u32 %v4542, 7
        %v4544 = vsub.s32 1, %v4543
        %v4545 = vrot.slane %v4536, %v4544
        %v4546 = vlaneseq
        %v4547 = vshrl.u32 %v4546, 7
        %v4548 = vsub.s32 2, %v4547
        %v4549 = vrot.slane %v4536, %v4548
        %v4550 = vlaneseq
        %v4551 = vshrl.u32 %v4550, 7
        %v4552 = vsub.s32 3, %v4551
        %v4553 = vrot.slane %v4536, %v4552
        %v4590 = vunpack.c.l.b16 %v4504
        %v4591 = vunpack.c.h.b16 %v4504
        %v4592 = vunpack.c.l.b16 %v4505
        %v4593 = vunpack.c.h.b16 %v4505
        %v4594 = vunpack.c.l.b16 %v4506
        %v4595 = vunpack.c.h.b16 %v4506
        %v4596 = vunpack.c.l.b16 %v4507
        %v4597 = vunpack.c.h.b16 %v4507
        %v4598 = vunpack.c.l.b16 %v4508
        %v4599 = vunpack.c.h.b16 %v4508
        %v4600 = vunpack.c.l.b16 %v4509
        %v4601 = vunpack.c.h.b16 %v4509
        %v4602 = vunpack.c.l.b16 %v4510
        %v4603 = vunpack.c.h.b16 %v4510
        %v4604 = vunpack.c.l.b16 %v4511
        %v4605 = vunpack.c.h.b16 %v4511
        %v4606 = vunpack.c.l.b16 %v4512
        %v4607 = vunpack.c.h.b16 %v4512
        %v4608 = vunpack.c.l.b16 %v4513
        %v4609 = vunpack.c.h.b16 %v4513
        %v4610 = vunpack.c.l.b16 %v4514
        %v4611 = vunpack.c.h.b16 %v4514
        %v4612 = vunpack.c.l.b16 %v4515
        %v4613 = vunpack.c.h.b16 %v4515
        %v4614 = vunpack.c.l.b16 %v4516
        %v4615 = vunpack.c.h.b16 %v4516
        %v4616 = vunpack.c.l.b16 %v4517
        %v4617 = vunpack.c.h.b16 %v4517
        %v4618 = vunpack.c.l.b16 %v4518
        %v4619 = vunpack.c.h.b16 %v4518
        %v4620 = vunpack.c.l.b16 %v4519
        %v4621 = vunpack.c.h.b16 %v4519
        %v4622 = vunpack.c.l.b16 %v4520
        %v4623 = vunpack.c.h.b16 %v4520
        %v4624 = vunpack.c.l.b16 %v4521
        %v4625 = vunpack.c.h.b16 %v4521
        %v4626 = vunpack.c.l.b16 %v4522
        %v4627 = vunpack.c.h.b16 %v4522
        %v4628 = vunpack.c.l.b16 %v4523
        %v4629 = vunpack.c.h.b16 %v4523
        %v4630 = vunpack.c.l.b16 %v4524
        %v4631 = vunpack.c.h.b16 %v4524
        %v4632 = vunpack.c.l.b16 %v4525
        %v4633 = vunpack.c.h.b16 %v4525
        %v4634 = vunpack.c.l.b16 %v4526
        %v4635 = vunpack.c.h.b16 %v4526
        %v4636 = vunpack.c.l.b16 %v4527
        %v4637 = vunpack.c.h.b16 %v4527
        %v4638 = vunpack.c.l.b16 %v4528
        %v4639 = vunpack.c.h.b16 %v4528
        %v4640 = vunpack.c.l.b16 %v4529
        %v4641 = vunpack.c.h.b16 %v4529
        %v4642 = vunpack.c.l.b16 %v4530
        %v4643 = vunpack.c.h.b16 %v4530
        %v4644 = vunpack.c.l.b16 %v4531
        %v4645 = vunpack.c.h.b16 %v4531
        %v4646 = vunpack.c.l.b16 %v4532
        %v4647 = vunpack.c.h.b16 %v4532
        %v4648 = vunpack.c.l.b16 %v4533
        %v4649 = vunpack.c.h.b16 %v4533
        %v4650 = vunpack.c.l.b16 %v4534
        %v4651 = vunpack.c.h.b16 %v4534
        %v4652 = vunpack.c.l.b16 %v4535
        %v4653 = vunpack.c.h.b16 %v4535
        %v4654 = vpack.c.b16 %v4594, %v4590
        %v4655 = vpack.c.b16 %v4595, %v4591
        %v4656 = vpack.c.b16 %v4596, %v4592
        %v4657 = vpack.c.b16 %v4597, %v4593
        %v4658 = vpack.c.b16 %v4602, %v4598
        %v4659 = vpack.c.b16 %v4603, %v4599
        %v4660 = vpack.c.b16 %v4604, %v4600
        %v4661 = vpack.c.b16 %v4605, %v4601
        %v4662 = vpack.c.b16 %v4610, %v4606
        %v4663 = vpack.c.b16 %v4611, %v4607
        %v4664 = vpack.c.b16 %v4612, %v4608
        %v4665 = vpack.c.b16 %v4613, %v4609
        %v4666 = vpack.c.b16 %v4618, %v4614
        %v4667 = vpack.c.b16 %v4619, %v4615
        %v4668 = vpack.c.b16 %v4620, %v4616
        %v4669 = vpack.c.b16 %v4621, %v4617
        %v4670 = vpack.c.b16 %v4626, %v4622
        %v4671 = vpack.c.b16 %v4627, %v4623
        %v4672 = vpack.c.b16 %v4628, %v4624
        %v4673 = vpack.c.b16 %v4629, %v4625
        %v4674 = vpack.c.b16 %v4634, %v4630
        %v4675 = vpack.c.b16 %v4635, %v4631
        %v4676 = vpack.c.b16 %v4636, %v4632
        %v4677 = vpack.c.b16 %v4637, %v4633
        %v4678 = vpack.c.b16 %v4642, %v4638
        %v4679 = vpack.c.b16 %v4643, %v4639
        %v4680 = vpack.c.b16 %v4644, %v4640
        %v4681 = vpack.c.b16 %v4645, %v4641
        %v4682 = vpack.c.b16 %v4650, %v4646
        %v4683 = vpack.c.b16 %v4651, %v4647
        %v4684 = vpack.c.b16 %v4652, %v4648
        %v4685 = vpack.c.b16 %v4653, %v4649
        %4718 = vmatprep.subr.bf16.mxu0 %v4655
        %4719 = vmatpush1.bf16.msra.mxu0 %v4654
        %4720 = vmatprep.subr.bf16.mxu0 %v4659
        %4721 = vmatpush1.bf16.msra.mxu0 %v4658
        %4722 = vmatprep.subr.bf16.mxu0 %v4663
        %4723 = vmatpush1.bf16.msra.mxu0 %v4662
        %4724 = vmatprep.subr.bf16.mxu0 %v4667
        %4725 = vmatpush1.bf16.msra.mxu0 %v4666
        %4726 = vmatprep.subr.bf16.mxu0 %v4671
        %4727 = vmatpush1.bf16.msra.mxu0 %v4670
        %4728 = vmatprep.subr.bf16.mxu0 %v4675
        %4729 = vmatpush1.bf16.msra.mxu0 %v4674
        %4730 = vmatprep.subr.bf16.mxu0 %v4679
        %4731 = vmatpush1.bf16.msra.mxu0 %v4678
        %4732 = vmatprep.subr.bf16.mxu0 %v4683
        %4733 = vmatpush1.bf16.msra.mxu0 %v4682
        %4734 = vmatprep.subr.bf16.mxu0 0
        %4735 = vmatpush1.bf16.msra.mxu0 0
        %4736 = vmatprep.subr.bf16.mxu0 0
        %4737 = vmatpush1.bf16.msra.mxu0 0
        %4738 = vmatprep.subr.bf16.mxu0 0
        %4739 = vmatpush1.bf16.msra.mxu0 0
        %4740 = vmatprep.subr.bf16.mxu0 0
        %4741 = vmatpush1.bf16.msra.mxu0 0
        %4742 = vmatprep.subr.bf16.mxu0 0
        %4743 = vmatpush1.bf16.msra.mxu0 0
        %4744 = vmatprep.subr.bf16.mxu0 0
        %4745 = vmatpush1.bf16.msra.mxu0 0
        %4746 = vmatprep.subr.bf16.mxu0 0
        %4747 = vmatpush1.bf16.msra.mxu0 0
        %4748 = vmatprep.subr.bf16.mxu0 0
        %4749 = vmatpush1.bf16.msra.mxu0 0
        %4750 = vmatprep.mubr.bf16.mxu0 0
        %4751 = vmatmul.mubr.bf16.gmra.mrb[0].mxu0 %v4496
        %v4752 = vpop.f32.mrb[0].mxu0
        %v4753 = vadd.f32 %v4541, %v4752
        %v4754 = vpop.f32.mrb[0].mxu0
        %v4755 = vadd.f32 %v4545, %v4754
        %v4756 = vpop.f32.mrb[0].mxu0
        %v4757 = vadd.f32 %v4541, %v4756
        %v4758 = vpop.f32.mrb[0].mxu0
        %v4759 = vadd.f32 %v4545, %v4758
        %4760 = vmatprep.mubr.bf16.mxu0 0
        %4761 = vmatmul.mubr.bf16.gmra.mrb[0].mxu0 %v4497
        %v4762 = vpop.f32.mrb[0].mxu0
        %v4763 = vadd.f32 %v4541, %v4762
        %v4764 = vpop.f32.mrb[0].mxu0
        %v4765 = vadd.f32 %v4545, %v4764
        %v4766 = vpop.f32.mrb[0].mxu0
        %v4767 = vadd.f32 %v4541, %v4766
        %v4768 = vpop.f32.mrb[0].mxu0
        %v4769 = vadd.f32 %v4545, %v4768
        %4770 = vmatprep.mubr.bf16.mxu0 0
        %4771 = vmatmul.mubr.bf16.gmra.mrb[0].mxu0 %v4498
        %v4772 = vpop.f32.mrb[0].mxu0
        %v4773 = vadd.f32 %v4541, %v4772
        %v4774 = vpop.f32.mrb[0].mxu0
        %v4775 = vadd.f32 %v4545, %v4774
        %v4776 = vpop.f32.mrb[0].mxu0
        %v4777 = vadd.f32 %v4541, %v4776
        %v4778 = vpop.f32.mrb[0].mxu0
        %v4779 = vadd.f32 %v4545, %v4778
        %4780 = vmatprep.mubr.bf16.mxu0 0
        %4781 = vmatmul.mubr.bf16.gmra.mrb[0].mxu0 %v4499
        %v4782 = vpop.f32.mrb[0].mxu0
        %v4783 = vadd.f32 %v4541, %v4782
        %v4784 = vpop.f32.mrb[0].mxu0
        %v4785 = vadd.f32 %v4545, %v4784
        %v4786 = vpop.f32.mrb[0].mxu0
        %v4787 = vadd.f32 %v4541, %v4786
        %v4788 = vpop.f32.mrb[0].mxu0
        %v4789 = vadd.f32 %v4545, %v4788
        %4790 = vmatprep.mubr.bf16.mxu0 0
        %4791 = vmatmul.mubr.bf16.gmra.mrb[0].mxu0 %v4500
        %v4792 = vpop.f32.mrb[0].mxu0
        %v4793 = vadd.f32 %v4541, %v4792
        %v4794 = vpop.f32.mrb[0].mxu0
        %v4795 = vadd.f32 %v4545, %v4794
        %v4796 = vpop.f32.mrb[0].mxu0
        %v4797 = vadd.f32 %v4541, %v4796
        %v4798 = vpop.f32.mrb[0].mxu0
        %v4799 = vadd.f32 %v4545, %v4798
        %4800 = vmatprep.mubr.bf16.mxu0 0
        %4801 = vmatmul.mubr.bf16.gmra.mrb[0].mxu0 %v4501
        %v4802 = vpop.f32.mrb[0].mxu0
        %v4803 = vadd.f32 %v4541, %v4802
        %v4804 = vpop.f32.mrb[0].mxu0
        %v4805 = vadd.f32 %v4545, %v4804
        %v4806 = vpop.f32.mrb[0].mxu0
        %v4807 = vadd.f32 %v4541, %v4806
        %v4808 = vpop.f32.mrb[0].mxu0
        %v4809 = vadd.f32 %v4545, %v4808
        %4810 = vmatprep.mubr.bf16.mxu0 0
        %4811 = vmatmul.mubr.bf16.gmra.mrb[0].mxu0 %v4502
        %v4812 = vpop.f32.mrb[0].mxu0
        %v4813 = vadd.f32 %v4541, %v4812
        %v4814 = vpop.f32.mrb[0].mxu0
        %v4815 = vadd.f32 %v4545, %v4814
        %v4816 = vpop.f32.mrb[0].mxu0
        %v4817 = vadd.f32 %v4541, %v4816
        %v4818 = vpop.f32.mrb[0].mxu0
        %v4819 = vadd.f32 %v4545, %v4818
        %4820 = vmatprep.mubr.bf16.mxu0 0
        %4821 = vmatmul.mubr.bf16.gmra.mrb[0].mxu0 %v4503
        %v4822 = vpop.f32.mrb[0].mxu0
        %v4823 = vadd.f32 %v4541, %v4822
        %v4824 = vpop.f32.mrb[0].mxu0
        %v4825 = vadd.f32 %v4545, %v4824
        %v4826 = vpop.f32.mrb[0].mxu0
        %v4827 = vadd.f32 %v4541, %v4826
        %v4828 = vpop.f32.mrb[0].mxu0
        %v4829 = vadd.f32 %v4545, %v4828
        %4830 = vdwg.mxu0
        %4831 = vmatprep.subr.bf16.mxu0 %v4657
        %4832 = vmatpush1.bf16.msra.mxu0 %v4656
        %4833 = vmatprep.subr.bf16.mxu0 %v4661
        %4834 = vmatpush1.bf16.msra.mxu0 %v4660
        %4835 = vmatprep.subr.bf16.mxu0 %v4665
        %4836 = vmatpush1.bf16.msra.mxu0 %v4664
        %4837 = vmatprep.subr.bf16.mxu0 %v4669
        %4838 = vmatpush1.bf16.msra.mxu0 %v4668
        %4839 = vmatprep.subr.bf16.mxu0 %v4673
        %4840 = vmatpush1.bf16.msra.mxu0 %v4672
        %4841 = vmatprep.subr.bf16.mxu0 %v4677
        %4842 = vmatpush1.bf16.msra.mxu0 %v4676
        %4843 = vmatprep.subr.bf16.mxu0 %v4681
        %4844 = vmatpush1.bf16.msra.mxu0 %v4680
        %4845 = vmatprep.subr.bf16.mxu0 %v4685
        %4846 = vmatpush1.bf16.msra.mxu0 %v4684
        %4847 = vmatprep.subr.bf16.mxu0 0
        %4848 = vmatpush1.bf16.msra.mxu0 0
        %4849 = vmatprep.subr.bf16.mxu0 0
        %4850 = vmatpush1.bf16.msra.mxu0 0
        %4851 = vmatprep.subr.bf16.mxu0 0
        %4852 = vmatpush1.bf16.msra.mxu0 0
        %4853 = vmatprep.subr.bf16.mxu0 0
        %4854 = vmatpush1.bf16.msra.mxu0 0
        %4855 = vmatprep.subr.bf16.mxu0 0
        %4856 = vmatpush1.bf16.msra.mxu0 0
        %4857 = vmatprep.subr.bf16.mxu0 0
        %4858 = vmatpush1.bf16.msra.mxu0 0
        %4859 = vmatprep.subr.bf16.mxu0 0
        %4860 = vmatpush1.bf16.msra.mxu0 0
        %4861 = vmatprep.subr.bf16.mxu0 0
        %4862 = vmatpush1.bf16.msra.mxu0 0
        %4863 = vmatprep.mubr.bf16.mxu0 0
        %4864 = vmatmul.mubr.bf16.gmra.mrb[0].mxu0 %v4496
        %v4865 = vpop.f32.mrb[0].mxu0
        %v4866 = vadd.f32 %v4549, %v4865
        %v4867 = vpop.f32.mrb[0].mxu0
        %v4868 = vadd.f32 %v4553, %v4867
        %v4869 = vpop.f32.mrb[0].mxu0
        %v4870 = vadd.f32 %v4549, %v4869
        %v4871 = vpop.f32.mrb[0].mxu0
        %v4872 = vadd.f32 %v4553, %v4871
        %4873 = vmatprep.mubr.bf16.mxu0 0
        %4874 = vmatmul.mubr.bf16.gmra.mrb[0].mxu0 %v4497
        %v4875 = vpop.f32.mrb[0].mxu0
        %v4876 = vadd.f32 %v4549, %v4875
        %v4877 = vpop.f32.mrb[0].mxu0
        %v4878 = vadd.f32 %v4553, %v4877
        %v4879 = vpop.f32.mrb[0].mxu0
        %v4880 = vadd.f32 %v4549, %v4879
        %v4881 = vpop.f32.mrb[0].mxu0
        %v4882 = vadd.f32 %v4553, %v4881
        %4883 = vmatprep.mubr.bf16.mxu0 0
        %4884 = vmatmul.mubr.bf16.gmra.mrb[0].mxu0 %v4498
        %v4885 = vpop.f32.mrb[0].mxu0
        %v4886 = vadd.f32 %v4549, %v4885
        %v4887 = vpop.f32.mrb[0].mxu0
        %v4888 = vadd.f32 %v4553, %v4887
        %v4889 = vpop.f32.mrb[0].mxu0
        %v4890 = vadd.f32 %v4549, %v4889
        %v4891 = vpop.f32.mrb[0].mxu0
        %v4892 = vadd.f32 %v4553, %v4891
        %4893 = vmatprep.mubr.bf16.mxu0 0
        %4894 = vmatmul.mubr.bf16.gmra.mrb[0].mxu0 %v4499
        %v4895 = vpop.f32.mrb[0].mxu0
        %v4896 = vadd.f32 %v4549, %v4895
        %v4897 = vpop.f32.mrb[0].mxu0
        %v4898 = vadd.f32 %v4553, %v4897
        %v4899 = vpop.f32.mrb[0].mxu0
        %v4900 = vadd.f32 %v4549, %v4899
        %v4901 = vpop.f32.mrb[0].mxu0
        %v4902 = vadd.f32 %v4553, %v4901
        %4903 = vmatprep.mubr.bf16.mxu0 0
        %4904 = vmatmul.mubr.bf16.gmra.mrb[0].mxu0 %v4500
        %v4905 = vpop.f32.mrb[0].mxu0
        %v4906 = vadd.f32 %v4549, %v4905
        %v4907 = vpop.f32.mrb[0].mxu0
        %v4908 = vadd.f32 %v4553, %v4907
        %v4909 = vpop.f32.mrb[0].mxu0
        %v4910 = vadd.f32 %v4549, %v4909
        %v4911 = vpop.f32.mrb[0].mxu0
        %v4912 = vadd.f32 %v4553, %v4911
        %4913 = vmatprep.mubr.bf16.mxu0 0
        %4914 = vmatmul.mubr.bf16.gmra.mrb[0].mxu0 %v4501
        %v4915 = vpop.f32.mrb[0].mxu0
        %v4916 = vadd.f32 %v4549, %v4915
        %v4917 = vpop.f32.mrb[0].mxu0
        %v4918 = vadd.f32 %v4553, %v4917
        %v4919 = vpop.f32.mrb[0].mxu0
        %v4920 = vadd.f32 %v4549, %v4919
        %v4921 = vpop.f32.mrb[0].mxu0
        %v4922 = vadd.f32 %v4553, %v4921
        %4923 = vmatprep.mubr.bf16.mxu0 0
        %4924 = vmatmul.mubr.bf16.gmra.mrb[0].mxu0 %v4502
        %v4925 = vpop.f32.mrb[0].mxu0
        %v4926 = vadd.f32 %v4549, %v4925
        %v4927 = vpop.f32.mrb[0].mxu0
        %v4928 = vadd.f32 %v4553, %v4927
        %v4929 = vpop.f32.mrb[0].mxu0
        %v4930 = vadd.f32 %v4549, %v4929
        %v4931 = vpop.f32.mrb[0].mxu0
        %v4932 = vadd.f32 %v4553, %v4931
        %4933 = vmatprep.mubr.bf16.mxu0 0
        %4934 = vmatmul.mubr.bf16.gmra.mrb[0].mxu0 %v4503
        %v4935 = vpop.f32.mrb[0].mxu0
        %v4936 = vadd.f32 %v4549, %v4935
        %v4937 = vpop.f32.mrb[0].mxu0
        %v4938 = vadd.f32 %v4553, %v4937
        %v4939 = vpop.f32.mrb[0].mxu0
        %v4940 = vadd.f32 %v4549, %v4939
        %v4941 = vpop.f32.mrb[0].mxu0
        %v4942 = vadd.f32 %v4553, %v4941
        %4943 = vdwg.mxu0
        %v4944 = vmul.f32 %v4753, 0.5
        %v4945 = vmul.f32 %v4755, 0.5
        %v4946 = vmul.f32 %v4866, 0.5
        %v4947 = vmul.f32 %v4868, 0.5
        %v4948 = vmul.f32 %v4757, 0.5
        %v4949 = vmul.f32 %v4759, 0.5
        %v4950 = vmul.f32 %v4870, 0.5
        %v4951 = vmul.f32 %v4872, 0.5
        %v4952 = vmul.f32 %v4763, 0.5
        %v4953 = vmul.f32 %v4765, 0.5
        %v4954 = vmul.f32 %v4876, 0.5
        %v4955 = vmul.f32 %v4878, 0.5
        %v4956 = vmul.f32 %v4767, 0.5
        %v4957 = vmul.f32 %v4769, 0.5
        %v4958 = vmul.f32 %v4880, 0.5
        %v4959 = vmul.f32 %v4882, 0.5
        %v4960 = vmul.f32 %v4773, 0.5
        %v4961 = vmul.f32 %v4775, 0.5
        %v4962 = vmul.f32 %v4886, 0.5
        %v4963 = vmul.f32 %v4888, 0.5
        %v4964 = vmul.f32 %v4777, 0.5
        %v4965 = vmul.f32 %v4779, 0.5
        %v4966 = vmul.f32 %v4890, 0.5
        %v4967 = vmul.f32 %v4892, 0.5
        %v4968 = vmul.f32 %v4783, 0.5
        %v4969 = vmul.f32 %v4785, 0.5
        %v4970 = vmul.f32 %v4896, 0.5
        %v4971 = vmul.f32 %v4898, 0.5
        %v4972 = vmul.f32 %v4787, 0.5
        %v4973 = vmul.f32 %v4789, 0.5
        %v4974 = vmul.f32 %v4900, 0.5
        %v4975 = vmul.f32 %v4902, 0.5
        %v4976 = vmul.f32 %v4793, 0.5
        %v4977 = vmul.f32 %v4795, 0.5
        %v4978 = vmul.f32 %v4906, 0.5
        %v4979 = vmul.f32 %v4908, 0.5
        %v4980 = vmul.f32 %v4797, 0.5
        %v4981 = vmul.f32 %v4799, 0.5
        %v4982 = vmul.f32 %v4910, 0.5
        %v4983 = vmul.f32 %v4912, 0.5
        %v4984 = vmul.f32 %v4803, 0.5
        %v4985 = vmul.f32 %v4805, 0.5
        %v4986 = vmul.f32 %v4916, 0.5
        %v4987 = vmul.f32 %v4918, 0.5
        %v4988 = vmul.f32 %v4807, 0.5
        %v4989 = vmul.f32 %v4809, 0.5
        %v4990 = vmul.f32 %v4920, 0.5
        %v4991 = vmul.f32 %v4922, 0.5
        %v4992 = vmul.f32 %v4813, 0.5
        %v4993 = vmul.f32 %v4815, 0.5
        %v4994 = vmul.f32 %v4926, 0.5
        %v4995 = vmul.f32 %v4928, 0.5
        %v4996 = vmul.f32 %v4817, 0.5
        %v4997 = vmul.f32 %v4819, 0.5
        %v4998 = vmul.f32 %v4930, 0.5
        %v4999 = vmul.f32 %v4932, 0.5
        %v5000 = vmul.f32 %v4823, 0.5
        %v5001 = vmul.f32 %v4825, 0.5
        %v5002 = vmul.f32 %v4936, 0.5
        %v5003 = vmul.f32 %v4938, 0.5
        %v5004 = vmul.f32 %v4827, 0.5
        %v5005 = vmul.f32 %v4829, 0.5
        %v5006 = vmul.f32 %v4940, 0.5
        %v5007 = vmul.f32 %v4942, 0.5
        %v5008 = vmul.f32 %v4753, 0.70710677
        %v5009 = vmul.f32 %v4755, 0.70710677
        %v5010 = vmul.f32 %v4866, 0.70710677
        %v5011 = vmul.f32 %v4868, 0.70710677
        %v5012 = vmul.f32 %v4757, 0.70710677
        %v5013 = vmul.f32 %v4759, 0.70710677
        %v5014 = vmul.f32 %v4870, 0.70710677
        %v5015 = vmul.f32 %v4872, 0.70710677
        %v5016 = vmul.f32 %v4763, 0.70710677
        %v5017 = vmul.f32 %v4765, 0.70710677
        %v5018 = vmul.f32 %v4876, 0.70710677
        %v5019 = vmul.f32 %v4878, 0.70710677
        %v5020 = vmul.f32 %v4767, 0.70710677
        %v5021 = vmul.f32 %v4769, 0.70710677
        %v5022 = vmul.f32 %v4880, 0.70710677
        %v5023 = vmul.f32 %v4882, 0.70710677
        %v5024 = vmul.f32 %v4773, 0.70710677
        %v5025 = vmul.f32 %v4775, 0.70710677
        %v5026 = vmul.f32 %v4886, 0.70710677
        %v5027 = vmul.f32 %v4888, 0.70710677
        %v5028 = vmul.f32 %v4777, 0.70710677
        %v5029 = vmul.f32 %v4779, 0.70710677
        %v5030 = vmul.f32 %v4890, 0.70710677
        %v5031 = vmul.f32 %v4892, 0.70710677
        %v5032 = vmul.f32 %v4783, 0.70710677
        %v5033 = vmul.f32 %v4785, 0.70710677
        %v5034 = vmul.f32 %v4896, 0.70710677
        %v5035 = vmul.f32 %v4898, 0.70710677
        %v5036 = vmul.f32 %v4787, 0.70710677
        %v5037 = vmul.f32 %v4789, 0.70710677
        %v5038 = vmul.f32 %v4900, 0.70710677
        %v5039 = vmul.f32 %v4902, 0.70710677
        %v5040 = vmul.f32 %v4793, 0.70710677
        %v5041 = vmul.f32 %v4795, 0.70710677
        %v5042 = vmul.f32 %v4906, 0.70710677
        %v5043 = vmul.f32 %v4908, 0.70710677
        %v5044 = vmul.f32 %v4797, 0.70710677
        %v5045 = vmul.f32 %v4799, 0.70710677
        %v5046 = vmul.f32 %v4910, 0.70710677
        %v5047 = vmul.f32 %v4912, 0.70710677
        %v5048 = vmul.f32 %v4803, 0.70710677
        %v5049 = vmul.f32 %v4805, 0.70710677
        %v5050 = vmul.f32 %v4916, 0.70710677
        %v5051 = vmul.f32 %v4918, 0.70710677
        %v5052 = vmul.f32 %v4807, 0.70710677
        %v5053 = vmul.f32 %v4809, 0.70710677
        %v5054 = vmul.f32 %v4920, 0.70710677
        %v5055 = vmul.f32 %v4922, 0.70710677
        %v5056 = vmul.f32 %v4813, 0.70710677
        %v5057 = vmul.f32 %v4815, 0.70710677
        %v5058 = vmul.f32 %v4926, 0.70710677
        %v5059 = vmul.f32 %v4928, 0.70710677
        %v5060 = vmul.f32 %v4817, 0.70710677
        %v5061 = vmul.f32 %v4819, 0.70710677
        %v5062 = vmul.f32 %v4930, 0.70710677
        %v5063 = vmul.f32 %v4932, 0.70710677
        %v5064 = vmul.f32 %v4823, 0.70710677
        %v5065 = vmul.f32 %v4825, 0.70710677
        %v5066 = vmul.f32 %v4936, 0.70710677
        %v5067 = vmul.f32 %v4938, 0.70710677
        %v5068 = vmul.f32 %v4827, 0.70710677
        %v5069 = vmul.f32 %v4829, 0.70710677
        %v5070 = vmul.f32 %v4940, 0.70710677
        %v5071 = vmul.f32 %v4942, 0.70710677
        %v5072 = vmax.f32 %v5008, -4.0
        %v5073 = vmax.f32 %v5009, -4.0
        %v5074 = vmax.f32 %v5010, -4.0
        %v5075 = vmax.f32 %v5011, -4.0
        %v5076 = vmax.f32 %v5012, -4.0
        %v5077 = vmax.f32 %v5013, -4.0
        %v5078 = vmax.f32 %v5014, -4.0
        %v5079 = vmax.f32 %v5015, -4.0
        %v5080 = vmax.f32 %v5016, -4.0
        %v5081 = vmax.f32 %v5017, -4.0
        %v5082 = vmax.f32 %v5018, -4.0
        %v5083 = vmax.f32 %v5019, -4.0
        %v5084 = vmax.f32 %v5020, -4.0
        %v5085 = vmax.f32 %v5021, -4.0
        %v5086 = vmax.f32 %v5022, -4.0
        %v5087 = vmax.f32 %v5023, -4.0
        %v5088 = vmax.f32 %v5024, -4.0
        %v5089 = vmax.f32 %v5025, -4.0
        %v5090 = vmax.f32 %v5026, -4.0
        %v5091 = vmax.f32 %v5027, -4.0
        %v5092 = vmax.f32 %v5028, -4.0
        %v5093 = vmax.f32 %v5029, -4.0
        %v5094 = vmax.f32 %v5030, -4.0
        %v5095 = vmax.f32 %v5031, -4.0
        %v5096 = vmax.f32 %v5032, -4.0
        %v5097 = vmax.f32 %v5033, -4.0
        %v5098 = vmax.f32 %v5034, -4.0
        %v5099 = vmax.f32 %v5035, -4.0
        %v5100 = vmax.f32 %v5036, -4.0
        %v5101 = vmax.f32 %v5037, -4.0
        %v5102 = vmax.f32 %v5038, -4.0
        %v5103 = vmax.f32 %v5039, -4.0
        %v5104 = vmax.f32 %v5040, -4.0
        %v5105 = vmax.f32 %v5041, -4.0
        %v5106 = vmax.f32 %v5042, -4.0
        %v5107 = vmax.f32 %v5043, -4.0
        %v5108 = vmax.f32 %v5044, -4.0
        %v5109 = vmax.f32 %v5045, -4.0
        %v5110 = vmax.f32 %v5046, -4.0
        %v5111 = vmax.f32 %v5047, -4.0
        %v5112 = vmax.f32 %v5048, -4.0
        %v5113 = vmax.f32 %v5049, -4.0
        %v5114 = vmax.f32 %v5050, -4.0
        %v5115 = vmax.f32 %v5051, -4.0
        %v5116 = vmax.f32 %v5052, -4.0
        %v5117 = vmax.f32 %v5053, -4.0
        %v5118 = vmax.f32 %v5054, -4.0
        %v5119 = vmax.f32 %v5055, -4.0
        %v5120 = vmax.f32 %v5056, -4.0
        %v5121 = vmax.f32 %v5057, -4.0
        %v5122 = vmax.f32 %v5058, -4.0
        %v5123 = vmax.f32 %v5059, -4.0
        %v5124 = vmax.f32 %v5060, -4.0
        %v5125 = vmax.f32 %v5061, -4.0
        %v5126 = vmax.f32 %v5062, -4.0
        %v5127 = vmax.f32 %v5063, -4.0
        %v5128 = vmax.f32 %v5064, -4.0
        %v5129 = vmax.f32 %v5065, -4.0
        %v5130 = vmax.f32 %v5066, -4.0
        %v5131 = vmax.f32 %v5067, -4.0
        %v5132 = vmax.f32 %v5068, -4.0
        %v5133 = vmax.f32 %v5069, -4.0
        %v5134 = vmax.f32 %v5070, -4.0
        %v5135 = vmax.f32 %v5071, -4.0
        %v5136 = vmin.f32 %v5072, 4.0
        %v5137 = vmin.f32 %v5073, 4.0
        %v5138 = vmin.f32 %v5074, 4.0
        %v5139 = vmin.f32 %v5075, 4.0
        %v5140 = vmin.f32 %v5076, 4.0
        %v5141 = vmin.f32 %v5077, 4.0
        %v5142 = vmin.f32 %v5078, 4.0
        %v5143 = vmin.f32 %v5079, 4.0
        %v5144 = vmin.f32 %v5080, 4.0
        %v5145 = vmin.f32 %v5081, 4.0
        %v5146 = vmin.f32 %v5082, 4.0
        %v5147 = vmin.f32 %v5083, 4.0
        %v5148 = vmin.f32 %v5084, 4.0
        %v5149 = vmin.f32 %v5085, 4.0
        %v5150 = vmin.f32 %v5086, 4.0
        %v5151 = vmin.f32 %v5087, 4.0
        %v5152 = vmin.f32 %v5088, 4.0
        %v5153 = vmin.f32 %v5089, 4.0
        %v5154 = vmin.f32 %v5090, 4.0
        %v5155 = vmin.f32 %v5091, 4.0
        %v5156 = vmin.f32 %v5092, 4.0
        %v5157 = vmin.f32 %v5093, 4.0
        %v5158 = vmin.f32 %v5094, 4.0
        %v5159 = vmin.f32 %v5095, 4.0
        %v5160 = vmin.f32 %v5096, 4.0
        %v5161 = vmin.f32 %v5097, 4.0
        %v5162 = vmin.f32 %v5098, 4.0
        %v5163 = vmin.f32 %v5099, 4.0
        %v5164 = vmin.f32 %v5100, 4.0
        %v5165 = vmin.f32 %v5101, 4.0
        %v5166 = vmin.f32 %v5102, 4.0
        %v5167 = vmin.f32 %v5103, 4.0
        %v5168 = vmin.f32 %v5104, 4.0
        %v5169 = vmin.f32 %v5105, 4.0
        %v5170 = vmin.f32 %v5106, 4.0
        %v5171 = vmin.f32 %v5107, 4.0
        %v5172 = vmin.f32 %v5108, 4.0
        %v5173 = vmin.f32 %v5109, 4.0
        %v5174 = vmin.f32 %v5110, 4.0
        %v5175 = vmin.f32 %v5111, 4.0
        %v5176 = vmin.f32 %v5112, 4.0
        %v5177 = vmin.f32 %v5113, 4.0
        %v5178 = vmin.f32 %v5114, 4.0
        %v5179 = vmin.f32 %v5115, 4.0
        %v5180 = vmin.f32 %v5116, 4.0
        %v5181 = vmin.f32 %v5117, 4.0
        %v5182 = vmin.f32 %v5118, 4.0
        %v5183 = vmin.f32 %v5119, 4.0
        %v5184 = vmin.f32 %v5120, 4.0
        %v5185 = vmin.f32 %v5121, 4.0
        %v5186 = vmin.f32 %v5122, 4.0
        %v5187 = vmin.f32 %v5123, 4.0
        %v5188 = vmin.f32 %v5124, 4.0
        %v5189 = vmin.f32 %v5125, 4.0
        %v5190 = vmin.f32 %v5126, 4.0
        %v5191 = vmin.f32 %v5127, 4.0
        %v5192 = vmin.f32 %v5128, 4.0
        %v5193 = vmin.f32 %v5129, 4.0
        %v5194 = vmin.f32 %v5130, 4.0
        %v5195 = vmin.f32 %v5131, 4.0
        %v5196 = vmin.f32 %v5132, 4.0
        %v5197 = vmin.f32 %v5133, 4.0
        %v5198 = vmin.f32 %v5134, 4.0
        %v5199 = vmin.f32 %v5135, 4.0
        %v5200 = vmul.f32 %v5136, %v5136
        %v5201 = vmul.f32 %v5137, %v5137
        %v5202 = vmul.f32 %v5138, %v5138
        %v5203 = vmul.f32 %v5139, %v5139
        %v5204 = vmul.f32 %v5140, %v5140
        %v5205 = vmul.f32 %v5141, %v5141
        %v5206 = vmul.f32 %v5142, %v5142
        %v5207 = vmul.f32 %v5143, %v5143
        %v5208 = vmul.f32 %v5144, %v5144
        %v5209 = vmul.f32 %v5145, %v5145
        %v5210 = vmul.f32 %v5146, %v5146
        %v5211 = vmul.f32 %v5147, %v5147
        %v5212 = vmul.f32 %v5148, %v5148
        %v5213 = vmul.f32 %v5149, %v5149
        %v5214 = vmul.f32 %v5150, %v5150
        %v5215 = vmul.f32 %v5151, %v5151
        %v5216 = vmul.f32 %v5152, %v5152
        %v5217 = vmul.f32 %v5153, %v5153
        %v5218 = vmul.f32 %v5154, %v5154
        %v5219 = vmul.f32 %v5155, %v5155
        %v5220 = vmul.f32 %v5156, %v5156
        %v5221 = vmul.f32 %v5157, %v5157
        %v5222 = vmul.f32 %v5158, %v5158
        %v5223 = vmul.f32 %v5159, %v5159
        %v5224 = vmul.f32 %v5160, %v5160
        %v5225 = vmul.f32 %v5161, %v5161
        %v5226 = vmul.f32 %v5162, %v5162
        %v5227 = vmul.f32 %v5163, %v5163
        %v5228 = vmul.f32 %v5164, %v5164
        %v5229 = vmul.f32 %v5165, %v5165
        %v5230 = vmul.f32 %v5166, %v5166
        %v5231 = vmul.f32 %v5167, %v5167
        %v5232 = vmul.f32 %v5168, %v5168
        %v5233 = vmul.f32 %v5169, %v5169
        %v5234 = vmul.f32 %v5170, %v5170
        %v5235 = vmul.f32 %v5171, %v5171
        %v5236 = vmul.f32 %v5172, %v5172
        %v5237 = vmul.f32 %v5173, %v5173
        %v5238 = vmul.f32 %v5174, %v5174
        %v5239 = vmul.f32 %v5175, %v5175
        %v5240 = vmul.f32 %v5176, %v5176
        %v5241 = vmul.f32 %v5177, %v5177
        %v5242 = vmul.f32 %v5178, %v5178
        %v5243 = vmul.f32 %v5179, %v5179
        %v5244 = vmul.f32 %v5180, %v5180
        %v5245 = vmul.f32 %v5181, %v5181
        %v5246 = vmul.f32 %v5182, %v5182
        %v5247 = vmul.f32 %v5183, %v5183
        %v5248 = vmul.f32 %v5184, %v5184
        %v5249 = vmul.f32 %v5185, %v5185
        %v5250 = vmul.f32 %v5186, %v5186
        %v5251 = vmul.f32 %v5187, %v5187
        %v5252 = vmul.f32 %v5188, %v5188
        %v5253 = vmul.f32 %v5189, %v5189
        %v5254 = vmul.f32 %v5190, %v5190
        %v5255 = vmul.f32 %v5191, %v5191
        %v5256 = vmul.f32 %v5192, %v5192
        %v5257 = vmul.f32 %v5193, %v5193
        %v5258 = vmul.f32 %v5194, %v5194
        %v5259 = vmul.f32 %v5195, %v5195
        %v5260 = vmul.f32 %v5196, %v5196
        %v5261 = vmul.f32 %v5197, %v5197
        %v5262 = vmul.f32 %v5198, %v5198
        %v5263 = vmul.f32 %v5199, %v5199
        %v5264 = vmul.f32 %v5200, -2.7261424e-10
        %v5265 = vmul.f32 %v5201, -2.7261424e-10
        %v5266 = vmul.f32 %v5202, -2.7261424e-10
        %v5267 = vmul.f32 %v5203, -2.7261424e-10
        %v5268 = vmul.f32 %v5204, -2.7261424e-10
        %v5269 = vmul.f32 %v5205, -2.7261424e-10
        %v5270 = vmul.f32 %v5206, -2.7261424e-10
        %v5271 = vmul.f32 %v5207, -2.7261424e-10
        %v5272 = vmul.f32 %v5208, -2.7261424e-10
        %v5273 = vmul.f32 %v5209, -2.7261424e-10
        %v5274 = vmul.f32 %v5210, -2.7261424e-10
        %v5275 = vmul.f32 %v5211, -2.7261424e-10
        %v5276 = vmul.f32 %v5212, -2.7261424e-10
        %v5277 = vmul.f32 %v5213, -2.7261424e-10
        %v5278 = vmul.f32 %v5214, -2.7261424e-10
        %v5279 = vmul.f32 %v5215, -2.7261424e-10
        %v5280 = vmul.f32 %v5216, -2.7261424e-10
        %v5281 = vmul.f32 %v5217, -2.7261424e-10
        %v5282 = vmul.f32 %v5218, -2.7261424e-10
        %v5283 = vmul.f32 %v5219, -2.7261424e-10
        %v5284 = vmul.f32 %v5220, -2.7261424e-10
        %v5285 = vmul.f32 %v5221, -2.7261424e-10
        %v5286 = vmul.f32 %v5222, -2.7261424e-10
        %v5287 = vmul.f32 %v5223, -2.7261424e-10
        %v5288 = vmul.f32 %v5224, -2.7261424e-10
        %v5289 = vmul.f32 %v5225, -2.7261424e-10
        %v5290 = vmul.f32 %v5226, -2.7261424e-10
        %v5291 = vmul.f32 %v5227, -2.7261424e-10
        %v5292 = vmul.f32 %v5228, -2.7261424e-10
        %v5293 = vmul.f32 %v5229, -2.7261424e-10
        %v5294 = vmul.f32 %v5230, -2.7261424e-10
        %v5295 = vmul.f32 %v5231, -2.7261424e-10
        %v5296 = vmul.f32 %v5232, -2.7261424e-10
        %v5297 = vmul.f32 %v5233, -2.7261424e-10
        %v5298 = vmul.f32 %v5234, -2.7261424e-10
        %v5299 = vmul.f32 %v5235, -2.7261424e-10
        %v5300 = vmul.f32 %v5236, -2.7261424e-10
        %v5301 = vmul.f32 %v5237, -2.7261424e-10
        %v5302 = vmul.f32 %v5238, -2.7261424e-10
        %v5303 = vmul.f32 %v5239, -2.7261424e-10
        %v5304 = vmul.f32 %v5240, -2.7261424e-10
        %v5305 = vmul.f32 %v5241, -2.7261424e-10
        %v5306 = vmul.f32 %v5242, -2.7261424e-10
        %v5307 = vmul.f32 %v5243, -2.7261424e-10
        %v5308 = vmul.f32 %v5244, -2.7261424e-10
        %v5309 = vmul.f32 %v5245, -2.7261424e-10
        %v5310 = vmul.f32 %v5246, -2.7261424e-10
        %v5311 = vmul.f32 %v5247, -2.7261424e-10
        %v5312 = vmul.f32 %v5248, -2.7261424e-10
        %v5313 = vmul.f32 %v5249, -2.7261424e-10
        %v5314 = vmul.f32 %v5250, -2.7261424e-10
        %v5315 = vmul.f32 %v5251, -2.7261424e-10
        %v5316 = vmul.f32 %v5252, -2.7261424e-10
        %v5317 = vmul.f32 %v5253, -2.7261424e-10
        %v5318 = vmul.f32 %v5254, -2.7261424e-10
        %v5319 = vmul.f32 %v5255, -2.7261424e-10
        %v5320 = vmul.f32 %v5256, -2.7261424e-10
        %v5321 = vmul.f32 %v5257, -2.7261424e-10
        %v5322 = vmul.f32 %v5258, -2.7261424e-10
        %v5323 = vmul.f32 %v5259, -2.7261424e-10
        %v5324 = vmul.f32 %v5260, -2.7261424e-10
        %v5325 = vmul.f32 %v5261, -2.7261424e-10
        %v5326 = vmul.f32 %v5262, -2.7261424e-10
        %v5327 = vmul.f32 %v5263, -2.7261424e-10
        %v5328 = vadd.f32 %v5264, 2.7706815e-08
        %v5329 = vadd.f32 %v5265, 2.7706815e-08
        %v5330 = vadd.f32 %v5266, 2.7706815e-08
        %v5331 = vadd.f32 %v5267, 2.7706815e-08
        %v5332 = vadd.f32 %v5268, 2.7706815e-08
        %v5333 = vadd.f32 %v5269, 2.7706815e-08
        %v5334 = vadd.f32 %v5270, 2.7706815e-08
        %v5335 = vadd.f32 %v5271, 2.7706815e-08
        %v5336 = vadd.f32 %v5272, 2.7706815e-08
        %v5337 = vadd.f32 %v5273, 2.7706815e-08
        %v5338 = vadd.f32 %v5274, 2.7706815e-08
        %v5339 = vadd.f32 %v5275, 2.7706815e-08
        %v5340 = vadd.f32 %v5276, 2.7706815e-08
        %v5341 = vadd.f32 %v5277, 2.7706815e-08
        %v5342 = vadd.f32 %v5278, 2.7706815e-08
        %v5343 = vadd.f32 %v5279, 2.7706815e-08
        %v5344 = vadd.f32 %v5280, 2.7706815e-08
        %v5345 = vadd.f32 %v5281, 2.7706815e-08
        %v5346 = vadd.f32 %v5282, 2.7706815e-08
        %v5347 = vadd.f32 %v5283, 2.7706815e-08
        %v5348 = vadd.f32 %v5284, 2.7706815e-08
        %v5349 = vadd.f32 %v5285, 2.7706815e-08
        %v5350 = vadd.f32 %v5286, 2.7706815e-08
        %v5351 = vadd.f32 %v5287, 2.7706815e-08
        %v5352 = vadd.f32 %v5288, 2.7706815e-08
        %v5353 = vadd.f32 %v5289, 2.7706815e-08
        %v5354 = vadd.f32 %v5290, 2.7706815e-08
        %v5355 = vadd.f32 %v5291, 2.7706815e-08
        %v5356 = vadd.f32 %v5292, 2.7706815e-08
        %v5357 = vadd.f32 %v5293, 2.7706815e-08
        %v5358 = vadd.f32 %v5294, 2.7706815e-08
        %v5359 = vadd.f32 %v5295, 2.7706815e-08
        %v5360 = vadd.f32 %v5296, 2.7706815e-08
        %v5361 = vadd.f32 %v5297, 2.7706815e-08
        %v5362 = vadd.f32 %v5298, 2.7706815e-08
        %v5363 = vadd.f32 %v5299, 2.7706815e-08
        %v5364 = vadd.f32 %v5300, 2.7706815e-08
        %v5365 = vadd.f32 %v5301, 2.7706815e-08
        %v5366 = vadd.f32 %v5302, 2.7706815e-08
        %v5367 = vadd.f32 %v5303, 2.7706815e-08
        %v5368 = vadd.f32 %v5304, 2.7706815e-08
        %v5369 = vadd.f32 %v5305, 2.7706815e-08
        %v5370 = vadd.f32 %v5306, 2.7706815e-08
        %v5371 = vadd.f32 %v5307, 2.7706815e-08
        %v5372 = vadd.f32 %v5308, 2.7706815e-08
        %v5373 = vadd.f32 %v5309, 2.7706815e-08
        %v5374 = vadd.f32 %v5310, 2.7706815e-08
        %v5375 = vadd.f32 %v5311, 2.7706815e-08
        %v5376 = vadd.f32 %v5312, 2.7706815e-08
        %v5377 = vadd.f32 %v5313, 2.7706815e-08
        %v5378 = vadd.f32 %v5314, 2.7706815e-08
        %v5379 = vadd.f32 %v5315, 2.7706815e-08
        %v5380 = vadd.f32 %v5316, 2.7706815e-08
        %v5381 = vadd.f32 %v5317, 2.7706815e-08
        %v5382 = vadd.f32 %v5318, 2.7706815e-08
        %v5383 = vadd.f32 %v5319, 2.7706815e-08
        %v5384 = vadd.f32 %v5320, 2.7706815e-08
        %v5385 = vadd.f32 %v5321, 2.7706815e-08
        %v5386 = vadd.f32 %v5322, 2.7706815e-08
        %v5387 = vadd.f32 %v5323, 2.7706815e-08
        %v5388 = vadd.f32 %v5324, 2.7706815e-08
        %v5389 = vadd.f32 %v5325, 2.7706815e-08
        %v5390 = vadd.f32 %v5326, 2.7706815e-08
        %v5391 = vadd.f32 %v5327, 2.7706815e-08
        %v5392 = vmul.f32 %v5328, %v5200
        %v5393 = vmul.f32 %v5329, %v5201
        %v5394 = vmul.f32 %v5330, %v5202
        %v5395 = vmul.f32 %v5331, %v5203
        %v5396 = vmul.f32 %v5332, %v5204
        %v5397 = vmul.f32 %v5333, %v5205
        %v5398 = vmul.f32 %v5334, %v5206
        %v5399 = vmul.f32 %v5335, %v5207
        %v5400 = vmul.f32 %v5336, %v5208
        %v5401 = vmul.f32 %v5337, %v5209
        %v5402 = vmul.f32 %v5338, %v5210
        %v5403 = vmul.f32 %v5339, %v5211
        %v5404 = vmul.f32 %v5340, %v5212
        %v5405 = vmul.f32 %v5341, %v5213
        %v5406 = vmul.f32 %v5342, %v5214
        %v5407 = vmul.f32 %v5343, %v5215
        %v5408 = vmul.f32 %v5344, %v5216
        %v5409 = vmul.f32 %v5345, %v5217
        %v5410 = vmul.f32 %v5346, %v5218
        %v5411 = vmul.f32 %v5347, %v5219
        %v5412 = vmul.f32 %v5348, %v5220
        %v5413 = vmul.f32 %v5349, %v5221
        %v5414 = vmul.f32 %v5350, %v5222
        %v5415 = vmul.f32 %v5351, %v5223
        %v5416 = vmul.f32 %v5352, %v5224
        %v5417 = vmul.f32 %v5353, %v5225
        %v5418 = vmul.f32 %v5354, %v5226
        %v5419 = vmul.f32 %v5355, %v5227
        %v5420 = vmul.f32 %v5356, %v5228
        %v5421 = vmul.f32 %v5357, %v5229
        %v5422 = vmul.f32 %v5358, %v5230
        %v5423 = vmul.f32 %v5359, %v5231
        %v5424 = vmul.f32 %v5360, %v5232
        %v5425 = vmul.f32 %v5361, %v5233
        %v5426 = vmul.f32 %v5362, %v5234
        %v5427 = vmul.f32 %v5363, %v5235
        %v5428 = vmul.f32 %v5364, %v5236
        %v5429 = vmul.f32 %v5365, %v5237
        %v5430 = vmul.f32 %v5366, %v5238
        %v5431 = vmul.f32 %v5367, %v5239
        %v5432 = vmul.f32 %v5368, %v5240
        %v5433 = vmul.f32 %v5369, %v5241
        %v5434 = vmul.f32 %v5370, %v5242
        %v5435 = vmul.f32 %v5371, %v5243
        %v5436 = vmul.f32 %v5372, %v5244
        %v5437 = vmul.f32 %v5373, %v5245
        %v5438 = vmul.f32 %v5374, %v5246
        %v5439 = vmul.f32 %v5375, %v5247
        %v5440 = vmul.f32 %v5376, %v5248
        %v5441 = vmul.f32 %v5377, %v5249
        %v5442 = vmul.f32 %v5378, %v5250
        %v5443 = vmul.f32 %v5379, %v5251
        %v5444 = vmul.f32 %v5380, %v5252
        %v5445 = vmul.f32 %v5381, %v5253
        %v5446 = vmul.f32 %v5382, %v5254
        %v5447 = vmul.f32 %v5383, %v5255
        %v5448 = vmul.f32 %v5384, %v5256
        %v5449 = vmul.f32 %v5385, %v5257
        %v5450 = vmul.f32 %v5386, %v5258
        %v5451 = vmul.f32 %v5387, %v5259
        %v5452 = vmul.f32 %v5388, %v5260
        %v5453 = vmul.f32 %v5389, %v5261
        %v5454 = vmul.f32 %v5390, %v5262
        %v5455 = vmul.f32 %v5391, %v5263
        %v5456 = vadd.f32 %v5392, -2.101024e-06
        %v5457 = vadd.f32 %v5393, -2.101024e-06
        %v5458 = vadd.f32 %v5394, -2.101024e-06
        %v5459 = vadd.f32 %v5395, -2.101024e-06
        %v5460 = vadd.f32 %v5396, -2.101024e-06
        %v5461 = vadd.f32 %v5397, -2.101024e-06
        %v5462 = vadd.f32 %v5398, -2.101024e-06
        %v5463 = vadd.f32 %v5399, -2.101024e-06
        %v5464 = vadd.f32 %v5400, -2.101024e-06
        %v5465 = vadd.f32 %v5401, -2.101024e-06
        %v5466 = vadd.f32 %v5402, -2.101024e-06
        %v5467 = vadd.f32 %v5403, -2.101024e-06
        %v5468 = vadd.f32 %v5404, -2.101024e-06
        %v5469 = vadd.f32 %v5405, -2.101024e-06
        %v5470 = vadd.f32 %v5406, -2.101024e-06
        %v5471 = vadd.f32 %v5407, -2.101024e-06
        %v5472 = vadd.f32 %v5408, -2.101024e-06
        %v5473 = vadd.f32 %v5409, -2.101024e-06
        %v5474 = vadd.f32 %v5410, -2.101024e-06
        %v5475 = vadd.f32 %v5411, -2.101024e-06
        %v5476 = vadd.f32 %v5412, -2.101024e-06
        %v5477 = vadd.f32 %v5413, -2.101024e-06
        %v5478 = vadd.f32 %v5414, -2.101024e-06
        %v5479 = vadd.f32 %v5415, -2.101024e-06
        %v5480 = vadd.f32 %v5416, -2.101024e-06
        %v5481 = vadd.f32 %v5417, -2.101024e-06
        %v5482 = vadd.f32 %v5418, -2.101024e-06
        %v5483 = vadd.f32 %v5419, -2.101024e-06
        %v5484 = vadd.f32 %v5420, -2.101024e-06
        %v5485 = vadd.f32 %v5421, -2.101024e-06
        %v5486 = vadd.f32 %v5422, -2.101024e-06
        %v5487 = vadd.f32 %v5423, -2.101024e-06
        %v5488 = vadd.f32 %v5424, -2.101024e-06
        %v5489 = vadd.f32 %v5425, -2.101024e-06
        %v5490 = vadd.f32 %v5426, -2.101024e-06
        %v5491 = vadd.f32 %v5427, -2.101024e-06
        %v5492 = vadd.f32 %v5428, -2.101024e-06
        %v5493 = vadd.f32 %v5429, -2.101024e-06
        %v5494 = vadd.f32 %v5430, -2.101024e-06
        %v5495 = vadd.f32 %v5431, -2.101024e-06
        %v5496 = vadd.f32 %v5432, -2.101024e-06
        %v5497 = vadd.f32 %v5433, -2.101024e-06
        %v5498 = vadd.f32 %v5434, -2.101024e-06
        %v5499 = vadd.f32 %v5435, -2.101024e-06
        %v5500 = vadd.f32 %v5436, -2.101024e-06
        %v5501 = vadd.f32 %v5437, -2.101024e-06
        %v5502 = vadd.f32 %v5438, -2.101024e-06
        %v5503 = vadd.f32 %v5439, -2.101024e-06
        %v5504 = vadd.f32 %v5440, -2.101024e-06
        %v5505 = vadd.f32 %v5441, -2.101024e-06
        %v5506 = vadd.f32 %v5442, -2.101024e-06
        %v5507 = vadd.f32 %v5443, -2.101024e-06
        %v5508 = vadd.f32 %v5444, -2.101024e-06
        %v5509 = vadd.f32 %v5445, -2.101024e-06
        %v5510 = vadd.f32 %v5446, -2.101024e-06
        %v5511 = vadd.f32 %v5447, -2.101024e-06
        %v5512 = vadd.f32 %v5448, -2.101024e-06
        %v5513 = vadd.f32 %v5449, -2.101024e-06
        %v5514 = vadd.f32 %v5450, -2.101024e-06
        %v5515 = vadd.f32 %v5451, -2.101024e-06
        %v5516 = vadd.f32 %v5452, -2.101024e-06
        %v5517 = vadd.f32 %v5453, -2.101024e-06
        %v5518 = vadd.f32 %v5454, -2.101024e-06
        %v5519 = vadd.f32 %v5455, -2.101024e-06
        %v5520 = vmul.f32 %v5456, %v5200
        %v5521 = vmul.f32 %v5457, %v5201
        %v5522 = vmul.f32 %v5458, %v5202
        %v5523 = vmul.f32 %v5459, %v5203
        %v5524 = vmul.f32 %v5460, %v5204
        %v5525 = vmul.f32 %v5461, %v5205
        %v5526 = vmul.f32 %v5462, %v5206
        %v5527 = vmul.f32 %v5463, %v5207
        %v5528 = vmul.f32 %v5464, %v5208
        %v5529 = vmul.f32 %v5465, %v5209
        %v5530 = vmul.f32 %v5466, %v5210
        %v5531 = vmul.f32 %v5467, %v5211
        %v5532 = vmul.f32 %v5468, %v5212
        %v5533 = vmul.f32 %v5469, %v5213
        %v5534 = vmul.f32 %v5470, %v5214
        %v5535 = vmul.f32 %v5471, %v5215
        %v5536 = vmul.f32 %v5472, %v5216
        %v5537 = vmul.f32 %v5473, %v5217
        %v5538 = vmul.f32 %v5474, %v5218
        %v5539 = vmul.f32 %v5475, %v5219
        %v5540 = vmul.f32 %v5476, %v5220
        %v5541 = vmul.f32 %v5477, %v5221
        %v5542 = vmul.f32 %v5478, %v5222
        %v5543 = vmul.f32 %v5479, %v5223
        %v5544 = vmul.f32 %v5480, %v5224
        %v5545 = vmul.f32 %v5481, %v5225
        %v5546 = vmul.f32 %v5482, %v5226
        %v5547 = vmul.f32 %v5483, %v5227
        %v5548 = vmul.f32 %v5484, %v5228
        %v5549 = vmul.f32 %v5485, %v5229
        %v5550 = vmul.f32 %v5486, %v5230
        %v5551 = vmul.f32 %v5487, %v5231
        %v5552 = vmul.f32 %v5488, %v5232
        %v5553 = vmul.f32 %v5489, %v5233
        %v5554 = vmul.f32 %v5490, %v5234
        %v5555 = vmul.f32 %v5491, %v5235
        %v5556 = vmul.f32 %v5492, %v5236
        %v5557 = vmul.f32 %v5493, %v5237
        %v5558 = vmul.f32 %v5494, %v5238
        %v5559 = vmul.f32 %v5495, %v5239
        %v5560 = vmul.f32 %v5496, %v5240
        %v5561 = vmul.f32 %v5497, %v5241
        %v5562 = vmul.f32 %v5498, %v5242
        %v5563 = vmul.f32 %v5499, %v5243
        %v5564 = vmul.f32 %v5500, %v5244
        %v5565 = vmul.f32 %v5501, %v5245
        %v5566 = vmul.f32 %v5502, %v5246
        %v5567 = vmul.f32 %v5503, %v5247
        %v5568 = vmul.f32 %v5504, %v5248
        %v5569 = vmul.f32 %v5505, %v5249
        %v5570 = vmul.f32 %v5506, %v5250
        %v5571 = vmul.f32 %v5507, %v5251
        %v5572 = vmul.f32 %v5508, %v5252
        %v5573 = vmul.f32 %v5509, %v5253
        %v5574 = vmul.f32 %v5510, %v5254
        %v5575 = vmul.f32 %v5511, %v5255
        %v5576 = vmul.f32 %v5512, %v5256
        %v5577 = vmul.f32 %v5513, %v5257
        %v5578 = vmul.f32 %v5514, %v5258
        %v5579 = vmul.f32 %v5515, %v5259
        %v5580 = vmul.f32 %v5516, %v5260
        %v5581 = vmul.f32 %v5517, %v5261
        %v5582 = vmul.f32 %v5518, %v5262
        %v5583 = vmul.f32 %v5519, %v5263
        %v5584 = vadd.f32 %v5520, -5.6925062e-05
        %v5585 = vadd.f32 %v5521, -5.6925062e-05
        %v5586 = vadd.f32 %v5522, -5.6925062e-05
        %v5587 = vadd.f32 %v5523, -5.6925062e-05
        %v5588 = vadd.f32 %v5524, -5.6925062e-05
        %v5589 = vadd.f32 %v5525, -5.6925062e-05
        %v5590 = vadd.f32 %v5526, -5.6925062e-05
        %v5591 = vadd.f32 %v5527, -5.6925062e-05
        %v5592 = vadd.f32 %v5528, -5.6925062e-05
        %v5593 = vadd.f32 %v5529, -5.6925062e-05
        %v5594 = vadd.f32 %v5530, -5.6925062e-05
        %v5595 = vadd.f32 %v5531, -5.6925062e-05
        %v5596 = vadd.f32 %v5532, -5.6925062e-05
        %v5597 = vadd.f32 %v5533, -5.6925062e-05
        %v5598 = vadd.f32 %v5534, -5.6925062e-05
        %v5599 = vadd.f32 %v5535, -5.6925062e-05
        %v5600 = vadd.f32 %v5536, -5.6925062e-05
        %v5601 = vadd.f32 %v5537, -5.6925062e-05
        %v5602 = vadd.f32 %v5538, -5.6925062e-05
        %v5603 = vadd.f32 %v5539, -5.6925062e-05
        %v5604 = vadd.f32 %v5540, -5.6925062e-05
        %v5605 = vadd.f32 %v5541, -5.6925062e-05
        %v5606 = vadd.f32 %v5542, -5.6925062e-05
        %v5607 = vadd.f32 %v5543, -5.6925062e-05
        %v5608 = vadd.f32 %v5544, -5.6925062e-05
        %v5609 = vadd.f32 %v5545, -5.6925062e-05
        %v5610 = vadd.f32 %v5546, -5.6925062e-05
        %v5611 = vadd.f32 %v5547, -5.6925062e-05
        %v5612 = vadd.f32 %v5548, -5.6925062e-05
        %v5613 = vadd.f32 %v5549, -5.6925062e-05
        %v5614 = vadd.f32 %v5550, -5.6925062e-05
        %v5615 = vadd.f32 %v5551, -5.6925062e-05
        %v5616 = vadd.f32 %v5552, -5.6925062e-05
        %v5617 = vadd.f32 %v5553, -5.6925062e-05
        %v5618 = vadd.f32 %v5554, -5.6925062e-05
        %v5619 = vadd.f32 %v5555, -5.6925062e-05
        %v5620 = vadd.f32 %v5556, -5.6925062e-05
        %v5621 = vadd.f32 %v5557, -5.6925062e-05
        %v5622 = vadd.f32 %v5558, -5.6925062e-05
        %v5623 = vadd.f32 %v5559, -5.6925062e-05
        %v5624 = vadd.f32 %v5560, -5.6925062e-05
        %v5625 = vadd.f32 %v5561, -5.6925062e-05
        %v5626 = vadd.f32 %v5562, -5.6925062e-05
        %v5627 = vadd.f32 %v5563, -5.6925062e-05
        %v5628 = vadd.f32 %v5564, -5.6925062e-05
        %v5629 = vadd.f32 %v5565, -5.6925062e-05
        %v5630 = vadd.f32 %v5566, -5.6925062e-05
        %v5631 = vadd.f32 %v5567, -5.6925062e-05
        %v5632 = vadd.f32 %v5568, -5.6925062e-05
        %v5633 = vadd.f32 %v5569, -5.6925062e-05
        %v5634 = vadd.f32 %v5570, -5.6925062e-05
        %v5635 = vadd.f32 %v5571, -5.6925062e-05
        %v5636 = vadd.f32 %v5572, -5.6925062e-05
        %v5637 = vadd.f32 %v5573, -5.6925062e-05
        %v5638 = vadd.f32 %v5574, -5.6925062e-05
        %v5639 = vadd.f32 %v5575, -5.6925062e-05
        %v5640 = vadd.f32 %v5576, -5.6925062e-05
        %v5641 = vadd.f32 %v5577, -5.6925062e-05
        %v5642 = vadd.f32 %v5578, -5.6925062e-05
        %v5643 = vadd.f32 %v5579, -5.6925062e-05
        %v5644 = vadd.f32 %v5580, -5.6925062e-05
        %v5645 = vadd.f32 %v5581, -5.6925062e-05
        %v5646 = vadd.f32 %v5582, -5.6925062e-05
        %v5647 = vadd.f32 %v5583, -5.6925062e-05
        %v5648 = vmul.f32 %v5584, %v5200
        %v5649 = vmul.f32 %v5585, %v5201
        %v5650 = vmul.f32 %v5586, %v5202
        %v5651 = vmul.f32 %v5587, %v5203
        %v5652 = vmul.f32 %v5588, %v5204
        %v5653 = vmul.f32 %v5589, %v5205
        %v5654 = vmul.f32 %v5590, %v5206
        %v5655 = vmul.f32 %v5591, %v5207
        %v5656 = vmul.f32 %v5592, %v5208
        %v5657 = vmul.f32 %v5593, %v5209
        %v5658 = vmul.f32 %v5594, %v5210
        %v5659 = vmul.f32 %v5595, %v5211
        %v5660 = vmul.f32 %v5596, %v5212
        %v5661 = vmul.f32 %v5597, %v5213
        %v5662 = vmul.f32 %v5598, %v5214
        %v5663 = vmul.f32 %v5599, %v5215
        %v5664 = vmul.f32 %v5600, %v5216
        %v5665 = vmul.f32 %v5601, %v5217
        %v5666 = vmul.f32 %v5602, %v5218
        %v5667 = vmul.f32 %v5603, %v5219
        %v5668 = vmul.f32 %v5604, %v5220
        %v5669 = vmul.f32 %v5605, %v5221
        %v5670 = vmul.f32 %v5606, %v5222
        %v5671 = vmul.f32 %v5607, %v5223
        %v5672 = vmul.f32 %v5608, %v5224
        %v5673 = vmul.f32 %v5609, %v5225
        %v5674 = vmul.f32 %v5610, %v5226
        %v5675 = vmul.f32 %v5611, %v5227
        %v5676 = vmul.f32 %v5612, %v5228
        %v5677 = vmul.f32 %v5613, %v5229
        %v5678 = vmul.f32 %v5614, %v5230
        %v5679 = vmul.f32 %v5615, %v5231
        %v5680 = vmul.f32 %v5616, %v5232
        %v5681 = vmul.f32 %v5617, %v5233
        %v5682 = vmul.f32 %v5618, %v5234
        %v5683 = vmul.f32 %v5619, %v5235
        %v5684 = vmul.f32 %v5620, %v5236
        %v5685 = vmul.f32 %v5621, %v5237
        %v5686 = vmul.f32 %v5622, %v5238
        %v5687 = vmul.f32 %v5623, %v5239
        %v5688 = vmul.f32 %v5624, %v5240
        %v5689 = vmul.f32 %v5625, %v5241
        %v5690 = vmul.f32 %v5626, %v5242
        %v5691 = vmul.f32 %v5627, %v5243
        %v5692 = vmul.f32 %v5628, %v5244
        %v5693 = vmul.f32 %v5629, %v5245
        %v5694 = vmul.f32 %v5630, %v5246
        %v5695 = vmul.f32 %v5631, %v5247
        %v5696 = vmul.f32 %v5632, %v5248
        %v5697 = vmul.f32 %v5633, %v5249
        %v5698 = vmul.f32 %v5634, %v5250
        %v5699 = vmul.f32 %v5635, %v5251
        %v5700 = vmul.f32 %v5636, %v5252
        %v5701 = vmul.f32 %v5637, %v5253
        %v5702 = vmul.f32 %v5638, %v5254
        %v5703 = vmul.f32 %v5639, %v5255
        %v5704 = vmul.f32 %v5640, %v5256
        %v5705 = vmul.f32 %v5641, %v5257
        %v5706 = vmul.f32 %v5642, %v5258
        %v5707 = vmul.f32 %v5643, %v5259
        %v5708 = vmul.f32 %v5644, %v5260
        %v5709 = vmul.f32 %v5645, %v5261
        %v5710 = vmul.f32 %v5646, %v5262
        %v5711 = vmul.f32 %v5647, %v5263
        %v5712 = vadd.f32 %v5648, -0.00073499064
        %v5713 = vadd.f32 %v5649, -0.00073499064
        %v5714 = vadd.f32 %v5650, -0.00073499064
        %v5715 = vadd.f32 %v5651, -0.00073499064
        %v5716 = vadd.f32 %v5652, -0.00073499064
        %v5717 = vadd.f32 %v5653, -0.00073499064
        %v5718 = vadd.f32 %v5654, -0.00073499064
        %v5719 = vadd.f32 %v5655, -0.00073499064
        %v5720 = vadd.f32 %v5656, -0.00073499064
        %v5721 = vadd.f32 %v5657, -0.00073499064
        %v5722 = vadd.f32 %v5658, -0.00073499064
        %v5723 = vadd.f32 %v5659, -0.00073499064
        %v5724 = vadd.f32 %v5660, -0.00073499064
        %v5725 = vadd.f32 %v5661, -0.00073499064
        %v5726 = vadd.f32 %v5662, -0.00073499064
        %v5727 = vadd.f32 %v5663, -0.00073499064
        %v5728 = vadd.f32 %v5664, -0.00073499064
        %v5729 = vadd.f32 %v5665, -0.00073499064
        %v5730 = vadd.f32 %v5666, -0.00073499064
        %v5731 = vadd.f32 %v5667, -0.00073499064
        %v5732 = vadd.f32 %v5668, -0.00073499064
        %v5733 = vadd.f32 %v5669, -0.00073499064
        %v5734 = vadd.f32 %v5670, -0.00073499064
        %v5735 = vadd.f32 %v5671, -0.00073499064
        %v5736 = vadd.f32 %v5672, -0.00073499064
        %v5737 = vadd.f32 %v5673, -0.00073499064
        %v5738 = vadd.f32 %v5674, -0.00073499064
        %v5739 = vadd.f32 %v5675, -0.00073499064
        %v5740 = vadd.f32 %v5676, -0.00073499064
        %v5741 = vadd.f32 %v5677, -0.00073499064
        %v5742 = vadd.f32 %v5678, -0.00073499064
        %v5743 = vadd.f32 %v5679, -0.00073499064
        %v5744 = vadd.f32 %v5680, -0.00073499064
        %v5745 = vadd.f32 %v5681, -0.00073499064
        %v5746 = vadd.f32 %v5682, -0.00073499064
        %v5747 = vadd.f32 %v5683, -0.00073499064
        %v5748 = vadd.f32 %v5684, -0.00073499064
        %v5749 = vadd.f32 %v5685, -0.00073499064
        %v5750 = vadd.f32 %v5686, -0.00073499064
        %v5751 = vadd.f32 %v5687, -0.00073499064
        %v5752 = vadd.f32 %v5688, -0.00073499064
        %v5753 = vadd.f32 %v5689, -0.00073499064
        %v5754 = vadd.f32 %v5690, -0.00073499064
        %v5755 = vadd.f32 %v5691, -0.00073499064
        %v5756 = vadd.f32 %v5692, -0.00073499064
        %v5757 = vadd.f32 %v5693, -0.00073499064
        %v5758 = vadd.f32 %v5694, -0.00073499064
        %v5759 = vadd.f32 %v5695, -0.00073499064
        %v5760 = vadd.f32 %v5696, -0.00073499064
        %v5761 = vadd.f32 %v5697, -0.00073499064
        %v5762 = vadd.f32 %v5698, -0.00073499064
        %v5763 = vadd.f32 %v5699, -0.00073499064
        %v5764 = vadd.f32 %v5700, -0.00073499064
        %v5765 = vadd.f32 %v5701, -0.00073499064
        %v5766 = vadd.f32 %v5702, -0.00073499064
        %v5767 = vadd.f32 %v5703, -0.00073499064
        %v5768 = vadd.f32 %v5704, -0.00073499064
        %v5769 = vadd.f32 %v5705, -0.00073499064
        %v5770 = vadd.f32 %v5706, -0.00073499064
        %v5771 = vadd.f32 %v5707, -0.00073499064
        %v5772 = vadd.f32 %v5708, -0.00073499064
        %v5773 = vadd.f32 %v5709, -0.00073499064
        %v5774 = vadd.f32 %v5710, -0.00073499064
        %v5775 = vadd.f32 %v5711, -0.00073499064
        %v5776 = vmul.f32 %v5712, %v5200
        %v5777 = vmul.f32 %v5713, %v5201
        %v5778 = vmul.f32 %v5714, %v5202
        %v5779 = vmul.f32 %v5715, %v5203
        %v5780 = vmul.f32 %v5716, %v5204
        %v5781 = vmul.f32 %v5717, %v5205
        %v5782 = vmul.f32 %v5718, %v5206
        %v5783 = vmul.f32 %v5719, %v5207
        %v5784 = vmul.f32 %v5720, %v5208
        %v5785 = vmul.f32 %v5721, %v5209
        %v5786 = vmul.f32 %v5722, %v5210
        %v5787 = vmul.f32 %v5723, %v5211
        %v5788 = vmul.f32 %v5724, %v5212
        %v5789 = vmul.f32 %v5725, %v5213
        %v5790 = vmul.f32 %v5726, %v5214
        %v5791 = vmul.f32 %v5727, %v5215
        %v5792 = vmul.f32 %v5728, %v5216
        %v5793 = vmul.f32 %v5729, %v5217
        %v5794 = vmul.f32 %v5730, %v5218
        %v5795 = vmul.f32 %v5731, %v5219
        %v5796 = vmul.f32 %v5732, %v5220
        %v5797 = vmul.f32 %v5733, %v5221
        %v5798 = vmul.f32 %v5734, %v5222
        %v5799 = vmul.f32 %v5735, %v5223
        %v5800 = vmul.f32 %v5736, %v5224
        %v5801 = vmul.f32 %v5737, %v5225
        %v5802 = vmul.f32 %v5738, %v5226
        %v5803 = vmul.f32 %v5739, %v5227
        %v5804 = vmul.f32 %v5740, %v5228
        %v5805 = vmul.f32 %v5741, %v5229
        %v5806 = vmul.f32 %v5742, %v5230
        %v5807 = vmul.f32 %v5743, %v5231
        %v5808 = vmul.f32 %v5744, %v5232
        %v5809 = vmul.f32 %v5745, %v5233
        %v5810 = vmul.f32 %v5746, %v5234
        %v5811 = vmul.f32 %v5747, %v5235
        %v5812 = vmul.f32 %v5748, %v5236
        %v5813 = vmul.f32 %v5749, %v5237
        %v5814 = vmul.f32 %v5750, %v5238
        %v5815 = vmul.f32 %v5751, %v5239
        %v5816 = vmul.f32 %v5752, %v5240
        %v5817 = vmul.f32 %v5753, %v5241
        %v5818 = vmul.f32 %v5754, %v5242
        %v5819 = vmul.f32 %v5755, %v5243
        %v5820 = vmul.f32 %v5756, %v5244
        %v5821 = vmul.f32 %v5757, %v5245
        %v5822 = vmul.f32 %v5758, %v5246
        %v5823 = vmul.f32 %v5759, %v5247
        %v5824 = vmul.f32 %v5760, %v5248
        %v5825 = vmul.f32 %v5761, %v5249
        %v5826 = vmul.f32 %v5762, %v5250
        %v5827 = vmul.f32 %v5763, %v5251
        %v5828 = vmul.f32 %v5764, %v5252
        %v5829 = vmul.f32 %v5765, %v5253
        %v5830 = vmul.f32 %v5766, %v5254
        %v5831 = vmul.f32 %v5767, %v5255
        %v5832 = vmul.f32 %v5768, %v5256
        %v5833 = vmul.f32 %v5769, %v5257
        %v5834 = vmul.f32 %v5770, %v5258
        %v5835 = vmul.f32 %v5771, %v5259
        %v5836 = vmul.f32 %v5772, %v5260
        %v5837 = vmul.f32 %v5773, %v5261
        %v5838 = vmul.f32 %v5774, %v5262
        %v5839 = vmul.f32 %v5775, %v5263
        %v5840 = vadd.f32 %v5776, -0.0029546
        %v5841 = vadd.f32 %v5777, -0.0029546
        %v5842 = vadd.f32 %v5778, -0.0029546
        %v5843 = vadd.f32 %v5779, -0.0029546
        %v5844 = vadd.f32 %v5780, -0.0029546
        %v5845 = vadd.f32 %v5781, -0.0029546
        %v5846 = vadd.f32 %v5782, -0.0029546
        %v5847 = vadd.f32 %v5783, -0.0029546
        %v5848 = vadd.f32 %v5784, -0.0029546
        %v5849 = vadd.f32 %v5785, -0.0029546
        %v5850 = vadd.f32 %v5786, -0.0029546
        %v5851 = vadd.f32 %v5787, -0.0029546
        %v5852 = vadd.f32 %v5788, -0.0029546
        %v5853 = vadd.f32 %v5789, -0.0029546
        %v5854 = vadd.f32 %v5790, -0.0029546
        %v5855 = vadd.f32 %v5791, -0.0029546
        %v5856 = vadd.f32 %v5792, -0.0029546
        %v5857 = vadd.f32 %v5793, -0.0029546
        %v5858 = vadd.f32 %v5794, -0.0029546
        %v5859 = vadd.f32 %v5795, -0.0029546
        %v5860 = vadd.f32 %v5796, -0.0029546
        %v5861 = vadd.f32 %v5797, -0.0029546
        %v5862 = vadd.f32 %v5798, -0.0029546
        %v5863 = vadd.f32 %v5799, -0.0029546
        %v5864 = vadd.f32 %v5800, -0.0029546
        %v5865 = vadd.f32 %v5801, -0.0029546
        %v5866 = vadd.f32 %v5802, -0.0029546
        %v5867 = vadd.f32 %v5803, -0.0029546
        %v5868 = vadd.f32 %v5804, -0.0029546
        %v5869 = vadd.f32 %v5805, -0.0029546
        %v5870 = vadd.f32 %v5806, -0.0029546
        %v5871 = vadd.f32 %v5807, -0.0029546
        %v5872 = vadd.f32 %v5808, -0.0029546
        %v5873 = vadd.f32 %v5809, -0.0029546
        %v5874 = vadd.f32 %v5810, -0.0029546
        %v5875 = vadd.f32 %v5811, -0.0029546
        %v5876 = vadd.f32 %v5812, -0.0029546
        %v5877 = vadd.f32 %v5813, -0.0029546
        %v5878 = vadd.f32 %v5814, -0.0029546
        %v5879 = vadd.f32 %v5815, -0.0029546
        %v5880 = vadd.f32 %v5816, -0.0029546
        %v5881 = vadd.f32 %v5817, -0.0029546
        %v5882 = vadd.f32 %v5818, -0.0029546
        %v5883 = vadd.f32 %v5819, -0.0029546
        %v5884 = vadd.f32 %v5820, -0.0029546
        %v5885 = vadd.f32 %v5821, -0.0029546
        %v5886 = vadd.f32 %v5822, -0.0029546
        %v5887 = vadd.f32 %v5823, -0.0029546
        %v5888 = vadd.f32 %v5824, -0.0029546
        %v5889 = vadd.f32 %v5825, -0.0029546
        %v5890 = vadd.f32 %v5826, -0.0029546
        %v5891 = vadd.f32 %v5827, -0.0029546
        %v5892 = vadd.f32 %v5828, -0.0029546
        %v5893 = vadd.f32 %v5829, -0.0029546
        %v5894 = vadd.f32 %v5830, -0.0029546
        %v5895 = vadd.f32 %v5831, -0.0029546
        %v5896 = vadd.f32 %v5832, -0.0029546
        %v5897 = vadd.f32 %v5833, -0.0029546
        %v5898 = vadd.f32 %v5834, -0.0029546
        %v5899 = vadd.f32 %v5835, -0.0029546
        %v5900 = vadd.f32 %v5836, -0.0029546
        %v5901 = vadd.f32 %v5837, -0.0029546
        %v5902 = vadd.f32 %v5838, -0.0029546
        %v5903 = vadd.f32 %v5839, -0.0029546
        %v5904 = vmul.f32 %v5840, %v5200
        %v5905 = vmul.f32 %v5841, %v5201
        %v5906 = vmul.f32 %v5842, %v5202
        %v5907 = vmul.f32 %v5843, %v5203
        %v5908 = vmul.f32 %v5844, %v5204
        %v5909 = vmul.f32 %v5845, %v5205
        %v5910 = vmul.f32 %v5846, %v5206
        %v5911 = vmul.f32 %v5847, %v5207
        %v5912 = vmul.f32 %v5848, %v5208
        %v5913 = vmul.f32 %v5849, %v5209
        %v5914 = vmul.f32 %v5850, %v5210
        %v5915 = vmul.f32 %v5851, %v5211
        %v5916 = vmul.f32 %v5852, %v5212
        %v5917 = vmul.f32 %v5853, %v5213
        %v5918 = vmul.f32 %v5854, %v5214
        %v5919 = vmul.f32 %v5855, %v5215
        %v5920 = vmul.f32 %v5856, %v5216
        %v5921 = vmul.f32 %v5857, %v5217
        %v5922 = vmul.f32 %v5858, %v5218
        %v5923 = vmul.f32 %v5859, %v5219
        %v5924 = vmul.f32 %v5860, %v5220
        %v5925 = vmul.f32 %v5861, %v5221
        %v5926 = vmul.f32 %v5862, %v5222
        %v5927 = vmul.f32 %v5863, %v5223
        %v5928 = vmul.f32 %v5864, %v5224
        %v5929 = vmul.f32 %v5865, %v5225
        %v5930 = vmul.f32 %v5866, %v5226
        %v5931 = vmul.f32 %v5867, %v5227
        %v5932 = vmul.f32 %v5868, %v5228
        %v5933 = vmul.f32 %v5869, %v5229
        %v5934 = vmul.f32 %v5870, %v5230
        %v5935 = vmul.f32 %v5871, %v5231
        %v5936 = vmul.f32 %v5872, %v5232
        %v5937 = vmul.f32 %v5873, %v5233
        %v5938 = vmul.f32 %v5874, %v5234
        %v5939 = vmul.f32 %v5875, %v5235
        %v5940 = vmul.f32 %v5876, %v5236
        %v5941 = vmul.f32 %v5877, %v5237
        %v5942 = vmul.f32 %v5878, %v5238
        %v5943 = vmul.f32 %v5879, %v5239
        %v5944 = vmul.f32 %v5880, %v5240
        %v5945 = vmul.f32 %v5881, %v5241
        %v5946 = vmul.f32 %v5882, %v5242
        %v5947 = vmul.f32 %v5883, %v5243
        %v5948 = vmul.f32 %v5884, %v5244
        %v5949 = vmul.f32 %v5885, %v5245
        %v5950 = vmul.f32 %v5886, %v5246
        %v5951 = vmul.f32 %v5887, %v5247
        %v5952 = vmul.f32 %v5888, %v5248
        %v5953 = vmul.f32 %v5889, %v5249
        %v5954 = vmul.f32 %v5890, %v5250
        %v5955 = vmul.f32 %v5891, %v5251
        %v5956 = vmul.f32 %v5892, %v5252
        %v5957 = vmul.f32 %v5893, %v5253
        %v5958 = vmul.f32 %v5894, %v5254
        %v5959 = vmul.f32 %v5895, %v5255
        %v5960 = vmul.f32 %v5896, %v5256
        %v5961 = vmul.f32 %v5897, %v5257
        %v5962 = vmul.f32 %v5898, %v5258
        %v5963 = vmul.f32 %v5899, %v5259
        %v5964 = vmul.f32 %v5900, %v5260
        %v5965 = vmul.f32 %v5901, %v5261
        %v5966 = vmul.f32 %v5902, %v5262
        %v5967 = vmul.f32 %v5903, %v5263
        %v5968 = vadd.f32 %v5904, -0.016096033
        %v5969 = vadd.f32 %v5905, -0.016096033
        %v5970 = vadd.f32 %v5906, -0.016096033
        %v5971 = vadd.f32 %v5907, -0.016096033
        %v5972 = vadd.f32 %v5908, -0.016096033
        %v5973 = vadd.f32 %v5909, -0.016096033
        %v5974 = vadd.f32 %v5910, -0.016096033
        %v5975 = vadd.f32 %v5911, -0.016096033
        %v5976 = vadd.f32 %v5912, -0.016096033
        %v5977 = vadd.f32 %v5913, -0.016096033
        %v5978 = vadd.f32 %v5914, -0.016096033
        %v5979 = vadd.f32 %v5915, -0.016096033
        %v5980 = vadd.f32 %v5916, -0.016096033
        %v5981 = vadd.f32 %v5917, -0.016096033
        %v5982 = vadd.f32 %v5918, -0.016096033
        %v5983 = vadd.f32 %v5919, -0.016096033
        %v5984 = vadd.f32 %v5920, -0.016096033
        %v5985 = vadd.f32 %v5921, -0.016096033
        %v5986 = vadd.f32 %v5922, -0.016096033
        %v5987 = vadd.f32 %v5923, -0.016096033
        %v5988 = vadd.f32 %v5924, -0.016096033
        %v5989 = vadd.f32 %v5925, -0.016096033
        %v5990 = vadd.f32 %v5926, -0.016096033
        %v5991 = vadd.f32 %v5927, -0.016096033
        %v5992 = vadd.f32 %v5928, -0.016096033
        %v5993 = vadd.f32 %v5929, -0.016096033
        %v5994 = vadd.f32 %v5930, -0.016096033
        %v5995 = vadd.f32 %v5931, -0.016096033
        %v5996 = vadd.f32 %v5932, -0.016096033
        %v5997 = vadd.f32 %v5933, -0.016096033
        %v5998 = vadd.f32 %v5934, -0.016096033
        %v5999 = vadd.f32 %v5935, -0.016096033
        %v6000 = vadd.f32 %v5936, -0.016096033
        %v6001 = vadd.f32 %v5937, -0.016096033
        %v6002 = vadd.f32 %v5938, -0.016096033
        %v6003 = vadd.f32 %v5939, -0.016096033
        %v6004 = vadd.f32 %v5940, -0.016096033
        %v6005 = vadd.f32 %v5941, -0.016096033
        %v6006 = vadd.f32 %v5942, -0.016096033
        %v6007 = vadd.f32 %v5943, -0.016096033
        %v6008 = vadd.f32 %v5944, -0.016096033
        %v6009 = vadd.f32 %v5945, -0.016096033
        %v6010 = vadd.f32 %v5946, -0.016096033
        %v6011 = vadd.f32 %v5947, -0.016096033
        %v6012 = vadd.f32 %v5948, -0.016096033
        %v6013 = vadd.f32 %v5949, -0.016096033
        %v6014 = vadd.f32 %v5950, -0.016096033
        %v6015 = vadd.f32 %v5951, -0.016096033
        %v6016 = vadd.f32 %v5952, -0.016096033
        %v6017 = vadd.f32 %v5953, -0.016096033
        %v6018 = vadd.f32 %v5954, -0.016096033
        %v6019 = vadd.f32 %v5955, -0.016096033
        %v6020 = vadd.f32 %v5956, -0.016096033
        %v6021 = vadd.f32 %v5957, -0.016096033
        %v6022 = vadd.f32 %v5958, -0.016096033
        %v6023 = vadd.f32 %v5959, -0.016096033
        %v6024 = vadd.f32 %v5960, -0.016096033
        %v6025 = vadd.f32 %v5961, -0.016096033
        %v6026 = vadd.f32 %v5962, -0.016096033
        %v6027 = vadd.f32 %v5963, -0.016096033
        %v6028 = vadd.f32 %v5964, -0.016096033
        %v6029 = vadd.f32 %v5965, -0.016096033
        %v6030 = vadd.f32 %v5966, -0.016096033
        %v6031 = vadd.f32 %v5967, -0.016096033
        %v6032 = vmul.f32 %v5968, %v5136
        %v6033 = vmul.f32 %v5969, %v5137
        %v6034 = vmul.f32 %v5970, %v5138
        %v6035 = vmul.f32 %v5971, %v5139
        %v6036 = vmul.f32 %v5972, %v5140
        %v6037 = vmul.f32 %v5973, %v5141
        %v6038 = vmul.f32 %v5974, %v5142
        %v6039 = vmul.f32 %v5975, %v5143
        %v6040 = vmul.f32 %v5976, %v5144
        %v6041 = vmul.f32 %v5977, %v5145
        %v6042 = vmul.f32 %v5978, %v5146
        %v6043 = vmul.f32 %v5979, %v5147
        %v6044 = vmul.f32 %v5980, %v5148
        %v6045 = vmul.f32 %v5981, %v5149
        %v6046 = vmul.f32 %v5982, %v5150
        %v6047 = vmul.f32 %v5983, %v5151
        %v6048 = vmul.f32 %v5984, %v5152
        %v6049 = vmul.f32 %v5985, %v5153
        %v6050 = vmul.f32 %v5986, %v5154
        %v6051 = vmul.f32 %v5987, %v5155
        %v6052 = vmul.f32 %v5988, %v5156
        %v6053 = vmul.f32 %v5989, %v5157
        %v6054 = vmul.f32 %v5990, %v5158
        %v6055 = vmul.f32 %v5991, %v5159
        %v6056 = vmul.f32 %v5992, %v5160
        %v6057 = vmul.f32 %v5993, %v5161
        %v6058 = vmul.f32 %v5994, %v5162
        %v6059 = vmul.f32 %v5995, %v5163
        %v6060 = vmul.f32 %v5996, %v5164
        %v6061 = vmul.f32 %v5997, %v5165
        %v6062 = vmul.f32 %v5998, %v5166
        %v6063 = vmul.f32 %v5999, %v5167
        %v6064 = vmul.f32 %v6000, %v5168
        %v6065 = vmul.f32 %v6001, %v5169
        %v6066 = vmul.f32 %v6002, %v5170
        %v6067 = vmul.f32 %v6003, %v5171
        %v6068 = vmul.f32 %v6004, %v5172
        %v6069 = vmul.f32 %v6005, %v5173
        %v6070 = vmul.f32 %v6006, %v5174
        %v6071 = vmul.f32 %v6007, %v5175
        %v6072 = vmul.f32 %v6008, %v5176
        %v6073 = vmul.f32 %v6009, %v5177
        %v6074 = vmul.f32 %v6010, %v5178
        %v6075 = vmul.f32 %v6011, %v5179
        %v6076 = vmul.f32 %v6012, %v5180
        %v6077 = vmul.f32 %v6013, %v5181
        %v6078 = vmul.f32 %v6014, %v5182
        %v6079 = vmul.f32 %v6015, %v5183
        %v6080 = vmul.f32 %v6016, %v5184
        %v6081 = vmul.f32 %v6017, %v5185
        %v6082 = vmul.f32 %v6018, %v5186
        %v6083 = vmul.f32 %v6019, %v5187
        %v6084 = vmul.f32 %v6020, %v5188
        %v6085 = vmul.f32 %v6021, %v5189
        %v6086 = vmul.f32 %v6022, %v5190
        %v6087 = vmul.f32 %v6023, %v5191
        %v6088 = vmul.f32 %v6024, %v5192
        %v6089 = vmul.f32 %v6025, %v5193
        %v6090 = vmul.f32 %v6026, %v5194
        %v6091 = vmul.f32 %v6027, %v5195
        %v6092 = vmul.f32 %v6028, %v5196
        %v6093 = vmul.f32 %v6029, %v5197
        %v6094 = vmul.f32 %v6030, %v5198
        %v6095 = vmul.f32 %v6031, %v5199
        %v6096 = vmul.f32 %v5200, -1.45660715e-05
        %v6097 = vmul.f32 %v5201, -1.45660715e-05
        %v6098 = vmul.f32 %v5202, -1.45660715e-05
        %v6099 = vmul.f32 %v5203, -1.45660715e-05
        %v6100 = vmul.f32 %v5204, -1.45660715e-05
        %v6101 = vmul.f32 %v5205, -1.45660715e-05
        %v6102 = vmul.f32 %v5206, -1.45660715e-05
        %v6103 = vmul.f32 %v5207, -1.45660715e-05
        %v6104 = vmul.f32 %v5208, -1.45660715e-05
        %v6105 = vmul.f32 %v5209, -1.45660715e-05
        %v6106 = vmul.f32 %v5210, -1.45660715e-05
        %v6107 = vmul.f32 %v5211, -1.45660715e-05
        %v6108 = vmul.f32 %v5212, -1.45660715e-05
        %v6109 = vmul.f32 %v5213, -1.45660715e-05
        %v6110 = vmul.f32 %v5214, -1.45660715e-05
        %v6111 = vmul.f32 %v5215, -1.45660715e-05
        %v6112 = vmul.f32 %v5216, -1.45660715e-05
        %v6113 = vmul.f32 %v5217, -1.45660715e-05
        %v6114 = vmul.f32 %v5218, -1.45660715e-05
        %v6115 = vmul.f32 %v5219, -1.45660715e-05
        %v6116 = vmul.f32 %v5220, -1.45660715e-05
        %v6117 = vmul.f32 %v5221, -1.45660715e-05
        %v6118 = vmul.f32 %v5222, -1.45660715e-05
        %v6119 = vmul.f32 %v5223, -1.45660715e-05
        %v6120 = vmul.f32 %v5224, -1.45660715e-05
        %v6121 = vmul.f32 %v5225, -1.45660715e-05
        %v6122 = vmul.f32 %v5226, -1.45660715e-05
        %v6123 = vmul.f32 %v5227, -1.45660715e-05
        %v6124 = vmul.f32 %v5228, -1.45660715e-05
        %v6125 = vmul.f32 %v5229, -1.45660715e-05
        %v6126 = vmul.f32 %v5230, -1.45660715e-05
        %v6127 = vmul.f32 %v5231, -1.45660715e-05
        %v6128 = vmul.f32 %v5232, -1.45660715e-05
        %v6129 = vmul.f32 %v5233, -1.45660715e-05
        %v6130 = vmul.f32 %v5234, -1.45660715e-05
        %v6131 = vmul.f32 %v5235, -1.45660715e-05
        %v6132 = vmul.f32 %v5236, -1.45660715e-05
        %v6133 = vmul.f32 %v5237, -1.45660715e-05
        %v6134 = vmul.f32 %v5238, -1.45660715e-05
        %v6135 = vmul.f32 %v5239, -1.45660715e-05
        %v6136 = vmul.f32 %v5240, -1.45660715e-05
        %v6137 = vmul.f32 %v5241, -1.45660715e-05
        %v6138 = vmul.f32 %v5242, -1.45660715e-05
        %v6139 = vmul.f32 %v5243, -1.45660715e-05
        %v6140 = vmul.f32 %v5244, -1.45660715e-05
        %v6141 = vmul.f32 %v5245, -1.45660715e-05
        %v6142 = vmul.f32 %v5246, -1.45660715e-05
        %v6143 = vmul.f32 %v5247, -1.45660715e-05
        %v6144 = vmul.f32 %v5248, -1.45660715e-05
        %v6145 = vmul.f32 %v5249, -1.45660715e-05
        %v6146 = vmul.f32 %v5250, -1.45660715e-05
        %v6147 = vmul.f32 %v5251, -1.45660715e-05
        %v6148 = vmul.f32 %v5252, -1.45660715e-05
        %v6149 = vmul.f32 %v5253, -1.45660715e-05
        %v6150 = vmul.f32 %v5254, -1.45660715e-05
        %v6151 = vmul.f32 %v5255, -1.45660715e-05
        %v6152 = vmul.f32 %v5256, -1.45660715e-05
        %v6153 = vmul.f32 %v5257, -1.45660715e-05
        %v6154 = vmul.f32 %v5258, -1.45660715e-05
        %v6155 = vmul.f32 %v5259, -1.45660715e-05
        %v6156 = vmul.f32 %v5260, -1.45660715e-05
        %v6157 = vmul.f32 %v5261, -1.45660715e-05
        %v6158 = vmul.f32 %v5262, -1.45660715e-05
        %v6159 = vmul.f32 %v5263, -1.45660715e-05
        %v6160 = vadd.f32 %v6096, -0.00021337405
        %v6161 = vadd.f32 %v6097, -0.00021337405
        %v6162 = vadd.f32 %v6098, -0.00021337405
        %v6163 = vadd.f32 %v6099, -0.00021337405
        %v6164 = vadd.f32 %v6100, -0.00021337405
        %v6165 = vadd.f32 %v6101, -0.00021337405
        %v6166 = vadd.f32 %v6102, -0.00021337405
        %v6167 = vadd.f32 %v6103, -0.00021337405
        %v6168 = vadd.f32 %v6104, -0.00021337405
        %v6169 = vadd.f32 %v6105, -0.00021337405
        %v6170 = vadd.f32 %v6106, -0.00021337405
        %v6171 = vadd.f32 %v6107, -0.00021337405
        %v6172 = vadd.f32 %v6108, -0.00021337405
        %v6173 = vadd.f32 %v6109, -0.00021337405
        %v6174 = vadd.f32 %v6110, -0.00021337405
        %v6175 = vadd.f32 %v6111, -0.00021337405
        %v6176 = vadd.f32 %v6112, -0.00021337405
        %v6177 = vadd.f32 %v6113, -0.00021337405
        %v6178 = vadd.f32 %v6114, -0.00021337405
        %v6179 = vadd.f32 %v6115, -0.00021337405
        %v6180 = vadd.f32 %v6116, -0.00021337405
        %v6181 = vadd.f32 %v6117, -0.00021337405
        %v6182 = vadd.f32 %v6118, -0.00021337405
        %v6183 = vadd.f32 %v6119, -0.00021337405
        %v6184 = vadd.f32 %v6120, -0.00021337405
        %v6185 = vadd.f32 %v6121, -0.00021337405
        %v6186 = vadd.f32 %v6122, -0.00021337405
        %v6187 = vadd.f32 %v6123, -0.00021337405
        %v6188 = vadd.f32 %v6124, -0.00021337405
        %v6189 = vadd.f32 %v6125, -0.00021337405
        %v6190 = vadd.f32 %v6126, -0.00021337405
        %v6191 = vadd.f32 %v6127, -0.00021337405
        %v6192 = vadd.f32 %v6128, -0.00021337405
        %v6193 = vadd.f32 %v6129, -0.00021337405
        %v6194 = vadd.f32 %v6130, -0.00021337405
        %v6195 = vadd.f32 %v6131, -0.00021337405
        %v6196 = vadd.f32 %v6132, -0.00021337405
        %v6197 = vadd.f32 %v6133, -0.00021337405
        %v6198 = vadd.f32 %v6134, -0.00021337405
        %v6199 = vadd.f32 %v6135, -0.00021337405
        %v6200 = vadd.f32 %v6136, -0.00021337405
        %v6201 = vadd.f32 %v6137, -0.00021337405
        %v6202 = vadd.f32 %v6138, -0.00021337405
        %v6203 = vadd.f32 %v6139, -0.00021337405
        %v6204 = vadd.f32 %v6140, -0.00021337405
        %v6205 = vadd.f32 %v6141, -0.00021337405
        %v6206 = vadd.f32 %v6142, -0.00021337405
        %v6207 = vadd.f32 %v6143, -0.00021337405
        %v6208 = vadd.f32 %v6144, -0.00021337405
        %v6209 = vadd.f32 %v6145, -0.00021337405
        %v6210 = vadd.f32 %v6146, -0.00021337405
        %v6211 = vadd.f32 %v6147, -0.00021337405
        %v6212 = vadd.f32 %v6148, -0.00021337405
        %v6213 = vadd.f32 %v6149, -0.00021337405
        %v6214 = vadd.f32 %v6150, -0.00021337405
        %v6215 = vadd.f32 %v6151, -0.00021337405
        %v6216 = vadd.f32 %v6152, -0.00021337405
        %v6217 = vadd.f32 %v6153, -0.00021337405
        %v6218 = vadd.f32 %v6154, -0.00021337405
        %v6219 = vadd.f32 %v6155, -0.00021337405
        %v6220 = vadd.f32 %v6156, -0.00021337405
        %v6221 = vadd.f32 %v6157, -0.00021337405
        %v6222 = vadd.f32 %v6158, -0.00021337405
        %v6223 = vadd.f32 %v6159, -0.00021337405
        %v6224 = vmul.f32 %v6160, %v5200
        %v6225 = vmul.f32 %v6161, %v5201
        %v6226 = vmul.f32 %v6162, %v5202
        %v6227 = vmul.f32 %v6163, %v5203
        %v6228 = vmul.f32 %v6164, %v5204
        %v6229 = vmul.f32 %v6165, %v5205
        %v6230 = vmul.f32 %v6166, %v5206
        %v6231 = vmul.f32 %v6167, %v5207
        %v6232 = vmul.f32 %v6168, %v5208
        %v6233 = vmul.f32 %v6169, %v5209
        %v6234 = vmul.f32 %v6170, %v5210
        %v6235 = vmul.f32 %v6171, %v5211
        %v6236 = vmul.f32 %v6172, %v5212
        %v6237 = vmul.f32 %v6173, %v5213
        %v6238 = vmul.f32 %v6174, %v5214
        %v6239 = vmul.f32 %v6175, %v5215
        %v6240 = vmul.f32 %v6176, %v5216
        %v6241 = vmul.f32 %v6177, %v5217
        %v6242 = vmul.f32 %v6178, %v5218
        %v6243 = vmul.f32 %v6179, %v5219
        %v6244 = vmul.f32 %v6180, %v5220
        %v6245 = vmul.f32 %v6181, %v5221
        %v6246 = vmul.f32 %v6182, %v5222
        %v6247 = vmul.f32 %v6183, %v5223
        %v6248 = vmul.f32 %v6184, %v5224
        %v6249 = vmul.f32 %v6185, %v5225
        %v6250 = vmul.f32 %v6186, %v5226
        %v6251 = vmul.f32 %v6187, %v5227
        %v6252 = vmul.f32 %v6188, %v5228
        %v6253 = vmul.f32 %v6189, %v5229
        %v6254 = vmul.f32 %v6190, %v5230
        %v6255 = vmul.f32 %v6191, %v5231
        %v6256 = vmul.f32 %v6192, %v5232
        %v6257 = vmul.f32 %v6193, %v5233
        %v6258 = vmul.f32 %v6194, %v5234
        %v6259 = vmul.f32 %v6195, %v5235
        %v6260 = vmul.f32 %v6196, %v5236
        %v6261 = vmul.f32 %v6197, %v5237
        %v6262 = vmul.f32 %v6198, %v5238
        %v6263 = vmul.f32 %v6199, %v5239
        %v6264 = vmul.f32 %v6200, %v5240
        %v6265 = vmul.f32 %v6201, %v5241
        %v6266 = vmul.f32 %v6202, %v5242
        %v6267 = vmul.f32 %v6203, %v5243
        %v6268 = vmul.f32 %v6204, %v5244
        %v6269 = vmul.f32 %v6205, %v5245
        %v6270 = vmul.f32 %v6206, %v5246
        %v6271 = vmul.f32 %v6207, %v5247
        %v6272 = vmul.f32 %v6208, %v5248
        %v6273 = vmul.f32 %v6209, %v5249
        %v6274 = vmul.f32 %v6210, %v5250
        %v6275 = vmul.f32 %v6211, %v5251
        %v6276 = vmul.f32 %v6212, %v5252
        %v6277 = vmul.f32 %v6213, %v5253
        %v6278 = vmul.f32 %v6214, %v5254
        %v6279 = vmul.f32 %v6215, %v5255
        %v6280 = vmul.f32 %v6216, %v5256
        %v6281 = vmul.f32 %v6217, %v5257
        %v6282 = vmul.f32 %v6218, %v5258
        %v6283 = vmul.f32 %v6219, %v5259
        %v6284 = vmul.f32 %v6220, %v5260
        %v6285 = vmul.f32 %v6221, %v5261
        %v6286 = vmul.f32 %v6222, %v5262
        %v6287 = vmul.f32 %v6223, %v5263
        %v6288 = vadd.f32 %v6224, -0.001682827
        %v6289 = vadd.f32 %v6225, -0.001682827
        %v6290 = vadd.f32 %v6226, -0.001682827
        %v6291 = vadd.f32 %v6227, -0.001682827
        %v6292 = vadd.f32 %v6228, -0.001682827
        %v6293 = vadd.f32 %v6229, -0.001682827
        %v6294 = vadd.f32 %v6230, -0.001682827
        %v6295 = vadd.f32 %v6231, -0.001682827
        %v6296 = vadd.f32 %v6232, -0.001682827
        %v6297 = vadd.f32 %v6233, -0.001682827
        %v6298 = vadd.f32 %v6234, -0.001682827
        %v6299 = vadd.f32 %v6235, -0.001682827
        %v6300 = vadd.f32 %v6236, -0.001682827
        %v6301 = vadd.f32 %v6237, -0.001682827
        %v6302 = vadd.f32 %v6238, -0.001682827
        %v6303 = vadd.f32 %v6239, -0.001682827
        %v6304 = vadd.f32 %v6240, -0.001682827
        %v6305 = vadd.f32 %v6241, -0.001682827
        %v6306 = vadd.f32 %v6242, -0.001682827
        %v6307 = vadd.f32 %v6243, -0.001682827
        %v6308 = vadd.f32 %v6244, -0.001682827
        %v6309 = vadd.f32 %v6245, -0.001682827
        %v6310 = vadd.f32 %v6246, -0.001682827
        %v6311 = vadd.f32 %v6247, -0.001682827
        %v6312 = vadd.f32 %v6248, -0.001682827
        %v6313 = vadd.f32 %v6249, -0.001682827
        %v6314 = vadd.f32 %v6250, -0.001682827
        %v6315 = vadd.f32 %v6251, -0.001682827
        %v6316 = vadd.f32 %v6252, -0.001682827
        %v6317 = vadd.f32 %v6253, -0.001682827
        %v6318 = vadd.f32 %v6254, -0.001682827
        %v6319 = vadd.f32 %v6255, -0.001682827
        %v6320 = vadd.f32 %v6256, -0.001682827
        %v6321 = vadd.f32 %v6257, -0.001682827
        %v6322 = vadd.f32 %v6258, -0.001682827
        %v6323 = vadd.f32 %v6259, -0.001682827
        %v6324 = vadd.f32 %v6260, -0.001682827
        %v6325 = vadd.f32 %v6261, -0.001682827
        %v6326 = vadd.f32 %v6262, -0.001682827
        %v6327 = vadd.f32 %v6263, -0.001682827
        %v6328 = vadd.f32 %v6264, -0.001682827
        %v6329 = vadd.f32 %v6265, -0.001682827
        %v6330 = vadd.f32 %v6266, -0.001682827
        %v6331 = vadd.f32 %v6267, -0.001682827
        %v6332 = vadd.f32 %v6268, -0.001682827
        %v6333 = vadd.f32 %v6269, -0.001682827
        %v6334 = vadd.f32 %v6270, -0.001682827
        %v6335 = vadd.f32 %v6271, -0.001682827
        %v6336 = vadd.f32 %v6272, -0.001682827
        %v6337 = vadd.f32 %v6273, -0.001682827
        %v6338 = vadd.f32 %v6274, -0.001682827
        %v6339 = vadd.f32 %v6275, -0.001682827
        %v6340 = vadd.f32 %v6276, -0.001682827
        %v6341 = vadd.f32 %v6277, -0.001682827
        %v6342 = vadd.f32 %v6278, -0.001682827
        %v6343 = vadd.f32 %v6279, -0.001682827
        %v6344 = vadd.f32 %v6280, -0.001682827
        %v6345 = vadd.f32 %v6281, -0.001682827
        %v6346 = vadd.f32 %v6282, -0.001682827
        %v6347 = vadd.f32 %v6283, -0.001682827
        %v6348 = vadd.f32 %v6284, -0.001682827
        %v6349 = vadd.f32 %v6285, -0.001682827
        %v6350 = vadd.f32 %v6286, -0.001682827
        %v6351 = vadd.f32 %v6287, -0.001682827
        %v6352 = vmul.f32 %v6288, %v5200
        %v6353 = vmul.f32 %v6289, %v5201
        %v6354 = vmul.f32 %v6290, %v5202
        %v6355 = vmul.f32 %v6291, %v5203
        %v6356 = vmul.f32 %v6292, %v5204
        %v6357 = vmul.f32 %v6293, %v5205
        %v6358 = vmul.f32 %v6294, %v5206
        %v6359 = vmul.f32 %v6295, %v5207
        %v6360 = vmul.f32 %v6296, %v5208
        %v6361 = vmul.f32 %v6297, %v5209
        %v6362 = vmul.f32 %v6298, %v5210
        %v6363 = vmul.f32 %v6299, %v5211
        %v6364 = vmul.f32 %v6300, %v5212
        %v6365 = vmul.f32 %v6301, %v5213
        %v6366 = vmul.f32 %v6302, %v5214
        %v6367 = vmul.f32 %v6303, %v5215
        %v6368 = vmul.f32 %v6304, %v5216
        %v6369 = vmul.f32 %v6305, %v5217
        %v6370 = vmul.f32 %v6306, %v5218
        %v6371 = vmul.f32 %v6307, %v5219
        %v6372 = vmul.f32 %v6308, %v5220
        %v6373 = vmul.f32 %v6309, %v5221
        %v6374 = vmul.f32 %v6310, %v5222
        %v6375 = vmul.f32 %v6311, %v5223
        %v6376 = vmul.f32 %v6312, %v5224
        %v6377 = vmul.f32 %v6313, %v5225
        %v6378 = vmul.f32 %v6314, %v5226
        %v6379 = vmul.f32 %v6315, %v5227
        %v6380 = vmul.f32 %v6316, %v5228
        %v6381 = vmul.f32 %v6317, %v5229
        %v6382 = vmul.f32 %v6318, %v5230
        %v6383 = vmul.f32 %v6319, %v5231
        %v6384 = vmul.f32 %v6320, %v5232
        %v6385 = vmul.f32 %v6321, %v5233
        %v6386 = vmul.f32 %v6322, %v5234
        %v6387 = vmul.f32 %v6323, %v5235
        %v6388 = vmul.f32 %v6324, %v5236
        %v6389 = vmul.f32 %v6325, %v5237
        %v6390 = vmul.f32 %v6326, %v5238
        %v6391 = vmul.f32 %v6327, %v5239
        %v6392 = vmul.f32 %v6328, %v5240
        %v6393 = vmul.f32 %v6329, %v5241
        %v6394 = vmul.f32 %v6330, %v5242
        %v6395 = vmul.f32 %v6331, %v5243
        %v6396 = vmul.f32 %v6332, %v5244
        %v6397 = vmul.f32 %v6333, %v5245
        %v6398 = vmul.f32 %v6334, %v5246
        %v6399 = vmul.f32 %v6335, %v5247
        %v6400 = vmul.f32 %v6336, %v5248
        %v6401 = vmul.f32 %v6337, %v5249
        %v6402 = vmul.f32 %v6338, %v5250
        %v6403 = vmul.f32 %v6339, %v5251
        %v6404 = vmul.f32 %v6340, %v5252
        %v6405 = vmul.f32 %v6341, %v5253
        %v6406 = vmul.f32 %v6342, %v5254
        %v6407 = vmul.f32 %v6343, %v5255
        %v6408 = vmul.f32 %v6344, %v5256
        %v6409 = vmul.f32 %v6345, %v5257
        %v6410 = vmul.f32 %v6346, %v5258
        %v6411 = vmul.f32 %v6347, %v5259
        %v6412 = vmul.f32 %v6348, %v5260
        %v6413 = vmul.f32 %v6349, %v5261
        %v6414 = vmul.f32 %v6350, %v5262
        %v6415 = vmul.f32 %v6351, %v5263
        %v6416 = vadd.f32 %v6352, -0.0073733293
        %v6417 = vadd.f32 %v6353, -0.0073733293
        %v6418 = vadd.f32 %v6354, -0.0073733293
        %v6419 = vadd.f32 %v6355, -0.0073733293
        %v6420 = vadd.f32 %v6356, -0.0073733293
        %v6421 = vadd.f32 %v6357, -0.0073733293
        %v6422 = vadd.f32 %v6358, -0.0073733293
        %v6423 = vadd.f32 %v6359, -0.0073733293
        %v6424 = vadd.f32 %v6360, -0.0073733293
        %v6425 = vadd.f32 %v6361, -0.0073733293
        %v6426 = vadd.f32 %v6362, -0.0073733293
        %v6427 = vadd.f32 %v6363, -0.0073733293
        %v6428 = vadd.f32 %v6364, -0.0073733293
        %v6429 = vadd.f32 %v6365, -0.0073733293
        %v6430 = vadd.f32 %v6366, -0.0073733293
        %v6431 = vadd.f32 %v6367, -0.0073733293
        %v6432 = vadd.f32 %v6368, -0.0073733293
        %v6433 = vadd.f32 %v6369, -0.0073733293
        %v6434 = vadd.f32 %v6370, -0.0073733293
        %v6435 = vadd.f32 %v6371, -0.0073733293
        %v6436 = vadd.f32 %v6372, -0.0073733293
        %v6437 = vadd.f32 %v6373, -0.0073733293
        %v6438 = vadd.f32 %v6374, -0.0073733293
        %v6439 = vadd.f32 %v6375, -0.0073733293
        %v6440 = vadd.f32 %v6376, -0.0073733293
        %v6441 = vadd.f32 %v6377, -0.0073733293
        %v6442 = vadd.f32 %v6378, -0.0073733293
        %v6443 = vadd.f32 %v6379, -0.0073733293
        %v6444 = vadd.f32 %v6380, -0.0073733293
        %v6445 = vadd.f32 %v6381, -0.0073733293
        %v6446 = vadd.f32 %v6382, -0.0073733293
        %v6447 = vadd.f32 %v6383, -0.0073733293
        %v6448 = vadd.f32 %v6384, -0.0073733293
        %v6449 = vadd.f32 %v6385, -0.0073733293
        %v6450 = vadd.f32 %v6386, -0.0073733293
        %v6451 = vadd.f32 %v6387, -0.0073733293
        %v6452 = vadd.f32 %v6388, -0.0073733293
        %v6453 = vadd.f32 %v6389, -0.0073733293
        %v6454 = vadd.f32 %v6390, -0.0073733293
        %v6455 = vadd.f32 %v6391, -0.0073733293
        %v6456 = vadd.f32 %v6392, -0.0073733293
        %v6457 = vadd.f32 %v6393, -0.0073733293
        %v6458 = vadd.f32 %v6394, -0.0073733293
        %v6459 = vadd.f32 %v6395, -0.0073733293
        %v6460 = vadd.f32 %v6396, -0.0073733293
        %v6461 = vadd.f32 %v6397, -0.0073733293
        %v6462 = vadd.f32 %v6398, -0.0073733293
        %v6463 = vadd.f32 %v6399, -0.0073733293
        %v6464 = vadd.f32 %v6400, -0.0073733293
        %v6465 = vadd.f32 %v6401, -0.0073733293
        %v6466 = vadd.f32 %v6402, -0.0073733293
        %v6467 = vadd.f32 %v6403, -0.0073733293
        %v6468 = vadd.f32 %v6404, -0.0073733293
        %v6469 = vadd.f32 %v6405, -0.0073733293
        %v6470 = vadd.f32 %v6406, -0.0073733293
        %v6471 = vadd.f32 %v6407, -0.0073733293
        %v6472 = vadd.f32 %v6408, -0.0073733293
        %v6473 = vadd.f32 %v6409, -0.0073733293
        %v6474 = vadd.f32 %v6410, -0.0073733293
        %v6475 = vadd.f32 %v6411, -0.0073733293
        %v6476 = vadd.f32 %v6412, -0.0073733293
        %v6477 = vadd.f32 %v6413, -0.0073733293
        %v6478 = vadd.f32 %v6414, -0.0073733293
        %v6479 = vadd.f32 %v6415, -0.0073733293
        %v6480 = vmul.f32 %v6416, %v5200
        %v6481 = vmul.f32 %v6417, %v5201
        %v6482 = vmul.f32 %v6418, %v5202
        %v6483 = vmul.f32 %v6419, %v5203
        %v6484 = vmul.f32 %v6420, %v5204
        %v6485 = vmul.f32 %v6421, %v5205
        %v6486 = vmul.f32 %v6422, %v5206
        %v6487 = vmul.f32 %v6423, %v5207
        %v6488 = vmul.f32 %v6424, %v5208
        %v6489 = vmul.f32 %v6425, %v5209
        %v6490 = vmul.f32 %v6426, %v5210
        %v6491 = vmul.f32 %v6427, %v5211
        %v6492 = vmul.f32 %v6428, %v5212
        %v6493 = vmul.f32 %v6429, %v5213
        %v6494 = vmul.f32 %v6430, %v5214
        %v6495 = vmul.f32 %v6431, %v5215
        %v6496 = vmul.f32 %v6432, %v5216
        %v6497 = vmul.f32 %v6433, %v5217
        %v6498 = vmul.f32 %v6434, %v5218
        %v6499 = vmul.f32 %v6435, %v5219
        %v6500 = vmul.f32 %v6436, %v5220
        %v6501 = vmul.f32 %v6437, %v5221
        %v6502 = vmul.f32 %v6438, %v5222
        %v6503 = vmul.f32 %v6439, %v5223
        %v6504 = vmul.f32 %v6440, %v5224
        %v6505 = vmul.f32 %v6441, %v5225
        %v6506 = vmul.f32 %v6442, %v5226
        %v6507 = vmul.f32 %v6443, %v5227
        %v6508 = vmul.f32 %v6444, %v5228
        %v6509 = vmul.f32 %v6445, %v5229
        %v6510 = vmul.f32 %v6446, %v5230
        %v6511 = vmul.f32 %v6447, %v5231
        %v6512 = vmul.f32 %v6448, %v5232
        %v6513 = vmul.f32 %v6449, %v5233
        %v6514 = vmul.f32 %v6450, %v5234
        %v6515 = vmul.f32 %v6451, %v5235
        %v6516 = vmul.f32 %v6452, %v5236
        %v6517 = vmul.f32 %v6453, %v5237
        %v6518 = vmul.f32 %v6454, %v5238
        %v6519 = vmul.f32 %v6455, %v5239
        %v6520 = vmul.f32 %v6456, %v5240
        %v6521 = vmul.f32 %v6457, %v5241
        %v6522 = vmul.f32 %v6458, %v5242
        %v6523 = vmul.f32 %v6459, %v5243
        %v6524 = vmul.f32 %v6460, %v5244
        %v6525 = vmul.f32 %v6461, %v5245
        %v6526 = vmul.f32 %v6462, %v5246
        %v6527 = vmul.f32 %v6463, %v5247
        %v6528 = vmul.f32 %v6464, %v5248
        %v6529 = vmul.f32 %v6465, %v5249
        %v6530 = vmul.f32 %v6466, %v5250
        %v6531 = vmul.f32 %v6467, %v5251
        %v6532 = vmul.f32 %v6468, %v5252
        %v6533 = vmul.f32 %v6469, %v5253
        %v6534 = vmul.f32 %v6470, %v5254
        %v6535 = vmul.f32 %v6471, %v5255
        %v6536 = vmul.f32 %v6472, %v5256
        %v6537 = vmul.f32 %v6473, %v5257
        %v6538 = vmul.f32 %v6474, %v5258
        %v6539 = vmul.f32 %v6475, %v5259
        %v6540 = vmul.f32 %v6476, %v5260
        %v6541 = vmul.f32 %v6477, %v5261
        %v6542 = vmul.f32 %v6478, %v5262
        %v6543 = vmul.f32 %v6479, %v5263
        %v6544 = vadd.f32 %v6480, -0.014264739
        %v6545 = vadd.f32 %v6481, -0.014264739
        %v6546 = vadd.f32 %v6482, -0.014264739
        %v6547 = vadd.f32 %v6483, -0.014264739
        %v6548 = vadd.f32 %v6484, -0.014264739
        %v6549 = vadd.f32 %v6485, -0.014264739
        %v6550 = vadd.f32 %v6486, -0.014264739
        %v6551 = vadd.f32 %v6487, -0.014264739
        %v6552 = vadd.f32 %v6488, -0.014264739
        %v6553 = vadd.f32 %v6489, -0.014264739
        %v6554 = vadd.f32 %v6490, -0.014264739
        %v6555 = vadd.f32 %v6491, -0.014264739
        %v6556 = vadd.f32 %v6492, -0.014264739
        %v6557 = vadd.f32 %v6493, -0.014264739
        %v6558 = vadd.f32 %v6494, -0.014264739
        %v6559 = vadd.f32 %v6495, -0.014264739
        %v6560 = vadd.f32 %v6496, -0.014264739
        %v6561 = vadd.f32 %v6497, -0.014264739
        %v6562 = vadd.f32 %v6498, -0.014264739
        %v6563 = vadd.f32 %v6499, -0.014264739
        %v6564 = vadd.f32 %v6500, -0.014264739
        %v6565 = vadd.f32 %v6501, -0.014264739
        %v6566 = vadd.f32 %v6502, -0.014264739
        %v6567 = vadd.f32 %v6503, -0.014264739
        %v6568 = vadd.f32 %v6504, -0.014264739
        %v6569 = vadd.f32 %v6505, -0.014264739
        %v6570 = vadd.f32 %v6506, -0.014264739
        %v6571 = vadd.f32 %v6507, -0.014264739
        %v6572 = vadd.f32 %v6508, -0.014264739
        %v6573 = vadd.f32 %v6509, -0.014264739
        %v6574 = vadd.f32 %v6510, -0.014264739
        %v6575 = vadd.f32 %v6511, -0.014264739
        %v6576 = vadd.f32 %v6512, -0.014264739
        %v6577 = vadd.f32 %v6513, -0.014264739
        %v6578 = vadd.f32 %v6514, -0.014264739
        %v6579 = vadd.f32 %v6515, -0.014264739
        %v6580 = vadd.f32 %v6516, -0.014264739
        %v6581 = vadd.f32 %v6517, -0.014264739
        %v6582 = vadd.f32 %v6518, -0.014264739
        %v6583 = vadd.f32 %v6519, -0.014264739
        %v6584 = vadd.f32 %v6520, -0.014264739
        %v6585 = vadd.f32 %v6521, -0.014264739
        %v6586 = vadd.f32 %v6522, -0.014264739
        %v6587 = vadd.f32 %v6523, -0.014264739
        %v6588 = vadd.f32 %v6524, -0.014264739
        %v6589 = vadd.f32 %v6525, -0.014264739
        %v6590 = vadd.f32 %v6526, -0.014264739
        %v6591 = vadd.f32 %v6527, -0.014264739
        %v6592 = vadd.f32 %v6528, -0.014264739
        %v6593 = vadd.f32 %v6529, -0.014264739
        %v6594 = vadd.f32 %v6530, -0.014264739
        %v6595 = vadd.f32 %v6531, -0.014264739
        %v6596 = vadd.f32 %v6532, -0.014264739
        %v6597 = vadd.f32 %v6533, -0.014264739
        %v6598 = vadd.f32 %v6534, -0.014264739
        %v6599 = vadd.f32 %v6535, -0.014264739
        %v6600 = vadd.f32 %v6536, -0.014264739
        %v6601 = vadd.f32 %v6537, -0.014264739
        %v6602 = vadd.f32 %v6538, -0.014264739
        %v6603 = vadd.f32 %v6539, -0.014264739
        %v6604 = vadd.f32 %v6540, -0.014264739
        %v6605 = vadd.f32 %v6541, -0.014264739
        %v6606 = vadd.f32 %v6542, -0.014264739
        %v6607 = vadd.f32 %v6543, -0.014264739
        %v6608 = vrcp.pop %v6544
        %v6609 = vrcp.pop %v6545
        %v6610 = vrcp.pop %v6546
        %v6611 = vrcp.pop %v6547
        %v6612 = vrcp.pop %v6548
        %v6613 = vrcp.pop %v6549
        %v6614 = vrcp.pop %v6550
        %v6615 = vrcp.pop %v6551
        %v6616 = vrcp.pop %v6552
        %v6617 = vrcp.pop %v6553
        %v6618 = vrcp.pop %v6554
        %v6619 = vrcp.pop %v6555
        %v6620 = vrcp.pop %v6556
        %v6621 = vrcp.pop %v6557
        %v6622 = vrcp.pop %v6558
        %v6623 = vrcp.pop %v6559
        %v6624 = vrcp.pop %v6560
        %v6625 = vrcp.pop %v6561
        %v6626 = vrcp.pop %v6562
        %v6627 = vrcp.pop %v6563
        %v6628 = vrcp.pop %v6564
        %v6629 = vrcp.pop %v6565
        %v6630 = vrcp.pop %v6566
        %v6631 = vrcp.pop %v6567
        %v6632 = vrcp.pop %v6568
        %v6633 = vrcp.pop %v6569
        %v6634 = vrcp.pop %v6570
        %v6635 = vrcp.pop %v6571
        %v6636 = vrcp.pop %v6572
        %v6637 = vrcp.pop %v6573
        %v6638 = vrcp.pop %v6574
        %v6639 = vrcp.pop %v6575
        %v6640 = vrcp.pop %v6576
        %v6641 = vrcp.pop %v6577
        %v6642 = vrcp.pop %v6578
        %v6643 = vrcp.pop %v6579
        %v6644 = vrcp.pop %v6580
        %v6645 = vrcp.pop %v6581
        %v6646 = vrcp.pop %v6582
        %v6647 = vrcp.pop %v6583
        %v6648 = vrcp.pop %v6584
        %v6649 = vrcp.pop %v6585
        %v6650 = vrcp.pop %v6586
        %v6651 = vrcp.pop %v6587
        %v6652 = vrcp.pop %v6588
        %v6653 = vrcp.pop %v6589
        %v6654 = vrcp.pop %v6590
        %v6655 = vrcp.pop %v6591
        %v6656 = vrcp.pop %v6592
        %v6657 = vrcp.pop %v6593
        %v6658 = vrcp.pop %v6594
        %v6659 = vrcp.pop %v6595
        %v6660 = vrcp.pop %v6596
        %v6661 = vrcp.pop %v6597
        %v6662 = vrcp.pop %v6598
        %v6663 = vrcp.pop %v6599
        %v6664 = vrcp.pop %v6600
        %v6665 = vrcp.pop %v6601
        %v6666 = vrcp.pop %v6602
        %v6667 = vrcp.pop %v6603
        %v6668 = vrcp.pop %v6604
        %v6669 = vrcp.pop %v6605
        %v6670 = vrcp.pop %v6606
        %v6671 = vrcp.pop %v6607
        %v6672 = vmul.f32 %v6032, %v6608
        %v6673 = vmul.f32 %v6033, %v6609
        %v6674 = vmul.f32 %v6034, %v6610
        %v6675 = vmul.f32 %v6035, %v6611
        %v6676 = vmul.f32 %v6036, %v6612
        %v6677 = vmul.f32 %v6037, %v6613
        %v6678 = vmul.f32 %v6038, %v6614
        %v6679 = vmul.f32 %v6039, %v6615
        %v6680 = vmul.f32 %v6040, %v6616
        %v6681 = vmul.f32 %v6041, %v6617
        %v6682 = vmul.f32 %v6042, %v6618
        %v6683 = vmul.f32 %v6043, %v6619
        %v6684 = vmul.f32 %v6044, %v6620
        %v6685 = vmul.f32 %v6045, %v6621
        %v6686 = vmul.f32 %v6046, %v6622
        %v6687 = vmul.f32 %v6047, %v6623
        %v6688 = vmul.f32 %v6048, %v6624
        %v6689 = vmul.f32 %v6049, %v6625
        %v6690 = vmul.f32 %v6050, %v6626
        %v6691 = vmul.f32 %v6051, %v6627
        %v6692 = vmul.f32 %v6052, %v6628
        %v6693 = vmul.f32 %v6053, %v6629
        %v6694 = vmul.f32 %v6054, %v6630
        %v6695 = vmul.f32 %v6055, %v6631
        %v6696 = vmul.f32 %v6056, %v6632
        %v6697 = vmul.f32 %v6057, %v6633
        %v6698 = vmul.f32 %v6058, %v6634
        %v6699 = vmul.f32 %v6059, %v6635
        %v6700 = vmul.f32 %v6060, %v6636
        %v6701 = vmul.f32 %v6061, %v6637
        %v6702 = vmul.f32 %v6062, %v6638
        %v6703 = vmul.f32 %v6063, %v6639
        %v6704 = vmul.f32 %v6064, %v6640
        %v6705 = vmul.f32 %v6065, %v6641
        %v6706 = vmul.f32 %v6066, %v6642
        %v6707 = vmul.f32 %v6067, %v6643
        %v6708 = vmul.f32 %v6068, %v6644
        %v6709 = vmul.f32 %v6069, %v6645
        %v6710 = vmul.f32 %v6070, %v6646
        %v6711 = vmul.f32 %v6071, %v6647
        %v6712 = vmul.f32 %v6072, %v6648
        %v6713 = vmul.f32 %v6073, %v6649
        %v6714 = vmul.f32 %v6074, %v6650
        %v6715 = vmul.f32 %v6075, %v6651
        %v6716 = vmul.f32 %v6076, %v6652
        %v6717 = vmul.f32 %v6077, %v6653
        %v6718 = vmul.f32 %v6078, %v6654
        %v6719 = vmul.f32 %v6079, %v6655
        %v6720 = vmul.f32 %v6080, %v6656
        %v6721 = vmul.f32 %v6081, %v6657
        %v6722 = vmul.f32 %v6082, %v6658
        %v6723 = vmul.f32 %v6083, %v6659
        %v6724 = vmul.f32 %v6084, %v6660
        %v6725 = vmul.f32 %v6085, %v6661
        %v6726 = vmul.f32 %v6086, %v6662
        %v6727 = vmul.f32 %v6087, %v6663
        %v6728 = vmul.f32 %v6088, %v6664
        %v6729 = vmul.f32 %v6089, %v6665
        %v6730 = vmul.f32 %v6090, %v6666
        %v6731 = vmul.f32 %v6091, %v6667
        %v6732 = vmul.f32 %v6092, %v6668
        %v6733 = vmul.f32 %v6093, %v6669
        %v6734 = vmul.f32 %v6094, %v6670
        %v6735 = vmul.f32 %v6095, %v6671
        %v6736 = vadd.f32 %v6672, 1.0
        %v6737 = vadd.f32 %v6673, 1.0
        %v6738 = vadd.f32 %v6674, 1.0
        %v6739 = vadd.f32 %v6675, 1.0
        %v6740 = vadd.f32 %v6676, 1.0
        %v6741 = vadd.f32 %v6677, 1.0
        %v6742 = vadd.f32 %v6678, 1.0
        %v6743 = vadd.f32 %v6679, 1.0
        %v6744 = vadd.f32 %v6680, 1.0
        %v6745 = vadd.f32 %v6681, 1.0
        %v6746 = vadd.f32 %v6682, 1.0
        %v6747 = vadd.f32 %v6683, 1.0
        %v6748 = vadd.f32 %v6684, 1.0
        %v6749 = vadd.f32 %v6685, 1.0
        %v6750 = vadd.f32 %v6686, 1.0
        %v6751 = vadd.f32 %v6687, 1.0
        %v6752 = vadd.f32 %v6688, 1.0
        %v6753 = vadd.f32 %v6689, 1.0
        %v6754 = vadd.f32 %v6690, 1.0
        %v6755 = vadd.f32 %v6691, 1.0
        %v6756 = vadd.f32 %v6692, 1.0
        %v6757 = vadd.f32 %v6693, 1.0
        %v6758 = vadd.f32 %v6694, 1.0
        %v6759 = vadd.f32 %v6695, 1.0
        %v6760 = vadd.f32 %v6696, 1.0
        %v6761 = vadd.f32 %v6697, 1.0
        %v6762 = vadd.f32 %v6698, 1.0
        %v6763 = vadd.f32 %v6699, 1.0
        %v6764 = vadd.f32 %v6700, 1.0
        %v6765 = vadd.f32 %v6701, 1.0
        %v6766 = vadd.f32 %v6702, 1.0
        %v6767 = vadd.f32 %v6703, 1.0
        %v6768 = vadd.f32 %v6704, 1.0
        %v6769 = vadd.f32 %v6705, 1.0
        %v6770 = vadd.f32 %v6706, 1.0
        %v6771 = vadd.f32 %v6707, 1.0
        %v6772 = vadd.f32 %v6708, 1.0
        %v6773 = vadd.f32 %v6709, 1.0
        %v6774 = vadd.f32 %v6710, 1.0
        %v6775 = vadd.f32 %v6711, 1.0
        %v6776 = vadd.f32 %v6712, 1.0
        %v6777 = vadd.f32 %v6713, 1.0
        %v6778 = vadd.f32 %v6714, 1.0
        %v6779 = vadd.f32 %v6715, 1.0
        %v6780 = vadd.f32 %v6716, 1.0
        %v6781 = vadd.f32 %v6717, 1.0
        %v6782 = vadd.f32 %v6718, 1.0
        %v6783 = vadd.f32 %v6719, 1.0
        %v6784 = vadd.f32 %v6720, 1.0
        %v6785 = vadd.f32 %v6721, 1.0
        %v6786 = vadd.f32 %v6722, 1.0
        %v6787 = vadd.f32 %v6723, 1.0
        %v6788 = vadd.f32 %v6724, 1.0
        %v6789 = vadd.f32 %v6725, 1.0
        %v6790 = vadd.f32 %v6726, 1.0
        %v6791 = vadd.f32 %v6727, 1.0
        %v6792 = vadd.f32 %v6728, 1.0
        %v6793 = vadd.f32 %v6729, 1.0
        %v6794 = vadd.f32 %v6730, 1.0
        %v6795 = vadd.f32 %v6731, 1.0
        %v6796 = vadd.f32 %v6732, 1.0
        %v6797 = vadd.f32 %v6733, 1.0
        %v6798 = vadd.f32 %v6734, 1.0
        %v6799 = vadd.f32 %v6735, 1.0
        %v6800 = vmul.f32 %v4944, %v6736
        %v6801 = vmul.f32 %v4945, %v6737
        %v6802 = vmul.f32 %v4946, %v6738
        %v6803 = vmul.f32 %v4947, %v6739
        %v6804 = vmul.f32 %v4948, %v6740
        %v6805 = vmul.f32 %v4949, %v6741
        %v6806 = vmul.f32 %v4950, %v6742
        %v6807 = vmul.f32 %v4951, %v6743
        %v6808 = vmul.f32 %v4952, %v6744
        %v6809 = vmul.f32 %v4953, %v6745
        %v6810 = vmul.f32 %v4954, %v6746
        %v6811 = vmul.f32 %v4955, %v6747
        %v6812 = vmul.f32 %v4956, %v6748
        %v6813 = vmul.f32 %v4957, %v6749
        %v6814 = vmul.f32 %v4958, %v6750
        %v6815 = vmul.f32 %v4959, %v6751
        %v6816 = vmul.f32 %v4960, %v6752
        %v6817 = vmul.f32 %v4961, %v6753
        %v6818 = vmul.f32 %v4962, %v6754
        %v6819 = vmul.f32 %v4963, %v6755
        %v6820 = vmul.f32 %v4964, %v6756
        %v6821 = vmul.f32 %v4965, %v6757
        %v6822 = vmul.f32 %v4966, %v6758
        %v6823 = vmul.f32 %v4967, %v6759
        %v6824 = vmul.f32 %v4968, %v6760
        %v6825 = vmul.f32 %v4969, %v6761
        %v6826 = vmul.f32 %v4970, %v6762
        %v6827 = vmul.f32 %v4971, %v6763
        %v6828 = vmul.f32 %v4972, %v6764
        %v6829 = vmul.f32 %v4973, %v6765
        %v6830 = vmul.f32 %v4974, %v6766
        %v6831 = vmul.f32 %v4975, %v6767
        %v6832 = vmul.f32 %v4976, %v6768
        %v6833 = vmul.f32 %v4977, %v6769
        %v6834 = vmul.f32 %v4978, %v6770
        %v6835 = vmul.f32 %v4979, %v6771
        %v6836 = vmul.f32 %v4980, %v6772
        %v6837 = vmul.f32 %v4981, %v6773
        %v6838 = vmul.f32 %v4982, %v6774
        %v6839 = vmul.f32 %v4983, %v6775
        %v6840 = vmul.f32 %v4984, %v6776
        %v6841 = vmul.f32 %v4985, %v6777
        %v6842 = vmul.f32 %v4986, %v6778
        %v6843 = vmul.f32 %v4987, %v6779
        %v6844 = vmul.f32 %v4988, %v6780
        %v6845 = vmul.f32 %v4989, %v6781
        %v6846 = vmul.f32 %v4990, %v6782
        %v6847 = vmul.f32 %v4991, %v6783
        %v6848 = vmul.f32 %v4992, %v6784
        %v6849 = vmul.f32 %v4993, %v6785
        %v6850 = vmul.f32 %v4994, %v6786
        %v6851 = vmul.f32 %v4995, %v6787
        %v6852 = vmul.f32 %v4996, %v6788
        %v6853 = vmul.f32 %v4997, %v6789
        %v6854 = vmul.f32 %v4998, %v6790
        %v6855 = vmul.f32 %v4999, %v6791
        %v6856 = vmul.f32 %v5000, %v6792
        %v6857 = vmul.f32 %v5001, %v6793
        %v6858 = vmul.f32 %v5002, %v6794
        %v6859 = vmul.f32 %v5003, %v6795
        %v6860 = vmul.f32 %v5004, %v6796
        %v6861 = vmul.f32 %v5005, %v6797
        %v6862 = vmul.f32 %v5006, %v6798
        %v6863 = vmul.f32 %v5007, %v6799
        %v6864 = vpack.c.bf16 %v6804, %v6800
        %v6865 = vpack.c.bf16 %v6805, %v6801
        %v6866 = vpack.c.bf16 %v6806, %v6802
        %v6867 = vpack.c.bf16 %v6807, %v6803
        %v6868 = vpack.c.bf16 %v6812, %v6808
        %v6869 = vpack.c.bf16 %v6813, %v6809
        %v6870 = vpack.c.bf16 %v6814, %v6810
        %v6871 = vpack.c.bf16 %v6815, %v6811
        %v6872 = vpack.c.bf16 %v6820, %v6816
        %v6873 = vpack.c.bf16 %v6821, %v6817
        %v6874 = vpack.c.bf16 %v6822, %v6818
        %v6875 = vpack.c.bf16 %v6823, %v6819
        %v6876 = vpack.c.bf16 %v6828, %v6824
        %v6877 = vpack.c.bf16 %v6829, %v6825
        %v6878 = vpack.c.bf16 %v6830, %v6826
        %v6879 = vpack.c.bf16 %v6831, %v6827
        %v6880 = vpack.c.bf16 %v6836, %v6832
        %v6881 = vpack.c.bf16 %v6837, %v6833
        %v6882 = vpack.c.bf16 %v6838, %v6834
        %v6883 = vpack.c.bf16 %v6839, %v6835
        %v6884 = vpack.c.bf16 %v6844, %v6840
        %v6885 = vpack.c.bf16 %v6845, %v6841
        %v6886 = vpack.c.bf16 %v6846, %v6842
        %v6887 = vpack.c.bf16 %v6847, %v6843
        %v6888 = vpack.c.bf16 %v6852, %v6848
        %v6889 = vpack.c.bf16 %v6853, %v6849
        %v6890 = vpack.c.bf16 %v6854, %v6850
        %v6891 = vpack.c.bf16 %v6855, %v6851
        %v6892 = vpack.c.bf16 %v6860, %v6856
        %v6893 = vpack.c.bf16 %v6861, %v6857
        %v6894 = vpack.c.bf16 %v6862, %v6858
        %v6895 = vpack.c.bf16 %v6863, %v6859
        %v6896 = vld [vmem:[#allocation10] sm:$0xf]
        %v6897 = vld [vmem:[#allocation10 + $0x4] sm:$0xf]
        %v6898 = vld [vmem:[#allocation10 + $0x8] sm:$0xf]
        %v6899 = vld [vmem:[#allocation10 + $0xc] sm:$0xf]
        %v6900 = vld [vmem:[#allocation10 + $0x10] sm:$0xf]
        %v6901 = vld [vmem:[#allocation10 + $0x14] sm:$0xf]
        %v6902 = vld [vmem:[#allocation10 + $0x18] sm:$0xf]
        %v6903 = vld [vmem:[#allocation10 + $0x1c] sm:$0xf]
        %v6904 = vld [vmem:[#allocation10 + $0x20] sm:$0xf]
        %v6905 = vld [vmem:[#allocation10 + $0x24] sm:$0xf]
        %v6906 = vld [vmem:[#allocation10 + $0x28] sm:$0xf]
        %v6907 = vld [vmem:[#allocation10 + $0x2c] sm:$0xf]
        %v6908 = vld [vmem:[#allocation10 + $0x30] sm:$0xf]
        %v6909 = vld [vmem:[#allocation10 + $0x34] sm:$0xf]
        %v6910 = vld [vmem:[#allocation10 + $0x38] sm:$0xf]
        %v6911 = vld [vmem:[#allocation10 + $0x3c] sm:$0xf]
        %v6912 = vld [vmem:[#allocation10 + $0x40] sm:$0xf]
        %v6913 = vld [vmem:[#allocation10 + $0x44] sm:$0xf]
        %v6914 = vld [vmem:[#allocation10 + $0x48] sm:$0xf]
        %v6915 = vld [vmem:[#allocation10 + $0x4c] sm:$0xf]
        %v6916 = vld [vmem:[#allocation10 + $0x50] sm:$0xf]
        %v6917 = vld [vmem:[#allocation10 + $0x54] sm:$0xf]
        %v6918 = vld [vmem:[#allocation10 + $0x58] sm:$0xf]
        %v6919 = vld [vmem:[#allocation10 + $0x5c] sm:$0xf]
        %v6920 = vld [vmem:[#allocation10 + $0x60] sm:$0xf]
        %v6921 = vld [vmem:[#allocation10 + $0x64] sm:$0xf]
        %v6922 = vld [vmem:[#allocation10 + $0x68] sm:$0xf]
        %v6923 = vld [vmem:[#allocation10 + $0x6c] sm:$0xf]
        %v6924 = vld [vmem:[#allocation10 + $0x70] sm:$0xf]
        %v6925 = vld [vmem:[#allocation10 + $0x74] sm:$0xf]
        %v6926 = vld [vmem:[#allocation10 + $0x78] sm:$0xf]
        %v6927 = vld [vmem:[#allocation10 + $0x7c] sm:$0xf]
        %v6928 = vld [vmem:[#allocation10 + $0x80] sm:$0xf]
        %v6929 = vld [vmem:[#allocation10 + $0x84] sm:$0xf]
        %v6930 = vld [vmem:[#allocation10 + $0x88] sm:$0xf]
        %v6931 = vld [vmem:[#allocation10 + $0x8c] sm:$0xf]
        %v6932 = vld [vmem:[#allocation10 + $0x90] sm:$0xf]
        %v6933 = vld [vmem:[#allocation10 + $0x94] sm:$0xf]
        %v6934 = vld [vmem:[#allocation10 + $0x98] sm:$0xf]
        %v6935 = vld [vmem:[#allocation10 + $0x9c] sm:$0xf]
        %v6936 = vld [vmem:[#allocation10 + $0xa0] sm:$0xf]
        %v6937 = vld [vmem:[#allocation10 + $0xa4] sm:$0xf]
        %v6938 = vld [vmem:[#allocation10 + $0xa8] sm:$0xf]
        %v6939 = vld [vmem:[#allocation10 + $0xac] sm:$0xf]
        %v6940 = vld [vmem:[#allocation10 + $0xb0] sm:$0xf]
        %v6941 = vld [vmem:[#allocation10 + $0xb4] sm:$0xf]
        %v6942 = vld [vmem:[#allocation10 + $0xb8] sm:$0xf]
        %v6943 = vld [vmem:[#allocation10 + $0xbc] sm:$0xf]
        %v6944 = vld [vmem:[#allocation10 + $0xc0] sm:$0xf]
        %v6945 = vld [vmem:[#allocation10 + $0xc4] sm:$0xf]
        %v6946 = vld [vmem:[#allocation10 + $0xc8] sm:$0xf]
        %v6947 = vld [vmem:[#allocation10 + $0xcc] sm:$0xf]
        %v6948 = vld [vmem:[#allocation10 + $0xd0] sm:$0xf]
        %v6949 = vld [vmem:[#allocation10 + $0xd4] sm:$0xf]
        %v6950 = vld [vmem:[#allocation10 + $0xd8] sm:$0xf]
        %v6951 = vld [vmem:[#allocation10 + $0xdc] sm:$0xf]
        %v6952 = vld [vmem:[#allocation10 + $0xe0] sm:$0xf]
        %v6953 = vld [vmem:[#allocation10 + $0xe4] sm:$0xf]
        %v6954 = vld [vmem:[#allocation10 + $0xe8] sm:$0xf]
        %v6955 = vld [vmem:[#allocation10 + $0xec] sm:$0xf]
        %v6956 = vld [vmem:[#allocation10 + $0xf0] sm:$0xf]
        %v6957 = vld [vmem:[#allocation10 + $0xf4] sm:$0xf]
        %v6958 = vld [vmem:[#allocation10 + $0xf8] sm:$0xf]
        %v6959 = vld [vmem:[#allocation10 + $0xfc] sm:$0xf]
        %v6960 = vld [vmem:[%s11] sm:$0x1]
        %v6962 = vlaneseq
        %v6963 = vshrl.u32 %v6962, 7
        %v6964 = vsub.s32 0, %v6963
        %v6965 = vrot.slane %v6960, %v6964
        %v7031 = vunpack.c.l.b16 %v6896
        %v7032 = vunpack.c.l.b16 %v6897
        %v7033 = vunpack.c.l.b16 %v6898
        %v7034 = vunpack.c.l.b16 %v6899
        %v7035 = vunpack.c.l.b16 %v6900
        %v7036 = vunpack.c.l.b16 %v6901
        %v7037 = vunpack.c.l.b16 %v6902
        %v7038 = vunpack.c.l.b16 %v6903
        %v7039 = vunpack.c.l.b16 %v6904
        %v7040 = vunpack.c.l.b16 %v6905
        %v7041 = vunpack.c.l.b16 %v6906
        %v7042 = vunpack.c.l.b16 %v6907
        %v7043 = vunpack.c.l.b16 %v6908
        %v7044 = vunpack.c.l.b16 %v6909
        %v7045 = vunpack.c.l.b16 %v6910
        %v7046 = vunpack.c.l.b16 %v6911
        %v7047 = vunpack.c.l.b16 %v6912
        %v7048 = vunpack.c.l.b16 %v6913
        %v7049 = vunpack.c.l.b16 %v6914
        %v7050 = vunpack.c.l.b16 %v6915
        %v7051 = vunpack.c.l.b16 %v6916
        %v7052 = vunpack.c.l.b16 %v6917
        %v7053 = vunpack.c.l.b16 %v6918
        %v7054 = vunpack.c.l.b16 %v6919
        %v7055 = vunpack.c.l.b16 %v6920
        %v7056 = vunpack.c.l.b16 %v6921
        %v7057 = vunpack.c.l.b16 %v6922
        %v7058 = vunpack.c.l.b16 %v6923
        %v7059 = vunpack.c.l.b16 %v6924
        %v7060 = vunpack.c.l.b16 %v6925
        %v7061 = vunpack.c.l.b16 %v6926
        %v7062 = vunpack.c.l.b16 %v6927
        %v7063 = vunpack.c.l.b16 %v6928
        %v7064 = vunpack.c.l.b16 %v6929
        %v7065 = vunpack.c.l.b16 %v6930
        %v7066 = vunpack.c.l.b16 %v6931
        %v7067 = vunpack.c.l.b16 %v6932
        %v7068 = vunpack.c.l.b16 %v6933
        %v7069 = vunpack.c.l.b16 %v6934
        %v7070 = vunpack.c.l.b16 %v6935
        %v7071 = vunpack.c.l.b16 %v6936
        %v7072 = vunpack.c.l.b16 %v6937
        %v7073 = vunpack.c.l.b16 %v6938
        %v7074 = vunpack.c.l.b16 %v6939
        %v7075 = vunpack.c.l.b16 %v6940
        %v7076 = vunpack.c.l.b16 %v6941
        %v7077 = vunpack.c.l.b16 %v6942
        %v7078 = vunpack.c.l.b16 %v6943
        %v7079 = vunpack.c.l.b16 %v6944
        %v7080 = vunpack.c.l.b16 %v6945
        %v7081 = vunpack.c.l.b16 %v6946
        %v7082 = vunpack.c.l.b16 %v6947
        %v7083 = vunpack.c.l.b16 %v6948
        %v7084 = vunpack.c.l.b16 %v6949
        %v7085 = vunpack.c.l.b16 %v6950
        %v7086 = vunpack.c.l.b16 %v6951
        %v7087 = vunpack.c.l.b16 %v6952
        %v7088 = vunpack.c.l.b16 %v6953
        %v7089 = vunpack.c.l.b16 %v6954
        %v7090 = vunpack.c.l.b16 %v6955
        %v7091 = vunpack.c.l.b16 %v6956
        %v7092 = vunpack.c.l.b16 %v6957
        %v7093 = vunpack.c.l.b16 %v6958
        %v7094 = vunpack.c.l.b16 %v6959
        %v7095 = vpack.c.b16 %v7032, %v7031
        %v7096 = vpack.c.b16 %v7034, %v7033
        %v7097 = vpack.c.b16 %v7036, %v7035
        %v7098 = vpack.c.b16 %v7038, %v7037
        %v7099 = vpack.c.b16 %v7040, %v7039
        %v7100 = vpack.c.b16 %v7042, %v7041
        %v7101 = vpack.c.b16 %v7044, %v7043
        %v7102 = vpack.c.b16 %v7046, %v7045
        %v7103 = vpack.c.b16 %v7048, %v7047
        %v7104 = vpack.c.b16 %v7050, %v7049
        %v7105 = vpack.c.b16 %v7052, %v7051
        %v7106 = vpack.c.b16 %v7054, %v7053
        %v7107 = vpack.c.b16 %v7056, %v7055
        %v7108 = vpack.c.b16 %v7058, %v7057
        %v7109 = vpack.c.b16 %v7060, %v7059
        %v7110 = vpack.c.b16 %v7062, %v7061
        %v7111 = vpack.c.b16 %v7064, %v7063
        %v7112 = vpack.c.b16 %v7066, %v7065
        %v7113 = vpack.c.b16 %v7068, %v7067
        %v7114 = vpack.c.b16 %v7070, %v7069
        %v7115 = vpack.c.b16 %v7072, %v7071
        %v7116 = vpack.c.b16 %v7074, %v7073
        %v7117 = vpack.c.b16 %v7076, %v7075
        %v7118 = vpack.c.b16 %v7078, %v7077
        %v7119 = vpack.c.b16 %v7080, %v7079
        %v7120 = vpack.c.b16 %v7082, %v7081
        %v7121 = vpack.c.b16 %v7084, %v7083
        %v7122 = vpack.c.b16 %v7086, %v7085
        %v7123 = vpack.c.b16 %v7088, %v7087
        %v7124 = vpack.c.b16 %v7090, %v7089
        %v7125 = vpack.c.b16 %v7092, %v7091
        %v7126 = vpack.c.b16 %v7094, %v7093
        %7159 = vmatprep.subr.bf16.mxu0 0
        %7160 = vmatpush1.bf16.msra.mxu0 %v7095
        %7161 = vmatprep.subr.bf16.mxu0 0
        %7162 = vmatpush1.bf16.msra.mxu0 %v7096
        %7163 = vmatprep.subr.bf16.mxu0 0
        %7164 = vmatpush1.bf16.msra.mxu0 %v7097
        %7165 = vmatprep.subr.bf16.mxu0 0
        %7166 = vmatpush1.bf16.msra.mxu0 %v7098
        %7167 = vmatprep.subr.bf16.mxu0 0
        %7168 = vmatpush1.bf16.msra.mxu0 %v7099
        %7169 = vmatprep.subr.bf16.mxu0 0
        %7170 = vmatpush1.bf16.msra.mxu0 %v7100
        %7171 = vmatprep.subr.bf16.mxu0 0
        %7172 = vmatpush1.bf16.msra.mxu0 %v7101
        %7173 = vmatprep.subr.bf16.mxu0 0
        %7174 = vmatpush1.bf16.msra.mxu0 %v7102
        %7175 = vmatprep.subr.bf16.mxu0 0
        %7176 = vmatpush1.bf16.msra.mxu0 %v7103
        %7177 = vmatprep.subr.bf16.mxu0 0
        %7178 = vmatpush1.bf16.msra.mxu0 %v7104
        %7179 = vmatprep.subr.bf16.mxu0 0
        %7180 = vmatpush1.bf16.msra.mxu0 %v7105
        %7181 = vmatprep.subr.bf16.mxu0 0
        %7182 = vmatpush1.bf16.msra.mxu0 %v7106
        %7183 = vmatprep.subr.bf16.mxu0 0
        %7184 = vmatpush1.bf16.msra.mxu0 %v7107
        %7185 = vmatprep.subr.bf16.mxu0 0
        %7186 = vmatpush1.bf16.msra.mxu0 %v7108
        %7187 = vmatprep.subr.bf16.mxu0 0
        %7188 = vmatpush1.bf16.msra.mxu0 %v7109
        %7189 = vmatprep.subr.bf16.mxu0 0
        %7190 = vmatpush1.bf16.msra.mxu0 %v7110
        %7191 = vmatprep.mubr.bf16.mxu0 %v6865
        %7192 = vmatmul.mubr.bf16.gmra.mrb[0].mxu0 %v6864
        %v7193 = vpop.f32.mrb[0].mxu0
        %v7194 = vadd.f32 %v6965, %v7193
        %v7195 = vpop.f32.mrb[0].mxu0
        %v7196 = vpop.f32.mrb[0].mxu0
        %v7197 = vadd.f32 %v6965, %v7196
        %v7198 = vpop.f32.mrb[0].mxu0
        %7199 = vmatprep.mubr.bf16.mxu0 %v6869
        %7200 = vmatmul.mubr.bf16.gmra.mrb[0].mxu0 %v6868
        %v7201 = vpop.f32.mrb[0].mxu0
        %v7202 = vadd.f32 %v6965, %v7201
        %v7203 = vpop.f32.mrb[0].mxu0
        %v7204 = vpop.f32.mrb[0].mxu0
        %v7205 = vadd.f32 %v6965, %v7204
        %v7206 = vpop.f32.mrb[0].mxu0
        %7207 = vmatprep.mubr.bf16.mxu0 %v6873
        %7208 = vmatmul.mubr.bf16.gmra.mrb[0].mxu0 %v6872
        %v7209 = vpop.f32.mrb[0].mxu0
        %v7210 = vadd.f32 %v6965, %v7209
        %v7211 = vpop.f32.mrb[0].mxu0
        %v7212 = vpop.f32.mrb[0].mxu0
        %v7213 = vadd.f32 %v6965, %v7212
        %v7214 = vpop.f32.mrb[0].mxu0
        %7215 = vmatprep.mubr.bf16.mxu0 %v6877
        %7216 = vmatmul.mubr.bf16.gmra.mrb[0].mxu0 %v6876
        %v7217 = vpop.f32.mrb[0].mxu0
        %v7218 = vadd.f32 %v6965, %v7217
        %v7219 = vpop.f32.mrb[0].mxu0
        %v7220 = vpop.f32.mrb[0].mxu0
        %v7221 = vadd.f32 %v6965, %v7220
        %v7222 = vpop.f32.mrb[0].mxu0
        %7223 = vmatprep.mubr.bf16.mxu0 %v6881
        %7224 = vmatmul.mubr.bf16.gmra.mrb[0].mxu0 %v6880
        %v7225 = vpop.f32.mrb[0].mxu0
        %v7226 = vadd.f32 %v6965, %v7225
        %v7227 = vpop.f32.mrb[0].mxu0
        %v7228 = vpop.f32.mrb[0].mxu0
        %v7229 = vadd.f32 %v6965, %v7228
        %v7230 = vpop.f32.mrb[0].mxu0
        %7231 = vmatprep.mubr.bf16.mxu0 %v6885
        %7232 = vmatmul.mubr.bf16.gmra.mrb[0].mxu0 %v6884
        %v7233 = vpop.f32.mrb[0].mxu0
        %v7234 = vadd.f32 %v6965, %v7233
        %v7235 = vpop.f32.mrb[0].mxu0
        %v7236 = vpop.f32.mrb[0].mxu0
        %v7237 = vadd.f32 %v6965, %v7236
        %v7238 = vpop.f32.mrb[0].mxu0
        %7239 = vmatprep.mubr.bf16.mxu0 %v6889
        %7240 = vmatmul.mubr.bf16.gmra.mrb[0].mxu0 %v6888
        %v7241 = vpop.f32.mrb[0].mxu0
        %v7242 = vadd.f32 %v6965, %v7241
        %v7243 = vpop.f32.mrb[0].mxu0
        %v7244 = vpop.f32.mrb[0].mxu0
        %v7245 = vadd.f32 %v6965, %v7244
        %v7246 = vpop.f32.mrb[0].mxu0
        %7247 = vmatprep.mubr.bf16.mxu0 %v6893
        %7248 = vmatmul.mubr.bf16.gmra.mrb[0].mxu0 %v6892
        %v7249 = vpop.f32.mrb[0].mxu0
        %v7250 = vadd.f32 %v6965, %v7249
        %v7251 = vpop.f32.mrb[0].mxu0
        %v7252 = vpop.f32.mrb[0].mxu0
        %v7253 = vadd.f32 %v6965, %v7252
        %v7254 = vpop.f32.mrb[0].mxu0
        %7255 = vdwg.mxu0
        %7256 = vmatprep.subr.bf16.mxu0 0
        %7257 = vmatpush1.bf16.msra.mxu0 %v7111
        %7258 = vmatprep.subr.bf16.mxu0 0
        %7259 = vmatpush1.bf16.msra.mxu0 %v7112
        %7260 = vmatprep.subr.bf16.mxu0 0
        %7261 = vmatpush1.bf16.msra.mxu0 %v7113
        %7262 = vmatprep.subr.bf16.mxu0 0
        %7263 = vmatpush1.bf16.msra.mxu0 %v7114
        %7264 = vmatprep.subr.bf16.mxu0 0
        %7265 = vmatpush1.bf16.msra.mxu0 %v7115
        %7266 = vmatprep.subr.bf16.mxu0 0
        %7267 = vmatpush1.bf16.msra.mxu0 %v7116
        %7268 = vmatprep.subr.bf16.mxu0 0
        %7269 = vmatpush1.bf16.msra.mxu0 %v7117
        %7270 = vmatprep.subr.bf16.mxu0 0
        %7271 = vmatpush1.bf16.msra.mxu0 %v7118
        %7272 = vmatprep.subr.bf16.mxu0 0
        %7273 = vmatpush1.bf16.msra.mxu0 %v7119
        %7274 = vmatprep.subr.bf16.mxu0 0
        %7275 = vmatpush1.bf16.msra.mxu0 %v7120
        %7276 = vmatprep.subr.bf16.mxu0 0
        %7277 = vmatpush1.bf16.msra.mxu0 %v7121
        %7278 = vmatprep.subr.bf16.mxu0 0
        %7279 = vmatpush1.bf16.msra.mxu0 %v7122
        %7280 = vmatprep.subr.bf16.mxu0 0
        %7281 = vmatpush1.bf16.msra.mxu0 %v7123
        %7282 = vmatprep.subr.bf16.mxu0 0
        %7283 = vmatpush1.bf16.msra.mxu0 %v7124
        %7284 = vmatprep.subr.bf16.mxu0 0
        %7285 = vmatpush1.bf16.msra.mxu0 %v7125
        %7286 = vmatprep.subr.bf16.mxu0 0
        %7287 = vmatpush1.bf16.msra.mxu0 %v7126
        %7288 = vmatprep.mubr.bf16.mxu0 %v6867
        %7289 = vmatmul.mubr.bf16.gmra.mrb[0].mxu0 %v6866
        %v7290 = vpop.f32.mrb[0].mxu0
        %v7291 = vadd.f32 %v7194, %v7290
        %v7292 = vpop.f32.mrb[0].mxu0
        %v7293 = vpop.f32.mrb[0].mxu0
        %v7294 = vadd.f32 %v7197, %v7293
        %v7295 = vpop.f32.mrb[0].mxu0
        %7296 = vmatprep.mubr.bf16.mxu0 %v6871
        %7297 = vmatmul.mubr.bf16.gmra.mrb[0].mxu0 %v6870
        %v7298 = vpop.f32.mrb[0].mxu0
        %v7299 = vadd.f32 %v7202, %v7298
        %v7300 = vpop.f32.mrb[0].mxu0
        %v7301 = vpop.f32.mrb[0].mxu0
        %v7302 = vadd.f32 %v7205, %v7301
        %v7303 = vpop.f32.mrb[0].mxu0
        %7304 = vmatprep.mubr.bf16.mxu0 %v6875
        %7305 = vmatmul.mubr.bf16.gmra.mrb[0].mxu0 %v6874
        %v7306 = vpop.f32.mrb[0].mxu0
        %v7307 = vadd.f32 %v7210, %v7306
        %v7308 = vpop.f32.mrb[0].mxu0
        %v7309 = vpop.f32.mrb[0].mxu0
        %v7310 = vadd.f32 %v7213, %v7309
        %v7311 = vpop.f32.mrb[0].mxu0
        %7312 = vmatprep.mubr.bf16.mxu0 %v6879
        %7313 = vmatmul.mubr.bf16.gmra.mrb[0].mxu0 %v6878
        %v7314 = vpop.f32.mrb[0].mxu0
        %v7315 = vadd.f32 %v7218, %v7314
        %v7316 = vpop.f32.mrb[0].mxu0
        %v7317 = vpop.f32.mrb[0].mxu0
        %v7318 = vadd.f32 %v7221, %v7317
        %v7319 = vpop.f32.mrb[0].mxu0
        %7320 = vmatprep.mubr.bf16.mxu0 %v6883
        %7321 = vmatmul.mubr.bf16.gmra.mrb[0].mxu0 %v6882
        %v7322 = vpop.f32.mrb[0].mxu0
        %v7323 = vadd.f32 %v7226, %v7322
        %v7324 = vpop.f32.mrb[0].mxu0
        %v7325 = vpop.f32.mrb[0].mxu0
        %v7326 = vadd.f32 %v7229, %v7325
        %v7327 = vpop.f32.mrb[0].mxu0
        %7328 = vmatprep.mubr.bf16.mxu0 %v6887
        %7329 = vmatmul.mubr.bf16.gmra.mrb[0].mxu0 %v6886
        %v7330 = vpop.f32.mrb[0].mxu0
        %v7331 = vadd.f32 %v7234, %v7330
        %v7332 = vpop.f32.mrb[0].mxu0
        %v7333 = vpop.f32.mrb[0].mxu0
        %v7334 = vadd.f32 %v7237, %v7333
        %v7335 = vpop.f32.mrb[0].mxu0
        %7336 = vmatprep.mubr.bf16.mxu0 %v6891
        %7337 = vmatmul.mubr.bf16.gmra.mrb[0].mxu0 %v6890
        %v7338 = vpop.f32.mrb[0].mxu0
        %v7339 = vadd.f32 %v7242, %v7338
        %v7340 = vpop.f32.mrb[0].mxu0
        %v7341 = vpop.f32.mrb[0].mxu0
        %v7342 = vadd.f32 %v7245, %v7341
        %v7343 = vpop.f32.mrb[0].mxu0
        %7344 = vmatprep.mubr.bf16.mxu0 %v6895
        %7345 = vmatmul.mubr.bf16.gmra.mrb[0].mxu0 %v6894
        %v7346 = vpop.f32.mrb[0].mxu0
        %v7347 = vadd.f32 %v7250, %v7346
        %v7348 = vpop.f32.mrb[0].mxu0
        %v7349 = vpop.f32.mrb[0].mxu0
        %v7350 = vadd.f32 %v7253, %v7349
        %v7351 = vpop.f32.mrb[0].mxu0
        %7352 = vdwg.mxu0
        %v7353 = vadd.f32 %v4258, %v7291
        %v7354 = vadd.f32 %v4259, %v7294
        %v7355 = vadd.f32 %v4260, %v7299
        %v7356 = vadd.f32 %v4261, %v7302
        %v7357 = vadd.f32 %v4262, %v7307
        %v7358 = vadd.f32 %v4263, %v7310
        %v7359 = vadd.f32 %v4264, %v7315
        %v7360 = vadd.f32 %v4265, %v7318
        %v7361 = vadd.f32 %v4266, %v7323
        %v7362 = vadd.f32 %v4267, %v7326
        %v7363 = vadd.f32 %v4268, %v7331
        %v7364 = vadd.f32 %v4269, %v7334
        %v7365 = vadd.f32 %v4270, %v7339
        %v7366 = vadd.f32 %v4271, %v7342
        %v7367 = vadd.f32 %v4272, %v7347
        %v7368 = vadd.f32 %v4273, %v7350
        %7369 = vst [vmem:[%s490] sm:$0xff] %v7353
        %7370 = vst [vmem:[%s490 + $0x8] sm:$0xff] %v7354
        %7371 = vst [vmem:[%s490 + $0x10] sm:$0xff] %v7355
        %7372 = vst [vmem:[%s490 + $0x18] sm:$0xff] %v7356
        %7373 = vst [vmem:[%s490 + $0x20] sm:$0xff] %v7357
        %7374 = vst [vmem:[%s490 + $0x28] sm:$0xff] %v7358
        %7375 = vst [vmem:[%s490 + $0x30] sm:$0xff] %v7359
        %7376 = vst [vmem:[%s490 + $0x38] sm:$0xff] %v7360
        %7377 = vst [vmem:[%s490 + $0x40] sm:$0xff] %v7361
        %7378 = vst [vmem:[%s490 + $0x48] sm:$0xff] %v7362
        %7379 = vst [vmem:[%s490 + $0x50] sm:$0xff] %v7363
        %7380 = vst [vmem:[%s490 + $0x58] sm:$0xff] %v7364
        %7381 = vst [vmem:[%s490 + $0x60] sm:$0xff] %v7365
        %7382 = vst [vmem:[%s490 + $0x68] sm:$0xff] %v7366
        %7383 = vst [vmem:[%s490 + $0x70] sm:$0xff] %v7367
        %7384 = vst [vmem:[%s490 + $0x78] sm:$0xff] %v7368
        %s7385 = sand.u32 %s296, 1
        %s7386 = scalar_lea.sflag [#allocation4], %s7385
        %s7387 = sand.u32 %s296, 1
        %s7388 = smul.addr %s7387, 128
        %s7389 = scalar_lea.vmem [#allocation11], %s7388
        // Predicated region
        $region89: #{tpu_custom_call.1} parent=67 // pred_check
          %p7390 = pneg %p306
        $region90: #{tpu_custom_call.1} parent=67 // pred_check_branch
          %7392 = sbr.rel (%p7390) target = $region92
        $region91: #{tpu_custom_call.1} parent=67 // pred_region
          %s7393 = smul.u32 4, %s31
          %s7395 = ssub.s32 2048, 2048
          %7396 = vsyncadd %s7386, %s7395
          %s7397 = smul.addr %s7393, 4
          %s7398 = smul.addr %s7397, 128
          %s7399 = scalar_lea.hbm %s12, %s7398
          %s7400 = sshll.u32 %s7389, 4
          %s7401 = int_to_ptr.vmem [resolvable:$true] %s7400
          %7406 = dma.vmem_to_hbm [thread:$0]  %s7401, 2048, %s7399, %s7386, 128, 128, 8
        $region92: #{tpu_custom_call.1} parent=67 // pred_fallthru
          _
      $region68: #{tpu_custom_call.1} parent=5 // pred_fallthru
        _
      %p7407 = scmp.le.s32.totalorder 2, %s26
      // Predicated region
      $region93: #{tpu_custom_call.1} parent=5 // pred_check
        %p7408 = pneg %p7407
      $region94: #{tpu_custom_call.1} parent=5 // pred_check_branch
        %7410 = sbr.rel (%p7408) target = $region96
      $region95: #{tpu_custom_call.1} parent=5 // pred_region
        %s7411 = ssub.s32 %s26, 2
        // Predicated region
        $region97: #{tpu_custom_call.1} parent=95 // pred_check
          %p7412 = pneg %p312
        $region98: #{tpu_custom_call.1} parent=95 // pred_check_branch
          %7414 = sbr.rel (%p7412) target = $region100
        $region99: #{tpu_custom_call.1} parent=95 // pred_region
          %s7415 = sand.u32 %s297, 1
          %s7416 = scalar_lea.sflag [#allocation4], %s7415
          %s7417 = sand.u32 %s297, 1
          %s7418 = smul.addr %s7417, 128
          %s7419 = scalar_lea.vmem [#allocation11], %s7418
          %7420 = dma.done %s7416, 2048
        $region100: #{tpu_custom_call.1} parent=95 // pred_fallthru
          _
      $region96: #{tpu_custom_call.1} parent=5 // pred_fallthru
        _
    $region6: #{tpu_custom_call.1} parent=1 // loop_footer
      %s30 = sadd.s32 1, %s26
    $region7: #{tpu_custom_call.1} parent=1 // loop_footer_branch
      %25 = sbr.rel target = $region3
    $region8: #{tpu_custom_call.1} parent=1 // loop_exit
      _
    %7421 = vsyncpa [#allocation3], 1
    %s7422 = scalar_lea.sflag [#allocation3], 1
    %7423 = vsyncpa %s7422, 1
    %7424 = vsyncpa [#allocation6], 1
    %7425 = vsyncpa [#allocation9], 1
    %7426 = vsyncpa [#allocation4], 1
    %s7427 = scalar_lea.sflag [#allocation4], 1
    %7428 = vsyncpa %s7427, 1

</llo_original>
